<compile_context>
chip_gen: v7x
topology: tpu7x:2x2x1
jax: 0.10.0
libtpu: 0.0.40
codegen_flags: <defaults>
</compile_context>

<pallas_src>
import functools
import math

import jax
import jax.numpy as jnp
from jax.experimental import pallas as pl
from jax.experimental.pallas import tpu as pltpu

_BN_EPS = 1e-5
_INV_SQRT2 = 1.0 / math.sqrt(2.0)
_LANE = 128
_VMEM_LIMIT = 32 * 1024 * 1024   # safe scoped-VMEM ceiling on v5e/v6e/v7x


def _round_up(v, m=_LANE):
    return ((v + m - 1) // m) * m


def _choose_tm(m):
    # Largest M tile that divides M (bigger tiles amortize per-step overhead);
    # fall back to a single full-extent block for tiny / odd M.
    for tm in (512, 256, 128):
        if m >= tm and m % tm == 0:
            return tm
    return m


# ---------------------------------------------------------------------------
# Kernel A: tiled matmul (bf16 x bf16 -> f32) + per-channel sum / sum-of-squares
# ---------------------------------------------------------------------------
def _matmul_stats_kernel(x_ref, w_ref, y_ref, s_ref, ss_ref):
    acc = jnp.dot(x_ref[...], w_ref[...], preferred_element_type=jnp.float32)
    y_ref[...] = acc

    @pl.when(pl.program_id(0) == 0)
    def _():
        s_ref[...] = jnp.zeros_like(s_ref)
        ss_ref[...] = jnp.zeros_like(ss_ref)

    s_ref[...] += jnp.sum(acc, axis=0, keepdims=True)
    ss_ref[...] += jnp.sum(acc * acc, axis=0, keepdims=True)


def _matmul_stats_call(x_mat, w_mat, tm):
    M, K = x_mat.shape
    Cp = w_mat.shape[1]
    return pl.pallas_call(
        _matmul_stats_kernel,
        out_shape=(jax.ShapeDtypeStruct((M, Cp), jnp.float32),
                   jax.ShapeDtypeStruct((1, Cp), jnp.float32),
                   jax.ShapeDtypeStruct((1, Cp), jnp.float32)),
        grid=(M // tm,),
        in_specs=[pl.BlockSpec((tm, K), lambda i: (i, 0)),
                  pl.BlockSpec((K, Cp), lambda i: (0, 0))],
        out_specs=(pl.BlockSpec((tm, Cp), lambda i: (i, 0)),
                   pl.BlockSpec((1, Cp), lambda i: (0, 0)),
                   pl.BlockSpec((1, Cp), lambda i: (0, 0))),
        compiler_params=pltpu.CompilerParams(
            dimension_semantics=("arbitrary",),
            vmem_limit_bytes=_VMEM_LIMIT),
    )(x_mat, w_mat)


# ---------------------------------------------------------------------------
# Kernel A' (no BN): tiled matmul + bias (residual 1x1 conv path)
# ---------------------------------------------------------------------------
def _matmul_bias_kernel(x_ref, w_ref, b_ref, y_ref):
    acc = jnp.dot(x_ref[...], w_ref[...], preferred_element_type=jnp.float32)
    y_ref[...] = (acc + b_ref[...]).astype(y_ref.dtype)


def _matmul_bias_call(x_mat, w_mat, bias, tm):
    M, K = x_mat.shape
    Cp = w_mat.shape[1]
    return pl.pallas_call(
        _matmul_bias_kernel,
        out_shape=jax.ShapeDtypeStruct((M, Cp), jnp.float32),
        grid=(M // tm,),
        in_specs=[pl.BlockSpec((tm, K), lambda i: (i, 0)),
                  pl.BlockSpec((K, Cp), lambda i: (0, 0)),
                  pl.BlockSpec((1, Cp), lambda i: (0, 0))],
        out_specs=pl.BlockSpec((tm, Cp), lambda i: (i, 0)),
        compiler_params=pltpu.CompilerParams(
            dimension_semantics=("parallel",),
            vmem_limit_bytes=_VMEM_LIMIT),
    )(x_mat, w_mat, bias)


# ---------------------------------------------------------------------------
# Kernel B: BN (folded gamma/beta) + optional residual + exact erf GELU
# ---------------------------------------------------------------------------
def _bn_act_kernel(*refs, inv_count, apply_gelu, has_res):
    if has_res:
        y_ref, s_ref, ss_ref, g_ref, b_ref, r_ref, o_ref = refs
    else:
        y_ref, s_ref, ss_ref, g_ref, b_ref, o_ref = refs

    mean = s_ref[...] * inv_count
    var = jnp.maximum(ss_ref[...] * inv_count - mean * mean, 0.0)
    scale = g_ref[...] * jax.lax.rsqrt(var + _BN_EPS)      # gamma * rstd
    shift = b_ref[...] - mean * scale                      # beta - mean*scale
    out = y_ref[...] * scale + shift                       # one FMA pass

    if has_res:
        out = out + r_ref[...]
    if apply_gelu:
        # Exact GELU (nn.GELU default): 0.5 * x * (1 + erf(x / sqrt(2)))
        out = 0.5 * out * (1.0 + jax.lax.erf(out * _INV_SQRT2))
    o_ref[...] = out.astype(o_ref.dtype)


def _bn_act_call(y, s, ss, gamma, beta, residual, tm, *, count, apply_gelu):
    M, Cp = y.shape
    has_res = residual is not None
    inputs = [y, s, ss, gamma, beta]
    in_specs = [pl.BlockSpec((tm, Cp), lambda i: (i, 0)),
                pl.BlockSpec((1, Cp), lambda i: (0, 0)),
                pl.BlockSpec((1, Cp), lambda i: (0, 0)),
                pl.BlockSpec((1, Cp), lambda i: (0, 0)),
                pl.BlockSpec((1, Cp), lambda i: (0, 0))]
    if has_res:
        inputs.append(residual)
        in_specs.append(pl.BlockSpec((tm, Cp), lambda i: (i, 0)))

    kernel = functools.partial(_bn_act_kernel, inv_count=1.0 / float(count),
                               apply_gelu=apply_gelu, has_res=has_res)
    return pl.pallas_call(
        kernel,
        out_shape=jax.ShapeDtypeStruct((M, Cp), jnp.float32),
        grid=(M // tm,),
        in_specs=in_specs,
        out_specs=pl.BlockSpec((tm, Cp), lambda i: (i, 0)),
        compiler_params=pltpu.CompilerParams(
            dimension_semantics=("parallel",),
            vmem_limit_bytes=_VMEM_LIMIT),
    )(*inputs)


# ---------------------------------------------------------------------------
# Glue: im2col (bf16), weight prep (lane/K padding), conv layer wrapper
# ---------------------------------------------------------------------------
def _im2col(x, kh_size, kw_size, stride, padding):
    N, H, W, C = x.shape
    OH = (H + 2 * padding - kh_size) // stride + 1
    OW = (W + 2 * padding - kw_size) // stride + 1
    xp = jnp.pad(x, ((0, 0), (padding, padding), (padding, padding), (0, 0)))
    cols = []
    for kh in range(kh_size):
        for kw in range(kw_size):
            cols.append(
                xp[:,
                   kh:kh + stride * (OH - 1) + 1:stride,
                   kw:kw + stride * (OW - 1) + 1:stride,
                   :]
            )
    patches = jnp.stack(cols, axis=3)                # [N, OH, OW, KH*KW, C]
    return patches.reshape(N * OH * OW, kh_size * kw_size * C), OH, OW


def _prep_wmat(w, cx, cp, kp):
    """w: [KH, KW, Cin, Cout] -> lane/K padded bf16 [kp, cp] matmul weight."""
    KH, KW, Cin, Cout = w.shape
    w = jnp.pad(w, ((0, 0), (0, 0), (0, cx - Cin), (0, cp - Cout)))
    w_mat = w.reshape(KH * KW * cx, cp)
    k = w_mat.shape[0]
    if kp != k:
        w_mat = jnp.pad(w_mat, ((0, kp - k), (0, 0)))
    return w_mat.astype(jnp.bfloat16)


def _pad_row(v, cp):
    return jnp.pad(v, (0, cp - v.shape[0])).reshape(1, cp).astype(jnp.float32)


def conv_layer(x, w, b, gamma=None, beta=None, *, stride, padding,
               apply_bn, apply_gelu, residual=None):
    """x: [N, H, W, Cx] f32 (Cx lane-padded, extra channels are 0).
       w: [KH, KW, Cin, Cout] with Cin <= Cx. Returns [N, OH, OW, round_up(Cout,128)]."""
    N, H, W, Cx = x.shape
    KH, KW, Cin, Cout = w.shape
    cp = _round_up(Cout)

    # bf16 MXU operands; f32 accumulation happens inside the kernels.
    x_mat, OH, OW = _im2col(x.astype(jnp.bfloat16), KH, KW, stride, padding)
    M, K = x_mat.shape
    kp = _round_up(K)
    if kp != K:
        x_mat = jnp.pad(x_mat, ((0, 0), (0, kp - K)))
    w_mat = _prep_wmat(w, Cx, cp, kp)
    tm = _choose_tm(M)

    if apply_bn:
        # Conv bias is dropped: BN mean-subtraction cancels it exactly.
        y, s, ss = _matmul_stats_call(x_mat, w_mat, tm)
        out = _bn_act_call(y, s, ss, _pad_row(gamma, cp), _pad_row(beta, cp),
                           residual, tm, count=M, apply_gelu=apply_gelu)
    else:
        assert not apply_gelu and residual is None
        out = _matmul_bias_call(x_mat, w_mat, _pad_row(b, cp), tm)

    return out.reshape(N, OH, OW, cp)


# ---------------------------------------------------------------------------
# Parameter init (deterministic, PyTorch-like fan-in uniform; BN gamma=1, beta=0)
# ---------------------------------------------------------------------------
def _init_conv(key, kh, kw, cin, cout):
    kw_key, kb_key = jax.random.split(key)
    bound = 1.0 / math.sqrt(kh * kw * cin)
    w = jax.random.uniform(kw_key, (kh, kw, cin, cout), jnp.float32, -bound, bound)
    b = jax.random.uniform(kb_key, (cout,), jnp.float32, -bound, bound)
    return w, b


def _init_block(key, cin, cout):
    k1, k2, kr = jax.random.split(key, 3)
    w1, b1 = _init_conv(k1, 3, 3, cin, cout)
    w2, b2 = _init_conv(k2, 3, 3, cout, cout)
    wr, br = _init_conv(kr, 1, 1, cin, cout)
    ones = jnp.ones((cout,), jnp.float32)
    zeros = jnp.zeros((cout,), jnp.float32)
    return dict(w1=w1, b1=b1, g1=ones, be1=zeros,
                w2=w2, b2=b2, g2=ones, be2=zeros,
                wr=wr, br=br)


def make_params(dim_latent=128, seed=0):
    key = jax.random.PRNGKey(seed)
    ks, k1, k2, k3, k4 = jax.random.split(key, 5)
    ws, bs = _init_conv(ks, 7, 7, 3, 32)
    stem = dict(w=ws, b=bs,
                g=jnp.ones((32,), jnp.float32), be=jnp.zeros((32,), jnp.float32))
    blocks = [
        _init_block(k1, 32, 64),
        _init_block(k2, 64, 64),
        _init_block(k3, 64, 128),
        _init_block(k4, 128, dim_latent),
    ]
    return dict(stem=stem, blocks=blocks)


# ---------------------------------------------------------------------------
# VanillaEncoder forward
# ---------------------------------------------------------------------------
def vanilla_encoder_forward(x_nchw, params):
    # NCHW (PyTorch) -> NHWC (kernel layout)
    x = jnp.transpose(x_nchw, (0, 2, 3, 1)).astype(jnp.float32)

    # Stem: Conv2d(3, 32, 7, padding=3) + BN + GELU
    s = params["stem"]
    x = conv_layer(x, s["w"], s["b"], s["g"], s["be"],
                   stride=1, padding=3, apply_bn=True, apply_gelu=True)

    # Blocks: GELU( BN(Conv3x3( GELU(BN(Conv3x3,s2(x))) )) + Conv1x1,s2(x) )
    for blk in params["blocks"]:
        h = conv_layer(x, blk["w1"], blk["b1"], blk["g1"], blk["be1"],
                       stride=2, padding=1, apply_bn=True, apply_gelu=True)
        r = conv_layer(x, blk["wr"], blk["br"],
                       stride=2, padding=0, apply_bn=False, apply_gelu=False)
        N, OH, OW, Cp = r.shape
        x = conv_layer(h, blk["w2"], blk["b2"], blk["g2"], blk["be2"],
                       stride=1, padding=1, apply_bn=True, apply_gelu=True,
                       residual=r.reshape(N * OH * OW, Cp))

    # AdaptiveAvgPool2d(1) + Flatten(1): mean over spatial -> [N, dim_latent]
    dim_latent = params["blocks"][-1]["w2"].shape[-1]
    return jnp.mean(x, axis=(1, 2))[:, :dim_latent]


if __name__ == "__main__":
    key = jax.random.PRNGKey(0)
    x = jax.random.normal(key, (2, 3, 16, 16), jnp.float32)   # NCHW, like PyTorch
    params = make_params(dim_latent=128, seed=0)

    forward = jax.jit(vanilla_encoder_forward)
    out = forward(x, params)
    out = jax.block_until_ready(out)

    assert out.shape == (2, 128), out.shape
    assert bool(jnp.all(jnp.isfinite(out)))
    print("KERNEL_OK")
</pallas_src>

<mosaic_0001>
module attributes {stable_mosaic.version = 11 : i64} {
  func.func @_bn_act_kernel(%arg0: i32, %arg1: memref<512x128xf32, #tpu.memory_space<vmem>>, %arg2: memref<1x128xf32, #tpu.memory_space<vmem>>, %arg3: memref<1x128xf32, #tpu.memory_space<vmem>>, %arg4: memref<1x128xf32, #tpu.memory_space<vmem>>, %arg5: memref<1x128xf32, #tpu.memory_space<vmem>>, %arg6: memref<512x128xf32, #tpu.memory_space<vmem>>) attributes {dimension_semantics = [#tpu.dimension_semantics<parallel>], iteration_bounds = array<i64: 1>, scalar_prefetch = 0 : i64, scratch_operands = 0 : i64, tpu.core_type = #tpu.core_type<tc>, window_params = [{transform_indices = @transform_0, window_bounds = array<i64: 512, 128>}, {pipeline_mode = #tpu.pipeline_mode<synchronous>, transform_indices = @transform_1, window_bounds = array<i64: 1, 128>}, {pipeline_mode = #tpu.pipeline_mode<synchronous>, transform_indices = @transform_2, window_bounds = array<i64: 1, 128>}, {pipeline_mode = #tpu.pipeline_mode<synchronous>, transform_indices = @transform_3, window_bounds = array<i64: 1, 128>}, {pipeline_mode = #tpu.pipeline_mode<synchronous>, transform_indices = @transform_4, window_bounds = array<i64: 1, 128>}, {transform_indices = @transform_5, window_bounds = array<i64: 512, 128>}]} {
    %c0 = arith.constant 0 : index
    %c0_0 = arith.constant 0 : index
    %0 = vector.load %arg2[%c0, %c0_0] : memref<1x128xf32, #tpu.memory_space<vmem>>, vector<1x128xf32>
    %cst = arith.constant 0.001953125 : f32
    %1 = vector.broadcast %cst : f32 to vector<1x128xf32>
    %2 = arith.mulf %0, %1 : vector<1x128xf32>
    %c0_1 = arith.constant 0 : index
    %c0_2 = arith.constant 0 : index
    %3 = vector.load %arg3[%c0_1, %c0_2] : memref<1x128xf32, #tpu.memory_space<vmem>>, vector<1x128xf32>
    %cst_3 = arith.constant 0.001953125 : f32
    %4 = vector.broadcast %cst_3 : f32 to vector<1x128xf32>
    %5 = arith.mulf %3, %4 : vector<1x128xf32>
    %6 = arith.mulf %2, %2 : vector<1x128xf32>
    %7 = arith.subf %5, %6 : vector<1x128xf32>
    %cst_4 = arith.constant 0.000000e+00 : f32
    %8 = vector.broadcast %cst_4 : f32 to vector<1x128xf32>
    %9 = arith.maximumf %7, %8 : vector<1x128xf32>
    %c0_5 = arith.constant 0 : index
    %c0_6 = arith.constant 0 : index
    %10 = vector.load %arg4[%c0_5, %c0_6] : memref<1x128xf32, #tpu.memory_space<vmem>>, vector<1x128xf32>
    %cst_7 = arith.constant 9.99999974E-6 : f32
    %11 = vector.broadcast %cst_7 : f32 to vector<1x128xf32>
    %12 = arith.addf %9, %11 : vector<1x128xf32>
    %13 = math.rsqrt %12 : vector<1x128xf32>
    %14 = arith.mulf %10, %13 : vector<1x128xf32>
    %c0_8 = arith.constant 0 : index
    %c0_9 = arith.constant 0 : index
    %15 = vector.load %arg5[%c0_8, %c0_9] : memref<1x128xf32, #tpu.memory_space<vmem>>, vector<1x128xf32>
    %16 = arith.mulf %2, %14 : vector<1x128xf32>
    %17 = arith.subf %15, %16 : vector<1x128xf32>
    %c0_10 = arith.constant 0 : index
    %c0_11 = arith.constant 0 : index
    %18 = vector.load %arg1[%c0_10, %c0_11] : memref<512x128xf32, #tpu.memory_space<vmem>>, vector<512x128xf32>
    %19 = vector.broadcast %14 : vector<1x128xf32> to vector<512x128xf32>
    %20 = arith.mulf %18, %19 : vector<512x128xf32>
    %21 = vector.broadcast %17 : vector<1x128xf32> to vector<512x128xf32>
    %22 = arith.addf %20, %21 : vector<512x128xf32>
    %cst_12 = arith.constant 5.000000e-01 : f32
    %23 = vector.broadcast %cst_12 : f32 to vector<512x128xf32>
    %24 = arith.mulf %23, %22 : vector<512x128xf32>
    %cst_13 = arith.constant 0.707106769 : f32
    %25 = vector.broadcast %cst_13 : f32 to vector<512x128xf32>
    %26 = arith.mulf %22, %25 : vector<512x128xf32>
    %27 = math.erf %26 : vector<512x128xf32>
    %cst_14 = arith.constant 1.000000e+00 : f32
    %28 = vector.broadcast %cst_14 : f32 to vector<512x128xf32>
    %29 = arith.addf %28, %27 : vector<512x128xf32>
    %30 = arith.mulf %24, %29 : vector<512x128xf32>
    %c0_15 = arith.constant 0 : index
    %c0_16 = arith.constant 0 : index
    %31 = vector.load %arg6[%c0_15, %c0_16] : memref<512x128xf32, #tpu.memory_space<vmem>>, vector<512x128xf32>
    tpu.vector_store %arg6[%c0_15, %c0_16], %30 {strides = array<i32>} : memref<512x128xf32, #tpu.memory_space<vmem>>, vector<512x128xf32>,
    return
  }
  func.func @transform_0(%arg0: i32) -> (i32, i32) {
    %c0_i32 = arith.constant 0 : i32
    %c0_i32_0 = arith.constant 0 : i32
    return %arg0, %c0_i32 : i32, i32
  }
  func.func @transform_1(%arg0: i32) -> (i32, i32) {
    %c0_i32 = arith.constant 0 : i32
    %c0_i32_0 = arith.constant 0 : i32
    %c0_i32_1 = arith.constant 0 : i32
    return %c0_i32, %c0_i32_0 : i32, i32
  }
  func.func @transform_2(%arg0: i32) -> (i32, i32) {
    %c0_i32 = arith.constant 0 : i32
    %c0_i32_0 = arith.constant 0 : i32
    %c0_i32_1 = arith.constant 0 : i32
    return %c0_i32, %c0_i32_0 : i32, i32
  }
  func.func @transform_3(%arg0: i32) -> (i32, i32) {
    %c0_i32 = arith.constant 0 : i32
    %c0_i32_0 = arith.constant 0 : i32
    %c0_i32_1 = arith.constant 0 : i32
    return %c0_i32, %c0_i32_0 : i32, i32
  }
  func.func @transform_4(%arg0: i32) -> (i32, i32) {
    %c0_i32 = arith.constant 0 : i32
    %c0_i32_0 = arith.constant 0 : i32
    %c0_i32_1 = arith.constant 0 : i32
    return %c0_i32, %c0_i32_0 : i32, i32
  }
  func.func @transform_5(%arg0: i32) -> (i32, i32) {
    %c0_i32 = arith.constant 0 : i32
    %c0_i32_0 = arith.constant 0 : i32
    return %arg0, %c0_i32 : i32, i32
  }
}

module attributes {stable_mosaic.version = 11 : i64} {
  func.func @_matmul_stats_kernel(%arg0: i32, %arg1: memref<512x256xbf16, #tpu.memory_space<vmem>>, %arg2: memref<256x128xbf16, #tpu.memory_space<vmem>>, %arg3: memref<512x128xf32, #tpu.memory_space<vmem>>, %arg4: memref<1x128xf32, #tpu.memory_space<vmem>>, %arg5: memref<1x128xf32, #tpu.memory_space<vmem>>) attributes {dimension_semantics = [#tpu.dimension_semantics<arbitrary>], iteration_bounds = array<i64: 1>, scalar_prefetch = 0 : i64, scratch_operands = 0 : i64, tpu.core_type = #tpu.core_type<tc>, window_params = [{transform_indices = @transform_0, window_bounds = array<i64: 512, 256>}, {pipeline_mode = #tpu.pipeline_mode<synchronous>, transform_indices = @transform_1, window_bounds = array<i64: 256, 128>}, {transform_indices = @transform_2, window_bounds = array<i64: 512, 128>}, {pipeline_mode = #tpu.pipeline_mode<synchronous>, transform_indices = @transform_3, window_bounds = array<i64: 1, 128>}, {pipeline_mode = #tpu.pipeline_mode<synchronous>, transform_indices = @transform_4, window_bounds = array<i64: 1, 128>}]} {
    %c0 = arith.constant 0 : index
    %c0_0 = arith.constant 0 : index
    %0 = vector.load %arg1[%c0, %c0_0] : memref<512x256xbf16, #tpu.memory_space<vmem>>, vector<512x256xbf16>
    %c0_1 = arith.constant 0 : index
    %c0_2 = arith.constant 0 : index
    %1 = vector.load %arg2[%c0_1, %c0_2] : memref<256x128xbf16, #tpu.memory_space<vmem>>, vector<256x128xbf16>
    %cst = arith.constant dense<0.000000e+00> : vector<512x128xf32>
    %2 = tpu.matmul %0, %1, %cst {dimension_numbers = #tpu.dot_dimension_numbers<[1], [0], [0], [1], [0, 0, 1, 1], [], []>} : vector<512x256xbf16>, vector<256x128xbf16>, vector<512x128xf32> -> vector<512x128xf32>
    %c0_3 = arith.constant 0 : index
    %c0_4 = arith.constant 0 : index
    %3 = vector.load %arg3[%c0_3, %c0_4] : memref<512x128xf32, #tpu.memory_space<vmem>>, vector<512x128xf32>
    tpu.vector_store %arg3[%c0_3, %c0_4], %2 {strides = array<i32>} : memref<512x128xf32, #tpu.memory_space<vmem>>, vector<512x128xf32>,
    %c0_i32 = arith.constant 0 : i32
    %4 = arith.cmpi eq, %arg0, %c0_i32 : i32
    %5 = arith.extui %4 : i1 to i32
    %c0_i32_5 = arith.constant 0 : i32
    %6 = arith.cmpi ne, %5, %c0_i32_5 : i32
    scf.if %6 {
      %cst_16 = arith.constant 0.000000e+00 : f32
      %18 = vector.broadcast %cst_16 : f32 to vector<1x128xf32>
      %c0_17 = arith.constant 0 : index
      %c0_18 = arith.constant 0 : index
      %19 = vector.load %arg4[%c0_17, %c0_18] : memref<1x128xf32, #tpu.memory_space<vmem>>, vector<1x128xf32>
      tpu.vector_store %arg4[%c0_17, %c0_18], %18 {strides = array<i32>} : memref<1x128xf32, #tpu.memory_space<vmem>>, vector<1x128xf32>,
      %cst_19 = arith.constant 0.000000e+00 : f32
      %20 = vector.broadcast %cst_19 : f32 to vector<1x128xf32>
      %c0_20 = arith.constant 0 : index
      %c0_21 = arith.constant 0 : index
      %21 = vector.load %arg5[%c0_20, %c0_21] : memref<1x128xf32, #tpu.memory_space<vmem>>, vector<1x128xf32>
      tpu.vector_store %arg5[%c0_20, %c0_21], %20 {strides = array<i32>} : memref<1x128xf32, #tpu.memory_space<vmem>>, vector<1x128xf32>,
    } else {
    }
    %c0_6 = arith.constant 0 : index
    %c0_7 = arith.constant 0 : index
    %7 = vector.load %arg4[%c0_6, %c0_7] : memref<1x128xf32, #tpu.memory_space<vmem>>, vector<1x128xf32>
    %cst_8 = arith.constant dense<0.000000e+00> : vector<128xf32>
    %8 = vector.multi_reduction <add>, %2, %cst_8 [0] : vector<512x128xf32> to vector<128xf32>
    %9 = vector.shape_cast %8 : vector<128xf32> to vector<1x128xf32>
    %10 = arith.addf %7, %9 : vector<1x128xf32>
    %c0_9 = arith.constant 0 : index
    %c0_10 = arith.constant 0 : index
    %11 = vector.load %arg4[%c0_9, %c0_10] : memref<1x128xf32, #tpu.memory_space<vmem>>, vector<1x128xf32>
    tpu.vector_store %arg4[%c0_9, %c0_10], %10 {strides = array<i32>} : memref<1x128xf32, #tpu.memory_space<vmem>>, vector<1x128xf32>,
    %c0_11 = arith.constant 0 : index
    %c0_12 = arith.constant 0 : index
    %12 = vector.load %arg5[%c0_11, %c0_12] : memref<1x128xf32, #tpu.memory_space<vmem>>, vector<1x128xf32>
    %13 = arith.mulf %2, %2 : vector<512x128xf32>
    %cst_13 = arith.constant dense<0.000000e+00> : vector<128xf32>
    %14 = vector.multi_reduction <add>, %13, %cst_13 [0] : vector<512x128xf32> to vector<128xf32>
    %15 = vector.shape_cast %14 : vector<128xf32> to vector<1x128xf32>
    %16 = arith.addf %12, %15 : vector<1x128xf32>
    %c0_14 = arith.constant 0 : index
    %c0_15 = arith.constant 0 : index
    %17 = vector.load %arg5[%c0_14, %c0_15] : memref<1x128xf32, #tpu.memory_space<vmem>>, vector<1x128xf32>
    tpu.vector_store %arg5[%c0_14, %c0_15], %16 {strides = array<i32>} : memref<1x128xf32, #tpu.memory_space<vmem>>, vector<1x128xf32>,
    return
  }
  func.func @transform_0(%arg0: i32) -> (i32, i32) {
    %c0_i32 = arith.constant 0 : i32
    %c0_i32_0 = arith.constant 0 : i32
    return %arg0, %c0_i32 : i32, i32
  }
  func.func @transform_1(%arg0: i32) -> (i32, i32) {
    %c0_i32 = arith.constant 0 : i32
    %c0_i32_0 = arith.constant 0 : i32
    %c0_i32_1 = arith.constant 0 : i32
    return %c0_i32, %c0_i32_0 : i32, i32
  }
  func.func @transform_2(%arg0: i32) -> (i32, i32) {
    %c0_i32 = arith.constant 0 : i32
    %c0_i32_0 = arith.constant 0 : i32
    return %arg0, %c0_i32 : i32, i32
  }
  func.func @transform_3(%arg0: i32) -> (i32, i32) {
    %c0_i32 = arith.constant 0 : i32
    %c0_i32_0 = arith.constant 0 : i32
    %c0_i32_1 = arith.constant 0 : i32
    return %c0_i32, %c0_i32_0 : i32, i32
  }
  func.func @transform_4(%arg0: i32) -> (i32, i32) {
    %c0_i32 = arith.constant 0 : i32
    %c0_i32_0 = arith.constant 0 : i32
    %c0_i32_1 = arith.constant 0 : i32
    return %c0_i32, %c0_i32_0 : i32, i32
  }
}

module attributes {stable_mosaic.version = 11 : i64} {
  func.func @_bn_act_kernel(%arg0: i32, %arg1: memref<128x128xf32, #tpu.memory_space<vmem>>, %arg2: memref<1x128xf32, #tpu.memory_space<vmem>>, %arg3: memref<1x128xf32, #tpu.memory_space<vmem>>, %arg4: memref<1x128xf32, #tpu.memory_space<vmem>>, %arg5: memref<1x128xf32, #tpu.memory_space<vmem>>, %arg6: memref<128x128xf32, #tpu.memory_space<vmem>>) attributes {dimension_semantics = [#tpu.dimension_semantics<parallel>], iteration_bounds = array<i64: 1>, scalar_prefetch = 0 : i64, scratch_operands = 0 : i64, tpu.core_type = #tpu.core_type<tc>, window_params = [{transform_indices = @transform_0, window_bounds = array<i64: 128, 128>}, {pipeline_mode = #tpu.pipeline_mode<synchronous>, transform_indices = @transform_1, window_bounds = array<i64: 1, 128>}, {pipeline_mode = #tpu.pipeline_mode<synchronous>, transform_indices = @transform_2, window_bounds = array<i64: 1, 128>}, {pipeline_mode = #tpu.pipeline_mode<synchronous>, transform_indices = @transform_3, window_bounds = array<i64: 1, 128>}, {pipeline_mode = #tpu.pipeline_mode<synchronous>, transform_indices = @transform_4, window_bounds = array<i64: 1, 128>}, {transform_indices = @transform_5, window_bounds = array<i64: 128, 128>}]} {
    %c0 = arith.constant 0 : index
    %c0_0 = arith.constant 0 : index
    %0 = vector.load %arg2[%c0, %c0_0] : memref<1x128xf32, #tpu.memory_space<vmem>>, vector<1x128xf32>
    %cst = arith.constant 7.812500e-03 : f32
    %1 = vector.broadcast %cst : f32 to vector<1x128xf32>
    %2 = arith.mulf %0, %1 : vector<1x128xf32>
    %c0_1 = arith.constant 0 : index
    %c0_2 = arith.constant 0 : index
    %3 = vector.load %arg3[%c0_1, %c0_2] : memref<1x128xf32, #tpu.memory_space<vmem>>, vector<1x128xf32>
    %cst_3 = arith.constant 7.812500e-03 : f32
    %4 = vector.broadcast %cst_3 : f32 to vector<1x128xf32>
    %5 = arith.mulf %3, %4 : vector<1x128xf32>
    %6 = arith.mulf %2, %2 : vector<1x128xf32>
    %7 = arith.subf %5, %6 : vector<1x128xf32>
    %cst_4 = arith.constant 0.000000e+00 : f32
    %8 = vector.broadcast %cst_4 : f32 to vector<1x128xf32>
    %9 = arith.maximumf %7, %8 : vector<1x128xf32>
    %c0_5 = arith.constant 0 : index
    %c0_6 = arith.constant 0 : index
    %10 = vector.load %arg4[%c0_5, %c0_6] : memref<1x128xf32, #tpu.memory_space<vmem>>, vector<1x128xf32>
    %cst_7 = arith.constant 9.99999974E-6 : f32
    %11 = vector.broadcast %cst_7 : f32 to vector<1x128xf32>
    %12 = arith.addf %9, %11 : vector<1x128xf32>
    %13 = math.rsqrt %12 : vector<1x128xf32>
    %14 = arith.mulf %10, %13 : vector<1x128xf32>
    %c0_8 = arith.constant 0 : index
    %c0_9 = arith.constant 0 : index
    %15 = vector.load %arg5[%c0_8, %c0_9] : memref<1x128xf32, #tpu.memory_space<vmem>>, vector<1x128xf32>
    %16 = arith.mulf %2, %14 : vector<1x128xf32>
    %17 = arith.subf %15, %16 : vector<1x128xf32>
    %c0_10 = arith.constant 0 : index
    %c0_11 = arith.constant 0 : index
    %18 = vector.load %arg1[%c0_10, %c0_11] : memref<128x128xf32, #tpu.memory_space<vmem>>, vector<128x128xf32>
    %19 = vector.broadcast %14 : vector<1x128xf32> to vector<128x128xf32>
    %20 = arith.mulf %18, %19 : vector<128x128xf32>
    %21 = vector.broadcast %17 : vector<1x128xf32> to vector<128x128xf32>
    %22 = arith.addf %20, %21 : vector<128x128xf32>
    %cst_12 = arith.constant 5.000000e-01 : f32
    %23 = vector.broadcast %cst_12 : f32 to vector<128x128xf32>
    %24 = arith.mulf %23, %22 : vector<128x128xf32>
    %cst_13 = arith.constant 0.707106769 : f32
    %25 = vector.broadcast %cst_13 : f32 to vector<128x128xf32>
    %26 = arith.mulf %22, %25 : vector<128x128xf32>
    %27 = math.erf %26 : vector<128x128xf32>
    %cst_14 = arith.constant 1.000000e+00 : f32
    %28 = vector.broadcast %cst_14 : f32 to vector<128x128xf32>
    %29 = arith.addf %28, %27 : vector<128x128xf32>
    %30 = arith.mulf %24, %29 : vector<128x128xf32>
    %c0_15 = arith.constant 0 : index
    %c0_16 = arith.constant 0 : index
    %31 = vector.load %arg6[%c0_15, %c0_16] : memref<128x128xf32, #tpu.memory_space<vmem>>, vector<128x128xf32>
    tpu.vector_store %arg6[%c0_15, %c0_16], %30 {strides = array<i32>} : memref<128x128xf32, #tpu.memory_space<vmem>>, vector<128x128xf32>,
    return
  }
  func.func @transform_0(%arg0: i32) -> (i32, i32) {
    %c0_i32 = arith.constant 0 : i32
    %c0_i32_0 = arith.constant 0 : i32
    return %arg0, %c0_i32 : i32, i32
  }
  func.func @transform_1(%arg0: i32) -> (i32, i32) {
    %c0_i32 = arith.constant 0 : i32
    %c0_i32_0 = arith.constant 0 : i32
    %c0_i32_1 = arith.constant 0 : i32
    return %c0_i32, %c0_i32_0 : i32, i32
  }
  func.func @transform_2(%arg0: i32) -> (i32, i32) {
    %c0_i32 = arith.constant 0 : i32
    %c0_i32_0 = arith.constant 0 : i32
    %c0_i32_1 = arith.constant 0 : i32
    return %c0_i32, %c0_i32_0 : i32, i32
  }
  func.func @transform_3(%arg0: i32) -> (i32, i32) {
    %c0_i32 = arith.constant 0 : i32
    %c0_i32_0 = arith.constant 0 : i32
    %c0_i32_1 = arith.constant 0 : i32
    return %c0_i32, %c0_i32_0 : i32, i32
  }
  func.func @transform_4(%arg0: i32) -> (i32, i32) {
    %c0_i32 = arith.constant 0 : i32
    %c0_i32_0 = arith.constant 0 : i32
    %c0_i32_1 = arith.constant 0 : i32
    return %c0_i32, %c0_i32_0 : i32, i32
  }
  func.func @transform_5(%arg0: i32) -> (i32, i32) {
    %c0_i32 = arith.constant 0 : i32
    %c0_i32_0 = arith.constant 0 : i32
    return %arg0, %c0_i32 : i32, i32
  }
}

module attributes {stable_mosaic.version = 11 : i64} {
  func.func @_matmul_stats_kernel(%arg0: i32, %arg1: memref<128x1152xbf16, #tpu.memory_space<vmem>>, %arg2: memref<1152x128xbf16, #tpu.memory_space<vmem>>, %arg3: memref<128x128xf32, #tpu.memory_space<vmem>>, %arg4: memref<1x128xf32, #tpu.memory_space<vmem>>, %arg5: memref<1x128xf32, #tpu.memory_space<vmem>>) attributes {dimension_semantics = [#tpu.dimension_semantics<arbitrary>], iteration_bounds = array<i64: 1>, scalar_prefetch = 0 : i64, scratch_operands = 0 : i64, tpu.core_type = #tpu.core_type<tc>, window_params = [{transform_indices = @transform_0, window_bounds = array<i64: 128, 1152>}, {pipeline_mode = #tpu.pipeline_mode<synchronous>, transform_indices = @transform_1, window_bounds = array<i64: 1152, 128>}, {transform_indices = @transform_2, window_bounds = array<i64: 128, 128>}, {pipeline_mode = #tpu.pipeline_mode<synchronous>, transform_indices = @transform_3, window_bounds = array<i64: 1, 128>}, {pipeline_mode = #tpu.pipeline_mode<synchronous>, transform_indices = @transform_4, window_bounds = array<i64: 1, 128>}]} {
    %c0 = arith.constant 0 : index
    %c0_0 = arith.constant 0 : index
    %0 = vector.load %arg1[%c0, %c0_0] : memref<128x1152xbf16, #tpu.memory_space<vmem>>, vector<128x1152xbf16>
    %c0_1 = arith.constant 0 : index
    %c0_2 = arith.constant 0 : index
    %1 = vector.load %arg2[%c0_1, %c0_2] : memref<1152x128xbf16, #tpu.memory_space<vmem>>, vector<1152x128xbf16>
    %cst = arith.constant dense<0.000000e+00> : vector<128x128xf32>
    %2 = tpu.matmul %0, %1, %cst {dimension_numbers = #tpu.dot_dimension_numbers<[1], [0], [0], [1], [0, 0, 1, 1], [], []>} : vector<128x1152xbf16>, vector<1152x128xbf16>, vector<128x128xf32> -> vector<128x128xf32>
    %c0_3 = arith.constant 0 : index
    %c0_4 = arith.constant 0 : index
    %3 = vector.load %arg3[%c0_3, %c0_4] : memref<128x128xf32, #tpu.memory_space<vmem>>, vector<128x128xf32>
    tpu.vector_store %arg3[%c0_3, %c0_4], %2 {strides = array<i32>} : memref<128x128xf32, #tpu.memory_space<vmem>>, vector<128x128xf32>,
    %c0_i32 = arith.constant 0 : i32
    %4 = arith.cmpi eq, %arg0, %c0_i32 : i32
    %5 = arith.extui %4 : i1 to i32
    %c0_i32_5 = arith.constant 0 : i32
    %6 = arith.cmpi ne, %5, %c0_i32_5 : i32
    scf.if %6 {
      %cst_16 = arith.constant 0.000000e+00 : f32
      %18 = vector.broadcast %cst_16 : f32 to vector<1x128xf32>
      %c0_17 = arith.constant 0 : index
      %c0_18 = arith.constant 0 : index
      %19 = vector.load %arg4[%c0_17, %c0_18] : memref<1x128xf32, #tpu.memory_space<vmem>>, vector<1x128xf32>
      tpu.vector_store %arg4[%c0_17, %c0_18], %18 {strides = array<i32>} : memref<1x128xf32, #tpu.memory_space<vmem>>, vector<1x128xf32>,
      %cst_19 = arith.constant 0.000000e+00 : f32
      %20 = vector.broadcast %cst_19 : f32 to vector<1x128xf32>
      %c0_20 = arith.constant 0 : index
      %c0_21 = arith.constant 0 : index
      %21 = vector.load %arg5[%c0_20, %c0_21] : memref<1x128xf32, #tpu.memory_space<vmem>>, vector<1x128xf32>
      tpu.vector_store %arg5[%c0_20, %c0_21], %20 {strides = array<i32>} : memref<1x128xf32, #tpu.memory_space<vmem>>, vector<1x128xf32>,
    } else {
    }
    %c0_6 = arith.constant 0 : index
    %c0_7 = arith.constant 0 : index
    %7 = vector.load %arg4[%c0_6, %c0_7] : memref<1x128xf32, #tpu.memory_space<vmem>>, vector<1x128xf32>
    %cst_8 = arith.constant dense<0.000000e+00> : vector<128xf32>
    %8 = vector.multi_reduction <add>, %2, %cst_8 [0] : vector<128x128xf32> to vector<128xf32>
    %9 = vector.shape_cast %8 : vector<128xf32> to vector<1x128xf32>
    %10 = arith.addf %7, %9 : vector<1x128xf32>
    %c0_9 = arith.constant 0 : index
    %c0_10 = arith.constant 0 : index
    %11 = vector.load %arg4[%c0_9, %c0_10] : memref<1x128xf32, #tpu.memory_space<vmem>>, vector<1x128xf32>
    tpu.vector_store %arg4[%c0_9, %c0_10], %10 {strides = array<i32>} : memref<1x128xf32, #tpu.memory_space<vmem>>, vector<1x128xf32>,
    %c0_11 = arith.constant 0 : index
    %c0_12 = arith.constant 0 : index
    %12 = vector.load %arg5[%c0_11, %c0_12] : memref<1x128xf32, #tpu.memory_space<vmem>>, vector<1x128xf32>
    %13 = arith.mulf %2, %2 : vector<128x128xf32>
    %cst_13 = arith.constant dense<0.000000e+00> : vector<128xf32>
    %14 = vector.multi_reduction <add>, %13, %cst_13 [0] : vector<128x128xf32> to vector<128xf32>
    %15 = vector.shape_cast %14 : vector<128xf32> to vector<1x128xf32>
    %16 = arith.addf %12, %15 : vector<1x128xf32>
    %c0_14 = arith.constant 0 : index
    %c0_15 = arith.constant 0 : index
    %17 = vector.load %arg5[%c0_14, %c0_15] : memref<1x128xf32, #tpu.memory_space<vmem>>, vector<1x128xf32>
    tpu.vector_store %arg5[%c0_14, %c0_15], %16 {strides = array<i32>} : memref<1x128xf32, #tpu.memory_space<vmem>>, vector<1x128xf32>,
    return
  }
  func.func @transform_0(%arg0: i32) -> (i32, i32) {
    %c0_i32 = arith.constant 0 : i32
    %c0_i32_0 = arith.constant 0 : i32
    return %arg0, %c0_i32 : i32, i32
  }
  func.func @transform_1(%arg0: i32) -> (i32, i32) {
    %c0_i32 = arith.constant 0 : i32
    %c0_i32_0 = arith.constant 0 : i32
    %c0_i32_1 = arith.constant 0 : i32
    return %c0_i32, %c0_i32_0 : i32, i32
  }
  func.func @transform_2(%arg0: i32) -> (i32, i32) {
    %c0_i32 = arith.constant 0 : i32
    %c0_i32_0 = arith.constant 0 : i32
    return %arg0, %c0_i32 : i32, i32
  }
  func.func @transform_3(%arg0: i32) -> (i32, i32) {
    %c0_i32 = arith.constant 0 : i32
    %c0_i32_0 = arith.constant 0 : i32
    %c0_i32_1 = arith.constant 0 : i32
    return %c0_i32, %c0_i32_0 : i32, i32
  }
  func.func @transform_4(%arg0: i32) -> (i32, i32) {
    %c0_i32 = arith.constant 0 : i32
    %c0_i32_0 = arith.constant 0 : i32
    %c0_i32_1 = arith.constant 0 : i32
    return %c0_i32, %c0_i32_0 : i32, i32
  }
}

module attributes {stable_mosaic.version = 11 : i64} {
  func.func @_bn_act_kernel(%arg0: i32, %arg1: memref<128x128xf32, #tpu.memory_space<vmem>>, %arg2: memref<1x128xf32, #tpu.memory_space<vmem>>, %arg3: memref<1x128xf32, #tpu.memory_space<vmem>>, %arg4: memref<1x128xf32, #tpu.memory_space<vmem>>, %arg5: memref<1x128xf32, #tpu.memory_space<vmem>>, %arg6: memref<128x128xf32, #tpu.memory_space<vmem>>, %arg7: memref<128x128xf32, #tpu.memory_space<vmem>>) attributes {dimension_semantics = [#tpu.dimension_semantics<parallel>], iteration_bounds = array<i64: 1>, scalar_prefetch = 0 : i64, scratch_operands = 0 : i64, tpu.core_type = #tpu.core_type<tc>, window_params = [{transform_indices = @transform_0, window_bounds = array<i64: 128, 128>}, {pipeline_mode = #tpu.pipeline_mode<synchronous>, transform_indices = @transform_1, window_bounds = array<i64: 1, 128>}, {pipeline_mode = #tpu.pipeline_mode<synchronous>, transform_indices = @transform_2, window_bounds = array<i64: 1, 128>}, {pipeline_mode = #tpu.pipeline_mode<synchronous>, transform_indices = @transform_3, window_bounds = array<i64: 1, 128>}, {pipeline_mode = #tpu.pipeline_mode<synchronous>, transform_indices = @transform_4, window_bounds = array<i64: 1, 128>}, {transform_indices = @transform_5, window_bounds = array<i64: 128, 128>}, {transform_indices = @transform_6, window_bounds = array<i64: 128, 128>}]} {
    %c0 = arith.constant 0 : index
    %c0_0 = arith.constant 0 : index
    %0 = vector.load %arg2[%c0, %c0_0] : memref<1x128xf32, #tpu.memory_space<vmem>>, vector<1x128xf32>
    %cst = arith.constant 7.812500e-03 : f32
    %1 = vector.broadcast %cst : f32 to vector<1x128xf32>
    %2 = arith.mulf %0, %1 : vector<1x128xf32>
    %c0_1 = arith.constant 0 : index
    %c0_2 = arith.constant 0 : index
    %3 = vector.load %arg3[%c0_1, %c0_2] : memref<1x128xf32, #tpu.memory_space<vmem>>, vector<1x128xf32>
    %cst_3 = arith.constant 7.812500e-03 : f32
    %4 = vector.broadcast %cst_3 : f32 to vector<1x128xf32>
    %5 = arith.mulf %3, %4 : vector<1x128xf32>
    %6 = arith.mulf %2, %2 : vector<1x128xf32>
    %7 = arith.subf %5, %6 : vector<1x128xf32>
    %cst_4 = arith.constant 0.000000e+00 : f32
    %8 = vector.broadcast %cst_4 : f32 to vector<1x128xf32>
    %9 = arith.maximumf %7, %8 : vector<1x128xf32>
    %c0_5 = arith.constant 0 : index
    %c0_6 = arith.constant 0 : index
    %10 = vector.load %arg4[%c0_5, %c0_6] : memref<1x128xf32, #tpu.memory_space<vmem>>, vector<1x128xf32>
    %cst_7 = arith.constant 9.99999974E-6 : f32
    %11 = vector.broadcast %cst_7 : f32 to vector<1x128xf32>
    %12 = arith.addf %9, %11 : vector<1x128xf32>
    %13 = math.rsqrt %12 : vector<1x128xf32>
    %14 = arith.mulf %10, %13 : vector<1x128xf32>
    %c0_8 = arith.constant 0 : index
    %c0_9 = arith.constant 0 : index
    %15 = vector.load %arg5[%c0_8, %c0_9] : memref<1x128xf32, #tpu.memory_space<vmem>>, vector<1x128xf32>
    %16 = arith.mulf %2, %14 : vector<1x128xf32>
    %17 = arith.subf %15, %16 : vector<1x128xf32>
    %c0_10 = arith.constant 0 : index
    %c0_11 = arith.constant 0 : index
    %18 = vector.load %arg1[%c0_10, %c0_11] : memref<128x128xf32, #tpu.memory_space<vmem>>, vector<128x128xf32>
    %19 = vector.broadcast %14 : vector<1x128xf32> to vector<128x128xf32>
    %20 = arith.mulf %18, %19 : vector<128x128xf32>
    %21 = vector.broadcast %17 : vector<1x128xf32> to vector<128x128xf32>
    %22 = arith.addf %20, %21 : vector<128x128xf32>
    %c0_12 = arith.constant 0 : index
    %c0_13 = arith.constant 0 : index
    %23 = vector.load %arg6[%c0_12, %c0_13] : memref<128x128xf32, #tpu.memory_space<vmem>>, vector<128x128xf32>
    %24 = arith.addf %22, %23 : vector<128x128xf32>
    %cst_14 = arith.constant 5.000000e-01 : f32
    %25 = vector.broadcast %cst_14 : f32 to vector<128x128xf32>
    %26 = arith.mulf %25, %24 : vector<128x128xf32>
    %cst_15 = arith.constant 0.707106769 : f32
    %27 = vector.broadcast %cst_15 : f32 to vector<128x128xf32>
    %28 = arith.mulf %24, %27 : vector<128x128xf32>
    %29 = math.erf %28 : vector<128x128xf32>
    %cst_16 = arith.constant 1.000000e+00 : f32
    %30 = vector.broadcast %cst_16 : f32 to vector<128x128xf32>
    %31 = arith.addf %30, %29 : vector<128x128xf32>
    %32 = arith.mulf %26, %31 : vector<128x128xf32>
    %c0_17 = arith.constant 0 : index
    %c0_18 = arith.constant 0 : index
    %33 = vector.load %arg7[%c0_17, %c0_18] : memref<128x128xf32, #tpu.memory_space<vmem>>, vector<128x128xf32>
    tpu.vector_store %arg7[%c0_17, %c0_18], %32 {strides = array<i32>} : memref<128x128xf32, #tpu.memory_space<vmem>>, vector<128x128xf32>,
    return
  }
  func.func @transform_0(%arg0: i32) -> (i32, i32) {
    %c0_i32 = arith.constant 0 : i32
    %c0_i32_0 = arith.constant 0 : i32
    return %arg0, %c0_i32 : i32, i32
  }
  func.func @transform_1(%arg0: i32) -> (i32, i32) {
    %c0_i32 = arith.constant 0 : i32
    %c0_i32_0 = arith.constant 0 : i32
    %c0_i32_1 = arith.constant 0 : i32
    return %c0_i32, %c0_i32_0 : i32, i32
  }
  func.func @transform_2(%arg0: i32) -> (i32, i32) {
    %c0_i32 = arith.constant 0 : i32
    %c0_i32_0 = arith.constant 0 : i32
    %c0_i32_1 = arith.constant 0 : i32
    return %c0_i32, %c0_i32_0 : i32, i32
  }
  func.func @transform_3(%arg0: i32) -> (i32, i32) {
    %c0_i32 = arith.constant 0 : i32
    %c0_i32_0 = arith.constant 0 : i32
    %c0_i32_1 = arith.constant 0 : i32
    return %c0_i32, %c0_i32_0 : i32, i32
  }
  func.func @transform_4(%arg0: i32) -> (i32, i32) {
    %c0_i32 = arith.constant 0 : i32
    %c0_i32_0 = arith.constant 0 : i32
    %c0_i32_1 = arith.constant 0 : i32
    return %c0_i32, %c0_i32_0 : i32, i32
  }
  func.func @transform_5(%arg0: i32) -> (i32, i32) {
    %c0_i32 = arith.constant 0 : i32
    %c0_i32_0 = arith.constant 0 : i32
    return %arg0, %c0_i32 : i32, i32
  }
  func.func @transform_6(%arg0: i32) -> (i32, i32) {
    %c0_i32 = arith.constant 0 : i32
    %c0_i32_0 = arith.constant 0 : i32
    return %arg0, %c0_i32 : i32, i32
  }
}

module attributes {stable_mosaic.version = 11 : i64} {
  func.func @_matmul_bias_kernel(%arg0: i32, %arg1: memref<128x128xbf16, #tpu.memory_space<vmem>>, %arg2: memref<128x128xbf16, #tpu.memory_space<vmem>>, %arg3: memref<1x128xf32, #tpu.memory_space<vmem>>, %arg4: memref<128x128xf32, #tpu.memory_space<vmem>>) attributes {dimension_semantics = [#tpu.dimension_semantics<parallel>], iteration_bounds = array<i64: 1>, scalar_prefetch = 0 : i64, scratch_operands = 0 : i64, tpu.core_type = #tpu.core_type<tc>, window_params = [{transform_indices = @transform_0, window_bounds = array<i64: 128, 128>}, {pipeline_mode = #tpu.pipeline_mode<synchronous>, transform_indices = @transform_1, window_bounds = array<i64: 128, 128>}, {pipeline_mode = #tpu.pipeline_mode<synchronous>, transform_indices = @transform_2, window_bounds = array<i64: 1, 128>}, {transform_indices = @transform_3, window_bounds = array<i64: 128, 128>}]} {
    %c0 = arith.constant 0 : index
    %c0_0 = arith.constant 0 : index
    %0 = vector.load %arg1[%c0, %c0_0] : memref<128x128xbf16, #tpu.memory_space<vmem>>, vector<128x128xbf16>
    %c0_1 = arith.constant 0 : index
    %c0_2 = arith.constant 0 : index
    %1 = vector.load %arg2[%c0_1, %c0_2] : memref<128x128xbf16, #tpu.memory_space<vmem>>, vector<128x128xbf16>
    %cst = arith.constant dense<0.000000e+00> : vector<128x128xf32>
    %2 = tpu.matmul %0, %1, %cst {dimension_numbers = #tpu.dot_dimension_numbers<[1], [0], [0], [1], [0, 0, 1, 1], [], []>} : vector<128x128xbf16>, vector<128x128xbf16>, vector<128x128xf32> -> vector<128x128xf32>
    %c0_3 = arith.constant 0 : index
    %c0_4 = arith.constant 0 : index
    %3 = vector.load %arg3[%c0_3, %c0_4] : memref<1x128xf32, #tpu.memory_space<vmem>>, vector<1x128xf32>
    %4 = vector.broadcast %3 : vector<1x128xf32> to vector<128x128xf32>
    %5 = arith.addf %2, %4 : vector<128x128xf32>
    %c0_5 = arith.constant 0 : index
    %c0_6 = arith.constant 0 : index
    %6 = vector.load %arg4[%c0_5, %c0_6] : memref<128x128xf32, #tpu.memory_space<vmem>>, vector<128x128xf32>
    tpu.vector_store %arg4[%c0_5, %c0_6], %5 {strides = array<i32>} : memref<128x128xf32, #tpu.memory_space<vmem>>, vector<128x128xf32>,
    return
  }
  func.func @transform_0(%arg0: i32) -> (i32, i32) {
    %c0_i32 = arith.constant 0 : i32
    %c0_i32_0 = arith.constant 0 : i32
    return %arg0, %c0_i32 : i32, i32
  }
  func.func @transform_1(%arg0: i32) -> (i32, i32) {
    %c0_i32 = arith.constant 0 : i32
    %c0_i32_0 = arith.constant 0 : i32
    %c0_i32_1 = arith.constant 0 : i32
    return %c0_i32, %c0_i32_0 : i32, i32
  }
  func.func @transform_2(%arg0: i32) -> (i32, i32) {
    %c0_i32 = arith.constant 0 : i32
    %c0_i32_0 = arith.constant 0 : i32
    %c0_i32_1 = arith.constant 0 : i32
    return %c0_i32, %c0_i32_0 : i32, i32
  }
  func.func @transform_3(%arg0: i32) -> (i32, i32) {
    %c0_i32 = arith.constant 0 : i32
    %c0_i32_0 = arith.constant 0 : i32
    return %arg0, %c0_i32 : i32, i32
  }
}

module attributes {stable_mosaic.version = 11 : i64} {
  func.func @_matmul_stats_kernel(%arg0: i32, %arg1: memref<32x1152xbf16, #tpu.memory_space<vmem>>, %arg2: memref<1152x128xbf16, #tpu.memory_space<vmem>>, %arg3: memref<32x128xf32, #tpu.memory_space<vmem>>, %arg4: memref<1x128xf32, #tpu.memory_space<vmem>>, %arg5: memref<1x128xf32, #tpu.memory_space<vmem>>) attributes {dimension_semantics = [#tpu.dimension_semantics<arbitrary>], iteration_bounds = array<i64: 1>, scalar_prefetch = 0 : i64, scratch_operands = 0 : i64, tpu.core_type = #tpu.core_type<tc>, window_params = [{transform_indices = @transform_0, window_bounds = array<i64: 32, 1152>}, {pipeline_mode = #tpu.pipeline_mode<synchronous>, transform_indices = @transform_1, window_bounds = array<i64: 1152, 128>}, {transform_indices = @transform_2, window_bounds = array<i64: 32, 128>}, {pipeline_mode = #tpu.pipeline_mode<synchronous>, transform_indices = @transform_3, window_bounds = array<i64: 1, 128>}, {pipeline_mode = #tpu.pipeline_mode<synchronous>, transform_indices = @transform_4, window_bounds = array<i64: 1, 128>}]} {
    %c0 = arith.constant 0 : index
    %c0_0 = arith.constant 0 : index
    %0 = vector.load %arg1[%c0, %c0_0] : memref<32x1152xbf16, #tpu.memory_space<vmem>>, vector<32x1152xbf16>
    %c0_1 = arith.constant 0 : index
    %c0_2 = arith.constant 0 : index
    %1 = vector.load %arg2[%c0_1, %c0_2] : memref<1152x128xbf16, #tpu.memory_space<vmem>>, vector<1152x128xbf16>
    %cst = arith.constant dense<0.000000e+00> : vector<32x128xf32>
    %2 = tpu.matmul %0, %1, %cst {dimension_numbers = #tpu.dot_dimension_numbers<[1], [0], [0], [1], [0, 0, 1, 1], [], []>} : vector<32x1152xbf16>, vector<1152x128xbf16>, vector<32x128xf32> -> vector<32x128xf32>
    %c0_3 = arith.constant 0 : index
    %c0_4 = arith.constant 0 : index
    %3 = vector.load %arg3[%c0_3, %c0_4] : memref<32x128xf32, #tpu.memory_space<vmem>>, vector<32x128xf32>
    tpu.vector_store %arg3[%c0_3, %c0_4], %2 {strides = array<i32>} : memref<32x128xf32, #tpu.memory_space<vmem>>, vector<32x128xf32>,
    %c0_i32 = arith.constant 0 : i32
    %4 = arith.cmpi eq, %arg0, %c0_i32 : i32
    %5 = arith.extui %4 : i1 to i32
    %c0_i32_5 = arith.constant 0 : i32
    %6 = arith.cmpi ne, %5, %c0_i32_5 : i32
    scf.if %6 {
      %cst_16 = arith.constant 0.000000e+00 : f32
      %18 = vector.broadcast %cst_16 : f32 to vector<1x128xf32>
      %c0_17 = arith.constant 0 : index
      %c0_18 = arith.constant 0 : index
      %19 = vector.load %arg4[%c0_17, %c0_18] : memref<1x128xf32, #tpu.memory_space<vmem>>, vector<1x128xf32>
      tpu.vector_store %arg4[%c0_17, %c0_18], %18 {strides = array<i32>} : memref<1x128xf32, #tpu.memory_space<vmem>>, vector<1x128xf32>,
      %cst_19 = arith.constant 0.000000e+00 : f32
      %20 = vector.broadcast %cst_19 : f32 to vector<1x128xf32>
      %c0_20 = arith.constant 0 : index
      %c0_21 = arith.constant 0 : index
      %21 = vector.load %arg5[%c0_20, %c0_21] : memref<1x128xf32, #tpu.memory_space<vmem>>, vector<1x128xf32>
      tpu.vector_store %arg5[%c0_20, %c0_21], %20 {strides = array<i32>} : memref<1x128xf32, #tpu.memory_space<vmem>>, vector<1x128xf32>,
    } else {
    }
    %c0_6 = arith.constant 0 : index
    %c0_7 = arith.constant 0 : index
    %7 = vector.load %arg4[%c0_6, %c0_7] : memref<1x128xf32, #tpu.memory_space<vmem>>, vector<1x128xf32>
    %cst_8 = arith.constant dense<0.000000e+00> : vector<128xf32>
    %8 = vector.multi_reduction <add>, %2, %cst_8 [0] : vector<32x128xf32> to vector<128xf32>
    %9 = vector.shape_cast %8 : vector<128xf32> to vector<1x128xf32>
    %10 = arith.addf %7, %9 : vector<1x128xf32>
    %c0_9 = arith.constant 0 : index
    %c0_10 = arith.constant 0 : index
    %11 = vector.load %arg4[%c0_9, %c0_10] : memref<1x128xf32, #tpu.memory_space<vmem>>, vector<1x128xf32>
    tpu.vector_store %arg4[%c0_9, %c0_10], %10 {strides = array<i32>} : memref<1x128xf32, #tpu.memory_space<vmem>>, vector<1x128xf32>,
    %c0_11 = arith.constant 0 : index
    %c0_12 = arith.constant 0 : index
    %12 = vector.load %arg5[%c0_11, %c0_12] : memref<1x128xf32, #tpu.memory_space<vmem>>, vector<1x128xf32>
    %13 = arith.mulf %2, %2 : vector<32x128xf32>
    %cst_13 = arith.constant dense<0.000000e+00> : vector<128xf32>
    %14 = vector.multi_reduction <add>, %13, %cst_13 [0] : vector<32x128xf32> to vector<128xf32>
    %15 = vector.shape_cast %14 : vector<128xf32> to vector<1x128xf32>
    %16 = arith.addf %12, %15 : vector<1x128xf32>
    %c0_14 = arith.constant 0 : index
    %c0_15 = arith.constant 0 : index
    %17 = vector.load %arg5[%c0_14, %c0_15] : memref<1x128xf32, #tpu.memory_space<vmem>>, vector<1x128xf32>
    tpu.vector_store %arg5[%c0_14, %c0_15], %16 {strides = array<i32>} : memref<1x128xf32, #tpu.memory_space<vmem>>, vector<1x128xf32>,
    return
  }
  func.func @transform_0(%arg0: i32) -> (i32, i32) {
    %c0_i32 = arith.constant 0 : i32
    %c0_i32_0 = arith.constant 0 : i32
    return %arg0, %c0_i32 : i32, i32
  }
  func.func @transform_1(%arg0: i32) -> (i32, i32) {
    %c0_i32 = arith.constant 0 : i32
    %c0_i32_0 = arith.constant 0 : i32
    %c0_i32_1 = arith.constant 0 : i32
    return %c0_i32, %c0_i32_0 : i32, i32
  }
  func.func @transform_2(%arg0: i32) -> (i32, i32) {
    %c0_i32 = arith.constant 0 : i32
    %c0_i32_0 = arith.constant 0 : i32
    return %arg0, %c0_i32 : i32, i32
  }
  func.func @transform_3(%arg0: i32) -> (i32, i32) {
    %c0_i32 = arith.constant 0 : i32
    %c0_i32_0 = arith.constant 0 : i32
    %c0_i32_1 = arith.constant 0 : i32
    return %c0_i32, %c0_i32_0 : i32, i32
  }
  func.func @transform_4(%arg0: i32) -> (i32, i32) {
    %c0_i32 = arith.constant 0 : i32
    %c0_i32_0 = arith.constant 0 : i32
    %c0_i32_1 = arith.constant 0 : i32
    return %c0_i32, %c0_i32_0 : i32, i32
  }
}

module attributes {stable_mosaic.version = 11 : i64} {
  func.func @_bn_act_kernel(%arg0: i32, %arg1: memref<32x128xf32, #tpu.memory_space<vmem>>, %arg2: memref<1x128xf32, #tpu.memory_space<vmem>>, %arg3: memref<1x128xf32, #tpu.memory_space<vmem>>, %arg4: memref<1x128xf32, #tpu.memory_space<vmem>>, %arg5: memref<1x128xf32, #tpu.memory_space<vmem>>, %arg6: memref<32x128xf32, #tpu.memory_space<vmem>>) attributes {dimension_semantics = [#tpu.dimension_semantics<parallel>], iteration_bounds = array<i64: 1>, scalar_prefetch = 0 : i64, scratch_operands = 0 : i64, tpu.core_type = #tpu.core_type<tc>, window_params = [{transform_indices = @transform_0, window_bounds = array<i64: 32, 128>}, {pipeline_mode = #tpu.pipeline_mode<synchronous>, transform_indices = @transform_1, window_bounds = array<i64: 1, 128>}, {pipeline_mode = #tpu.pipeline_mode<synchronous>, transform_indices = @transform_2, window_bounds = array<i64: 1, 128>}, {pipeline_mode = #tpu.pipeline_mode<synchronous>, transform_indices = @transform_3, window_bounds = array<i64: 1, 128>}, {pipeline_mode = #tpu.pipeline_mode<synchronous>, transform_indices = @transform_4, window_bounds = array<i64: 1, 128>}, {transform_indices = @transform_5, window_bounds = array<i64: 32, 128>}]} {
    %c0 = arith.constant 0 : index
    %c0_0 = arith.constant 0 : index
    %0 = vector.load %arg2[%c0, %c0_0] : memref<1x128xf32, #tpu.memory_space<vmem>>, vector<1x128xf32>
    %cst = arith.constant 3.125000e-02 : f32
    %1 = vector.broadcast %cst : f32 to vector<1x128xf32>
    %2 = arith.mulf %0, %1 : vector<1x128xf32>
    %c0_1 = arith.constant 0 : index
    %c0_2 = arith.constant 0 : index
    %3 = vector.load %arg3[%c0_1, %c0_2] : memref<1x128xf32, #tpu.memory_space<vmem>>, vector<1x128xf32>
    %cst_3 = arith.constant 3.125000e-02 : f32
    %4 = vector.broadcast %cst_3 : f32 to vector<1x128xf32>
    %5 = arith.mulf %3, %4 : vector<1x128xf32>
    %6 = arith.mulf %2, %2 : vector<1x128xf32>
    %7 = arith.subf %5, %6 : vector<1x128xf32>
    %cst_4 = arith.constant 0.000000e+00 : f32
    %8 = vector.broadcast %cst_4 : f32 to vector<1x128xf32>
    %9 = arith.maximumf %7, %8 : vector<1x128xf32>
    %c0_5 = arith.constant 0 : index
    %c0_6 = arith.constant 0 : index
    %10 = vector.load %arg4[%c0_5, %c0_6] : memref<1x128xf32, #tpu.memory_space<vmem>>, vector<1x128xf32>
    %cst_7 = arith.constant 9.99999974E-6 : f32
    %11 = vector.broadcast %cst_7 : f32 to vector<1x128xf32>
    %12 = arith.addf %9, %11 : vector<1x128xf32>
    %13 = math.rsqrt %12 : vector<1x128xf32>
    %14 = arith.mulf %10, %13 : vector<1x128xf32>
    %c0_8 = arith.constant 0 : index
    %c0_9 = arith.constant 0 : index
    %15 = vector.load %arg5[%c0_8, %c0_9] : memref<1x128xf32, #tpu.memory_space<vmem>>, vector<1x128xf32>
    %16 = arith.mulf %2, %14 : vector<1x128xf32>
    %17 = arith.subf %15, %16 : vector<1x128xf32>
    %c0_10 = arith.constant 0 : index
    %c0_11 = arith.constant 0 : index
    %18 = vector.load %arg1[%c0_10, %c0_11] : memref<32x128xf32, #tpu.memory_space<vmem>>, vector<32x128xf32>
    %19 = vector.broadcast %14 : vector<1x128xf32> to vector<32x128xf32>
    %20 = arith.mulf %18, %19 : vector<32x128xf32>
    %21 = vector.broadcast %17 : vector<1x128xf32> to vector<32x128xf32>
    %22 = arith.addf %20, %21 : vector<32x128xf32>
    %cst_12 = arith.constant 5.000000e-01 : f32
    %23 = vector.broadcast %cst_12 : f32 to vector<32x128xf32>
    %24 = arith.mulf %23, %22 : vector<32x128xf32>
    %cst_13 = arith.constant 0.707106769 : f32
    %25 = vector.broadcast %cst_13 : f32 to vector<32x128xf32>
    %26 = arith.mulf %22, %25 : vector<32x128xf32>
    %27 = math.erf %26 : vector<32x128xf32>
    %cst_14 = arith.constant 1.000000e+00 : f32
    %28 = vector.broadcast %cst_14 : f32 to vector<32x128xf32>
    %29 = arith.addf %28, %27 : vector<32x128xf32>
    %30 = arith.mulf %24, %29 : vector<32x128xf32>
    %c0_15 = arith.constant 0 : index
    %c0_16 = arith.constant 0 : index
    %31 = vector.load %arg6[%c0_15, %c0_16] : memref<32x128xf32, #tpu.memory_space<vmem>>, vector<32x128xf32>
    tpu.vector_store %arg6[%c0_15, %c0_16], %30 {strides = array<i32>} : memref<32x128xf32, #tpu.memory_space<vmem>>, vector<32x128xf32>,
    return
  }
  func.func @transform_0(%arg0: i32) -> (i32, i32) {
    %c0_i32 = arith.constant 0 : i32
    %c0_i32_0 = arith.constant 0 : i32
    return %arg0, %c0_i32 : i32, i32
  }
  func.func @transform_1(%arg0: i32) -> (i32, i32) {
    %c0_i32 = arith.constant 0 : i32
    %c0_i32_0 = arith.constant 0 : i32
    %c0_i32_1 = arith.constant 0 : i32
    return %c0_i32, %c0_i32_0 : i32, i32
  }
  func.func @transform_2(%arg0: i32) -> (i32, i32) {
    %c0_i32 = arith.constant 0 : i32
    %c0_i32_0 = arith.constant 0 : i32
    %c0_i32_1 = arith.constant 0 : i32
    return %c0_i32, %c0_i32_0 : i32, i32
  }
  func.func @transform_3(%arg0: i32) -> (i32, i32) {
    %c0_i32 = arith.constant 0 : i32
    %c0_i32_0 = arith.constant 0 : i32
    %c0_i32_1 = arith.constant 0 : i32
    return %c0_i32, %c0_i32_0 : i32, i32
  }
  func.func @transform_4(%arg0: i32) -> (i32, i32) {
    %c0_i32 = arith.constant 0 : i32
    %c0_i32_0 = arith.constant 0 : i32
    %c0_i32_1 = arith.constant 0 : i32
    return %c0_i32, %c0_i32_0 : i32, i32
  }
  func.func @transform_5(%arg0: i32) -> (i32, i32) {
    %c0_i32 = arith.constant 0 : i32
    %c0_i32_0 = arith.constant 0 : i32
    return %arg0, %c0_i32 : i32, i32
  }
}

module attributes {stable_mosaic.version = 11 : i64} {
  func.func @_bn_act_kernel(%arg0: i32, %arg1: memref<32x128xf32, #tpu.memory_space<vmem>>, %arg2: memref<1x128xf32, #tpu.memory_space<vmem>>, %arg3: memref<1x128xf32, #tpu.memory_space<vmem>>, %arg4: memref<1x128xf32, #tpu.memory_space<vmem>>, %arg5: memref<1x128xf32, #tpu.memory_space<vmem>>, %arg6: memref<32x128xf32, #tpu.memory_space<vmem>>, %arg7: memref<32x128xf32, #tpu.memory_space<vmem>>) attributes {dimension_semantics = [#tpu.dimension_semantics<parallel>], iteration_bounds = array<i64: 1>, scalar_prefetch = 0 : i64, scratch_operands = 0 : i64, tpu.core_type = #tpu.core_type<tc>, window_params = [{transform_indices = @transform_0, window_bounds = array<i64: 32, 128>}, {pipeline_mode = #tpu.pipeline_mode<synchronous>, transform_indices = @transform_1, window_bounds = array<i64: 1, 128>}, {pipeline_mode = #tpu.pipeline_mode<synchronous>, transform_indices = @transform_2, window_bounds = array<i64: 1, 128>}, {pipeline_mode = #tpu.pipeline_mode<synchronous>, transform_indices = @transform_3, window_bounds = array<i64: 1, 128>}, {pipeline_mode = #tpu.pipeline_mode<synchronous>, transform_indices = @transform_4, window_bounds = array<i64: 1, 128>}, {transform_indices = @transform_5, window_bounds = array<i64: 32, 128>}, {transform_indices = @transform_6, window_bounds = array<i64: 32, 128>}]} {
    %c0 = arith.constant 0 : index
    %c0_0 = arith.constant 0 : index
    %0 = vector.load %arg2[%c0, %c0_0] : memref<1x128xf32, #tpu.memory_space<vmem>>, vector<1x128xf32>
    %cst = arith.constant 3.125000e-02 : f32
    %1 = vector.broadcast %cst : f32 to vector<1x128xf32>
    %2 = arith.mulf %0, %1 : vector<1x128xf32>
    %c0_1 = arith.constant 0 : index
    %c0_2 = arith.constant 0 : index
    %3 = vector.load %arg3[%c0_1, %c0_2] : memref<1x128xf32, #tpu.memory_space<vmem>>, vector<1x128xf32>
    %cst_3 = arith.constant 3.125000e-02 : f32
    %4 = vector.broadcast %cst_3 : f32 to vector<1x128xf32>
    %5 = arith.mulf %3, %4 : vector<1x128xf32>
    %6 = arith.mulf %2, %2 : vector<1x128xf32>
    %7 = arith.subf %5, %6 : vector<1x128xf32>
    %cst_4 = arith.constant 0.000000e+00 : f32
    %8 = vector.broadcast %cst_4 : f32 to vector<1x128xf32>
    %9 = arith.maximumf %7, %8 : vector<1x128xf32>
    %c0_5 = arith.constant 0 : index
    %c0_6 = arith.constant 0 : index
    %10 = vector.load %arg4[%c0_5, %c0_6] : memref<1x128xf32, #tpu.memory_space<vmem>>, vector<1x128xf32>
    %cst_7 = arith.constant 9.99999974E-6 : f32
    %11 = vector.broadcast %cst_7 : f32 to vector<1x128xf32>
    %12 = arith.addf %9, %11 : vector<1x128xf32>
    %13 = math.rsqrt %12 : vector<1x128xf32>
    %14 = arith.mulf %10, %13 : vector<1x128xf32>
    %c0_8 = arith.constant 0 : index
    %c0_9 = arith.constant 0 : index
    %15 = vector.load %arg5[%c0_8, %c0_9] : memref<1x128xf32, #tpu.memory_space<vmem>>, vector<1x128xf32>
    %16 = arith.mulf %2, %14 : vector<1x128xf32>
    %17 = arith.subf %15, %16 : vector<1x128xf32>
    %c0_10 = arith.constant 0 : index
    %c0_11 = arith.constant 0 : index
    %18 = vector.load %arg1[%c0_10, %c0_11] : memref<32x128xf32, #tpu.memory_space<vmem>>, vector<32x128xf32>
    %19 = vector.broadcast %14 : vector<1x128xf32> to vector<32x128xf32>
    %20 = arith.mulf %18, %19 : vector<32x128xf32>
    %21 = vector.broadcast %17 : vector<1x128xf32> to vector<32x128xf32>
    %22 = arith.addf %20, %21 : vector<32x128xf32>
    %c0_12 = arith.constant 0 : index
    %c0_13 = arith.constant 0 : index
    %23 = vector.load %arg6[%c0_12, %c0_13] : memref<32x128xf32, #tpu.memory_space<vmem>>, vector<32x128xf32>
    %24 = arith.addf %22, %23 : vector<32x128xf32>
    %cst_14 = arith.constant 5.000000e-01 : f32
    %25 = vector.broadcast %cst_14 : f32 to vector<32x128xf32>
    %26 = arith.mulf %25, %24 : vector<32x128xf32>
    %cst_15 = arith.constant 0.707106769 : f32
    %27 = vector.broadcast %cst_15 : f32 to vector<32x128xf32>
    %28 = arith.mulf %24, %27 : vector<32x128xf32>
    %29 = math.erf %28 : vector<32x128xf32>
    %cst_16 = arith.constant 1.000000e+00 : f32
    %30 = vector.broadcast %cst_16 : f32 to vector<32x128xf32>
    %31 = arith.addf %30, %29 : vector<32x128xf32>
    %32 = arith.mulf %26, %31 : vector<32x128xf32>
    %c0_17 = arith.constant 0 : index
    %c0_18 = arith.constant 0 : index
    %33 = vector.load %arg7[%c0_17, %c0_18] : memref<32x128xf32, #tpu.memory_space<vmem>>, vector<32x128xf32>
    tpu.vector_store %arg7[%c0_17, %c0_18], %32 {strides = array<i32>} : memref<32x128xf32, #tpu.memory_space<vmem>>, vector<32x128xf32>,
    return
  }
  func.func @transform_0(%arg0: i32) -> (i32, i32) {
    %c0_i32 = arith.constant 0 : i32
    %c0_i32_0 = arith.constant 0 : i32
    return %arg0, %c0_i32 : i32, i32
  }
  func.func @transform_1(%arg0: i32) -> (i32, i32) {
    %c0_i32 = arith.constant 0 : i32
    %c0_i32_0 = arith.constant 0 : i32
    %c0_i32_1 = arith.constant 0 : i32
    return %c0_i32, %c0_i32_0 : i32, i32
  }
  func.func @transform_2(%arg0: i32) -> (i32, i32) {
    %c0_i32 = arith.constant 0 : i32
    %c0_i32_0 = arith.constant 0 : i32
    %c0_i32_1 = arith.constant 0 : i32
    return %c0_i32, %c0_i32_0 : i32, i32
  }
  func.func @transform_3(%arg0: i32) -> (i32, i32) {
    %c0_i32 = arith.constant 0 : i32
    %c0_i32_0 = arith.constant 0 : i32
    %c0_i32_1 = arith.constant 0 : i32
    return %c0_i32, %c0_i32_0 : i32, i32
  }
  func.func @transform_4(%arg0: i32) -> (i32, i32) {
    %c0_i32 = arith.constant 0 : i32
    %c0_i32_0 = arith.constant 0 : i32
    %c0_i32_1 = arith.constant 0 : i32
    return %c0_i32, %c0_i32_0 : i32, i32
  }
  func.func @transform_5(%arg0: i32) -> (i32, i32) {
    %c0_i32 = arith.constant 0 : i32
    %c0_i32_0 = arith.constant 0 : i32
    return %arg0, %c0_i32 : i32, i32
  }
  func.func @transform_6(%arg0: i32) -> (i32, i32) {
    %c0_i32 = arith.constant 0 : i32
    %c0_i32_0 = arith.constant 0 : i32
    return %arg0, %c0_i32 : i32, i32
  }
}

module attributes {stable_mosaic.version = 11 : i64} {
  func.func @_matmul_bias_kernel(%arg0: i32, %arg1: memref<32x128xbf16, #tpu.memory_space<vmem>>, %arg2: memref<128x128xbf16, #tpu.memory_space<vmem>>, %arg3: memref<1x128xf32, #tpu.memory_space<vmem>>, %arg4: memref<32x128xf32, #tpu.memory_space<vmem>>) attributes {dimension_semantics = [#tpu.dimension_semantics<parallel>], iteration_bounds = array<i64: 1>, scalar_prefetch = 0 : i64, scratch_operands = 0 : i64, tpu.core_type = #tpu.core_type<tc>, window_params = [{transform_indices = @transform_0, window_bounds = array<i64: 32, 128>}, {pipeline_mode = #tpu.pipeline_mode<synchronous>, transform_indices = @transform_1, window_bounds = array<i64: 128, 128>}, {pipeline_mode = #tpu.pipeline_mode<synchronous>, transform_indices = @transform_2, window_bounds = array<i64: 1, 128>}, {transform_indices = @transform_3, window_bounds = array<i64: 32, 128>}]} {
    %c0 = arith.constant 0 : index
    %c0_0 = arith.constant 0 : index
    %0 = vector.load %arg1[%c0, %c0_0] : memref<32x128xbf16, #tpu.memory_space<vmem>>, vector<32x128xbf16>
    %c0_1 = arith.constant 0 : index
    %c0_2 = arith.constant 0 : index
    %1 = vector.load %arg2[%c0_1, %c0_2] : memref<128x128xbf16, #tpu.memory_space<vmem>>, vector<128x128xbf16>
    %cst = arith.constant dense<0.000000e+00> : vector<32x128xf32>
    %2 = tpu.matmul %0, %1, %cst {dimension_numbers = #tpu.dot_dimension_numbers<[1], [0], [0], [1], [0, 0, 1, 1], [], []>} : vector<32x128xbf16>, vector<128x128xbf16>, vector<32x128xf32> -> vector<32x128xf32>
    %c0_3 = arith.constant 0 : index
    %c0_4 = arith.constant 0 : index
    %3 = vector.load %arg3[%c0_3, %c0_4] : memref<1x128xf32, #tpu.memory_space<vmem>>, vector<1x128xf32>
    %4 = vector.broadcast %3 : vector<1x128xf32> to vector<32x128xf32>
    %5 = arith.addf %2, %4 : vector<32x128xf32>
    %c0_5 = arith.constant 0 : index
    %c0_6 = arith.constant 0 : index
    %6 = vector.load %arg4[%c0_5, %c0_6] : memref<32x128xf32, #tpu.memory_space<vmem>>, vector<32x128xf32>
    tpu.vector_store %arg4[%c0_5, %c0_6], %5 {strides = array<i32>} : memref<32x128xf32, #tpu.memory_space<vmem>>, vector<32x128xf32>,
    return
  }
  func.func @transform_0(%arg0: i32) -> (i32, i32) {
    %c0_i32 = arith.constant 0 : i32
    %c0_i32_0 = arith.constant 0 : i32
    return %arg0, %c0_i32 : i32, i32
  }
  func.func @transform_1(%arg0: i32) -> (i32, i32) {
    %c0_i32 = arith.constant 0 : i32
    %c0_i32_0 = arith.constant 0 : i32
    %c0_i32_1 = arith.constant 0 : i32
    return %c0_i32, %c0_i32_0 : i32, i32
  }
  func.func @transform_2(%arg0: i32) -> (i32, i32) {
    %c0_i32 = arith.constant 0 : i32
    %c0_i32_0 = arith.constant 0 : i32
    %c0_i32_1 = arith.constant 0 : i32
    return %c0_i32, %c0_i32_0 : i32, i32
  }
  func.func @transform_3(%arg0: i32) -> (i32, i32) {
    %c0_i32 = arith.constant 0 : i32
    %c0_i32_0 = arith.constant 0 : i32
    return %arg0, %c0_i32 : i32, i32
  }
}

module attributes {stable_mosaic.version = 11 : i64} {
  func.func @_matmul_stats_kernel(%arg0: i32, %arg1: memref<8x1152xbf16, #tpu.memory_space<vmem>>, %arg2: memref<1152x128xbf16, #tpu.memory_space<vmem>>, %arg3: memref<8x128xf32, #tpu.memory_space<vmem>>, %arg4: memref<1x128xf32, #tpu.memory_space<vmem>>, %arg5: memref<1x128xf32, #tpu.memory_space<vmem>>) attributes {dimension_semantics = [#tpu.dimension_semantics<arbitrary>], iteration_bounds = array<i64: 1>, scalar_prefetch = 0 : i64, scratch_operands = 0 : i64, tpu.core_type = #tpu.core_type<tc>, window_params = [{transform_indices = @transform_0, window_bounds = array<i64: 8, 1152>}, {pipeline_mode = #tpu.pipeline_mode<synchronous>, transform_indices = @transform_1, window_bounds = array<i64: 1152, 128>}, {transform_indices = @transform_2, window_bounds = array<i64: 8, 128>}, {pipeline_mode = #tpu.pipeline_mode<synchronous>, transform_indices = @transform_3, window_bounds = array<i64: 1, 128>}, {pipeline_mode = #tpu.pipeline_mode<synchronous>, transform_indices = @transform_4, window_bounds = array<i64: 1, 128>}]} {
    %c0 = arith.constant 0 : index
    %c0_0 = arith.constant 0 : index
    %0 = vector.load %arg1[%c0, %c0_0] : memref<8x1152xbf16, #tpu.memory_space<vmem>>, vector<8x1152xbf16>
    %c0_1 = arith.constant 0 : index
    %c0_2 = arith.constant 0 : index
    %1 = vector.load %arg2[%c0_1, %c0_2] : memref<1152x128xbf16, #tpu.memory_space<vmem>>, vector<1152x128xbf16>
    %cst = arith.constant dense<0.000000e+00> : vector<8x128xf32>
    %2 = tpu.matmul %0, %1, %cst {dimension_numbers = #tpu.dot_dimension_numbers<[1], [0], [0], [1], [0, 0, 1, 1], [], []>} : vector<8x1152xbf16>, vector<1152x128xbf16>, vector<8x128xf32> -> vector<8x128xf32>
    %c0_3 = arith.constant 0 : index
    %c0_4 = arith.constant 0 : index
    %3 = vector.load %arg3[%c0_3, %c0_4] : memref<8x128xf32, #tpu.memory_space<vmem>>, vector<8x128xf32>
    tpu.vector_store %arg3[%c0_3, %c0_4], %2 {strides = array<i32>} : memref<8x128xf32, #tpu.memory_space<vmem>>, vector<8x128xf32>,
    %c0_i32 = arith.constant 0 : i32
    %4 = arith.cmpi eq, %arg0, %c0_i32 : i32
    %5 = arith.extui %4 : i1 to i32
    %c0_i32_5 = arith.constant 0 : i32
    %6 = arith.cmpi ne, %5, %c0_i32_5 : i32
    scf.if %6 {
      %cst_16 = arith.constant 0.000000e+00 : f32
      %18 = vector.broadcast %cst_16 : f32 to vector<1x128xf32>
      %c0_17 = arith.constant 0 : index
      %c0_18 = arith.constant 0 : index
      %19 = vector.load %arg4[%c0_17, %c0_18] : memref<1x128xf32, #tpu.memory_space<vmem>>, vector<1x128xf32>
      tpu.vector_store %arg4[%c0_17, %c0_18], %18 {strides = array<i32>} : memref<1x128xf32, #tpu.memory_space<vmem>>, vector<1x128xf32>,
      %cst_19 = arith.constant 0.000000e+00 : f32
      %20 = vector.broadcast %cst_19 : f32 to vector<1x128xf32>
      %c0_20 = arith.constant 0 : index
      %c0_21 = arith.constant 0 : index
      %21 = vector.load %arg5[%c0_20, %c0_21] : memref<1x128xf32, #tpu.memory_space<vmem>>, vector<1x128xf32>
      tpu.vector_store %arg5[%c0_20, %c0_21], %20 {strides = array<i32>} : memref<1x128xf32, #tpu.memory_space<vmem>>, vector<1x128xf32>,
    } else {
    }
    %c0_6 = arith.constant 0 : index
    %c0_7 = arith.constant 0 : index
    %7 = vector.load %arg4[%c0_6, %c0_7] : memref<1x128xf32, #tpu.memory_space<vmem>>, vector<1x128xf32>
    %cst_8 = arith.constant dense<0.000000e+00> : vector<128xf32>
    %8 = vector.multi_reduction <add>, %2, %cst_8 [0] : vector<8x128xf32> to vector<128xf32>
    %9 = vector.shape_cast %8 : vector<128xf32> to vector<1x128xf32>
    %10 = arith.addf %7, %9 : vector<1x128xf32>
    %c0_9 = arith.constant 0 : index
    %c0_10 = arith.constant 0 : index
    %11 = vector.load %arg4[%c0_9, %c0_10] : memref<1x128xf32, #tpu.memory_space<vmem>>, vector<1x128xf32>
    tpu.vector_store %arg4[%c0_9, %c0_10], %10 {strides = array<i32>} : memref<1x128xf32, #tpu.memory_space<vmem>>, vector<1x128xf32>,
    %c0_11 = arith.constant 0 : index
    %c0_12 = arith.constant 0 : index
    %12 = vector.load %arg5[%c0_11, %c0_12] : memref<1x128xf32, #tpu.memory_space<vmem>>, vector<1x128xf32>
    %13 = arith.mulf %2, %2 : vector<8x128xf32>
    %cst_13 = arith.constant dense<0.000000e+00> : vector<128xf32>
    %14 = vector.multi_reduction <add>, %13, %cst_13 [0] : vector<8x128xf32> to vector<128xf32>
    %15 = vector.shape_cast %14 : vector<128xf32> to vector<1x128xf32>
    %16 = arith.addf %12, %15 : vector<1x128xf32>
    %c0_14 = arith.constant 0 : index
    %c0_15 = arith.constant 0 : index
    %17 = vector.load %arg5[%c0_14, %c0_15] : memref<1x128xf32, #tpu.memory_space<vmem>>, vector<1x128xf32>
    tpu.vector_store %arg5[%c0_14, %c0_15], %16 {strides = array<i32>} : memref<1x128xf32, #tpu.memory_space<vmem>>, vector<1x128xf32>,
    return
  }
  func.func @transform_0(%arg0: i32) -> (i32, i32) {
    %c0_i32 = arith.constant 0 : i32
    %c0_i32_0 = arith.constant 0 : i32
    return %arg0, %c0_i32 : i32, i32
  }
  func.func @transform_1(%arg0: i32) -> (i32, i32) {
    %c0_i32 = arith.constant 0 : i32
    %c0_i32_0 = arith.constant 0 : i32
    %c0_i32_1 = arith.constant 0 : i32
    return %c0_i32, %c0_i32_0 : i32, i32
  }
  func.func @transform_2(%arg0: i32) -> (i32, i32) {
    %c0_i32 = arith.constant 0 : i32
    %c0_i32_0 = arith.constant 0 : i32
    return %arg0, %c0_i32 : i32, i32
  }
  func.func @transform_3(%arg0: i32) -> (i32, i32) {
    %c0_i32 = arith.constant 0 : i32
    %c0_i32_0 = arith.constant 0 : i32
    %c0_i32_1 = arith.constant 0 : i32
    return %c0_i32, %c0_i32_0 : i32, i32
  }
  func.func @transform_4(%arg0: i32) -> (i32, i32) {
    %c0_i32 = arith.constant 0 : i32
    %c0_i32_0 = arith.constant 0 : i32
    %c0_i32_1 = arith.constant 0 : i32
    return %c0_i32, %c0_i32_0 : i32, i32
  }
}

module attributes {stable_mosaic.version = 11 : i64} {
  func.func @_bn_act_kernel(%arg0: i32, %arg1: memref<8x128xf32, #tpu.memory_space<vmem>>, %arg2: memref<1x128xf32, #tpu.memory_space<vmem>>, %arg3: memref<1x128xf32, #tpu.memory_space<vmem>>, %arg4: memref<1x128xf32, #tpu.memory_space<vmem>>, %arg5: memref<1x128xf32, #tpu.memory_space<vmem>>, %arg6: memref<8x128xf32, #tpu.memory_space<vmem>>) attributes {dimension_semantics = [#tpu.dimension_semantics<parallel>], iteration_bounds = array<i64: 1>, scalar_prefetch = 0 : i64, scratch_operands = 0 : i64, tpu.core_type = #tpu.core_type<tc>, window_params = [{transform_indices = @transform_0, window_bounds = array<i64: 8, 128>}, {pipeline_mode = #tpu.pipeline_mode<synchronous>, transform_indices = @transform_1, window_bounds = array<i64: 1, 128>}, {pipeline_mode = #tpu.pipeline_mode<synchronous>, transform_indices = @transform_2, window_bounds = array<i64: 1, 128>}, {pipeline_mode = #tpu.pipeline_mode<synchronous>, transform_indices = @transform_3, window_bounds = array<i64: 1, 128>}, {pipeline_mode = #tpu.pipeline_mode<synchronous>, transform_indices = @transform_4, window_bounds = array<i64: 1, 128>}, {transform_indices = @transform_5, window_bounds = array<i64: 8, 128>}]} {
    %c0 = arith.constant 0 : index
    %c0_0 = arith.constant 0 : index
    %0 = vector.load %arg2[%c0, %c0_0] : memref<1x128xf32, #tpu.memory_space<vmem>>, vector<1x128xf32>
    %cst = arith.constant 1.250000e-01 : f32
    %1 = vector.broadcast %cst : f32 to vector<1x128xf32>
    %2 = arith.mulf %0, %1 : vector<1x128xf32>
    %c0_1 = arith.constant 0 : index
    %c0_2 = arith.constant 0 : index
    %3 = vector.load %arg3[%c0_1, %c0_2] : memref<1x128xf32, #tpu.memory_space<vmem>>, vector<1x128xf32>
    %cst_3 = arith.constant 1.250000e-01 : f32
    %4 = vector.broadcast %cst_3 : f32 to vector<1x128xf32>
    %5 = arith.mulf %3, %4 : vector<1x128xf32>
    %6 = arith.mulf %2, %2 : vector<1x128xf32>
    %7 = arith.subf %5, %6 : vector<1x128xf32>
    %cst_4 = arith.constant 0.000000e+00 : f32
    %8 = vector.broadcast %cst_4 : f32 to vector<1x128xf32>
    %9 = arith.maximumf %7, %8 : vector<1x128xf32>
    %c0_5 = arith.constant 0 : index
    %c0_6 = arith.constant 0 : index
    %10 = vector.load %arg4[%c0_5, %c0_6] : memref<1x128xf32, #tpu.memory_space<vmem>>, vector<1x128xf32>
    %cst_7 = arith.constant 9.99999974E-6 : f32
    %11 = vector.broadcast %cst_7 : f32 to vector<1x128xf32>
    %12 = arith.addf %9, %11 : vector<1x128xf32>
    %13 = math.rsqrt %12 : vector<1x128xf32>
    %14 = arith.mulf %10, %13 : vector<1x128xf32>
    %c0_8 = arith.constant 0 : index
    %c0_9 = arith.constant 0 : index
    %15 = vector.load %arg5[%c0_8, %c0_9] : memref<1x128xf32, #tpu.memory_space<vmem>>, vector<1x128xf32>
    %16 = arith.mulf %2, %14 : vector<1x128xf32>
    %17 = arith.subf %15, %16 : vector<1x128xf32>
    %c0_10 = arith.constant 0 : index
    %c0_11 = arith.constant 0 : index
    %18 = vector.load %arg1[%c0_10, %c0_11] : memref<8x128xf32, #tpu.memory_space<vmem>>, vector<8x128xf32>
    %19 = vector.broadcast %14 : vector<1x128xf32> to vector<8x128xf32>
    %20 = arith.mulf %18, %19 : vector<8x128xf32>
    %21 = vector.broadcast %17 : vector<1x128xf32> to vector<8x128xf32>
    %22 = arith.addf %20, %21 : vector<8x128xf32>
    %cst_12 = arith.constant 5.000000e-01 : f32
    %23 = vector.broadcast %cst_12 : f32 to vector<8x128xf32>
    %24 = arith.mulf %23, %22 : vector<8x128xf32>
    %cst_13 = arith.constant 0.707106769 : f32
    %25 = vector.broadcast %cst_13 : f32 to vector<8x128xf32>
    %26 = arith.mulf %22, %25 : vector<8x128xf32>
    %27 = math.erf %26 : vector<8x128xf32>
    %cst_14 = arith.constant 1.000000e+00 : f32
    %28 = vector.broadcast %cst_14 : f32 to vector<8x128xf32>
    %29 = arith.addf %28, %27 : vector<8x128xf32>
    %30 = arith.mulf %24, %29 : vector<8x128xf32>
    %c0_15 = arith.constant 0 : index
    %c0_16 = arith.constant 0 : index
    %31 = vector.load %arg6[%c0_15, %c0_16] : memref<8x128xf32, #tpu.memory_space<vmem>>, vector<8x128xf32>
    tpu.vector_store %arg6[%c0_15, %c0_16], %30 {strides = array<i32>} : memref<8x128xf32, #tpu.memory_space<vmem>>, vector<8x128xf32>,
    return
  }
  func.func @transform_0(%arg0: i32) -> (i32, i32) {
    %c0_i32 = arith.constant 0 : i32
    %c0_i32_0 = arith.constant 0 : i32
    return %arg0, %c0_i32 : i32, i32
  }
  func.func @transform_1(%arg0: i32) -> (i32, i32) {
    %c0_i32 = arith.constant 0 : i32
    %c0_i32_0 = arith.constant 0 : i32
    %c0_i32_1 = arith.constant 0 : i32
    return %c0_i32, %c0_i32_0 : i32, i32
  }
  func.func @transform_2(%arg0: i32) -> (i32, i32) {
    %c0_i32 = arith.constant 0 : i32
    %c0_i32_0 = arith.constant 0 : i32
    %c0_i32_1 = arith.constant 0 : i32
    return %c0_i32, %c0_i32_0 : i32, i32
  }
  func.func @transform_3(%arg0: i32) -> (i32, i32) {
    %c0_i32 = arith.constant 0 : i32
    %c0_i32_0 = arith.constant 0 : i32
    %c0_i32_1 = arith.constant 0 : i32
    return %c0_i32, %c0_i32_0 : i32, i32
  }
  func.func @transform_4(%arg0: i32) -> (i32, i32) {
    %c0_i32 = arith.constant 0 : i32
    %c0_i32_0 = arith.constant 0 : i32
    %c0_i32_1 = arith.constant 0 : i32
    return %c0_i32, %c0_i32_0 : i32, i32
  }
  func.func @transform_5(%arg0: i32) -> (i32, i32) {
    %c0_i32 = arith.constant 0 : i32
    %c0_i32_0 = arith.constant 0 : i32
    return %arg0, %c0_i32 : i32, i32
  }
}

module attributes {stable_mosaic.version = 11 : i64} {
  func.func @_matmul_bias_kernel(%arg0: i32, %arg1: memref<8x128xbf16, #tpu.memory_space<vmem>>, %arg2: memref<128x128xbf16, #tpu.memory_space<vmem>>, %arg3: memref<1x128xf32, #tpu.memory_space<vmem>>, %arg4: memref<8x128xf32, #tpu.memory_space<vmem>>) attributes {dimension_semantics = [#tpu.dimension_semantics<parallel>], iteration_bounds = array<i64: 1>, scalar_prefetch = 0 : i64, scratch_operands = 0 : i64, tpu.core_type = #tpu.core_type<tc>, window_params = [{transform_indices = @transform_0, window_bounds = array<i64: 8, 128>}, {pipeline_mode = #tpu.pipeline_mode<synchronous>, transform_indices = @transform_1, window_bounds = array<i64: 128, 128>}, {pipeline_mode = #tpu.pipeline_mode<synchronous>, transform_indices = @transform_2, window_bounds = array<i64: 1, 128>}, {transform_indices = @transform_3, window_bounds = array<i64: 8, 128>}]} {
    %c0 = arith.constant 0 : index
    %c0_0 = arith.constant 0 : index
    %0 = vector.load %arg1[%c0, %c0_0] : memref<8x128xbf16, #tpu.memory_space<vmem>>, vector<8x128xbf16>
    %c0_1 = arith.constant 0 : index
    %c0_2 = arith.constant 0 : index
    %1 = vector.load %arg2[%c0_1, %c0_2] : memref<128x128xbf16, #tpu.memory_space<vmem>>, vector<128x128xbf16>
    %cst = arith.constant dense<0.000000e+00> : vector<8x128xf32>
    %2 = tpu.matmul %0, %1, %cst {dimension_numbers = #tpu.dot_dimension_numbers<[1], [0], [0], [1], [0, 0, 1, 1], [], []>} : vector<8x128xbf16>, vector<128x128xbf16>, vector<8x128xf32> -> vector<8x128xf32>
    %c0_3 = arith.constant 0 : index
    %c0_4 = arith.constant 0 : index
    %3 = vector.load %arg3[%c0_3, %c0_4] : memref<1x128xf32, #tpu.memory_space<vmem>>, vector<1x128xf32>
    %4 = vector.broadcast %3 : vector<1x128xf32> to vector<8x128xf32>
    %5 = arith.addf %2, %4 : vector<8x128xf32>
    %c0_5 = arith.constant 0 : index
    %c0_6 = arith.constant 0 : index
    %6 = vector.load %arg4[%c0_5, %c0_6] : memref<8x128xf32, #tpu.memory_space<vmem>>, vector<8x128xf32>
    tpu.vector_store %arg4[%c0_5, %c0_6], %5 {strides = array<i32>} : memref<8x128xf32, #tpu.memory_space<vmem>>, vector<8x128xf32>,
    return
  }
  func.func @transform_0(%arg0: i32) -> (i32, i32) {
    %c0_i32 = arith.constant 0 : i32
    %c0_i32_0 = arith.constant 0 : i32
    return %arg0, %c0_i32 : i32, i32
  }
  func.func @transform_1(%arg0: i32) -> (i32, i32) {
    %c0_i32 = arith.constant 0 : i32
    %c0_i32_0 = arith.constant 0 : i32
    %c0_i32_1 = arith.constant 0 : i32
    return %c0_i32, %c0_i32_0 : i32, i32
  }
  func.func @transform_2(%arg0: i32) -> (i32, i32) {
    %c0_i32 = arith.constant 0 : i32
    %c0_i32_0 = arith.constant 0 : i32
    %c0_i32_1 = arith.constant 0 : i32
    return %c0_i32, %c0_i32_0 : i32, i32
  }
  func.func @transform_3(%arg0: i32) -> (i32, i32) {
    %c0_i32 = arith.constant 0 : i32
    %c0_i32_0 = arith.constant 0 : i32
    return %arg0, %c0_i32 : i32, i32
  }
}

module attributes {stable_mosaic.version = 11 : i64} {
  func.func @_bn_act_kernel(%arg0: i32, %arg1: memref<8x128xf32, #tpu.memory_space<vmem>>, %arg2: memref<1x128xf32, #tpu.memory_space<vmem>>, %arg3: memref<1x128xf32, #tpu.memory_space<vmem>>, %arg4: memref<1x128xf32, #tpu.memory_space<vmem>>, %arg5: memref<1x128xf32, #tpu.memory_space<vmem>>, %arg6: memref<8x128xf32, #tpu.memory_space<vmem>>, %arg7: memref<8x128xf32, #tpu.memory_space<vmem>>) attributes {dimension_semantics = [#tpu.dimension_semantics<parallel>], iteration_bounds = array<i64: 1>, scalar_prefetch = 0 : i64, scratch_operands = 0 : i64, tpu.core_type = #tpu.core_type<tc>, window_params = [{transform_indices = @transform_0, window_bounds = array<i64: 8, 128>}, {pipeline_mode = #tpu.pipeline_mode<synchronous>, transform_indices = @transform_1, window_bounds = array<i64: 1, 128>}, {pipeline_mode = #tpu.pipeline_mode<synchronous>, transform_indices = @transform_2, window_bounds = array<i64: 1, 128>}, {pipeline_mode = #tpu.pipeline_mode<synchronous>, transform_indices = @transform_3, window_bounds = array<i64: 1, 128>}, {pipeline_mode = #tpu.pipeline_mode<synchronous>, transform_indices = @transform_4, window_bounds = array<i64: 1, 128>}, {transform_indices = @transform_5, window_bounds = array<i64: 8, 128>}, {transform_indices = @transform_6, window_bounds = array<i64: 8, 128>}]} {
    %c0 = arith.constant 0 : index
    %c0_0 = arith.constant 0 : index
    %0 = vector.load %arg2[%c0, %c0_0] : memref<1x128xf32, #tpu.memory_space<vmem>>, vector<1x128xf32>
    %cst = arith.constant 1.250000e-01 : f32
    %1 = vector.broadcast %cst : f32 to vector<1x128xf32>
    %2 = arith.mulf %0, %1 : vector<1x128xf32>
    %c0_1 = arith.constant 0 : index
    %c0_2 = arith.constant 0 : index
    %3 = vector.load %arg3[%c0_1, %c0_2] : memref<1x128xf32, #tpu.memory_space<vmem>>, vector<1x128xf32>
    %cst_3 = arith.constant 1.250000e-01 : f32
    %4 = vector.broadcast %cst_3 : f32 to vector<1x128xf32>
    %5 = arith.mulf %3, %4 : vector<1x128xf32>
    %6 = arith.mulf %2, %2 : vector<1x128xf32>
    %7 = arith.subf %5, %6 : vector<1x128xf32>
    %cst_4 = arith.constant 0.000000e+00 : f32
    %8 = vector.broadcast %cst_4 : f32 to vector<1x128xf32>
    %9 = arith.maximumf %7, %8 : vector<1x128xf32>
    %c0_5 = arith.constant 0 : index
    %c0_6 = arith.constant 0 : index
    %10 = vector.load %arg4[%c0_5, %c0_6] : memref<1x128xf32, #tpu.memory_space<vmem>>, vector<1x128xf32>
    %cst_7 = arith.constant 9.99999974E-6 : f32
    %11 = vector.broadcast %cst_7 : f32 to vector<1x128xf32>
    %12 = arith.addf %9, %11 : vector<1x128xf32>
    %13 = math.rsqrt %12 : vector<1x128xf32>
    %14 = arith.mulf %10, %13 : vector<1x128xf32>
    %c0_8 = arith.constant 0 : index
    %c0_9 = arith.constant 0 : index
    %15 = vector.load %arg5[%c0_8, %c0_9] : memref<1x128xf32, #tpu.memory_space<vmem>>, vector<1x128xf32>
    %16 = arith.mulf %2, %14 : vector<1x128xf32>
    %17 = arith.subf %15, %16 : vector<1x128xf32>
    %c0_10 = arith.constant 0 : index
    %c0_11 = arith.constant 0 : index
    %18 = vector.load %arg1[%c0_10, %c0_11] : memref<8x128xf32, #tpu.memory_space<vmem>>, vector<8x128xf32>
    %19 = vector.broadcast %14 : vector<1x128xf32> to vector<8x128xf32>
    %20 = arith.mulf %18, %19 : vector<8x128xf32>
    %21 = vector.broadcast %17 : vector<1x128xf32> to vector<8x128xf32>
    %22 = arith.addf %20, %21 : vector<8x128xf32>
    %c0_12 = arith.constant 0 : index
    %c0_13 = arith.constant 0 : index
    %23 = vector.load %arg6[%c0_12, %c0_13] : memref<8x128xf32, #tpu.memory_space<vmem>>, vector<8x128xf32>
    %24 = arith.addf %22, %23 : vector<8x128xf32>
    %cst_14 = arith.constant 5.000000e-01 : f32
    %25 = vector.broadcast %cst_14 : f32 to vector<8x128xf32>
    %26 = arith.mulf %25, %24 : vector<8x128xf32>
    %cst_15 = arith.constant 0.707106769 : f32
    %27 = vector.broadcast %cst_15 : f32 to vector<8x128xf32>
    %28 = arith.mulf %24, %27 : vector<8x128xf32>
    %29 = math.erf %28 : vector<8x128xf32>
    %cst_16 = arith.constant 1.000000e+00 : f32
    %30 = vector.broadcast %cst_16 : f32 to vector<8x128xf32>
    %31 = arith.addf %30, %29 : vector<8x128xf32>
    %32 = arith.mulf %26, %31 : vector<8x128xf32>
    %c0_17 = arith.constant 0 : index
    %c0_18 = arith.constant 0 : index
    %33 = vector.load %arg7[%c0_17, %c0_18] : memref<8x128xf32, #tpu.memory_space<vmem>>, vector<8x128xf32>
    tpu.vector_store %arg7[%c0_17, %c0_18], %32 {strides = array<i32>} : memref<8x128xf32, #tpu.memory_space<vmem>>, vector<8x128xf32>,
    return
  }
  func.func @transform_0(%arg0: i32) -> (i32, i32) {
    %c0_i32 = arith.constant 0 : i32
    %c0_i32_0 = arith.constant 0 : i32
    return %arg0, %c0_i32 : i32, i32
  }
  func.func @transform_1(%arg0: i32) -> (i32, i32) {
    %c0_i32 = arith.constant 0 : i32
    %c0_i32_0 = arith.constant 0 : i32
    %c0_i32_1 = arith.constant 0 : i32
    return %c0_i32, %c0_i32_0 : i32, i32
  }
  func.func @transform_2(%arg0: i32) -> (i32, i32) {
    %c0_i32 = arith.constant 0 : i32
    %c0_i32_0 = arith.constant 0 : i32
    %c0_i32_1 = arith.constant 0 : i32
    return %c0_i32, %c0_i32_0 : i32, i32
  }
  func.func @transform_3(%arg0: i32) -> (i32, i32) {
    %c0_i32 = arith.constant 0 : i32
    %c0_i32_0 = arith.constant 0 : i32
    %c0_i32_1 = arith.constant 0 : i32
    return %c0_i32, %c0_i32_0 : i32, i32
  }
  func.func @transform_4(%arg0: i32) -> (i32, i32) {
    %c0_i32 = arith.constant 0 : i32
    %c0_i32_0 = arith.constant 0 : i32
    %c0_i32_1 = arith.constant 0 : i32
    return %c0_i32, %c0_i32_0 : i32, i32
  }
  func.func @transform_5(%arg0: i32) -> (i32, i32) {
    %c0_i32 = arith.constant 0 : i32
    %c0_i32_0 = arith.constant 0 : i32
    return %arg0, %c0_i32 : i32, i32
  }
  func.func @transform_6(%arg0: i32) -> (i32, i32) {
    %c0_i32 = arith.constant 0 : i32
    %c0_i32_0 = arith.constant 0 : i32
    return %arg0, %c0_i32 : i32, i32
  }
}

module attributes {stable_mosaic.version = 11 : i64} {
  func.func @_bn_act_kernel(%arg0: i32, %arg1: memref<2x128xf32, #tpu.memory_space<vmem>>, %arg2: memref<1x128xf32, #tpu.memory_space<vmem>>, %arg3: memref<1x128xf32, #tpu.memory_space<vmem>>, %arg4: memref<1x128xf32, #tpu.memory_space<vmem>>, %arg5: memref<1x128xf32, #tpu.memory_space<vmem>>, %arg6: memref<2x128xf32, #tpu.memory_space<vmem>>) attributes {dimension_semantics = [#tpu.dimension_semantics<parallel>], iteration_bounds = array<i64: 1>, scalar_prefetch = 0 : i64, scratch_operands = 0 : i64, tpu.core_type = #tpu.core_type<tc>, window_params = [{transform_indices = @transform_0, window_bounds = array<i64: 2, 128>}, {pipeline_mode = #tpu.pipeline_mode<synchronous>, transform_indices = @transform_1, window_bounds = array<i64: 1, 128>}, {pipeline_mode = #tpu.pipeline_mode<synchronous>, transform_indices = @transform_2, window_bounds = array<i64: 1, 128>}, {pipeline_mode = #tpu.pipeline_mode<synchronous>, transform_indices = @transform_3, window_bounds = array<i64: 1, 128>}, {pipeline_mode = #tpu.pipeline_mode<synchronous>, transform_indices = @transform_4, window_bounds = array<i64: 1, 128>}, {transform_indices = @transform_5, window_bounds = array<i64: 2, 128>}]} {
    %c0 = arith.constant 0 : index
    %c0_0 = arith.constant 0 : index
    %0 = vector.load %arg2[%c0, %c0_0] : memref<1x128xf32, #tpu.memory_space<vmem>>, vector<1x128xf32>
    %cst = arith.constant 5.000000e-01 : f32
    %1 = vector.broadcast %cst : f32 to vector<1x128xf32>
    %2 = arith.mulf %0, %1 : vector<1x128xf32>
    %c0_1 = arith.constant 0 : index
    %c0_2 = arith.constant 0 : index
    %3 = vector.load %arg3[%c0_1, %c0_2] : memref<1x128xf32, #tpu.memory_space<vmem>>, vector<1x128xf32>
    %cst_3 = arith.constant 5.000000e-01 : f32
    %4 = vector.broadcast %cst_3 : f32 to vector<1x128xf32>
    %5 = arith.mulf %3, %4 : vector<1x128xf32>
    %6 = arith.mulf %2, %2 : vector<1x128xf32>
    %7 = arith.subf %5, %6 : vector<1x128xf32>
    %cst_4 = arith.constant 0.000000e+00 : f32
    %8 = vector.broadcast %cst_4 : f32 to vector<1x128xf32>
    %9 = arith.maximumf %7, %8 : vector<1x128xf32>
    %c0_5 = arith.constant 0 : index
    %c0_6 = arith.constant 0 : index
    %10 = vector.load %arg4[%c0_5, %c0_6] : memref<1x128xf32, #tpu.memory_space<vmem>>, vector<1x128xf32>
    %cst_7 = arith.constant 9.99999974E-6 : f32
    %11 = vector.broadcast %cst_7 : f32 to vector<1x128xf32>
    %12 = arith.addf %9, %11 : vector<1x128xf32>
    %13 = math.rsqrt %12 : vector<1x128xf32>
    %14 = arith.mulf %10, %13 : vector<1x128xf32>
    %c0_8 = arith.constant 0 : index
    %c0_9 = arith.constant 0 : index
    %15 = vector.load %arg5[%c0_8, %c0_9] : memref<1x128xf32, #tpu.memory_space<vmem>>, vector<1x128xf32>
    %16 = arith.mulf %2, %14 : vector<1x128xf32>
    %17 = arith.subf %15, %16 : vector<1x128xf32>
    %c0_10 = arith.constant 0 : index
    %c0_11 = arith.constant 0 : index
    %18 = vector.load %arg1[%c0_10, %c0_11] : memref<2x128xf32, #tpu.memory_space<vmem>>, vector<2x128xf32>
    %19 = vector.broadcast %14 : vector<1x128xf32> to vector<2x128xf32>
    %20 = arith.mulf %18, %19 : vector<2x128xf32>
    %21 = vector.broadcast %17 : vector<1x128xf32> to vector<2x128xf32>
    %22 = arith.addf %20, %21 : vector<2x128xf32>
    %cst_12 = arith.constant 5.000000e-01 : f32
    %23 = vector.broadcast %cst_12 : f32 to vector<2x128xf32>
    %24 = arith.mulf %23, %22 : vector<2x128xf32>
    %cst_13 = arith.constant 0.707106769 : f32
    %25 = vector.broadcast %cst_13 : f32 to vector<2x128xf32>
    %26 = arith.mulf %22, %25 : vector<2x128xf32>
    %27 = math.erf %26 : vector<2x128xf32>
    %cst_14 = arith.constant 1.000000e+00 : f32
    %28 = vector.broadcast %cst_14 : f32 to vector<2x128xf32>
    %29 = arith.addf %28, %27 : vector<2x128xf32>
    %30 = arith.mulf %24, %29 : vector<2x128xf32>
    %c0_15 = arith.constant 0 : index
    %c0_16 = arith.constant 0 : index
    %31 = vector.load %arg6[%c0_15, %c0_16] : memref<2x128xf32, #tpu.memory_space<vmem>>, vector<2x128xf32>
    tpu.vector_store %arg6[%c0_15, %c0_16], %30 {strides = array<i32>} : memref<2x128xf32, #tpu.memory_space<vmem>>, vector<2x128xf32>,
    return
  }
  func.func @transform_0(%arg0: i32) -> (i32, i32) {
    %c0_i32 = arith.constant 0 : i32
    %c0_i32_0 = arith.constant 0 : i32
    return %arg0, %c0_i32 : i32, i32
  }
  func.func @transform_1(%arg0: i32) -> (i32, i32) {
    %c0_i32 = arith.constant 0 : i32
    %c0_i32_0 = arith.constant 0 : i32
    %c0_i32_1 = arith.constant 0 : i32
    return %c0_i32, %c0_i32_0 : i32, i32
  }
  func.func @transform_2(%arg0: i32) -> (i32, i32) {
    %c0_i32 = arith.constant 0 : i32
    %c0_i32_0 = arith.constant 0 : i32
    %c0_i32_1 = arith.constant 0 : i32
    return %c0_i32, %c0_i32_0 : i32, i32
  }
  func.func @transform_3(%arg0: i32) -> (i32, i32) {
    %c0_i32 = arith.constant 0 : i32
    %c0_i32_0 = arith.constant 0 : i32
    %c0_i32_1 = arith.constant 0 : i32
    return %c0_i32, %c0_i32_0 : i32, i32
  }
  func.func @transform_4(%arg0: i32) -> (i32, i32) {
    %c0_i32 = arith.constant 0 : i32
    %c0_i32_0 = arith.constant 0 : i32
    %c0_i32_1 = arith.constant 0 : i32
    return %c0_i32, %c0_i32_0 : i32, i32
  }
  func.func @transform_5(%arg0: i32) -> (i32, i32) {
    %c0_i32 = arith.constant 0 : i32
    %c0_i32_0 = arith.constant 0 : i32
    return %arg0, %c0_i32 : i32, i32
  }
}

module attributes {stable_mosaic.version = 11 : i64} {
  func.func @_matmul_stats_kernel(%arg0: i32, %arg1: memref<2x1152xbf16, #tpu.memory_space<vmem>>, %arg2: memref<1152x128xbf16, #tpu.memory_space<vmem>>, %arg3: memref<2x128xf32, #tpu.memory_space<vmem>>, %arg4: memref<1x128xf32, #tpu.memory_space<vmem>>, %arg5: memref<1x128xf32, #tpu.memory_space<vmem>>) attributes {dimension_semantics = [#tpu.dimension_semantics<arbitrary>], iteration_bounds = array<i64: 1>, scalar_prefetch = 0 : i64, scratch_operands = 0 : i64, tpu.core_type = #tpu.core_type<tc>, window_params = [{transform_indices = @transform_0, window_bounds = array<i64: 2, 1152>}, {pipeline_mode = #tpu.pipeline_mode<synchronous>, transform_indices = @transform_1, window_bounds = array<i64: 1152, 128>}, {transform_indices = @transform_2, window_bounds = array<i64: 2, 128>}, {pipeline_mode = #tpu.pipeline_mode<synchronous>, transform_indices = @transform_3, window_bounds = array<i64: 1, 128>}, {pipeline_mode = #tpu.pipeline_mode<synchronous>, transform_indices = @transform_4, window_bounds = array<i64: 1, 128>}]} {
    %c0 = arith.constant 0 : index
    %c0_0 = arith.constant 0 : index
    %0 = vector.load %arg1[%c0, %c0_0] : memref<2x1152xbf16, #tpu.memory_space<vmem>>, vector<2x1152xbf16>
    %c0_1 = arith.constant 0 : index
    %c0_2 = arith.constant 0 : index
    %1 = vector.load %arg2[%c0_1, %c0_2] : memref<1152x128xbf16, #tpu.memory_space<vmem>>, vector<1152x128xbf16>
    %cst = arith.constant dense<0.000000e+00> : vector<2x128xf32>
    %2 = tpu.matmul %0, %1, %cst {dimension_numbers = #tpu.dot_dimension_numbers<[1], [0], [0], [1], [0, 0, 1, 1], [], []>} : vector<2x1152xbf16>, vector<1152x128xbf16>, vector<2x128xf32> -> vector<2x128xf32>
    %c0_3 = arith.constant 0 : index
    %c0_4 = arith.constant 0 : index
    %3 = vector.load %arg3[%c0_3, %c0_4] : memref<2x128xf32, #tpu.memory_space<vmem>>, vector<2x128xf32>
    tpu.vector_store %arg3[%c0_3, %c0_4], %2 {strides = array<i32>} : memref<2x128xf32, #tpu.memory_space<vmem>>, vector<2x128xf32>,
    %c0_i32 = arith.constant 0 : i32
    %4 = arith.cmpi eq, %arg0, %c0_i32 : i32
    %5 = arith.extui %4 : i1 to i32
    %c0_i32_5 = arith.constant 0 : i32
    %6 = arith.cmpi ne, %5, %c0_i32_5 : i32
    scf.if %6 {
      %cst_16 = arith.constant 0.000000e+00 : f32
      %18 = vector.broadcast %cst_16 : f32 to vector<1x128xf32>
      %c0_17 = arith.constant 0 : index
      %c0_18 = arith.constant 0 : index
      %19 = vector.load %arg4[%c0_17, %c0_18] : memref<1x128xf32, #tpu.memory_space<vmem>>, vector<1x128xf32>
      tpu.vector_store %arg4[%c0_17, %c0_18], %18 {strides = array<i32>} : memref<1x128xf32, #tpu.memory_space<vmem>>, vector<1x128xf32>,
      %cst_19 = arith.constant 0.000000e+00 : f32
      %20 = vector.broadcast %cst_19 : f32 to vector<1x128xf32>
      %c0_20 = arith.constant 0 : index
      %c0_21 = arith.constant 0 : index
      %21 = vector.load %arg5[%c0_20, %c0_21] : memref<1x128xf32, #tpu.memory_space<vmem>>, vector<1x128xf32>
      tpu.vector_store %arg5[%c0_20, %c0_21], %20 {strides = array<i32>} : memref<1x128xf32, #tpu.memory_space<vmem>>, vector<1x128xf32>,
    } else {
    }
    %c0_6 = arith.constant 0 : index
    %c0_7 = arith.constant 0 : index
    %7 = vector.load %arg4[%c0_6, %c0_7] : memref<1x128xf32, #tpu.memory_space<vmem>>, vector<1x128xf32>
    %cst_8 = arith.constant dense<0.000000e+00> : vector<128xf32>
    %8 = vector.multi_reduction <add>, %2, %cst_8 [0] : vector<2x128xf32> to vector<128xf32>
    %9 = vector.shape_cast %8 : vector<128xf32> to vector<1x128xf32>
    %10 = arith.addf %7, %9 : vector<1x128xf32>
    %c0_9 = arith.constant 0 : index
    %c0_10 = arith.constant 0 : index
    %11 = vector.load %arg4[%c0_9, %c0_10] : memref<1x128xf32, #tpu.memory_space<vmem>>, vector<1x128xf32>
    tpu.vector_store %arg4[%c0_9, %c0_10], %10 {strides = array<i32>} : memref<1x128xf32, #tpu.memory_space<vmem>>, vector<1x128xf32>,
    %c0_11 = arith.constant 0 : index
    %c0_12 = arith.constant 0 : index
    %12 = vector.load %arg5[%c0_11, %c0_12] : memref<1x128xf32, #tpu.memory_space<vmem>>, vector<1x128xf32>
    %13 = arith.mulf %2, %2 : vector<2x128xf32>
    %cst_13 = arith.constant dense<0.000000e+00> : vector<128xf32>
    %14 = vector.multi_reduction <add>, %13, %cst_13 [0] : vector<2x128xf32> to vector<128xf32>
    %15 = vector.shape_cast %14 : vector<128xf32> to vector<1x128xf32>
    %16 = arith.addf %12, %15 : vector<1x128xf32>
    %c0_14 = arith.constant 0 : index
    %c0_15 = arith.constant 0 : index
    %17 = vector.load %arg5[%c0_14, %c0_15] : memref<1x128xf32, #tpu.memory_space<vmem>>, vector<1x128xf32>
    tpu.vector_store %arg5[%c0_14, %c0_15], %16 {strides = array<i32>} : memref<1x128xf32, #tpu.memory_space<vmem>>, vector<1x128xf32>,
    return
  }
  func.func @transform_0(%arg0: i32) -> (i32, i32) {
    %c0_i32 = arith.constant 0 : i32
    %c0_i32_0 = arith.constant 0 : i32
    return %arg0, %c0_i32 : i32, i32
  }
  func.func @transform_1(%arg0: i32) -> (i32, i32) {
    %c0_i32 = arith.constant 0 : i32
    %c0_i32_0 = arith.constant 0 : i32
    %c0_i32_1 = arith.constant 0 : i32
    return %c0_i32, %c0_i32_0 : i32, i32
  }
  func.func @transform_2(%arg0: i32) -> (i32, i32) {
    %c0_i32 = arith.constant 0 : i32
    %c0_i32_0 = arith.constant 0 : i32
    return %arg0, %c0_i32 : i32, i32
  }
  func.func @transform_3(%arg0: i32) -> (i32, i32) {
    %c0_i32 = arith.constant 0 : i32
    %c0_i32_0 = arith.constant 0 : i32
    %c0_i32_1 = arith.constant 0 : i32
    return %c0_i32, %c0_i32_0 : i32, i32
  }
  func.func @transform_4(%arg0: i32) -> (i32, i32) {
    %c0_i32 = arith.constant 0 : i32
    %c0_i32_0 = arith.constant 0 : i32
    %c0_i32_1 = arith.constant 0 : i32
    return %c0_i32, %c0_i32_0 : i32, i32
  }
}

module attributes {stable_mosaic.version = 11 : i64} {
  func.func @_matmul_bias_kernel(%arg0: i32, %arg1: memref<2x128xbf16, #tpu.memory_space<vmem>>, %arg2: memref<128x128xbf16, #tpu.memory_space<vmem>>, %arg3: memref<1x128xf32, #tpu.memory_space<vmem>>, %arg4: memref<2x128xf32, #tpu.memory_space<vmem>>) attributes {dimension_semantics = [#tpu.dimension_semantics<parallel>], iteration_bounds = array<i64: 1>, scalar_prefetch = 0 : i64, scratch_operands = 0 : i64, tpu.core_type = #tpu.core_type<tc>, window_params = [{transform_indices = @transform_0, window_bounds = array<i64: 2, 128>}, {pipeline_mode = #tpu.pipeline_mode<synchronous>, transform_indices = @transform_1, window_bounds = array<i64: 128, 128>}, {pipeline_mode = #tpu.pipeline_mode<synchronous>, transform_indices = @transform_2, window_bounds = array<i64: 1, 128>}, {transform_indices = @transform_3, window_bounds = array<i64: 2, 128>}]} {
    %c0 = arith.constant 0 : index
    %c0_0 = arith.constant 0 : index
    %0 = vector.load %arg1[%c0, %c0_0] : memref<2x128xbf16, #tpu.memory_space<vmem>>, vector<2x128xbf16>
    %c0_1 = arith.constant 0 : index
    %c0_2 = arith.constant 0 : index
    %1 = vector.load %arg2[%c0_1, %c0_2] : memref<128x128xbf16, #tpu.memory_space<vmem>>, vector<128x128xbf16>
    %cst = arith.constant dense<0.000000e+00> : vector<2x128xf32>
    %2 = tpu.matmul %0, %1, %cst {dimension_numbers = #tpu.dot_dimension_numbers<[1], [0], [0], [1], [0, 0, 1, 1], [], []>} : vector<2x128xbf16>, vector<128x128xbf16>, vector<2x128xf32> -> vector<2x128xf32>
    %c0_3 = arith.constant 0 : index
    %c0_4 = arith.constant 0 : index
    %3 = vector.load %arg3[%c0_3, %c0_4] : memref<1x128xf32, #tpu.memory_space<vmem>>, vector<1x128xf32>
    %4 = vector.broadcast %3 : vector<1x128xf32> to vector<2x128xf32>
    %5 = arith.addf %2, %4 : vector<2x128xf32>
    %c0_5 = arith.constant 0 : index
    %c0_6 = arith.constant 0 : index
    %6 = vector.load %arg4[%c0_5, %c0_6] : memref<2x128xf32, #tpu.memory_space<vmem>>, vector<2x128xf32>
    tpu.vector_store %arg4[%c0_5, %c0_6], %5 {strides = array<i32>} : memref<2x128xf32, #tpu.memory_space<vmem>>, vector<2x128xf32>,
    return
  }
  func.func @transform_0(%arg0: i32) -> (i32, i32) {
    %c0_i32 = arith.constant 0 : i32
    %c0_i32_0 = arith.constant 0 : i32
    return %arg0, %c0_i32 : i32, i32
  }
  func.func @transform_1(%arg0: i32) -> (i32, i32) {
    %c0_i32 = arith.constant 0 : i32
    %c0_i32_0 = arith.constant 0 : i32
    %c0_i32_1 = arith.constant 0 : i32
    return %c0_i32, %c0_i32_0 : i32, i32
  }
  func.func @transform_2(%arg0: i32) -> (i32, i32) {
    %c0_i32 = arith.constant 0 : i32
    %c0_i32_0 = arith.constant 0 : i32
    %c0_i32_1 = arith.constant 0 : i32
    return %c0_i32, %c0_i32_0 : i32, i32
  }
  func.func @transform_3(%arg0: i32) -> (i32, i32) {
    %c0_i32 = arith.constant 0 : i32
    %c0_i32_0 = arith.constant 0 : i32
    return %arg0, %c0_i32 : i32, i32
  }
}

module attributes {stable_mosaic.version = 11 : i64} {
  func.func @_bn_act_kernel(%arg0: i32, %arg1: memref<2x128xf32, #tpu.memory_space<vmem>>, %arg2: memref<1x128xf32, #tpu.memory_space<vmem>>, %arg3: memref<1x128xf32, #tpu.memory_space<vmem>>, %arg4: memref<1x128xf32, #tpu.memory_space<vmem>>, %arg5: memref<1x128xf32, #tpu.memory_space<vmem>>, %arg6: memref<2x128xf32, #tpu.memory_space<vmem>>, %arg7: memref<2x128xf32, #tpu.memory_space<vmem>>) attributes {dimension_semantics = [#tpu.dimension_semantics<parallel>], iteration_bounds = array<i64: 1>, scalar_prefetch = 0 : i64, scratch_operands = 0 : i64, tpu.core_type = #tpu.core_type<tc>, window_params = [{transform_indices = @transform_0, window_bounds = array<i64: 2, 128>}, {pipeline_mode = #tpu.pipeline_mode<synchronous>, transform_indices = @transform_1, window_bounds = array<i64: 1, 128>}, {pipeline_mode = #tpu.pipeline_mode<synchronous>, transform_indices = @transform_2, window_bounds = array<i64: 1, 128>}, {pipeline_mode = #tpu.pipeline_mode<synchronous>, transform_indices = @transform_3, window_bounds = array<i64: 1, 128>}, {pipeline_mode = #tpu.pipeline_mode<synchronous>, transform_indices = @transform_4, window_bounds = array<i64: 1, 128>}, {transform_indices = @transform_5, window_bounds = array<i64: 2, 128>}, {transform_indices = @transform_6, window_bounds = array<i64: 2, 128>}]} {
    %c0 = arith.constant 0 : index
    %c0_0 = arith.constant 0 : index
    %0 = vector.load %arg2[%c0, %c0_0] : memref<1x128xf32, #tpu.memory_space<vmem>>, vector<1x128xf32>
    %cst = arith.constant 5.000000e-01 : f32
    %1 = vector.broadcast %cst : f32 to vector<1x128xf32>
    %2 = arith.mulf %0, %1 : vector<1x128xf32>
    %c0_1 = arith.constant 0 : index
    %c0_2 = arith.constant 0 : index
    %3 = vector.load %arg3[%c0_1, %c0_2] : memref<1x128xf32, #tpu.memory_space<vmem>>, vector<1x128xf32>
    %cst_3 = arith.constant 5.000000e-01 : f32
    %4 = vector.broadcast %cst_3 : f32 to vector<1x128xf32>
    %5 = arith.mulf %3, %4 : vector<1x128xf32>
    %6 = arith.mulf %2, %2 : vector<1x128xf32>
    %7 = arith.subf %5, %6 : vector<1x128xf32>
    %cst_4 = arith.constant 0.000000e+00 : f32
    %8 = vector.broadcast %cst_4 : f32 to vector<1x128xf32>
    %9 = arith.maximumf %7, %8 : vector<1x128xf32>
    %c0_5 = arith.constant 0 : index
    %c0_6 = arith.constant 0 : index
    %10 = vector.load %arg4[%c0_5, %c0_6] : memref<1x128xf32, #tpu.memory_space<vmem>>, vector<1x128xf32>
    %cst_7 = arith.constant 9.99999974E-6 : f32
    %11 = vector.broadcast %cst_7 : f32 to vector<1x128xf32>
    %12 = arith.addf %9, %11 : vector<1x128xf32>
    %13 = math.rsqrt %12 : vector<1x128xf32>
    %14 = arith.mulf %10, %13 : vector<1x128xf32>
    %c0_8 = arith.constant 0 : index
    %c0_9 = arith.constant 0 : index
    %15 = vector.load %arg5[%c0_8, %c0_9] : memref<1x128xf32, #tpu.memory_space<vmem>>, vector<1x128xf32>
    %16 = arith.mulf %2, %14 : vector<1x128xf32>
    %17 = arith.subf %15, %16 : vector<1x128xf32>
    %c0_10 = arith.constant 0 : index
    %c0_11 = arith.constant 0 : index
    %18 = vector.load %arg1[%c0_10, %c0_11] : memref<2x128xf32, #tpu.memory_space<vmem>>, vector<2x128xf32>
    %19 = vector.broadcast %14 : vector<1x128xf32> to vector<2x128xf32>
    %20 = arith.mulf %18, %19 : vector<2x128xf32>
    %21 = vector.broadcast %17 : vector<1x128xf32> to vector<2x128xf32>
    %22 = arith.addf %20, %21 : vector<2x128xf32>
    %c0_12 = arith.constant 0 : index
    %c0_13 = arith.constant 0 : index
    %23 = vector.load %arg6[%c0_12, %c0_13] : memref<2x128xf32, #tpu.memory_space<vmem>>, vector<2x128xf32>
    %24 = arith.addf %22, %23 : vector<2x128xf32>
    %cst_14 = arith.constant 5.000000e-01 : f32
    %25 = vector.broadcast %cst_14 : f32 to vector<2x128xf32>
    %26 = arith.mulf %25, %24 : vector<2x128xf32>
    %cst_15 = arith.constant 0.707106769 : f32
    %27 = vector.broadcast %cst_15 : f32 to vector<2x128xf32>
    %28 = arith.mulf %24, %27 : vector<2x128xf32>
    %29 = math.erf %28 : vector<2x128xf32>
    %cst_16 = arith.constant 1.000000e+00 : f32
    %30 = vector.broadcast %cst_16 : f32 to vector<2x128xf32>
    %31 = arith.addf %30, %29 : vector<2x128xf32>
    %32 = arith.mulf %26, %31 : vector<2x128xf32>
    %c0_17 = arith.constant 0 : index
    %c0_18 = arith.constant 0 : index
    %33 = vector.load %arg7[%c0_17, %c0_18] : memref<2x128xf32, #tpu.memory_space<vmem>>, vector<2x128xf32>
    tpu.vector_store %arg7[%c0_17, %c0_18], %32 {strides = array<i32>} : memref<2x128xf32, #tpu.memory_space<vmem>>, vector<2x128xf32>,
    return
  }
  func.func @transform_0(%arg0: i32) -> (i32, i32) {
    %c0_i32 = arith.constant 0 : i32
    %c0_i32_0 = arith.constant 0 : i32
    return %arg0, %c0_i32 : i32, i32
  }
  func.func @transform_1(%arg0: i32) -> (i32, i32) {
    %c0_i32 = arith.constant 0 : i32
    %c0_i32_0 = arith.constant 0 : i32
    %c0_i32_1 = arith.constant 0 : i32
    return %c0_i32, %c0_i32_0 : i32, i32
  }
  func.func @transform_2(%arg0: i32) -> (i32, i32) {
    %c0_i32 = arith.constant 0 : i32
    %c0_i32_0 = arith.constant 0 : i32
    %c0_i32_1 = arith.constant 0 : i32
    return %c0_i32, %c0_i32_0 : i32, i32
  }
  func.func @transform_3(%arg0: i32) -> (i32, i32) {
    %c0_i32 = arith.constant 0 : i32
    %c0_i32_0 = arith.constant 0 : i32
    %c0_i32_1 = arith.constant 0 : i32
    return %c0_i32, %c0_i32_0 : i32, i32
  }
  func.func @transform_4(%arg0: i32) -> (i32, i32) {
    %c0_i32 = arith.constant 0 : i32
    %c0_i32_0 = arith.constant 0 : i32
    %c0_i32_1 = arith.constant 0 : i32
    return %c0_i32, %c0_i32_0 : i32, i32
  }
  func.func @transform_5(%arg0: i32) -> (i32, i32) {
    %c0_i32 = arith.constant 0 : i32
    %c0_i32_0 = arith.constant 0 : i32
    return %arg0, %c0_i32 : i32, i32
  }
  func.func @transform_6(%arg0: i32) -> (i32, i32) {
    %c0_i32 = arith.constant 0 : i32
    %c0_i32_0 = arith.constant 0 : i32
    return %arg0, %c0_i32 : i32, i32
  }
}

</mosaic_0001>

<llo_original>
// kernel: vanilla_encoder_forward.23
$region0: #{vanilla_encoder_forward.23}
  #allocation0 [shape = 'u32[]', space=smem, size = 0x4, offset = 0x4, fixed_abs, tag = 'smem constant byte address 0x4 - core index']
  #allocation1 [shape = 'u32[144,128]{1,0:T(1,128)}', space=vmem, size = 0x12000, scoped, tag = 'internal scratch']
  %s0 = inlined_call_operand.vmem [shape: f32[512,128], index: 0, kind: input, shape index: {}]
  %s1 = inlined_call_operand.vmem [shape: f32[1,128], index: 1, kind: input, shape index: {}]
  %s2 = inlined_call_operand.vmem [shape: f32[1,128], index: 2, kind: input, shape index: {}]
  %s3 = inlined_call_operand.vmem [shape: f32[1,128], index: 3, kind: input, shape index: {}]
  %s4 = inlined_call_operand.vmem [shape: f32[1,128], index: 4, kind: input, shape index: {}]
  %s5 = inlined_call_operand.vmem [shape: f32[512,128], index: 5, kind: output, shape index: {}]
  %s6 = sld [smem:[#allocation0]]
  $region30: #{vanilla_encoder_forward.23} parent=0
    _
  %s8 = ssub.s32 1, %s6
  %s9 = scalar_select 0, %s8, %s6
  // Predicated region
  $region2: #{vanilla_encoder_forward.23} parent=0 // pred_check
    _
  $region3: #{vanilla_encoder_forward.23} parent=0 // pred_check_branch
    %11 = sbr.rel (0) target = $region5
  $region4: #{vanilla_encoder_forward.23} parent=0 // pred_region
    _
  $region5: #{vanilla_encoder_forward.23} parent=0 // pred_fallthru
    _
  // Predicated region
  $region6: #{vanilla_encoder_forward.23} parent=0 // pred_check
    _
  $region7: #{vanilla_encoder_forward.23} parent=0 // pred_check_branch
    %13 = sbr.rel (0) target = $region9
  $region8: #{vanilla_encoder_forward.23} parent=0 // pred_region
    _
  $region9: #{vanilla_encoder_forward.23} parent=0 // pred_fallthru
    _
  // Predicated region
  $region10: #{vanilla_encoder_forward.23} parent=0 // pred_check
    _
  $region11: #{vanilla_encoder_forward.23} parent=0 // pred_check_branch
    %15 = sbr.rel (0) target = $region13
  $region12: #{vanilla_encoder_forward.23} parent=0 // pred_region
    _
  $region13: #{vanilla_encoder_forward.23} parent=0 // pred_fallthru
    _
  // Predicated region
  $region14: #{vanilla_encoder_forward.23} parent=0 // pred_check
    _
  $region15: #{vanilla_encoder_forward.23} parent=0 // pred_check_branch
    %17 = sbr.rel (0) target = $region17
  $region16: #{vanilla_encoder_forward.23} parent=0 // pred_region
    _
  $region17: #{vanilla_encoder_forward.23} parent=0 // pred_fallthru
    _
  // Predicated region
  $region18: #{vanilla_encoder_forward.23} parent=0 // pred_check
    _
  $region19: #{vanilla_encoder_forward.23} parent=0 // pred_check_branch
    %19 = sbr.rel (0) target = $region21
  $region20: #{vanilla_encoder_forward.23} parent=0 // pred_region
    _
  $region21: #{vanilla_encoder_forward.23} parent=0 // pred_fallthru
    _
  %v20 = vld [vmem:[%s1] sm:$0x1]
  %v21 = vmul.f32 %v20, 0.001953125
  %v22 = vld [vmem:[%s2] sm:$0x1]
  %v23 = vmul.f32 %v22, 0.001953125
  %v24 = vmul.f32 %v21, %v21
  %v25 = vsub.f32 %v23, %v24
  %v26 = vmax.f32 %v25, 0.0
  %v27 = vld [vmem:[%s3] sm:$0x1]
  %v28 = vadd.f32 %v26, 1e-05
  %v29 = vrsqrt.pop %v28
  %v30 = vmul.f32 %v27, %v29
  %v31 = vld [vmem:[%s4] sm:$0x1]
  %v32 = vmul.f32 %v21, %v30
  %v33 = vsub.f32 %v31, %v32
  %v34 = vld [vmem:[%s0] sm:$0xff]
  %v35 = vld [vmem:[%s0 + $0x8] sm:$0xff]
  %v36 = vld [vmem:[%s0 + $0x10] sm:$0xff]
  %v37 = vld [vmem:[%s0 + $0x18] sm:$0xff]
  %v38 = vld [vmem:[%s0 + $0x20] sm:$0xff]
  %v39 = vld [vmem:[%s0 + $0x28] sm:$0xff]
  %v40 = vld [vmem:[%s0 + $0x30] sm:$0xff]
  %v41 = vld [vmem:[%s0 + $0x38] sm:$0xff]
  %v42 = vld [vmem:[%s0 + $0x40] sm:$0xff]
  %v43 = vld [vmem:[%s0 + $0x48] sm:$0xff]
  %v44 = vld [vmem:[%s0 + $0x50] sm:$0xff]
  %v45 = vld [vmem:[%s0 + $0x58] sm:$0xff]
  %v46 = vld [vmem:[%s0 + $0x60] sm:$0xff]
  %v47 = vld [vmem:[%s0 + $0x68] sm:$0xff]
  %v48 = vld [vmem:[%s0 + $0x70] sm:$0xff]
  %v49 = vld [vmem:[%s0 + $0x78] sm:$0xff]
  %v50 = vld [vmem:[%s0 + $0x80] sm:$0xff]
  %v51 = vld [vmem:[%s0 + $0x88] sm:$0xff]
  %v52 = vld [vmem:[%s0 + $0x90] sm:$0xff]
  %v53 = vld [vmem:[%s0 + $0x98] sm:$0xff]
  %v54 = vld [vmem:[%s0 + $0xa0] sm:$0xff]
  %v55 = vld [vmem:[%s0 + $0xa8] sm:$0xff]
  %v56 = vld [vmem:[%s0 + $0xb0] sm:$0xff]
  %v57 = vld [vmem:[%s0 + $0xb8] sm:$0xff]
  %v58 = vld [vmem:[%s0 + $0xc0] sm:$0xff]
  %v59 = vld [vmem:[%s0 + $0xc8] sm:$0xff]
  %v60 = vld [vmem:[%s0 + $0xd0] sm:$0xff]
  %v61 = vld [vmem:[%s0 + $0xd8] sm:$0xff]
  %v62 = vld [vmem:[%s0 + $0xe0] sm:$0xff]
  %v63 = vld [vmem:[%s0 + $0xe8] sm:$0xff]
  %v64 = vld [vmem:[%s0 + $0xf0] sm:$0xff]
  %v65 = vld [vmem:[%s0 + $0xf8] sm:$0xff]
  %v66 = vld [vmem:[%s0 + $0x100] sm:$0xff]
  %v67 = vld [vmem:[%s0 + $0x108] sm:$0xff]
  %v68 = vld [vmem:[%s0 + $0x110] sm:$0xff]
  %v69 = vld [vmem:[%s0 + $0x118] sm:$0xff]
  %v70 = vld [vmem:[%s0 + $0x120] sm:$0xff]
  %v71 = vld [vmem:[%s0 + $0x128] sm:$0xff]
  %v72 = vld [vmem:[%s0 + $0x130] sm:$0xff]
  %v73 = vld [vmem:[%s0 + $0x138] sm:$0xff]
  %v74 = vld [vmem:[%s0 + $0x140] sm:$0xff]
  %v75 = vld [vmem:[%s0 + $0x148] sm:$0xff]
  %v76 = vld [vmem:[%s0 + $0x150] sm:$0xff]
  %v77 = vld [vmem:[%s0 + $0x158] sm:$0xff]
  %v78 = vld [vmem:[%s0 + $0x160] sm:$0xff]
  %v79 = vld [vmem:[%s0 + $0x168] sm:$0xff]
  %v80 = vld [vmem:[%s0 + $0x170] sm:$0xff]
  %v81 = vld [vmem:[%s0 + $0x178] sm:$0xff]
  %v82 = vld [vmem:[%s0 + $0x180] sm:$0xff]
  %v83 = vld [vmem:[%s0 + $0x188] sm:$0xff]
  %v84 = vld [vmem:[%s0 + $0x190] sm:$0xff]
  %v85 = vld [vmem:[%s0 + $0x198] sm:$0xff]
  %v86 = vld [vmem:[%s0 + $0x1a0] sm:$0xff]
  %v87 = vld [vmem:[%s0 + $0x1a8] sm:$0xff]
  %v88 = vld [vmem:[%s0 + $0x1b0] sm:$0xff]
  %v89 = vld [vmem:[%s0 + $0x1b8] sm:$0xff]
  %v90 = vld [vmem:[%s0 + $0x1c0] sm:$0xff]
  %v91 = vld [vmem:[%s0 + $0x1c8] sm:$0xff]
  %v92 = vld [vmem:[%s0 + $0x1d0] sm:$0xff]
  %v93 = vld [vmem:[%s0 + $0x1d8] sm:$0xff]
  %v94 = vld [vmem:[%s0 + $0x1e0] sm:$0xff]
  %v95 = vld [vmem:[%s0 + $0x1e8] sm:$0xff]
  %v96 = vld [vmem:[%s0 + $0x1f0] sm:$0xff]
  %v97 = vld [vmem:[%s0 + $0x1f8] sm:$0xff]
  %v99 = vlaneseq
  %v100 = vshrl.u32 %v99, 7
  %v101 = vsub.s32 0, %v100
  %v102 = vrot.slane %v30, %v101
  %v104 = vmul.f32 %v34, %v102
  %v105 = vmul.f32 %v35, %v102
  %v106 = vmul.f32 %v36, %v102
  %v107 = vmul.f32 %v37, %v102
  %v108 = vmul.f32 %v38, %v102
  %v109 = vmul.f32 %v39, %v102
  %v110 = vmul.f32 %v40, %v102
  %v111 = vmul.f32 %v41, %v102
  %v112 = vmul.f32 %v42, %v102
  %v113 = vmul.f32 %v43, %v102
  %v114 = vmul.f32 %v44, %v102
  %v115 = vmul.f32 %v45, %v102
  %v116 = vmul.f32 %v46, %v102
  %v117 = vmul.f32 %v47, %v102
  %v118 = vmul.f32 %v48, %v102
  %v119 = vmul.f32 %v49, %v102
  %v120 = vmul.f32 %v50, %v102
  %v121 = vmul.f32 %v51, %v102
  %v122 = vmul.f32 %v52, %v102
  %v123 = vmul.f32 %v53, %v102
  %v124 = vmul.f32 %v54, %v102
  %v125 = vmul.f32 %v55, %v102
  %v126 = vmul.f32 %v56, %v102
  %v127 = vmul.f32 %v57, %v102
  %v128 = vmul.f32 %v58, %v102
  %v129 = vmul.f32 %v59, %v102
  %v130 = vmul.f32 %v60, %v102
  %v131 = vmul.f32 %v61, %v102
  %v132 = vmul.f32 %v62, %v102
  %v133 = vmul.f32 %v63, %v102
  %v134 = vmul.f32 %v64, %v102
  %v135 = vmul.f32 %v65, %v102
  %v136 = vmul.f32 %v66, %v102
  %v137 = vmul.f32 %v67, %v102
  %v138 = vmul.f32 %v68, %v102
  %v139 = vmul.f32 %v69, %v102
  %v140 = vmul.f32 %v70, %v102
  %v141 = vmul.f32 %v71, %v102
  %v142 = vmul.f32 %v72, %v102
  %v143 = vmul.f32 %v73, %v102
  %v144 = vmul.f32 %v74, %v102
  %v145 = vmul.f32 %v75, %v102
  %v146 = vmul.f32 %v76, %v102
  %v147 = vmul.f32 %v77, %v102
  %v148 = vmul.f32 %v78, %v102
  %v149 = vmul.f32 %v79, %v102
  %v150 = vmul.f32 %v80, %v102
  %v151 = vmul.f32 %v81, %v102
  %v152 = vmul.f32 %v82, %v102
  %v153 = vmul.f32 %v83, %v102
  %v154 = vmul.f32 %v84, %v102
  %v155 = vmul.f32 %v85, %v102
  %v156 = vmul.f32 %v86, %v102
  %v157 = vmul.f32 %v87, %v102
  %v158 = vmul.f32 %v88, %v102
  %v159 = vmul.f32 %v89, %v102
  %v160 = vmul.f32 %v90, %v102
  %v161 = vmul.f32 %v91, %v102
  %v162 = vmul.f32 %v92, %v102
  %v163 = vmul.f32 %v93, %v102
  %v164 = vmul.f32 %v94, %v102
  %v165 = vmul.f32 %v95, %v102
  %v166 = vmul.f32 %v96, %v102
  %v167 = vmul.f32 %v97, %v102
  %v169 = vlaneseq
  %v170 = vshrl.u32 %v169, 7
  %v171 = vsub.s32 0, %v170
  %v172 = vrot.slane %v33, %v171
  %v174 = vadd.f32 %v104, %v172
  %v175 = vadd.f32 %v105, %v172
  %v176 = vadd.f32 %v106, %v172
  %v177 = vadd.f32 %v107, %v172
  %v178 = vadd.f32 %v108, %v172
  %v179 = vadd.f32 %v109, %v172
  %v180 = vadd.f32 %v110, %v172
  %v181 = vadd.f32 %v111, %v172
  %v182 = vadd.f32 %v112, %v172
  %v183 = vadd.f32 %v113, %v172
  %v184 = vadd.f32 %v114, %v172
  %v185 = vadd.f32 %v115, %v172
  %v186 = vadd.f32 %v116, %v172
  %v187 = vadd.f32 %v117, %v172
  %v188 = vadd.f32 %v118, %v172
  %v189 = vadd.f32 %v119, %v172
  %v190 = vadd.f32 %v120, %v172
  %v191 = vadd.f32 %v121, %v172
  %v192 = vadd.f32 %v122, %v172
  %v193 = vadd.f32 %v123, %v172
  %v194 = vadd.f32 %v124, %v172
  %v195 = vadd.f32 %v125, %v172
  %v196 = vadd.f32 %v126, %v172
  %v197 = vadd.f32 %v127, %v172
  %v198 = vadd.f32 %v128, %v172
  %v199 = vadd.f32 %v129, %v172
  %v200 = vadd.f32 %v130, %v172
  %v201 = vadd.f32 %v131, %v172
  %v202 = vadd.f32 %v132, %v172
  %v203 = vadd.f32 %v133, %v172
  %v204 = vadd.f32 %v134, %v172
  %v205 = vadd.f32 %v135, %v172
  %v206 = vadd.f32 %v136, %v172
  %v207 = vadd.f32 %v137, %v172
  %v208 = vadd.f32 %v138, %v172
  %v209 = vadd.f32 %v139, %v172
  %v210 = vadd.f32 %v140, %v172
  %v211 = vadd.f32 %v141, %v172
  %v212 = vadd.f32 %v142, %v172
  %v213 = vadd.f32 %v143, %v172
  %v214 = vadd.f32 %v144, %v172
  %v215 = vadd.f32 %v145, %v172
  %v216 = vadd.f32 %v146, %v172
  %v217 = vadd.f32 %v147, %v172
  %v218 = vadd.f32 %v148, %v172
  %v219 = vadd.f32 %v149, %v172
  %v220 = vadd.f32 %v150, %v172
  %v221 = vadd.f32 %v151, %v172
  %v222 = vadd.f32 %v152, %v172
  %v223 = vadd.f32 %v153, %v172
  %v224 = vadd.f32 %v154, %v172
  %v225 = vadd.f32 %v155, %v172
  %v226 = vadd.f32 %v156, %v172
  %v227 = vadd.f32 %v157, %v172
  %v228 = vadd.f32 %v158, %v172
  %v229 = vadd.f32 %v159, %v172
  %v230 = vadd.f32 %v160, %v172
  %v231 = vadd.f32 %v161, %v172
  %v232 = vadd.f32 %v162, %v172
  %v233 = vadd.f32 %v163, %v172
  %v234 = vadd.f32 %v164, %v172
  %v235 = vadd.f32 %v165, %v172
  %v236 = vadd.f32 %v166, %v172
  %v237 = vadd.f32 %v167, %v172
  %v238 = vmul.f32 %v174, 0.5
  %v239 = vmul.f32 %v175, 0.5
  %v240 = vmul.f32 %v176, 0.5
  %v241 = vmul.f32 %v177, 0.5
  %v242 = vmul.f32 %v178, 0.5
  %v243 = vmul.f32 %v179, 0.5
  %v244 = vmul.f32 %v180, 0.5
  %v245 = vmul.f32 %v181, 0.5
  %v246 = vmul.f32 %v182, 0.5
  %v247 = vmul.f32 %v183, 0.5
  %v248 = vmul.f32 %v184, 0.5
  %v249 = vmul.f32 %v185, 0.5
  %v250 = vmul.f32 %v186, 0.5
  %v251 = vmul.f32 %v187, 0.5
  %v252 = vmul.f32 %v188, 0.5
  %v253 = vmul.f32 %v189, 0.5
  %v254 = vmul.f32 %v190, 0.5
  %v255 = vmul.f32 %v191, 0.5
  %v256 = vmul.f32 %v192, 0.5
  %v257 = vmul.f32 %v193, 0.5
  %v258 = vmul.f32 %v194, 0.5
  %v259 = vmul.f32 %v195, 0.5
  %v260 = vmul.f32 %v196, 0.5
  %v261 = vmul.f32 %v197, 0.5
  %v262 = vmul.f32 %v198, 0.5
  %v263 = vmul.f32 %v199, 0.5
  %v264 = vmul.f32 %v200, 0.5
  %v265 = vmul.f32 %v201, 0.5
  %v266 = vmul.f32 %v202, 0.5
  %v267 = vmul.f32 %v203, 0.5
  %v268 = vmul.f32 %v204, 0.5
  %v269 = vmul.f32 %v205, 0.5
  %v270 = vmul.f32 %v206, 0.5
  %v271 = vmul.f32 %v207, 0.5
  %v272 = vmul.f32 %v208, 0.5
  %v273 = vmul.f32 %v209, 0.5
  %v274 = vmul.f32 %v210, 0.5
  %v275 = vmul.f32 %v211, 0.5
  %v276 = vmul.f32 %v212, 0.5
  %v277 = vmul.f32 %v213, 0.5
  %v278 = vmul.f32 %v214, 0.5
  %v279 = vmul.f32 %v215, 0.5
  %v280 = vmul.f32 %v216, 0.5
  %v281 = vmul.f32 %v217, 0.5
  %v282 = vmul.f32 %v218, 0.5
  %v283 = vmul.f32 %v219, 0.5
  %v284 = vmul.f32 %v220, 0.5
  %v285 = vmul.f32 %v221, 0.5
  %v286 = vmul.f32 %v222, 0.5
  %v287 = vmul.f32 %v223, 0.5
  %v288 = vmul.f32 %v224, 0.5
  %v289 = vmul.f32 %v225, 0.5
  %v290 = vmul.f32 %v226, 0.5
  %v291 = vmul.f32 %v227, 0.5
  %v292 = vmul.f32 %v228, 0.5
  %v293 = vmul.f32 %v229, 0.5
  %v294 = vmul.f32 %v230, 0.5
  %v295 = vmul.f32 %v231, 0.5
  %v296 = vmul.f32 %v232, 0.5
  %v297 = vmul.f32 %v233, 0.5
  %v298 = vmul.f32 %v234, 0.5
  %v299 = vmul.f32 %v235, 0.5
  %v300 = vmul.f32 %v236, 0.5
  %v301 = vmul.f32 %v237, 0.5
  %v302 = vmul.f32 %v174, 0.70710677
  %v303 = vmul.f32 %v175, 0.70710677
  %v304 = vmul.f32 %v176, 0.70710677
  %v305 = vmul.f32 %v177, 0.70710677
  %v306 = vmul.f32 %v178, 0.70710677
  %v307 = vmul.f32 %v179, 0.70710677
  %v308 = vmul.f32 %v180, 0.70710677
  %v309 = vmul.f32 %v181, 0.70710677
  %v310 = vmul.f32 %v182, 0.70710677
  %v311 = vmul.f32 %v183, 0.70710677
  %v312 = vmul.f32 %v184, 0.70710677
  %v313 = vmul.f32 %v185, 0.70710677
  %v314 = vmul.f32 %v186, 0.70710677
  %v315 = vmul.f32 %v187, 0.70710677
  %v316 = vmul.f32 %v188, 0.70710677
  %v317 = vmul.f32 %v189, 0.70710677
  %v318 = vmul.f32 %v190, 0.70710677
  %v319 = vmul.f32 %v191, 0.70710677
  %v320 = vmul.f32 %v192, 0.70710677
  %v321 = vmul.f32 %v193, 0.70710677
  %v322 = vmul.f32 %v194, 0.70710677
  %v323 = vmul.f32 %v195, 0.70710677
  %v324 = vmul.f32 %v196, 0.70710677
  %v325 = vmul.f32 %v197, 0.70710677
  %v326 = vmul.f32 %v198, 0.70710677
  %v327 = vmul.f32 %v199, 0.70710677
  %v328 = vmul.f32 %v200, 0.70710677
  %v329 = vmul.f32 %v201, 0.70710677
  %v330 = vmul.f32 %v202, 0.70710677
  %v331 = vmul.f32 %v203, 0.70710677
  %v332 = vmul.f32 %v204, 0.70710677
  %v333 = vmul.f32 %v205, 0.70710677
  %v334 = vmul.f32 %v206, 0.70710677
  %v335 = vmul.f32 %v207, 0.70710677
  %v336 = vmul.f32 %v208, 0.70710677
  %v337 = vmul.f32 %v209, 0.70710677
  %v338 = vmul.f32 %v210, 0.70710677
  %v339 = vmul.f32 %v211, 0.70710677
  %v340 = vmul.f32 %v212, 0.70710677
  %v341 = vmul.f32 %v213, 0.70710677
  %v342 = vmul.f32 %v214, 0.70710677
  %v343 = vmul.f32 %v215, 0.70710677
  %v344 = vmul.f32 %v216, 0.70710677
  %v345 = vmul.f32 %v217, 0.70710677
  %v346 = vmul.f32 %v218, 0.70710677
  %v347 = vmul.f32 %v219, 0.70710677
  %v348 = vmul.f32 %v220, 0.70710677
  %v349 = vmul.f32 %v221, 0.70710677
  %v350 = vmul.f32 %v222, 0.70710677
  %v351 = vmul.f32 %v223, 0.70710677
  %v352 = vmul.f32 %v224, 0.70710677
  %v353 = vmul.f32 %v225, 0.70710677
  %v354 = vmul.f32 %v226, 0.70710677
  %v355 = vmul.f32 %v227, 0.70710677
  %v356 = vmul.f32 %v228, 0.70710677
  %v357 = vmul.f32 %v229, 0.70710677
  %v358 = vmul.f32 %v230, 0.70710677
  %v359 = vmul.f32 %v231, 0.70710677
  %v360 = vmul.f32 %v232, 0.70710677
  %v361 = vmul.f32 %v233, 0.70710677
  %v362 = vmul.f32 %v234, 0.70710677
  %v363 = vmul.f32 %v235, 0.70710677
  %v364 = vmul.f32 %v236, 0.70710677
  %v365 = vmul.f32 %v237, 0.70710677
  %v366 = verf.f32.pop %v302
  %v367 = verf.f32.pop %v303
  %v368 = verf.f32.pop %v304
  %v369 = verf.f32.pop %v305
  %v370 = verf.f32.pop %v306
  %v371 = verf.f32.pop %v307
  %v372 = verf.f32.pop %v308
  %v373 = verf.f32.pop %v309
  %v374 = verf.f32.pop %v310
  %v375 = verf.f32.pop %v311
  %v376 = verf.f32.pop %v312
  %v377 = verf.f32.pop %v313
  %v378 = verf.f32.pop %v314
  %v379 = verf.f32.pop %v315
  %v380 = verf.f32.pop %v316
  %v381 = verf.f32.pop %v317
  %v382 = verf.f32.pop %v318
  %v383 = verf.f32.pop %v319
  %v384 = verf.f32.pop %v320
  %v385 = verf.f32.pop %v321
  %v386 = verf.f32.pop %v322
  %v387 = verf.f32.pop %v323
  %v388 = verf.f32.pop %v324
  %v389 = verf.f32.pop %v325
  %v390 = verf.f32.pop %v326
  %v391 = verf.f32.pop %v327
  %v392 = verf.f32.pop %v328
  %v393 = verf.f32.pop %v329
  %v394 = verf.f32.pop %v330
  %v395 = verf.f32.pop %v331
  %v396 = verf.f32.pop %v332
  %v397 = verf.f32.pop %v333
  %v398 = verf.f32.pop %v334
  %v399 = verf.f32.pop %v335
  %v400 = verf.f32.pop %v336
  %v401 = verf.f32.pop %v337
  %v402 = verf.f32.pop %v338
  %v403 = verf.f32.pop %v339
  %v404 = verf.f32.pop %v340
  %v405 = verf.f32.pop %v341
  %v406 = verf.f32.pop %v342
  %v407 = verf.f32.pop %v343
  %v408 = verf.f32.pop %v344
  %v409 = verf.f32.pop %v345
  %v410 = verf.f32.pop %v346
  %v411 = verf.f32.pop %v347
  %v412 = verf.f32.pop %v348
  %v413 = verf.f32.pop %v349
  %v414 = verf.f32.pop %v350
  %v415 = verf.f32.pop %v351
  %v416 = verf.f32.pop %v352
  %v417 = verf.f32.pop %v353
  %v418 = verf.f32.pop %v354
  %v419 = verf.f32.pop %v355
  %v420 = verf.f32.pop %v356
  %v421 = verf.f32.pop %v357
  %v422 = verf.f32.pop %v358
  %v423 = verf.f32.pop %v359
  %v424 = verf.f32.pop %v360
  %v425 = verf.f32.pop %v361
  %v426 = verf.f32.pop %v362
  %v427 = verf.f32.pop %v363
  %v428 = verf.f32.pop %v364
  %v429 = verf.f32.pop %v365
  %v430 = vadd.f32 %v366, 1.0
  %v431 = vadd.f32 %v367, 1.0
  %v432 = vadd.f32 %v368, 1.0
  %v433 = vadd.f32 %v369, 1.0
  %v434 = vadd.f32 %v370, 1.0
  %v435 = vadd.f32 %v371, 1.0
  %v436 = vadd.f32 %v372, 1.0
  %v437 = vadd.f32 %v373, 1.0
  %v438 = vadd.f32 %v374, 1.0
  %v439 = vadd.f32 %v375, 1.0
  %v440 = vadd.f32 %v376, 1.0
  %v441 = vadd.f32 %v377, 1.0
  %v442 = vadd.f32 %v378, 1.0
  %v443 = vadd.f32 %v379, 1.0
  %v444 = vadd.f32 %v380, 1.0
  %v445 = vadd.f32 %v381, 1.0
  %v446 = vadd.f32 %v382, 1.0
  %v447 = vadd.f32 %v383, 1.0
  %v448 = vadd.f32 %v384, 1.0
  %v449 = vadd.f32 %v385, 1.0
  %v450 = vadd.f32 %v386, 1.0
  %v451 = vadd.f32 %v387, 1.0
  %v452 = vadd.f32 %v388, 1.0
  %v453 = vadd.f32 %v389, 1.0
  %v454 = vadd.f32 %v390, 1.0
  %v455 = vadd.f32 %v391, 1.0
  %v456 = vadd.f32 %v392, 1.0
  %v457 = vadd.f32 %v393, 1.0
  %v458 = vadd.f32 %v394, 1.0
  %v459 = vadd.f32 %v395, 1.0
  %v460 = vadd.f32 %v396, 1.0
  %v461 = vadd.f32 %v397, 1.0
  %v462 = vadd.f32 %v398, 1.0
  %v463 = vadd.f32 %v399, 1.0
  %v464 = vadd.f32 %v400, 1.0
  %v465 = vadd.f32 %v401, 1.0
  %v466 = vadd.f32 %v402, 1.0
  %v467 = vadd.f32 %v403, 1.0
  %v468 = vadd.f32 %v404, 1.0
  %v469 = vadd.f32 %v405, 1.0
  %v470 = vadd.f32 %v406, 1.0
  %v471 = vadd.f32 %v407, 1.0
  %v472 = vadd.f32 %v408, 1.0
  %v473 = vadd.f32 %v409, 1.0
  %v474 = vadd.f32 %v410, 1.0
  %v475 = vadd.f32 %v411, 1.0
  %v476 = vadd.f32 %v412, 1.0
  %v477 = vadd.f32 %v413, 1.0
  %v478 = vadd.f32 %v414, 1.0
  %v479 = vadd.f32 %v415, 1.0
  %v480 = vadd.f32 %v416, 1.0
  %v481 = vadd.f32 %v417, 1.0
  %v482 = vadd.f32 %v418, 1.0
  %v483 = vadd.f32 %v419, 1.0
  %v484 = vadd.f32 %v420, 1.0
  %v485 = vadd.f32 %v421, 1.0
  %v486 = vadd.f32 %v422, 1.0
  %v487 = vadd.f32 %v423, 1.0
  %v488 = vadd.f32 %v424, 1.0
  %v489 = vadd.f32 %v425, 1.0
  %v490 = vadd.f32 %v426, 1.0
  %v491 = vadd.f32 %v427, 1.0
  %v492 = vadd.f32 %v428, 1.0
  %v493 = vadd.f32 %v429, 1.0
  %v494 = vmul.f32 %v238, %v430
  %v495 = vmul.f32 %v239, %v431
  %v496 = vmul.f32 %v240, %v432
  %v497 = vmul.f32 %v241, %v433
  %v498 = vmul.f32 %v242, %v434
  %v499 = vmul.f32 %v243, %v435
  %v500 = vmul.f32 %v244, %v436
  %v501 = vmul.f32 %v245, %v437
  %v502 = vmul.f32 %v246, %v438
  %v503 = vmul.f32 %v247, %v439
  %v504 = vmul.f32 %v248, %v440
  %v505 = vmul.f32 %v249, %v441
  %v506 = vmul.f32 %v250, %v442
  %v507 = vmul.f32 %v251, %v443
  %v508 = vmul.f32 %v252, %v444
  %v509 = vmul.f32 %v253, %v445
  %v510 = vmul.f32 %v254, %v446
  %v511 = vmul.f32 %v255, %v447
  %v512 = vmul.f32 %v256, %v448
  %v513 = vmul.f32 %v257, %v449
  %v514 = vmul.f32 %v258, %v450
  %v515 = vmul.f32 %v259, %v451
  %v516 = vmul.f32 %v260, %v452
  %v517 = vmul.f32 %v261, %v453
  %v518 = vmul.f32 %v262, %v454
  %v519 = vmul.f32 %v263, %v455
  %v520 = vmul.f32 %v264, %v456
  %v521 = vmul.f32 %v265, %v457
  %v522 = vmul.f32 %v266, %v458
  %v523 = vmul.f32 %v267, %v459
  %v524 = vmul.f32 %v268, %v460
  %v525 = vmul.f32 %v269, %v461
  %v526 = vmul.f32 %v270, %v462
  %v527 = vmul.f32 %v271, %v463
  %v528 = vmul.f32 %v272, %v464
  %v529 = vmul.f32 %v273, %v465
  %v530 = vmul.f32 %v274, %v466
  %v531 = vmul.f32 %v275, %v467
  %v532 = vmul.f32 %v276, %v468
  %v533 = vmul.f32 %v277, %v469
  %v534 = vmul.f32 %v278, %v470
  %v535 = vmul.f32 %v279, %v471
  %v536 = vmul.f32 %v280, %v472
  %v537 = vmul.f32 %v281, %v473
  %v538 = vmul.f32 %v282, %v474
  %v539 = vmul.f32 %v283, %v475
  %v540 = vmul.f32 %v284, %v476
  %v541 = vmul.f32 %v285, %v477
  %v542 = vmul.f32 %v286, %v478
  %v543 = vmul.f32 %v287, %v479
  %v544 = vmul.f32 %v288, %v480
  %v545 = vmul.f32 %v289, %v481
  %v546 = vmul.f32 %v290, %v482
  %v547 = vmul.f32 %v291, %v483
  %v548 = vmul.f32 %v292, %v484
  %v549 = vmul.f32 %v293, %v485
  %v550 = vmul.f32 %v294, %v486
  %v551 = vmul.f32 %v295, %v487
  %v552 = vmul.f32 %v296, %v488
  %v553 = vmul.f32 %v297, %v489
  %v554 = vmul.f32 %v298, %v490
  %v555 = vmul.f32 %v299, %v491
  %v556 = vmul.f32 %v300, %v492
  %v557 = vmul.f32 %v301, %v493
  %558 = vst [vmem:[%s5] sm:$0xff] %v494
  %559 = vst [vmem:[%s5 + $0x8] sm:$0xff] %v495
  %560 = vst [vmem:[%s5 + $0x10] sm:$0xff] %v496
  %561 = vst [vmem:[%s5 + $0x18] sm:$0xff] %v497
  %562 = vst [vmem:[%s5 + $0x20] sm:$0xff] %v498
  %563 = vst [vmem:[%s5 + $0x28] sm:$0xff] %v499
  %564 = vst [vmem:[%s5 + $0x30] sm:$0xff] %v500
  %565 = vst [vmem:[%s5 + $0x38] sm:$0xff] %v501
  %566 = vst [vmem:[%s5 + $0x40] sm:$0xff] %v502
  %567 = vst [vmem:[%s5 + $0x48] sm:$0xff] %v503
  %568 = vst [vmem:[%s5 + $0x50] sm:$0xff] %v504
  %569 = vst [vmem:[%s5 + $0x58] sm:$0xff] %v505
  %570 = vst [vmem:[%s5 + $0x60] sm:$0xff] %v506
  %571 = vst [vmem:[%s5 + $0x68] sm:$0xff] %v507
  %572 = vst [vmem:[%s5 + $0x70] sm:$0xff] %v508
  %573 = vst [vmem:[%s5 + $0x78] sm:$0xff] %v509
  %574 = vst [vmem:[%s5 + $0x80] sm:$0xff] %v510
  %575 = vst [vmem:[%s5 + $0x88] sm:$0xff] %v511
  %576 = vst [vmem:[%s5 + $0x90] sm:$0xff] %v512
  %577 = vst [vmem:[%s5 + $0x98] sm:$0xff] %v513
  %578 = vst [vmem:[%s5 + $0xa0] sm:$0xff] %v514
  %579 = vst [vmem:[%s5 + $0xa8] sm:$0xff] %v515
  %580 = vst [vmem:[%s5 + $0xb0] sm:$0xff] %v516
  %581 = vst [vmem:[%s5 + $0xb8] sm:$0xff] %v517
  %582 = vst [vmem:[%s5 + $0xc0] sm:$0xff] %v518
  %583 = vst [vmem:[%s5 + $0xc8] sm:$0xff] %v519
  %584 = vst [vmem:[%s5 + $0xd0] sm:$0xff] %v520
  %585 = vst [vmem:[%s5 + $0xd8] sm:$0xff] %v521
  %586 = vst [vmem:[%s5 + $0xe0] sm:$0xff] %v522
  %587 = vst [vmem:[%s5 + $0xe8] sm:$0xff] %v523
  %588 = vst [vmem:[%s5 + $0xf0] sm:$0xff] %v524
  %589 = vst [vmem:[%s5 + $0xf8] sm:$0xff] %v525
  %590 = vst [vmem:[%s5 + $0x100] sm:$0xff] %v526
  %591 = vst [vmem:[%s5 + $0x108] sm:$0xff] %v527
  %592 = vst [vmem:[%s5 + $0x110] sm:$0xff] %v528
  %593 = vst [vmem:[%s5 + $0x118] sm:$0xff] %v529
  %594 = vst [vmem:[%s5 + $0x120] sm:$0xff] %v530
  %595 = vst [vmem:[%s5 + $0x128] sm:$0xff] %v531
  %596 = vst [vmem:[%s5 + $0x130] sm:$0xff] %v532
  %597 = vst [vmem:[%s5 + $0x138] sm:$0xff] %v533
  %598 = vst [vmem:[%s5 + $0x140] sm:$0xff] %v534
  %599 = vst [vmem:[%s5 + $0x148] sm:$0xff] %v535
  %600 = vst [vmem:[%s5 + $0x150] sm:$0xff] %v536
  %601 = vst [vmem:[%s5 + $0x158] sm:$0xff] %v537
  %602 = vst [vmem:[%s5 + $0x160] sm:$0xff] %v538
  %603 = vst [vmem:[%s5 + $0x168] sm:$0xff] %v539
  %604 = vst [vmem:[%s5 + $0x170] sm:$0xff] %v540
  %605 = vst [vmem:[%s5 + $0x178] sm:$0xff] %v541
  %606 = vst [vmem:[%s5 + $0x180] sm:$0xff] %v542
  %607 = vst [vmem:[%s5 + $0x188] sm:$0xff] %v543
  %608 = vst [vmem:[%s5 + $0x190] sm:$0xff] %v544
  %609 = vst [vmem:[%s5 + $0x198] sm:$0xff] %v545
  %610 = vst [vmem:[%s5 + $0x1a0] sm:$0xff] %v546
  %611 = vst [vmem:[%s5 + $0x1a8] sm:$0xff] %v547
  %612 = vst [vmem:[%s5 + $0x1b0] sm:$0xff] %v548
  %613 = vst [vmem:[%s5 + $0x1b8] sm:$0xff] %v549
  %614 = vst [vmem:[%s5 + $0x1c0] sm:$0xff] %v550
  %615 = vst [vmem:[%s5 + $0x1c8] sm:$0xff] %v551
  %616 = vst [vmem:[%s5 + $0x1d0] sm:$0xff] %v552
  %617 = vst [vmem:[%s5 + $0x1d8] sm:$0xff] %v553
  %618 = vst [vmem:[%s5 + $0x1e0] sm:$0xff] %v554
  %619 = vst [vmem:[%s5 + $0x1e8] sm:$0xff] %v555
  %620 = vst [vmem:[%s5 + $0x1f0] sm:$0xff] %v556
  %621 = vst [vmem:[%s5 + $0x1f8] sm:$0xff] %v557
  // Predicated region
  $region22: #{vanilla_encoder_forward.23} parent=0 // pred_check
    _
  $region23: #{vanilla_encoder_forward.23} parent=0 // pred_check_branch
    %623 = sbr.rel (0) target = $region25
  $region24: #{vanilla_encoder_forward.23} parent=0 // pred_region
    _
  $region25: #{vanilla_encoder_forward.23} parent=0 // pred_fallthru
    _
  // Predicated region
  $region26: #{vanilla_encoder_forward.23} parent=0 // pred_check
    _
  $region27: #{vanilla_encoder_forward.23} parent=0 // pred_check_branch
    %625 = sbr.rel (0) target = $region29
  $region28: #{vanilla_encoder_forward.23} parent=0 // pred_region
    _
  $region29: #{vanilla_encoder_forward.23} parent=0 // pred_fallthru
    _

// kernel: vanilla_encoder_forward.22
$region0: #{vanilla_encoder_forward.22}
  #allocation0 [shape = 'u32[]', space=smem, size = 0x4, offset = 0x4, fixed_abs, tag = 'smem constant byte address 0x4 - core index']
  #allocation1 [shape = 'u32[144,128]{1,0:T(1,128)}', space=vmem, size = 0x12000, scoped, tag = 'internal scratch']
  %s0 = inlined_call_operand.vmem [shape: bf16[512,256], index: 0, kind: input, shape index: {}]
  %s1 = inlined_call_operand.vmem [shape: bf16[256,128], index: 1, kind: input, shape index: {}]
  %s2 = inlined_call_operand.vmem [shape: f32[512,128], index: 2, kind: output, shape index: {0}]
  %s3 = inlined_call_operand.vmem [shape: f32[1,128], index: 3, kind: output, shape index: {1}]
  %s4 = inlined_call_operand.vmem [shape: f32[1,128], index: 4, kind: output, shape index: {2}]
  %5 = xla_tuple %s2, %s3, %s4
  %s6 = sld [smem:[#allocation0]]
  $region38: #{vanilla_encoder_forward.22} parent=0
    _
  %s8 = ssub.s32 1, %s6
  %s9 = scalar_select 0, %s8, %s6
  // Predicated region
  $region2: #{vanilla_encoder_forward.22} parent=0 // pred_check
    _
  $region3: #{vanilla_encoder_forward.22} parent=0 // pred_check_branch
    %11 = sbr.rel (0) target = $region5
  $region4: #{vanilla_encoder_forward.22} parent=0 // pred_region
    _
  $region5: #{vanilla_encoder_forward.22} parent=0 // pred_fallthru
    _
  // Predicated region
  $region6: #{vanilla_encoder_forward.22} parent=0 // pred_check
    _
  $region7: #{vanilla_encoder_forward.22} parent=0 // pred_check_branch
    %13 = sbr.rel (0) target = $region9
  $region8: #{vanilla_encoder_forward.22} parent=0 // pred_region
    _
  $region9: #{vanilla_encoder_forward.22} parent=0 // pred_fallthru
    _
  %v15 = vld [vmem:[%s0] sm:$0xff]
  %v16 = vld [vmem:[%s0 + $0x8] sm:$0xff]
  %v17 = vld [vmem:[%s0 + $0x10] sm:$0xff]
  %v18 = vld [vmem:[%s0 + $0x18] sm:$0xff]
  %v19 = vld [vmem:[%s0 + $0x20] sm:$0xff]
  %v20 = vld [vmem:[%s0 + $0x28] sm:$0xff]
  %v21 = vld [vmem:[%s0 + $0x30] sm:$0xff]
  %v22 = vld [vmem:[%s0 + $0x38] sm:$0xff]
  %v23 = vld [vmem:[%s0 + $0x40] sm:$0xff]
  %v24 = vld [vmem:[%s0 + $0x48] sm:$0xff]
  %v25 = vld [vmem:[%s0 + $0x50] sm:$0xff]
  %v26 = vld [vmem:[%s0 + $0x58] sm:$0xff]
  %v27 = vld [vmem:[%s0 + $0x60] sm:$0xff]
  %v28 = vld [vmem:[%s0 + $0x68] sm:$0xff]
  %v29 = vld [vmem:[%s0 + $0x70] sm:$0xff]
  %v30 = vld [vmem:[%s0 + $0x78] sm:$0xff]
  %v31 = vld [vmem:[%s0 + $0x80] sm:$0xff]
  %v32 = vld [vmem:[%s0 + $0x88] sm:$0xff]
  %v33 = vld [vmem:[%s0 + $0x90] sm:$0xff]
  %v34 = vld [vmem:[%s0 + $0x98] sm:$0xff]
  %v35 = vld [vmem:[%s0 + $0xa0] sm:$0xff]
  %v36 = vld [vmem:[%s0 + $0xa8] sm:$0xff]
  %v37 = vld [vmem:[%s0 + $0xb0] sm:$0xff]
  %v38 = vld [vmem:[%s0 + $0xb8] sm:$0xff]
  %v39 = vld [vmem:[%s0 + $0xc0] sm:$0xff]
  %v40 = vld [vmem:[%s0 + $0xc8] sm:$0xff]
  %v41 = vld [vmem:[%s0 + $0xd0] sm:$0xff]
  %v42 = vld [vmem:[%s0 + $0xd8] sm:$0xff]
  %v43 = vld [vmem:[%s0 + $0xe0] sm:$0xff]
  %v44 = vld [vmem:[%s0 + $0xe8] sm:$0xff]
  %v45 = vld [vmem:[%s0 + $0xf0] sm:$0xff]
  %v46 = vld [vmem:[%s0 + $0xf8] sm:$0xff]
  %v47 = vld [vmem:[%s0 + $0x100] sm:$0xff]
  %v48 = vld [vmem:[%s0 + $0x108] sm:$0xff]
  %v49 = vld [vmem:[%s0 + $0x110] sm:$0xff]
  %v50 = vld [vmem:[%s0 + $0x118] sm:$0xff]
  %v51 = vld [vmem:[%s0 + $0x120] sm:$0xff]
  %v52 = vld [vmem:[%s0 + $0x128] sm:$0xff]
  %v53 = vld [vmem:[%s0 + $0x130] sm:$0xff]
  %v54 = vld [vmem:[%s0 + $0x138] sm:$0xff]
  %v55 = vld [vmem:[%s0 + $0x140] sm:$0xff]
  %v56 = vld [vmem:[%s0 + $0x148] sm:$0xff]
  %v57 = vld [vmem:[%s0 + $0x150] sm:$0xff]
  %v58 = vld [vmem:[%s0 + $0x158] sm:$0xff]
  %v59 = vld [vmem:[%s0 + $0x160] sm:$0xff]
  %v60 = vld [vmem:[%s0 + $0x168] sm:$0xff]
  %v61 = vld [vmem:[%s0 + $0x170] sm:$0xff]
  %v62 = vld [vmem:[%s0 + $0x178] sm:$0xff]
  %v63 = vld [vmem:[%s0 + $0x180] sm:$0xff]
  %v64 = vld [vmem:[%s0 + $0x188] sm:$0xff]
  %v65 = vld [vmem:[%s0 + $0x190] sm:$0xff]
  %v66 = vld [vmem:[%s0 + $0x198] sm:$0xff]
  %v67 = vld [vmem:[%s0 + $0x1a0] sm:$0xff]
  %v68 = vld [vmem:[%s0 + $0x1a8] sm:$0xff]
  %v69 = vld [vmem:[%s0 + $0x1b0] sm:$0xff]
  %v70 = vld [vmem:[%s0 + $0x1b8] sm:$0xff]
  %v71 = vld [vmem:[%s0 + $0x1c0] sm:$0xff]
  %v72 = vld [vmem:[%s0 + $0x1c8] sm:$0xff]
  %v73 = vld [vmem:[%s0 + $0x1d0] sm:$0xff]
  %v74 = vld [vmem:[%s0 + $0x1d8] sm:$0xff]
  %v75 = vld [vmem:[%s0 + $0x1e0] sm:$0xff]
  %v76 = vld [vmem:[%s0 + $0x1e8] sm:$0xff]
  %v77 = vld [vmem:[%s0 + $0x1f0] sm:$0xff]
  %v78 = vld [vmem:[%s0 + $0x1f8] sm:$0xff]
  %v79 = vld [vmem:[%s1] sm:$0xf]
  %v80 = vld [vmem:[%s1 + $0x4] sm:$0xf]
  %v81 = vld [vmem:[%s1 + $0x8] sm:$0xf]
  %v82 = vld [vmem:[%s1 + $0xc] sm:$0xf]
  %v83 = vld [vmem:[%s1 + $0x10] sm:$0xf]
  %v84 = vld [vmem:[%s1 + $0x14] sm:$0xf]
  %v85 = vld [vmem:[%s1 + $0x18] sm:$0xf]
  %v86 = vld [vmem:[%s1 + $0x1c] sm:$0xf]
  %v87 = vld [vmem:[%s1 + $0x20] sm:$0xf]
  %v88 = vld [vmem:[%s1 + $0x24] sm:$0xf]
  %v89 = vld [vmem:[%s1 + $0x28] sm:$0xf]
  %v90 = vld [vmem:[%s1 + $0x2c] sm:$0xf]
  %v91 = vld [vmem:[%s1 + $0x30] sm:$0xf]
  %v92 = vld [vmem:[%s1 + $0x34] sm:$0xf]
  %v93 = vld [vmem:[%s1 + $0x38] sm:$0xf]
  %v94 = vld [vmem:[%s1 + $0x3c] sm:$0xf]
  %v95 = vld [vmem:[%s1 + $0x40] sm:$0xf]
  %v96 = vld [vmem:[%s1 + $0x44] sm:$0xf]
  %v97 = vld [vmem:[%s1 + $0x48] sm:$0xf]
  %v98 = vld [vmem:[%s1 + $0x4c] sm:$0xf]
  %v99 = vld [vmem:[%s1 + $0x50] sm:$0xf]
  %v100 = vld [vmem:[%s1 + $0x54] sm:$0xf]
  %v101 = vld [vmem:[%s1 + $0x58] sm:$0xf]
  %v102 = vld [vmem:[%s1 + $0x5c] sm:$0xf]
  %v103 = vld [vmem:[%s1 + $0x60] sm:$0xf]
  %v104 = vld [vmem:[%s1 + $0x64] sm:$0xf]
  %v105 = vld [vmem:[%s1 + $0x68] sm:$0xf]
  %v106 = vld [vmem:[%s1 + $0x6c] sm:$0xf]
  %v107 = vld [vmem:[%s1 + $0x70] sm:$0xf]
  %v108 = vld [vmem:[%s1 + $0x74] sm:$0xf]
  %v109 = vld [vmem:[%s1 + $0x78] sm:$0xf]
  %v110 = vld [vmem:[%s1 + $0x7c] sm:$0xf]
  %v175 = vunpack.c.l.b16 %v15
  %v176 = vunpack.c.h.b16 %v15
  %v177 = vunpack.c.l.b16 %v16
  %v178 = vunpack.c.h.b16 %v16
  %v179 = vunpack.c.l.b16 %v17
  %v180 = vunpack.c.h.b16 %v17
  %v181 = vunpack.c.l.b16 %v18
  %v182 = vunpack.c.h.b16 %v18
  %v183 = vunpack.c.l.b16 %v19
  %v184 = vunpack.c.h.b16 %v19
  %v185 = vunpack.c.l.b16 %v20
  %v186 = vunpack.c.h.b16 %v20
  %v187 = vunpack.c.l.b16 %v21
  %v188 = vunpack.c.h.b16 %v21
  %v189 = vunpack.c.l.b16 %v22
  %v190 = vunpack.c.h.b16 %v22
  %v191 = vunpack.c.l.b16 %v23
  %v192 = vunpack.c.h.b16 %v23
  %v193 = vunpack.c.l.b16 %v24
  %v194 = vunpack.c.h.b16 %v24
  %v195 = vunpack.c.l.b16 %v25
  %v196 = vunpack.c.h.b16 %v25
  %v197 = vunpack.c.l.b16 %v26
  %v198 = vunpack.c.h.b16 %v26
  %v199 = vunpack.c.l.b16 %v27
  %v200 = vunpack.c.h.b16 %v27
  %v201 = vunpack.c.l.b16 %v28
  %v202 = vunpack.c.h.b16 %v28
  %v203 = vunpack.c.l.b16 %v29
  %v204 = vunpack.c.h.b16 %v29
  %v205 = vunpack.c.l.b16 %v30
  %v206 = vunpack.c.h.b16 %v30
  %v207 = vunpack.c.l.b16 %v31
  %v208 = vunpack.c.h.b16 %v31
  %v209 = vunpack.c.l.b16 %v32
  %v210 = vunpack.c.h.b16 %v32
  %v211 = vunpack.c.l.b16 %v33
  %v212 = vunpack.c.h.b16 %v33
  %v213 = vunpack.c.l.b16 %v34
  %v214 = vunpack.c.h.b16 %v34
  %v215 = vunpack.c.l.b16 %v35
  %v216 = vunpack.c.h.b16 %v35
  %v217 = vunpack.c.l.b16 %v36
  %v218 = vunpack.c.h.b16 %v36
  %v219 = vunpack.c.l.b16 %v37
  %v220 = vunpack.c.h.b16 %v37
  %v221 = vunpack.c.l.b16 %v38
  %v222 = vunpack.c.h.b16 %v38
  %v223 = vunpack.c.l.b16 %v39
  %v224 = vunpack.c.h.b16 %v39
  %v225 = vunpack.c.l.b16 %v40
  %v226 = vunpack.c.h.b16 %v40
  %v227 = vunpack.c.l.b16 %v41
  %v228 = vunpack.c.h.b16 %v41
  %v229 = vunpack.c.l.b16 %v42
  %v230 = vunpack.c.h.b16 %v42
  %v231 = vunpack.c.l.b16 %v43
  %v232 = vunpack.c.h.b16 %v43
  %v233 = vunpack.c.l.b16 %v44
  %v234 = vunpack.c.h.b16 %v44
  %v235 = vunpack.c.l.b16 %v45
  %v236 = vunpack.c.h.b16 %v45
  %v237 = vunpack.c.l.b16 %v46
  %v238 = vunpack.c.h.b16 %v46
  %v239 = vunpack.c.l.b16 %v47
  %v240 = vunpack.c.h.b16 %v47
  %v241 = vunpack.c.l.b16 %v48
  %v242 = vunpack.c.h.b16 %v48
  %v243 = vunpack.c.l.b16 %v49
  %v244 = vunpack.c.h.b16 %v49
  %v245 = vunpack.c.l.b16 %v50
  %v246 = vunpack.c.h.b16 %v50
  %v247 = vunpack.c.l.b16 %v51
  %v248 = vunpack.c.h.b16 %v51
  %v249 = vunpack.c.l.b16 %v52
  %v250 = vunpack.c.h.b16 %v52
  %v251 = vunpack.c.l.b16 %v53
  %v252 = vunpack.c.h.b16 %v53
  %v253 = vunpack.c.l.b16 %v54
  %v254 = vunpack.c.h.b16 %v54
  %v255 = vunpack.c.l.b16 %v55
  %v256 = vunpack.c.h.b16 %v55
  %v257 = vunpack.c.l.b16 %v56
  %v258 = vunpack.c.h.b16 %v56
  %v259 = vunpack.c.l.b16 %v57
  %v260 = vunpack.c.h.b16 %v57
  %v261 = vunpack.c.l.b16 %v58
  %v262 = vunpack.c.h.b16 %v58
  %v263 = vunpack.c.l.b16 %v59
  %v264 = vunpack.c.h.b16 %v59
  %v265 = vunpack.c.l.b16 %v60
  %v266 = vunpack.c.h.b16 %v60
  %v267 = vunpack.c.l.b16 %v61
  %v268 = vunpack.c.h.b16 %v61
  %v269 = vunpack.c.l.b16 %v62
  %v270 = vunpack.c.h.b16 %v62
  %v271 = vunpack.c.l.b16 %v63
  %v272 = vunpack.c.h.b16 %v63
  %v273 = vunpack.c.l.b16 %v64
  %v274 = vunpack.c.h.b16 %v64
  %v275 = vunpack.c.l.b16 %v65
  %v276 = vunpack.c.h.b16 %v65
  %v277 = vunpack.c.l.b16 %v66
  %v278 = vunpack.c.h.b16 %v66
  %v279 = vunpack.c.l.b16 %v67
  %v280 = vunpack.c.h.b16 %v67
  %v281 = vunpack.c.l.b16 %v68
  %v282 = vunpack.c.h.b16 %v68
  %v283 = vunpack.c.l.b16 %v69
  %v284 = vunpack.c.h.b16 %v69
  %v285 = vunpack.c.l.b16 %v70
  %v286 = vunpack.c.h.b16 %v70
  %v287 = vunpack.c.l.b16 %v71
  %v288 = vunpack.c.h.b16 %v71
  %v289 = vunpack.c.l.b16 %v72
  %v290 = vunpack.c.h.b16 %v72
  %v291 = vunpack.c.l.b16 %v73
  %v292 = vunpack.c.h.b16 %v73
  %v293 = vunpack.c.l.b16 %v74
  %v294 = vunpack.c.h.b16 %v74
  %v295 = vunpack.c.l.b16 %v75
  %v296 = vunpack.c.h.b16 %v75
  %v297 = vunpack.c.l.b16 %v76
  %v298 = vunpack.c.h.b16 %v76
  %v299 = vunpack.c.l.b16 %v77
  %v300 = vunpack.c.h.b16 %v77
  %v301 = vunpack.c.l.b16 %v78
  %v302 = vunpack.c.h.b16 %v78
  %v303 = vpack.c.b16 %v177, %v175
  %v304 = vpack.c.b16 %v178, %v176
  %v305 = vpack.c.b16 %v181, %v179
  %v306 = vpack.c.b16 %v182, %v180
  %v307 = vpack.c.b16 %v185, %v183
  %v308 = vpack.c.b16 %v186, %v184
  %v309 = vpack.c.b16 %v189, %v187
  %v310 = vpack.c.b16 %v190, %v188
  %v311 = vpack.c.b16 %v193, %v191
  %v312 = vpack.c.b16 %v194, %v192
  %v313 = vpack.c.b16 %v197, %v195
  %v314 = vpack.c.b16 %v198, %v196
  %v315 = vpack.c.b16 %v201, %v199
  %v316 = vpack.c.b16 %v202, %v200
  %v317 = vpack.c.b16 %v205, %v203
  %v318 = vpack.c.b16 %v206, %v204
  %v319 = vpack.c.b16 %v209, %v207
  %v320 = vpack.c.b16 %v210, %v208
  %v321 = vpack.c.b16 %v213, %v211
  %v322 = vpack.c.b16 %v214, %v212
  %v323 = vpack.c.b16 %v217, %v215
  %v324 = vpack.c.b16 %v218, %v216
  %v325 = vpack.c.b16 %v221, %v219
  %v326 = vpack.c.b16 %v222, %v220
  %v327 = vpack.c.b16 %v225, %v223
  %v328 = vpack.c.b16 %v226, %v224
  %v329 = vpack.c.b16 %v229, %v227
  %v330 = vpack.c.b16 %v230, %v228
  %v331 = vpack.c.b16 %v233, %v231
  %v332 = vpack.c.b16 %v234, %v232
  %v333 = vpack.c.b16 %v237, %v235
  %v334 = vpack.c.b16 %v238, %v236
  %v335 = vpack.c.b16 %v241, %v239
  %v336 = vpack.c.b16 %v242, %v240
  %v337 = vpack.c.b16 %v245, %v243
  %v338 = vpack.c.b16 %v246, %v244
  %v339 = vpack.c.b16 %v249, %v247
  %v340 = vpack.c.b16 %v250, %v248
  %v341 = vpack.c.b16 %v253, %v251
  %v342 = vpack.c.b16 %v254, %v252
  %v343 = vpack.c.b16 %v257, %v255
  %v344 = vpack.c.b16 %v258, %v256
  %v345 = vpack.c.b16 %v261, %v259
  %v346 = vpack.c.b16 %v262, %v260
  %v347 = vpack.c.b16 %v265, %v263
  %v348 = vpack.c.b16 %v266, %v264
  %v349 = vpack.c.b16 %v269, %v267
  %v350 = vpack.c.b16 %v270, %v268
  %v351 = vpack.c.b16 %v273, %v271
  %v352 = vpack.c.b16 %v274, %v272
  %v353 = vpack.c.b16 %v277, %v275
  %v354 = vpack.c.b16 %v278, %v276
  %v355 = vpack.c.b16 %v281, %v279
  %v356 = vpack.c.b16 %v282, %v280
  %v357 = vpack.c.b16 %v285, %v283
  %v358 = vpack.c.b16 %v286, %v284
  %v359 = vpack.c.b16 %v289, %v287
  %v360 = vpack.c.b16 %v290, %v288
  %v361 = vpack.c.b16 %v293, %v291
  %v362 = vpack.c.b16 %v294, %v292
  %v363 = vpack.c.b16 %v297, %v295
  %v364 = vpack.c.b16 %v298, %v296
  %v365 = vpack.c.b16 %v301, %v299
  %v366 = vpack.c.b16 %v302, %v300
  %v463 = vunpack.c.l.b16 %v79
  %v464 = vunpack.c.l.b16 %v80
  %v465 = vunpack.c.l.b16 %v81
  %v466 = vunpack.c.l.b16 %v82
  %v467 = vunpack.c.l.b16 %v83
  %v468 = vunpack.c.l.b16 %v84
  %v469 = vunpack.c.l.b16 %v85
  %v470 = vunpack.c.l.b16 %v86
  %v471 = vunpack.c.l.b16 %v87
  %v472 = vunpack.c.l.b16 %v88
  %v473 = vunpack.c.l.b16 %v89
  %v474 = vunpack.c.l.b16 %v90
  %v475 = vunpack.c.l.b16 %v91
  %v476 = vunpack.c.l.b16 %v92
  %v477 = vunpack.c.l.b16 %v93
  %v478 = vunpack.c.l.b16 %v94
  %v479 = vunpack.c.l.b16 %v95
  %v480 = vunpack.c.l.b16 %v96
  %v481 = vunpack.c.l.b16 %v97
  %v482 = vunpack.c.l.b16 %v98
  %v483 = vunpack.c.l.b16 %v99
  %v484 = vunpack.c.l.b16 %v100
  %v485 = vunpack.c.l.b16 %v101
  %v486 = vunpack.c.l.b16 %v102
  %v487 = vunpack.c.l.b16 %v103
  %v488 = vunpack.c.l.b16 %v104
  %v489 = vunpack.c.l.b16 %v105
  %v490 = vunpack.c.l.b16 %v106
  %v491 = vunpack.c.l.b16 %v107
  %v492 = vunpack.c.l.b16 %v108
  %v493 = vunpack.c.l.b16 %v109
  %v494 = vunpack.c.l.b16 %v110
  %v495 = vpack.c.b16 %v464, %v463
  %v496 = vpack.c.b16 %v466, %v465
  %v497 = vpack.c.b16 %v468, %v467
  %v498 = vpack.c.b16 %v470, %v469
  %v499 = vpack.c.b16 %v472, %v471
  %v500 = vpack.c.b16 %v474, %v473
  %v501 = vpack.c.b16 %v476, %v475
  %v502 = vpack.c.b16 %v478, %v477
  %v503 = vpack.c.b16 %v480, %v479
  %v504 = vpack.c.b16 %v482, %v481
  %v505 = vpack.c.b16 %v484, %v483
  %v506 = vpack.c.b16 %v486, %v485
  %v507 = vpack.c.b16 %v488, %v487
  %v508 = vpack.c.b16 %v490, %v489
  %v509 = vpack.c.b16 %v492, %v491
  %v510 = vpack.c.b16 %v494, %v493
  %527 = vmatprep.subr.bf16.mxu0 0
  %528 = vmatpush1.bf16.msra.mxu0 %v495
  %529 = vmatprep.subr.bf16.mxu0 0
  %530 = vmatpush1.bf16.msra.mxu0 %v496
  %531 = vmatprep.subr.bf16.mxu0 0
  %532 = vmatpush1.bf16.msra.mxu0 %v497
  %533 = vmatprep.subr.bf16.mxu0 0
  %534 = vmatpush1.bf16.msra.mxu0 %v498
  %535 = vmatprep.subr.bf16.mxu0 0
  %536 = vmatpush1.bf16.msra.mxu0 %v499
  %537 = vmatprep.subr.bf16.mxu0 0
  %538 = vmatpush1.bf16.msra.mxu0 %v500
  %539 = vmatprep.subr.bf16.mxu0 0
  %540 = vmatpush1.bf16.msra.mxu0 %v501
  %541 = vmatprep.subr.bf16.mxu0 0
  %542 = vmatpush1.bf16.msra.mxu0 %v502
  %543 = vmatprep.subr.bf16.mxu0 0
  %544 = vmatpush1.bf16.msra.mxu0 %v503
  %545 = vmatprep.subr.bf16.mxu0 0
  %546 = vmatpush1.bf16.msra.mxu0 %v504
  %547 = vmatprep.subr.bf16.mxu0 0
  %548 = vmatpush1.bf16.msra.mxu0 %v505
  %549 = vmatprep.subr.bf16.mxu0 0
  %550 = vmatpush1.bf16.msra.mxu0 %v506
  %551 = vmatprep.subr.bf16.mxu0 0
  %552 = vmatpush1.bf16.msra.mxu0 %v507
  %553 = vmatprep.subr.bf16.mxu0 0
  %554 = vmatpush1.bf16.msra.mxu0 %v508
  %555 = vmatprep.subr.bf16.mxu0 0
  %556 = vmatpush1.bf16.msra.mxu0 %v509
  %557 = vmatprep.subr.bf16.mxu0 0
  %558 = vmatpush1.bf16.msra.mxu0 %v510
  %559 = vmatprep.mubr.bf16.mxu0 %v304
  %560 = vmatmul.mubr.bf16.gmra.mrb[0].mxu0 %v303
  %v561 = vpop.f32.mrb[0].mxu0
  %v562 = vadd.f32 0.0, %v561
  %v563 = vpop.f32.mrb[0].mxu0
  %v564 = vpop.f32.mrb[0].mxu0
  %v565 = vadd.f32 0.0, %v564
  %v566 = vpop.f32.mrb[0].mxu0
  %567 = vmatprep.mubr.bf16.mxu0 %v306
  %568 = vmatmul.mubr.bf16.gmra.mrb[0].mxu0 %v305
  %v569 = vpop.f32.mrb[0].mxu0
  %v570 = vadd.f32 0.0, %v569
  %v571 = vpop.f32.mrb[0].mxu0
  %v572 = vpop.f32.mrb[0].mxu0
  %v573 = vadd.f32 0.0, %v572
  %v574 = vpop.f32.mrb[0].mxu0
  %575 = vmatprep.mubr.bf16.mxu0 %v308
  %576 = vmatmul.mubr.bf16.gmra.mrb[0].mxu0 %v307
  %v577 = vpop.f32.mrb[0].mxu0
  %v578 = vadd.f32 0.0, %v577
  %v579 = vpop.f32.mrb[0].mxu0
  %v580 = vpop.f32.mrb[0].mxu0
  %v581 = vadd.f32 0.0, %v580
  %v582 = vpop.f32.mrb[0].mxu0
  %583 = vmatprep.mubr.bf16.mxu0 %v310
  %584 = vmatmul.mubr.bf16.gmra.mrb[0].mxu0 %v309
  %v585 = vpop.f32.mrb[0].mxu0
  %v586 = vadd.f32 0.0, %v585
  %v587 = vpop.f32.mrb[0].mxu0
  %v588 = vpop.f32.mrb[0].mxu0
  %v589 = vadd.f32 0.0, %v588
  %v590 = vpop.f32.mrb[0].mxu0
  %591 = vmatprep.mubr.bf16.mxu0 %v312
  %592 = vmatmul.mubr.bf16.gmra.mrb[0].mxu0 %v311
  %v593 = vpop.f32.mrb[0].mxu0
  %v594 = vadd.f32 0.0, %v593
  %v595 = vpop.f32.mrb[0].mxu0
  %v596 = vpop.f32.mrb[0].mxu0
  %v597 = vadd.f32 0.0, %v596
  %v598 = vpop.f32.mrb[0].mxu0
  %599 = vmatprep.mubr.bf16.mxu0 %v314
  %600 = vmatmul.mubr.bf16.gmra.mrb[0].mxu0 %v313
  %v601 = vpop.f32.mrb[0].mxu0
  %v602 = vadd.f32 0.0, %v601
  %v603 = vpop.f32.mrb[0].mxu0
  %v604 = vpop.f32.mrb[0].mxu0
  %v605 = vadd.f32 0.0, %v604
  %v606 = vpop.f32.mrb[0].mxu0
  %607 = vmatprep.mubr.bf16.mxu0 %v316
  %608 = vmatmul.mubr.bf16.gmra.mrb[0].mxu0 %v315
  %v609 = vpop.f32.mrb[0].mxu0
  %v610 = vadd.f32 0.0, %v609
  %v611 = vpop.f32.mrb[0].mxu0
  %v612 = vpop.f32.mrb[0].mxu0
  %v613 = vadd.f32 0.0, %v612
  %v614 = vpop.f32.mrb[0].mxu0
  %615 = vmatprep.mubr.bf16.mxu0 %v318
  %616 = vmatmul.mubr.bf16.gmra.mrb[0].mxu0 %v317
  %v617 = vpop.f32.mrb[0].mxu0
  %v618 = vadd.f32 0.0, %v617
  %v619 = vpop.f32.mrb[0].mxu0
  %v620 = vpop.f32.mrb[0].mxu0
  %v621 = vadd.f32 0.0, %v620
  %v622 = vpop.f32.mrb[0].mxu0
  %623 = vmatprep.mubr.bf16.mxu0 %v320
  %624 = vmatmul.mubr.bf16.gmra.mrb[0].mxu0 %v319
  %v625 = vpop.f32.mrb[0].mxu0
  %v626 = vadd.f32 0.0, %v625
  %v627 = vpop.f32.mrb[0].mxu0
  %v628 = vpop.f32.mrb[0].mxu0
  %v629 = vadd.f32 0.0, %v628
  %v630 = vpop.f32.mrb[0].mxu0
  %631 = vmatprep.mubr.bf16.mxu0 %v322
  %632 = vmatmul.mubr.bf16.gmra.mrb[0].mxu0 %v321
  %v633 = vpop.f32.mrb[0].mxu0
  %v634 = vadd.f32 0.0, %v633
  %v635 = vpop.f32.mrb[0].mxu0
  %v636 = vpop.f32.mrb[0].mxu0
  %v637 = vadd.f32 0.0, %v636
  %v638 = vpop.f32.mrb[0].mxu0
  %639 = vmatprep.mubr.bf16.mxu0 %v324
  %640 = vmatmul.mubr.bf16.gmra.mrb[0].mxu0 %v323
  %v641 = vpop.f32.mrb[0].mxu0
  %v642 = vadd.f32 0.0, %v641
  %v643 = vpop.f32.mrb[0].mxu0
  %v644 = vpop.f32.mrb[0].mxu0
  %v645 = vadd.f32 0.0, %v644
  %v646 = vpop.f32.mrb[0].mxu0
  %647 = vmatprep.mubr.bf16.mxu0 %v326
  %648 = vmatmul.mubr.bf16.gmra.mrb[0].mxu0 %v325
  %v649 = vpop.f32.mrb[0].mxu0
  %v650 = vadd.f32 0.0, %v649
  %v651 = vpop.f32.mrb[0].mxu0
  %v652 = vpop.f32.mrb[0].mxu0
  %v653 = vadd.f32 0.0, %v652
  %v654 = vpop.f32.mrb[0].mxu0
  %655 = vmatprep.mubr.bf16.mxu0 %v328
  %656 = vmatmul.mubr.bf16.gmra.mrb[0].mxu0 %v327
  %v657 = vpop.f32.mrb[0].mxu0
  %v658 = vadd.f32 0.0, %v657
  %v659 = vpop.f32.mrb[0].mxu0
  %v660 = vpop.f32.mrb[0].mxu0
  %v661 = vadd.f32 0.0, %v660
  %v662 = vpop.f32.mrb[0].mxu0
  %663 = vmatprep.mubr.bf16.mxu0 %v330
  %664 = vmatmul.mubr.bf16.gmra.mrb[0].mxu0 %v329
  %v665 = vpop.f32.mrb[0].mxu0
  %v666 = vadd.f32 0.0, %v665
  %v667 = vpop.f32.mrb[0].mxu0
  %v668 = vpop.f32.mrb[0].mxu0
  %v669 = vadd.f32 0.0, %v668
  %v670 = vpop.f32.mrb[0].mxu0
  %671 = vmatprep.mubr.bf16.mxu0 %v332
  %672 = vmatmul.mubr.bf16.gmra.mrb[0].mxu0 %v331
  %v673 = vpop.f32.mrb[0].mxu0
  %v674 = vadd.f32 0.0, %v673
  %v675 = vpop.f32.mrb[0].mxu0
  %v676 = vpop.f32.mrb[0].mxu0
  %v677 = vadd.f32 0.0, %v676
  %v678 = vpop.f32.mrb[0].mxu0
  %679 = vmatprep.mubr.bf16.mxu0 %v334
  %680 = vmatmul.mubr.bf16.gmra.mrb[0].mxu0 %v333
  %v681 = vpop.f32.mrb[0].mxu0
  %v682 = vadd.f32 0.0, %v681
  %v683 = vpop.f32.mrb[0].mxu0
  %v684 = vpop.f32.mrb[0].mxu0
  %v685 = vadd.f32 0.0, %v684
  %v686 = vpop.f32.mrb[0].mxu0
  %687 = vmatprep.mubr.bf16.mxu0 %v336
  %688 = vmatmul.mubr.bf16.gmra.mrb[0].mxu0 %v335
  %v689 = vpop.f32.mrb[0].mxu0
  %v690 = vadd.f32 0.0, %v689
  %v691 = vpop.f32.mrb[0].mxu0
  %v692 = vpop.f32.mrb[0].mxu0
  %v693 = vadd.f32 0.0, %v692
  %v694 = vpop.f32.mrb[0].mxu0
  %695 = vmatprep.mubr.bf16.mxu0 %v338
  %696 = vmatmul.mubr.bf16.gmra.mrb[0].mxu0 %v337
  %v697 = vpop.f32.mrb[0].mxu0
  %v698 = vadd.f32 0.0, %v697
  %v699 = vpop.f32.mrb[0].mxu0
  %v700 = vpop.f32.mrb[0].mxu0
  %v701 = vadd.f32 0.0, %v700
  %v702 = vpop.f32.mrb[0].mxu0
  %703 = vmatprep.mubr.bf16.mxu0 %v340
  %704 = vmatmul.mubr.bf16.gmra.mrb[0].mxu0 %v339
  %v705 = vpop.f32.mrb[0].mxu0
  %v706 = vadd.f32 0.0, %v705
  %v707 = vpop.f32.mrb[0].mxu0
  %v708 = vpop.f32.mrb[0].mxu0
  %v709 = vadd.f32 0.0, %v708
  %v710 = vpop.f32.mrb[0].mxu0
  %711 = vmatprep.mubr.bf16.mxu0 %v342
  %712 = vmatmul.mubr.bf16.gmra.mrb[0].mxu0 %v341
  %v713 = vpop.f32.mrb[0].mxu0
  %v714 = vadd.f32 0.0, %v713
  %v715 = vpop.f32.mrb[0].mxu0
  %v716 = vpop.f32.mrb[0].mxu0
  %v717 = vadd.f32 0.0, %v716
  %v718 = vpop.f32.mrb[0].mxu0
  %719 = vmatprep.mubr.bf16.mxu0 %v344
  %720 = vmatmul.mubr.bf16.gmra.mrb[0].mxu0 %v343
  %v721 = vpop.f32.mrb[0].mxu0
  %v722 = vadd.f32 0.0, %v721
  %v723 = vpop.f32.mrb[0].mxu0
  %v724 = vpop.f32.mrb[0].mxu0
  %v725 = vadd.f32 0.0, %v724
  %v726 = vpop.f32.mrb[0].mxu0
  %727 = vmatprep.mubr.bf16.mxu0 %v346
  %728 = vmatmul.mubr.bf16.gmra.mrb[0].mxu0 %v345
  %v729 = vpop.f32.mrb[0].mxu0
  %v730 = vadd.f32 0.0, %v729
  %v731 = vpop.f32.mrb[0].mxu0
  %v732 = vpop.f32.mrb[0].mxu0
  %v733 = vadd.f32 0.0, %v732
  %v734 = vpop.f32.mrb[0].mxu0
  %735 = vmatprep.mubr.bf16.mxu0 %v348
  %736 = vmatmul.mubr.bf16.gmra.mrb[0].mxu0 %v347
  %v737 = vpop.f32.mrb[0].mxu0
  %v738 = vadd.f32 0.0, %v737
  %v739 = vpop.f32.mrb[0].mxu0
  %v740 = vpop.f32.mrb[0].mxu0
  %v741 = vadd.f32 0.0, %v740
  %v742 = vpop.f32.mrb[0].mxu0
  %743 = vmatprep.mubr.bf16.mxu0 %v350
  %744 = vmatmul.mubr.bf16.gmra.mrb[0].mxu0 %v349
  %v745 = vpop.f32.mrb[0].mxu0
  %v746 = vadd.f32 0.0, %v745
  %v747 = vpop.f32.mrb[0].mxu0
  %v748 = vpop.f32.mrb[0].mxu0
  %v749 = vadd.f32 0.0, %v748
  %v750 = vpop.f32.mrb[0].mxu0
  %751 = vmatprep.mubr.bf16.mxu0 %v352
  %752 = vmatmul.mubr.bf16.gmra.mrb[0].mxu0 %v351
  %v753 = vpop.f32.mrb[0].mxu0
  %v754 = vadd.f32 0.0, %v753
  %v755 = vpop.f32.mrb[0].mxu0
  %v756 = vpop.f32.mrb[0].mxu0
  %v757 = vadd.f32 0.0, %v756
  %v758 = vpop.f32.mrb[0].mxu0
  %759 = vmatprep.mubr.bf16.mxu0 %v354
  %760 = vmatmul.mubr.bf16.gmra.mrb[0].mxu0 %v353
  %v761 = vpop.f32.mrb[0].mxu0
  %v762 = vadd.f32 0.0, %v761
  %v763 = vpop.f32.mrb[0].mxu0
  %v764 = vpop.f32.mrb[0].mxu0
  %v765 = vadd.f32 0.0, %v764
  %v766 = vpop.f32.mrb[0].mxu0
  %767 = vmatprep.mubr.bf16.mxu0 %v356
  %768 = vmatmul.mubr.bf16.gmra.mrb[0].mxu0 %v355
  %v769 = vpop.f32.mrb[0].mxu0
  %v770 = vadd.f32 0.0, %v769
  %v771 = vpop.f32.mrb[0].mxu0
  %v772 = vpop.f32.mrb[0].mxu0
  %v773 = vadd.f32 0.0, %v772
  %v774 = vpop.f32.mrb[0].mxu0
  %775 = vmatprep.mubr.bf16.mxu0 %v358
  %776 = vmatmul.mubr.bf16.gmra.mrb[0].mxu0 %v357
  %v777 = vpop.f32.mrb[0].mxu0
  %v778 = vadd.f32 0.0, %v777
  %v779 = vpop.f32.mrb[0].mxu0
  %v780 = vpop.f32.mrb[0].mxu0
  %v781 = vadd.f32 0.0, %v780
  %v782 = vpop.f32.mrb[0].mxu0
  %783 = vmatprep.mubr.bf16.mxu0 %v360
  %784 = vmatmul.mubr.bf16.gmra.mrb[0].mxu0 %v359
  %v785 = vpop.f32.mrb[0].mxu0
  %v786 = vadd.f32 0.0, %v785
  %v787 = vpop.f32.mrb[0].mxu0
  %v788 = vpop.f32.mrb[0].mxu0
  %v789 = vadd.f32 0.0, %v788
  %v790 = vpop.f32.mrb[0].mxu0
  %791 = vmatprep.mubr.bf16.mxu0 %v362
  %792 = vmatmul.mubr.bf16.gmra.mrb[0].mxu0 %v361
  %v793 = vpop.f32.mrb[0].mxu0
  %v794 = vadd.f32 0.0, %v793
  %v795 = vpop.f32.mrb[0].mxu0
  %v796 = vpop.f32.mrb[0].mxu0
  %v797 = vadd.f32 0.0, %v796
  %v798 = vpop.f32.mrb[0].mxu0
  %799 = vmatprep.mubr.bf16.mxu0 %v364
  %800 = vmatmul.mubr.bf16.gmra.mrb[0].mxu0 %v363
  %v801 = vpop.f32.mrb[0].mxu0
  %v802 = vadd.f32 0.0, %v801
  %v803 = vpop.f32.mrb[0].mxu0
  %v804 = vpop.f32.mrb[0].mxu0
  %v805 = vadd.f32 0.0, %v804
  %v806 = vpop.f32.mrb[0].mxu0
  %807 = vmatprep.mubr.bf16.mxu0 %v366
  %808 = vmatmul.mubr.bf16.gmra.mrb[0].mxu0 %v365
  %v809 = vpop.f32.mrb[0].mxu0
  %v810 = vadd.f32 0.0, %v809
  %v811 = vpop.f32.mrb[0].mxu0
  %v812 = vpop.f32.mrb[0].mxu0
  %v813 = vadd.f32 0.0, %v812
  %v814 = vpop.f32.mrb[0].mxu0
  %815 = vdwg.mxu0
  %816 = vst [vmem:[%s2] sm:$0xff] %v562
  %817 = vst [vmem:[%s2 + $0x8] sm:$0xff] %v565
  %818 = vst [vmem:[%s2 + $0x10] sm:$0xff] %v570
  %819 = vst [vmem:[%s2 + $0x18] sm:$0xff] %v573
  %820 = vst [vmem:[%s2 + $0x20] sm:$0xff] %v578
  %821 = vst [vmem:[%s2 + $0x28] sm:$0xff] %v581
  %822 = vst [vmem:[%s2 + $0x30] sm:$0xff] %v586
  %823 = vst [vmem:[%s2 + $0x38] sm:$0xff] %v589
  %824 = vst [vmem:[%s2 + $0x40] sm:$0xff] %v594
  %825 = vst [vmem:[%s2 + $0x48] sm:$0xff] %v597
  %826 = vst [vmem:[%s2 + $0x50] sm:$0xff] %v602
  %827 = vst [vmem:[%s2 + $0x58] sm:$0xff] %v605
  %828 = vst [vmem:[%s2 + $0x60] sm:$0xff] %v610
  %829 = vst [vmem:[%s2 + $0x68] sm:$0xff] %v613
  %830 = vst [vmem:[%s2 + $0x70] sm:$0xff] %v618
  %831 = vst [vmem:[%s2 + $0x78] sm:$0xff] %v621
  %832 = vst [vmem:[%s2 + $0x80] sm:$0xff] %v626
  %833 = vst [vmem:[%s2 + $0x88] sm:$0xff] %v629
  %834 = vst [vmem:[%s2 + $0x90] sm:$0xff] %v634
  %835 = vst [vmem:[%s2 + $0x98] sm:$0xff] %v637
  %836 = vst [vmem:[%s2 + $0xa0] sm:$0xff] %v642
  %837 = vst [vmem:[%s2 + $0xa8] sm:$0xff] %v645
  %838 = vst [vmem:[%s2 + $0xb0] sm:$0xff] %v650
  %839 = vst [vmem:[%s2 + $0xb8] sm:$0xff] %v653
  %840 = vst [vmem:[%s2 + $0xc0] sm:$0xff] %v658
  %841 = vst [vmem:[%s2 + $0xc8] sm:$0xff] %v661
  %842 = vst [vmem:[%s2 + $0xd0] sm:$0xff] %v666
  %843 = vst [vmem:[%s2 + $0xd8] sm:$0xff] %v669
  %844 = vst [vmem:[%s2 + $0xe0] sm:$0xff] %v674
  %845 = vst [vmem:[%s2 + $0xe8] sm:$0xff] %v677
  %846 = vst [vmem:[%s2 + $0xf0] sm:$0xff] %v682
  %847 = vst [vmem:[%s2 + $0xf8] sm:$0xff] %v685
  %848 = vst [vmem:[%s2 + $0x100] sm:$0xff] %v690
  %849 = vst [vmem:[%s2 + $0x108] sm:$0xff] %v693
  %850 = vst [vmem:[%s2 + $0x110] sm:$0xff] %v698
  %851 = vst [vmem:[%s2 + $0x118] sm:$0xff] %v701
  %852 = vst [vmem:[%s2 + $0x120] sm:$0xff] %v706
  %853 = vst [vmem:[%s2 + $0x128] sm:$0xff] %v709
  %854 = vst [vmem:[%s2 + $0x130] sm:$0xff] %v714
  %855 = vst [vmem:[%s2 + $0x138] sm:$0xff] %v717
  %856 = vst [vmem:[%s2 + $0x140] sm:$0xff] %v722
  %857 = vst [vmem:[%s2 + $0x148] sm:$0xff] %v725
  %858 = vst [vmem:[%s2 + $0x150] sm:$0xff] %v730
  %859 = vst [vmem:[%s2 + $0x158] sm:$0xff] %v733
  %860 = vst [vmem:[%s2 + $0x160] sm:$0xff] %v738
  %861 = vst [vmem:[%s2 + $0x168] sm:$0xff] %v741
  %862 = vst [vmem:[%s2 + $0x170] sm:$0xff] %v746
  %863 = vst [vmem:[%s2 + $0x178] sm:$0xff] %v749
  %864 = vst [vmem:[%s2 + $0x180] sm:$0xff] %v754
  %865 = vst [vmem:[%s2 + $0x188] sm:$0xff] %v757
  %866 = vst [vmem:[%s2 + $0x190] sm:$0xff] %v762
  %867 = vst [vmem:[%s2 + $0x198] sm:$0xff] %v765
  %868 = vst [vmem:[%s2 + $0x1a0] sm:$0xff] %v770
  %869 = vst [vmem:[%s2 + $0x1a8] sm:$0xff] %v773
  %870 = vst [vmem:[%s2 + $0x1b0] sm:$0xff] %v778
  %871 = vst [vmem:[%s2 + $0x1b8] sm:$0xff] %v781
  %872 = vst [vmem:[%s2 + $0x1c0] sm:$0xff] %v786
  %873 = vst [vmem:[%s2 + $0x1c8] sm:$0xff] %v789
  %874 = vst [vmem:[%s2 + $0x1d0] sm:$0xff] %v794
  %875 = vst [vmem:[%s2 + $0x1d8] sm:$0xff] %v797
  %876 = vst [vmem:[%s2 + $0x1e0] sm:$0xff] %v802
  %877 = vst [vmem:[%s2 + $0x1e8] sm:$0xff] %v805
  %878 = vst [vmem:[%s2 + $0x1f0] sm:$0xff] %v810
  %879 = vst [vmem:[%s2 + $0x1f8] sm:$0xff] %v813
  %p880 = scmp.eq.s32.totalorder 0, 0
  // Predicated region
  $region10: #{vanilla_encoder_forward.22} parent=0 // pred_check
    %p881 = pneg %p880
  $region11: #{vanilla_encoder_forward.22} parent=0 // pred_check_branch
    %883 = sbr.rel (%p881) target = $region13
  $region12: #{vanilla_encoder_forward.22} parent=0 // pred_region
    %884 = vst [vmem:[%s3] sm:$0x1] 0.0
    %885 = vst [vmem:[%s4] sm:$0x1] 0.0
  $region13: #{vanilla_encoder_forward.22} parent=0 // pred_fallthru
    _
  %v886 = vld [vmem:[%s3] sm:$0x1]
  %v887 = vadd.f32 %v562, %v565
  %v888 = vadd.f32 %v887, %v570
  %v889 = vadd.f32 %v888, %v573
  %v890 = vadd.f32 %v889, %v578
  %v891 = vadd.f32 %v890, %v581
  %v892 = vadd.f32 %v891, %v586
  %v893 = vadd.f32 %v892, %v589
  %v894 = vadd.f32 %v893, %v594
  %v895 = vadd.f32 %v894, %v597
  %v896 = vadd.f32 %v895, %v602
  %v897 = vadd.f32 %v896, %v605
  %v898 = vadd.f32 %v897, %v610
  %v899 = vadd.f32 %v898, %v613
  %v900 = vadd.f32 %v899, %v618
  %v901 = vadd.f32 %v900, %v621
  %v902 = vadd.f32 %v901, %v626
  %v903 = vadd.f32 %v902, %v629
  %v904 = vadd.f32 %v903, %v634
  %v905 = vadd.f32 %v904, %v637
  %v906 = vadd.f32 %v905, %v642
  %v907 = vadd.f32 %v906, %v645
  %v908 = vadd.f32 %v907, %v650
  %v909 = vadd.f32 %v908, %v653
  %v910 = vadd.f32 %v909, %v658
  %v911 = vadd.f32 %v910, %v661
  %v912 = vadd.f32 %v911, %v666
  %v913 = vadd.f32 %v912, %v669
  %v914 = vadd.f32 %v913, %v674
  %v915 = vadd.f32 %v914, %v677
  %v916 = vadd.f32 %v915, %v682
  %v917 = vadd.f32 %v916, %v685
  %v918 = vadd.f32 %v917, %v690
  %v919 = vadd.f32 %v918, %v693
  %v920 = vadd.f32 %v919, %v698
  %v921 = vadd.f32 %v920, %v701
  %v922 = vadd.f32 %v921, %v706
  %v923 = vadd.f32 %v922, %v709
  %v924 = vadd.f32 %v923, %v714
  %v925 = vadd.f32 %v924, %v717
  %v926 = vadd.f32 %v925, %v722
  %v927 = vadd.f32 %v926, %v725
  %v928 = vadd.f32 %v927, %v730
  %v929 = vadd.f32 %v928, %v733
  %v930 = vadd.f32 %v929, %v738
  %v931 = vadd.f32 %v930, %v741
  %v932 = vadd.f32 %v931, %v746
  %v933 = vadd.f32 %v932, %v749
  %v934 = vadd.f32 %v933, %v754
  %v935 = vadd.f32 %v934, %v757
  %v936 = vadd.f32 %v935, %v762
  %v937 = vadd.f32 %v936, %v765
  %v938 = vadd.f32 %v937, %v770
  %v939 = vadd.f32 %v938, %v773
  %v940 = vadd.f32 %v939, %v778
  %v941 = vadd.f32 %v940, %v781
  %v942 = vadd.f32 %v941, %v786
  %v943 = vadd.f32 %v942, %v789
  %v944 = vadd.f32 %v943, %v794
  %v945 = vadd.f32 %v944, %v797
  %v946 = vadd.f32 %v945, %v802
  %v947 = vadd.f32 %v946, %v805
  %v948 = vadd.f32 %v947, %v810
  %v949 = vadd.f32 %v948, %v813
  %v950 = vrot.slane %v949, 4
  %v951 = vadd.f32 %v949, %v950
  %v952 = vrot.slane %v951, 2
  %v953 = vadd.f32 %v951, %v952
  %v954 = vrot.slane %v953, 1
  %v955 = vadd.f32 %v953, %v954
  %v956 = vadd.f32 %v886, %v955
  %957 = vst [vmem:[%s3] sm:$0x1] %v956
  %v958 = vld [vmem:[%s4] sm:$0x1]
  %v959 = vmul.f32 %v562, %v562
  %v960 = vmul.f32 %v565, %v565
  %v961 = vmul.f32 %v570, %v570
  %v962 = vmul.f32 %v573, %v573
  %v963 = vmul.f32 %v578, %v578
  %v964 = vmul.f32 %v581, %v581
  %v965 = vmul.f32 %v586, %v586
  %v966 = vmul.f32 %v589, %v589
  %v967 = vmul.f32 %v594, %v594
  %v968 = vmul.f32 %v597, %v597
  %v969 = vmul.f32 %v602, %v602
  %v970 = vmul.f32 %v605, %v605
  %v971 = vmul.f32 %v610, %v610
  %v972 = vmul.f32 %v613, %v613
  %v973 = vmul.f32 %v618, %v618
  %v974 = vmul.f32 %v621, %v621
  %v975 = vmul.f32 %v626, %v626
  %v976 = vmul.f32 %v629, %v629
  %v977 = vmul.f32 %v634, %v634
  %v978 = vmul.f32 %v637, %v637
  %v979 = vmul.f32 %v642, %v642
  %v980 = vmul.f32 %v645, %v645
  %v981 = vmul.f32 %v650, %v650
  %v982 = vmul.f32 %v653, %v653
  %v983 = vmul.f32 %v658, %v658
  %v984 = vmul.f32 %v661, %v661
  %v985 = vmul.f32 %v666, %v666
  %v986 = vmul.f32 %v669, %v669
  %v987 = vmul.f32 %v674, %v674
  %v988 = vmul.f32 %v677, %v677
  %v989 = vmul.f32 %v682, %v682
  %v990 = vmul.f32 %v685, %v685
  %v991 = vmul.f32 %v690, %v690
  %v992 = vmul.f32 %v693, %v693
  %v993 = vmul.f32 %v698, %v698
  %v994 = vmul.f32 %v701, %v701
  %v995 = vmul.f32 %v706, %v706
  %v996 = vmul.f32 %v709, %v709
  %v997 = vmul.f32 %v714, %v714
  %v998 = vmul.f32 %v717, %v717
  %v999 = vmul.f32 %v722, %v722
  %v1000 = vmul.f32 %v725, %v725
  %v1001 = vmul.f32 %v730, %v730
  %v1002 = vmul.f32 %v733, %v733
  %v1003 = vmul.f32 %v738, %v738
  %v1004 = vmul.f32 %v741, %v741
  %v1005 = vmul.f32 %v746, %v746
  %v1006 = vmul.f32 %v749, %v749
  %v1007 = vmul.f32 %v754, %v754
  %v1008 = vmul.f32 %v757, %v757
  %v1009 = vmul.f32 %v762, %v762
  %v1010 = vmul.f32 %v765, %v765
  %v1011 = vmul.f32 %v770, %v770
  %v1012 = vmul.f32 %v773, %v773
  %v1013 = vmul.f32 %v778, %v778
  %v1014 = vmul.f32 %v781, %v781
  %v1015 = vmul.f32 %v786, %v786
  %v1016 = vmul.f32 %v789, %v789
  %v1017 = vmul.f32 %v794, %v794
  %v1018 = vmul.f32 %v797, %v797
  %v1019 = vmul.f32 %v802, %v802
  %v1020 = vmul.f32 %v805, %v805
  %v1021 = vmul.f32 %v810, %v810
  %v1022 = vmul.f32 %v813, %v813
  %v1023 = vadd.f32 %v959, %v960
  %v1024 = vadd.f32 %v1023, %v961
  %v1025 = vadd.f32 %v1024, %v962
  %v1026 = vadd.f32 %v1025, %v963
  %v1027 = vadd.f32 %v1026, %v964
  %v1028 = vadd.f32 %v1027, %v965
  %v1029 = vadd.f32 %v1028, %v966
  %v1030 = vadd.f32 %v1029, %v967
  %v1031 = vadd.f32 %v1030, %v968
  %v1032 = vadd.f32 %v1031, %v969
  %v1033 = vadd.f32 %v1032, %v970
  %v1034 = vadd.f32 %v1033, %v971
  %v1035 = vadd.f32 %v1034, %v972
  %v1036 = vadd.f32 %v1035, %v973
  %v1037 = vadd.f32 %v1036, %v974
  %v1038 = vadd.f32 %v1037, %v975
  %v1039 = vadd.f32 %v1038, %v976
  %v1040 = vadd.f32 %v1039, %v977
  %v1041 = vadd.f32 %v1040, %v978
  %v1042 = vadd.f32 %v1041, %v979
  %v1043 = vadd.f32 %v1042, %v980
  %v1044 = vadd.f32 %v1043, %v981
  %v1045 = vadd.f32 %v1044, %v982
  %v1046 = vadd.f32 %v1045, %v983
  %v1047 = vadd.f32 %v1046, %v984
  %v1048 = vadd.f32 %v1047, %v985
  %v1049 = vadd.f32 %v1048, %v986
  %v1050 = vadd.f32 %v1049, %v987
  %v1051 = vadd.f32 %v1050, %v988
  %v1052 = vadd.f32 %v1051, %v989
  %v1053 = vadd.f32 %v1052, %v990
  %v1054 = vadd.f32 %v1053, %v991
  %v1055 = vadd.f32 %v1054, %v992
  %v1056 = vadd.f32 %v1055, %v993
  %v1057 = vadd.f32 %v1056, %v994
  %v1058 = vadd.f32 %v1057, %v995
  %v1059 = vadd.f32 %v1058, %v996
  %v1060 = vadd.f32 %v1059, %v997
  %v1061 = vadd.f32 %v1060, %v998
  %v1062 = vadd.f32 %v1061, %v999
  %v1063 = vadd.f32 %v1062, %v1000
  %v1064 = vadd.f32 %v1063, %v1001
  %v1065 = vadd.f32 %v1064, %v1002
  %v1066 = vadd.f32 %v1065, %v1003
  %v1067 = vadd.f32 %v1066, %v1004
  %v1068 = vadd.f32 %v1067, %v1005
  %v1069 = vadd.f32 %v1068, %v1006
  %v1070 = vadd.f32 %v1069, %v1007
  %v1071 = vadd.f32 %v1070, %v1008
  %v1072 = vadd.f32 %v1071, %v1009
  %v1073 = vadd.f32 %v1072, %v1010
  %v1074 = vadd.f32 %v1073, %v1011
  %v1075 = vadd.f32 %v1074, %v1012
  %v1076 = vadd.f32 %v1075, %v1013
  %v1077 = vadd.f32 %v1076, %v1014
  %v1078 = vadd.f32 %v1077, %v1015
  %v1079 = vadd.f32 %v1078, %v1016
  %v1080 = vadd.f32 %v1079, %v1017
  %v1081 = vadd.f32 %v1080, %v1018
  %v1082 = vadd.f32 %v1081, %v1019
  %v1083 = vadd.f32 %v1082, %v1020
  %v1084 = vadd.f32 %v1083, %v1021
  %v1085 = vadd.f32 %v1084, %v1022
  %v1086 = vrot.slane %v1085, 4
  %v1087 = vadd.f32 %v1085, %v1086
  %v1088 = vrot.slane %v1087, 2
  %v1089 = vadd.f32 %v1087, %v1088
  %v1090 = vrot.slane %v1089, 1
  %v1091 = vadd.f32 %v1089, %v1090
  %v1092 = vadd.f32 %v958, %v1091
  %1093 = vst [vmem:[%s4] sm:$0x1] %v1092
  // Predicated region
  $region14: #{vanilla_encoder_forward.22} parent=0 // pred_check
    _
  $region15: #{vanilla_encoder_forward.22} parent=0 // pred_check_branch
    %1095 = sbr.rel (0) target = $region17
  $region16: #{vanilla_encoder_forward.22} parent=0 // pred_region
    _
  $region17: #{vanilla_encoder_forward.22} parent=0 // pred_fallthru
    _
  // Predicated region
  $region18: #{vanilla_encoder_forward.22} parent=0 // pred_check
    _
  $region19: #{vanilla_encoder_forward.22} parent=0 // pred_check_branch
    %1097 = sbr.rel (0) target = $region21
  $region20: #{vanilla_encoder_forward.22} parent=0 // pred_region
    _
  $region21: #{vanilla_encoder_forward.22} parent=0 // pred_fallthru
    _
  // Predicated region
  $region22: #{vanilla_encoder_forward.22} parent=0 // pred_check
    _
  $region23: #{vanilla_encoder_forward.22} parent=0 // pred_check_branch
    %1099 = sbr.rel (0) target = $region25
  $region24: #{vanilla_encoder_forward.22} parent=0 // pred_region
    _
  $region25: #{vanilla_encoder_forward.22} parent=0 // pred_fallthru
    _
  // Predicated region
  $region26: #{vanilla_encoder_forward.22} parent=0 // pred_check
    _
  $region27: #{vanilla_encoder_forward.22} parent=0 // pred_check_branch
    %1101 = sbr.rel (0) target = $region29
  $region28: #{vanilla_encoder_forward.22} parent=0 // pred_region
    _
  $region29: #{vanilla_encoder_forward.22} parent=0 // pred_fallthru
    _
  // Predicated region
  $region30: #{vanilla_encoder_forward.22} parent=0 // pred_check
    _
  $region31: #{vanilla_encoder_forward.22} parent=0 // pred_check_branch
    %1103 = sbr.rel (0) target = $region33
  $region32: #{vanilla_encoder_forward.22} parent=0 // pred_region
    _
  $region33: #{vanilla_encoder_forward.22} parent=0 // pred_fallthru
    _
  // Predicated region
  $region34: #{vanilla_encoder_forward.22} parent=0 // pred_check
    _
  $region35: #{vanilla_encoder_forward.22} parent=0 // pred_check_branch
    %1105 = sbr.rel (0) target = $region37
  $region36: #{vanilla_encoder_forward.22} parent=0 // pred_region
    _
  $region37: #{vanilla_encoder_forward.22} parent=0 // pred_fallthru
    _

// kernel: vanilla_encoder_forward.25
$region0: #{vanilla_encoder_forward.25}
  #allocation0 [shape = 'u32[]', space=smem, size = 0x4, offset = 0x4, fixed_abs, tag = 'smem constant byte address 0x4 - core index']
  #allocation1 [shape = 'u32[144,128]{1,0:T(1,128)}', space=vmem, size = 0x12000, scoped, tag = 'internal scratch']
  %s0 = inlined_call_operand.vmem [shape: f32[128,128], index: 0, kind: input, shape index: {}]
  %s1 = inlined_call_operand.vmem [shape: f32[1,128], index: 1, kind: input, shape index: {}]
  %s2 = inlined_call_operand.vmem [shape: f32[1,128], index: 2, kind: input, shape index: {}]
  %s3 = inlined_call_operand.vmem [shape: f32[1,128], index: 3, kind: input, shape index: {}]
  %s4 = inlined_call_operand.vmem [shape: f32[1,128], index: 4, kind: input, shape index: {}]
  %s5 = inlined_call_operand.vmem [shape: f32[128,128], index: 5, kind: output, shape index: {}]
  %s6 = sld [smem:[#allocation0]]
  $region30: #{vanilla_encoder_forward.25} parent=0
    _
  %s8 = ssub.s32 1, %s6
  %s9 = scalar_select 0, %s8, %s6
  // Predicated region
  $region2: #{vanilla_encoder_forward.25} parent=0 // pred_check
    _
  $region3: #{vanilla_encoder_forward.25} parent=0 // pred_check_branch
    %11 = sbr.rel (0) target = $region5
  $region4: #{vanilla_encoder_forward.25} parent=0 // pred_region
    _
  $region5: #{vanilla_encoder_forward.25} parent=0 // pred_fallthru
    _
  // Predicated region
  $region6: #{vanilla_encoder_forward.25} parent=0 // pred_check
    _
  $region7: #{vanilla_encoder_forward.25} parent=0 // pred_check_branch
    %13 = sbr.rel (0) target = $region9
  $region8: #{vanilla_encoder_forward.25} parent=0 // pred_region
    _
  $region9: #{vanilla_encoder_forward.25} parent=0 // pred_fallthru
    _
  // Predicated region
  $region10: #{vanilla_encoder_forward.25} parent=0 // pred_check
    _
  $region11: #{vanilla_encoder_forward.25} parent=0 // pred_check_branch
    %15 = sbr.rel (0) target = $region13
  $region12: #{vanilla_encoder_forward.25} parent=0 // pred_region
    _
  $region13: #{vanilla_encoder_forward.25} parent=0 // pred_fallthru
    _
  // Predicated region
  $region14: #{vanilla_encoder_forward.25} parent=0 // pred_check
    _
  $region15: #{vanilla_encoder_forward.25} parent=0 // pred_check_branch
    %17 = sbr.rel (0) target = $region17
  $region16: #{vanilla_encoder_forward.25} parent=0 // pred_region
    _
  $region17: #{vanilla_encoder_forward.25} parent=0 // pred_fallthru
    _
  // Predicated region
  $region18: #{vanilla_encoder_forward.25} parent=0 // pred_check
    _
  $region19: #{vanilla_encoder_forward.25} parent=0 // pred_check_branch
    %19 = sbr.rel (0) target = $region21
  $region20: #{vanilla_encoder_forward.25} parent=0 // pred_region
    _
  $region21: #{vanilla_encoder_forward.25} parent=0 // pred_fallthru
    _
  %v20 = vld [vmem:[%s1] sm:$0x1]
  %v21 = vmul.f32 %v20, 0.0078125
  %v22 = vld [vmem:[%s2] sm:$0x1]
  %v23 = vmul.f32 %v22, 0.0078125
  %v24 = vmul.f32 %v21, %v21
  %v25 = vsub.f32 %v23, %v24
  %v26 = vmax.f32 %v25, 0.0
  %v27 = vld [vmem:[%s3] sm:$0x1]
  %v28 = vadd.f32 %v26, 1e-05
  %v29 = vrsqrt.pop %v28
  %v30 = vmul.f32 %v27, %v29
  %v31 = vld [vmem:[%s4] sm:$0x1]
  %v32 = vmul.f32 %v21, %v30
  %v33 = vsub.f32 %v31, %v32
  %v34 = vld [vmem:[%s0] sm:$0xff]
  %v35 = vld [vmem:[%s0 + $0x8] sm:$0xff]
  %v36 = vld [vmem:[%s0 + $0x10] sm:$0xff]
  %v37 = vld [vmem:[%s0 + $0x18] sm:$0xff]
  %v38 = vld [vmem:[%s0 + $0x20] sm:$0xff]
  %v39 = vld [vmem:[%s0 + $0x28] sm:$0xff]
  %v40 = vld [vmem:[%s0 + $0x30] sm:$0xff]
  %v41 = vld [vmem:[%s0 + $0x38] sm:$0xff]
  %v42 = vld [vmem:[%s0 + $0x40] sm:$0xff]
  %v43 = vld [vmem:[%s0 + $0x48] sm:$0xff]
  %v44 = vld [vmem:[%s0 + $0x50] sm:$0xff]
  %v45 = vld [vmem:[%s0 + $0x58] sm:$0xff]
  %v46 = vld [vmem:[%s0 + $0x60] sm:$0xff]
  %v47 = vld [vmem:[%s0 + $0x68] sm:$0xff]
  %v48 = vld [vmem:[%s0 + $0x70] sm:$0xff]
  %v49 = vld [vmem:[%s0 + $0x78] sm:$0xff]
  %v51 = vlaneseq
  %v52 = vshrl.u32 %v51, 7
  %v53 = vsub.s32 0, %v52
  %v54 = vrot.slane %v30, %v53
  %v56 = vmul.f32 %v34, %v54
  %v57 = vmul.f32 %v35, %v54
  %v58 = vmul.f32 %v36, %v54
  %v59 = vmul.f32 %v37, %v54
  %v60 = vmul.f32 %v38, %v54
  %v61 = vmul.f32 %v39, %v54
  %v62 = vmul.f32 %v40, %v54
  %v63 = vmul.f32 %v41, %v54
  %v64 = vmul.f32 %v42, %v54
  %v65 = vmul.f32 %v43, %v54
  %v66 = vmul.f32 %v44, %v54
  %v67 = vmul.f32 %v45, %v54
  %v68 = vmul.f32 %v46, %v54
  %v69 = vmul.f32 %v47, %v54
  %v70 = vmul.f32 %v48, %v54
  %v71 = vmul.f32 %v49, %v54
  %v73 = vlaneseq
  %v74 = vshrl.u32 %v73, 7
  %v75 = vsub.s32 0, %v74
  %v76 = vrot.slane %v33, %v75
  %v78 = vadd.f32 %v56, %v76
  %v79 = vadd.f32 %v57, %v76
  %v80 = vadd.f32 %v58, %v76
  %v81 = vadd.f32 %v59, %v76
  %v82 = vadd.f32 %v60, %v76
  %v83 = vadd.f32 %v61, %v76
  %v84 = vadd.f32 %v62, %v76
  %v85 = vadd.f32 %v63, %v76
  %v86 = vadd.f32 %v64, %v76
  %v87 = vadd.f32 %v65, %v76
  %v88 = vadd.f32 %v66, %v76
  %v89 = vadd.f32 %v67, %v76
  %v90 = vadd.f32 %v68, %v76
  %v91 = vadd.f32 %v69, %v76
  %v92 = vadd.f32 %v70, %v76
  %v93 = vadd.f32 %v71, %v76
  %v94 = vmul.f32 %v78, 0.5
  %v95 = vmul.f32 %v79, 0.5
  %v96 = vmul.f32 %v80, 0.5
  %v97 = vmul.f32 %v81, 0.5
  %v98 = vmul.f32 %v82, 0.5
  %v99 = vmul.f32 %v83, 0.5
  %v100 = vmul.f32 %v84, 0.5
  %v101 = vmul.f32 %v85, 0.5
  %v102 = vmul.f32 %v86, 0.5
  %v103 = vmul.f32 %v87, 0.5
  %v104 = vmul.f32 %v88, 0.5
  %v105 = vmul.f32 %v89, 0.5
  %v106 = vmul.f32 %v90, 0.5
  %v107 = vmul.f32 %v91, 0.5
  %v108 = vmul.f32 %v92, 0.5
  %v109 = vmul.f32 %v93, 0.5
  %v110 = vmul.f32 %v78, 0.70710677
  %v111 = vmul.f32 %v79, 0.70710677
  %v112 = vmul.f32 %v80, 0.70710677
  %v113 = vmul.f32 %v81, 0.70710677
  %v114 = vmul.f32 %v82, 0.70710677
  %v115 = vmul.f32 %v83, 0.70710677
  %v116 = vmul.f32 %v84, 0.70710677
  %v117 = vmul.f32 %v85, 0.70710677
  %v118 = vmul.f32 %v86, 0.70710677
  %v119 = vmul.f32 %v87, 0.70710677
  %v120 = vmul.f32 %v88, 0.70710677
  %v121 = vmul.f32 %v89, 0.70710677
  %v122 = vmul.f32 %v90, 0.70710677
  %v123 = vmul.f32 %v91, 0.70710677
  %v124 = vmul.f32 %v92, 0.70710677
  %v125 = vmul.f32 %v93, 0.70710677
  %v126 = verf.f32.pop %v110
  %v127 = verf.f32.pop %v111
  %v128 = verf.f32.pop %v112
  %v129 = verf.f32.pop %v113
  %v130 = verf.f32.pop %v114
  %v131 = verf.f32.pop %v115
  %v132 = verf.f32.pop %v116
  %v133 = verf.f32.pop %v117
  %v134 = verf.f32.pop %v118
  %v135 = verf.f32.pop %v119
  %v136 = verf.f32.pop %v120
  %v137 = verf.f32.pop %v121
  %v138 = verf.f32.pop %v122
  %v139 = verf.f32.pop %v123
  %v140 = verf.f32.pop %v124
  %v141 = verf.f32.pop %v125
  %v142 = vadd.f32 %v126, 1.0
  %v143 = vadd.f32 %v127, 1.0
  %v144 = vadd.f32 %v128, 1.0
  %v145 = vadd.f32 %v129, 1.0
  %v146 = vadd.f32 %v130, 1.0
  %v147 = vadd.f32 %v131, 1.0
  %v148 = vadd.f32 %v132, 1.0
  %v149 = vadd.f32 %v133, 1.0
  %v150 = vadd.f32 %v134, 1.0
  %v151 = vadd.f32 %v135, 1.0
  %v152 = vadd.f32 %v136, 1.0
  %v153 = vadd.f32 %v137, 1.0
  %v154 = vadd.f32 %v138, 1.0
  %v155 = vadd.f32 %v139, 1.0
  %v156 = vadd.f32 %v140, 1.0
  %v157 = vadd.f32 %v141, 1.0
  %v158 = vmul.f32 %v94, %v142
  %v159 = vmul.f32 %v95, %v143
  %v160 = vmul.f32 %v96, %v144
  %v161 = vmul.f32 %v97, %v145
  %v162 = vmul.f32 %v98, %v146
  %v163 = vmul.f32 %v99, %v147
  %v164 = vmul.f32 %v100, %v148
  %v165 = vmul.f32 %v101, %v149
  %v166 = vmul.f32 %v102, %v150
  %v167 = vmul.f32 %v103, %v151
  %v168 = vmul.f32 %v104, %v152
  %v169 = vmul.f32 %v105, %v153
  %v170 = vmul.f32 %v106, %v154
  %v171 = vmul.f32 %v107, %v155
  %v172 = vmul.f32 %v108, %v156
  %v173 = vmul.f32 %v109, %v157
  %174 = vst [vmem:[%s5] sm:$0xff] %v158
  %175 = vst [vmem:[%s5 + $0x8] sm:$0xff] %v159
  %176 = vst [vmem:[%s5 + $0x10] sm:$0xff] %v160
  %177 = vst [vmem:[%s5 + $0x18] sm:$0xff] %v161
  %178 = vst [vmem:[%s5 + $0x20] sm:$0xff] %v162
  %179 = vst [vmem:[%s5 + $0x28] sm:$0xff] %v163
  %180 = vst [vmem:[%s5 + $0x30] sm:$0xff] %v164
  %181 = vst [vmem:[%s5 + $0x38] sm:$0xff] %v165
  %182 = vst [vmem:[%s5 + $0x40] sm:$0xff] %v166
  %183 = vst [vmem:[%s5 + $0x48] sm:$0xff] %v167
  %184 = vst [vmem:[%s5 + $0x50] sm:$0xff] %v168
  %185 = vst [vmem:[%s5 + $0x58] sm:$0xff] %v169
  %186 = vst [vmem:[%s5 + $0x60] sm:$0xff] %v170
  %187 = vst [vmem:[%s5 + $0x68] sm:$0xff] %v171
  %188 = vst [vmem:[%s5 + $0x70] sm:$0xff] %v172
  %189 = vst [vmem:[%s5 + $0x78] sm:$0xff] %v173
  // Predicated region
  $region22: #{vanilla_encoder_forward.25} parent=0 // pred_check
    _
  $region23: #{vanilla_encoder_forward.25} parent=0 // pred_check_branch
    %191 = sbr.rel (0) target = $region25
  $region24: #{vanilla_encoder_forward.25} parent=0 // pred_region
    _
  $region25: #{vanilla_encoder_forward.25} parent=0 // pred_fallthru
    _
  // Predicated region
  $region26: #{vanilla_encoder_forward.25} parent=0 // pred_check
    _
  $region27: #{vanilla_encoder_forward.25} parent=0 // pred_check_branch
    %193 = sbr.rel (0) target = $region29
  $region28: #{vanilla_encoder_forward.25} parent=0 // pred_region
    _
  $region29: #{vanilla_encoder_forward.25} parent=0 // pred_fallthru
    _

// kernel: vanilla_encoder_forward.24
$region0: #{vanilla_encoder_forward.24}
  #allocation0 [shape = 'u32[]', space=smem, size = 0x4, offset = 0x4, fixed_abs, tag = 'smem constant byte address 0x4 - core index']
  #allocation1 [shape = 'u32[144,128]{1,0:T(1,128)}', space=vmem, size = 0x12000, scoped, tag = 'internal scratch']
  %s0 = inlined_call_operand.vmem [shape: bf16[128,1152], index: 0, kind: input, shape index: {}]
  %s1 = inlined_call_operand.vmem [shape: bf16[1152,128], index: 1, kind: input, shape index: {}]
  %s2 = inlined_call_operand.vmem [shape: f32[128,128], index: 2, kind: output, shape index: {0}]
  %s3 = inlined_call_operand.vmem [shape: f32[1,128], index: 3, kind: output, shape index: {1}]
  %s4 = inlined_call_operand.vmem [shape: f32[1,128], index: 4, kind: output, shape index: {2}]
  %5 = xla_tuple %s2, %s3, %s4
  %s6 = sld [smem:[#allocation0]]
  $region38: #{vanilla_encoder_forward.24} parent=0
    _
  %s8 = ssub.s32 1, %s6
  %s9 = scalar_select 0, %s8, %s6
  // Predicated region
  $region2: #{vanilla_encoder_forward.24} parent=0 // pred_check
    _
  $region3: #{vanilla_encoder_forward.24} parent=0 // pred_check_branch
    %11 = sbr.rel (0) target = $region5
  $region4: #{vanilla_encoder_forward.24} parent=0 // pred_region
    _
  $region5: #{vanilla_encoder_forward.24} parent=0 // pred_fallthru
    _
  // Predicated region
  $region6: #{vanilla_encoder_forward.24} parent=0 // pred_check
    _
  $region7: #{vanilla_encoder_forward.24} parent=0 // pred_check_branch
    %13 = sbr.rel (0) target = $region9
  $region8: #{vanilla_encoder_forward.24} parent=0 // pred_region
    _
  $region9: #{vanilla_encoder_forward.24} parent=0 // pred_fallthru
    _
  %v15 = vld [vmem:[%s0] sm:$0xff]
  %v16 = vld [vmem:[%s0 + $0x8] sm:$0xff]
  %v17 = vld [vmem:[%s0 + $0x10] sm:$0xff]
  %v18 = vld [vmem:[%s0 + $0x18] sm:$0xff]
  %v19 = vld [vmem:[%s0 + $0x20] sm:$0xf]
  %v20 = vld [vmem:[%s0 + $0x24] sm:$0xff]
  %v21 = vld [vmem:[%s0 + $0x2c] sm:$0xff]
  %v22 = vld [vmem:[%s0 + $0x34] sm:$0xff]
  %v23 = vld [vmem:[%s0 + $0x3c] sm:$0xff]
  %v24 = vld [vmem:[%s0 + $0x44] sm:$0xf]
  %v25 = vld [vmem:[%s0 + $0x48] sm:$0xff]
  %v26 = vld [vmem:[%s0 + $0x50] sm:$0xff]
  %v27 = vld [vmem:[%s0 + $0x58] sm:$0xff]
  %v28 = vld [vmem:[%s0 + $0x60] sm:$0xff]
  %v29 = vld [vmem:[%s0 + $0x68] sm:$0xf]
  %v30 = vld [vmem:[%s0 + $0x6c] sm:$0xff]
  %v31 = vld [vmem:[%s0 + $0x74] sm:$0xff]
  %v32 = vld [vmem:[%s0 + $0x7c] sm:$0xff]
  %v33 = vld [vmem:[%s0 + $0x84] sm:$0xff]
  %v34 = vld [vmem:[%s0 + $0x8c] sm:$0xf]
  %v35 = vld [vmem:[%s0 + $0x90] sm:$0xff]
  %v36 = vld [vmem:[%s0 + $0x98] sm:$0xff]
  %v37 = vld [vmem:[%s0 + $0xa0] sm:$0xff]
  %v38 = vld [vmem:[%s0 + $0xa8] sm:$0xff]
  %v39 = vld [vmem:[%s0 + $0xb0] sm:$0xf]
  %v40 = vld [vmem:[%s0 + $0xb4] sm:$0xff]
  %v41 = vld [vmem:[%s0 + $0xbc] sm:$0xff]
  %v42 = vld [vmem:[%s0 + $0xc4] sm:$0xff]
  %v43 = vld [vmem:[%s0 + $0xcc] sm:$0xff]
  %v44 = vld [vmem:[%s0 + $0xd4] sm:$0xf]
  %v45 = vld [vmem:[%s0 + $0xd8] sm:$0xff]
  %v46 = vld [vmem:[%s0 + $0xe0] sm:$0xff]
  %v47 = vld [vmem:[%s0 + $0xe8] sm:$0xff]
  %v48 = vld [vmem:[%s0 + $0xf0] sm:$0xff]
  %v49 = vld [vmem:[%s0 + $0xf8] sm:$0xf]
  %v50 = vld [vmem:[%s0 + $0xfc] sm:$0xff]
  %v51 = vld [vmem:[%s0 + $0x104] sm:$0xff]
  %v52 = vld [vmem:[%s0 + $0x10c] sm:$0xff]
  %v53 = vld [vmem:[%s0 + $0x114] sm:$0xff]
  %v54 = vld [vmem:[%s0 + $0x11c] sm:$0xf]
  %v55 = vld [vmem:[%s0 + $0x120] sm:$0xff]
  %v56 = vld [vmem:[%s0 + $0x128] sm:$0xff]
  %v57 = vld [vmem:[%s0 + $0x130] sm:$0xff]
  %v58 = vld [vmem:[%s0 + $0x138] sm:$0xff]
  %v59 = vld [vmem:[%s0 + $0x140] sm:$0xf]
  %v60 = vld [vmem:[%s0 + $0x144] sm:$0xff]
  %v61 = vld [vmem:[%s0 + $0x14c] sm:$0xff]
  %v62 = vld [vmem:[%s0 + $0x154] sm:$0xff]
  %v63 = vld [vmem:[%s0 + $0x15c] sm:$0xff]
  %v64 = vld [vmem:[%s0 + $0x164] sm:$0xf]
  %v65 = vld [vmem:[%s0 + $0x168] sm:$0xff]
  %v66 = vld [vmem:[%s0 + $0x170] sm:$0xff]
  %v67 = vld [vmem:[%s0 + $0x178] sm:$0xff]
  %v68 = vld [vmem:[%s0 + $0x180] sm:$0xff]
  %v69 = vld [vmem:[%s0 + $0x188] sm:$0xf]
  %v70 = vld [vmem:[%s0 + $0x18c] sm:$0xff]
  %v71 = vld [vmem:[%s0 + $0x194] sm:$0xff]
  %v72 = vld [vmem:[%s0 + $0x19c] sm:$0xff]
  %v73 = vld [vmem:[%s0 + $0x1a4] sm:$0xff]
  %v74 = vld [vmem:[%s0 + $0x1ac] sm:$0xf]
  %v75 = vld [vmem:[%s0 + $0x1b0] sm:$0xff]
  %v76 = vld [vmem:[%s0 + $0x1b8] sm:$0xff]
  %v77 = vld [vmem:[%s0 + $0x1c0] sm:$0xff]
  %v78 = vld [vmem:[%s0 + $0x1c8] sm:$0xff]
  %v79 = vld [vmem:[%s0 + $0x1d0] sm:$0xf]
  %v80 = vld [vmem:[%s0 + $0x1d4] sm:$0xff]
  %v81 = vld [vmem:[%s0 + $0x1dc] sm:$0xff]
  %v82 = vld [vmem:[%s0 + $0x1e4] sm:$0xff]
  %v83 = vld [vmem:[%s0 + $0x1ec] sm:$0xff]
  %v84 = vld [vmem:[%s0 + $0x1f4] sm:$0xf]
  %v85 = vld [vmem:[%s0 + $0x1f8] sm:$0xff]
  %v86 = vld [vmem:[%s0 + $0x200] sm:$0xff]
  %v87 = vld [vmem:[%s0 + $0x208] sm:$0xff]
  %v88 = vld [vmem:[%s0 + $0x210] sm:$0xff]
  %v89 = vld [vmem:[%s0 + $0x218] sm:$0xf]
  %v90 = vld [vmem:[%s0 + $0x21c] sm:$0xff]
  %v91 = vld [vmem:[%s0 + $0x224] sm:$0xff]
  %v92 = vld [vmem:[%s0 + $0x22c] sm:$0xff]
  %v93 = vld [vmem:[%s0 + $0x234] sm:$0xff]
  %v94 = vld [vmem:[%s0 + $0x23c] sm:$0xf]
  %v95 = vld [vmem:[%s1] sm:$0xf]
  %v96 = vld [vmem:[%s1 + $0x4] sm:$0xf]
  %v97 = vld [vmem:[%s1 + $0x8] sm:$0xf]
  %v98 = vld [vmem:[%s1 + $0xc] sm:$0xf]
  %v99 = vld [vmem:[%s1 + $0x10] sm:$0xf]
  %v100 = vld [vmem:[%s1 + $0x14] sm:$0xf]
  %v101 = vld [vmem:[%s1 + $0x18] sm:$0xf]
  %v102 = vld [vmem:[%s1 + $0x1c] sm:$0xf]
  %v103 = vld [vmem:[%s1 + $0x20] sm:$0xf]
  %v104 = vld [vmem:[%s1 + $0x24] sm:$0xf]
  %v105 = vld [vmem:[%s1 + $0x28] sm:$0xf]
  %v106 = vld [vmem:[%s1 + $0x2c] sm:$0xf]
  %v107 = vld [vmem:[%s1 + $0x30] sm:$0xf]
  %v108 = vld [vmem:[%s1 + $0x34] sm:$0xf]
  %v109 = vld [vmem:[%s1 + $0x38] sm:$0xf]
  %v110 = vld [vmem:[%s1 + $0x3c] sm:$0xf]
  %v111 = vld [vmem:[%s1 + $0x40] sm:$0xf]
  %v112 = vld [vmem:[%s1 + $0x44] sm:$0xf]
  %v113 = vld [vmem:[%s1 + $0x48] sm:$0xf]
  %v114 = vld [vmem:[%s1 + $0x4c] sm:$0xf]
  %v115 = vld [vmem:[%s1 + $0x50] sm:$0xf]
  %v116 = vld [vmem:[%s1 + $0x54] sm:$0xf]
  %v117 = vld [vmem:[%s1 + $0x58] sm:$0xf]
  %v118 = vld [vmem:[%s1 + $0x5c] sm:$0xf]
  %v119 = vld [vmem:[%s1 + $0x60] sm:$0xf]
  %v120 = vld [vmem:[%s1 + $0x64] sm:$0xf]
  %v121 = vld [vmem:[%s1 + $0x68] sm:$0xf]
  %v122 = vld [vmem:[%s1 + $0x6c] sm:$0xf]
  %v123 = vld [vmem:[%s1 + $0x70] sm:$0xf]
  %v124 = vld [vmem:[%s1 + $0x74] sm:$0xf]
  %v125 = vld [vmem:[%s1 + $0x78] sm:$0xf]
  %v126 = vld [vmem:[%s1 + $0x7c] sm:$0xf]
  %v127 = vld [vmem:[%s1 + $0x80] sm:$0xf]
  %v128 = vld [vmem:[%s1 + $0x84] sm:$0xf]
  %v129 = vld [vmem:[%s1 + $0x88] sm:$0xf]
  %v130 = vld [vmem:[%s1 + $0x8c] sm:$0xf]
  %v131 = vld [vmem:[%s1 + $0x90] sm:$0xf]
  %v132 = vld [vmem:[%s1 + $0x94] sm:$0xf]
  %v133 = vld [vmem:[%s1 + $0x98] sm:$0xf]
  %v134 = vld [vmem:[%s1 + $0x9c] sm:$0xf]
  %v135 = vld [vmem:[%s1 + $0xa0] sm:$0xf]
  %v136 = vld [vmem:[%s1 + $0xa4] sm:$0xf]
  %v137 = vld [vmem:[%s1 + $0xa8] sm:$0xf]
  %v138 = vld [vmem:[%s1 + $0xac] sm:$0xf]
  %v139 = vld [vmem:[%s1 + $0xb0] sm:$0xf]
  %v140 = vld [vmem:[%s1 + $0xb4] sm:$0xf]
  %v141 = vld [vmem:[%s1 + $0xb8] sm:$0xf]
  %v142 = vld [vmem:[%s1 + $0xbc] sm:$0xf]
  %v143 = vld [vmem:[%s1 + $0xc0] sm:$0xf]
  %v144 = vld [vmem:[%s1 + $0xc4] sm:$0xf]
  %v145 = vld [vmem:[%s1 + $0xc8] sm:$0xf]
  %v146 = vld [vmem:[%s1 + $0xcc] sm:$0xf]
  %v147 = vld [vmem:[%s1 + $0xd0] sm:$0xf]
  %v148 = vld [vmem:[%s1 + $0xd4] sm:$0xf]
  %v149 = vld [vmem:[%s1 + $0xd8] sm:$0xf]
  %v150 = vld [vmem:[%s1 + $0xdc] sm:$0xf]
  %v151 = vld [vmem:[%s1 + $0xe0] sm:$0xf]
  %v152 = vld [vmem:[%s1 + $0xe4] sm:$0xf]
  %v153 = vld [vmem:[%s1 + $0xe8] sm:$0xf]
  %v154 = vld [vmem:[%s1 + $0xec] sm:$0xf]
  %v155 = vld [vmem:[%s1 + $0xf0] sm:$0xf]
  %v156 = vld [vmem:[%s1 + $0xf4] sm:$0xf]
  %v157 = vld [vmem:[%s1 + $0xf8] sm:$0xf]
  %v158 = vld [vmem:[%s1 + $0xfc] sm:$0xf]
  %v159 = vld [vmem:[%s1 + $0x100] sm:$0xf]
  %v160 = vld [vmem:[%s1 + $0x104] sm:$0xf]
  %v161 = vld [vmem:[%s1 + $0x108] sm:$0xf]
  %v162 = vld [vmem:[%s1 + $0x10c] sm:$0xf]
  %v163 = vld [vmem:[%s1 + $0x110] sm:$0xf]
  %v164 = vld [vmem:[%s1 + $0x114] sm:$0xf]
  %v165 = vld [vmem:[%s1 + $0x118] sm:$0xf]
  %v166 = vld [vmem:[%s1 + $0x11c] sm:$0xf]
  %v167 = vld [vmem:[%s1 + $0x120] sm:$0xf]
  %v168 = vld [vmem:[%s1 + $0x124] sm:$0xf]
  %v169 = vld [vmem:[%s1 + $0x128] sm:$0xf]
  %v170 = vld [vmem:[%s1 + $0x12c] sm:$0xf]
  %v171 = vld [vmem:[%s1 + $0x130] sm:$0xf]
  %v172 = vld [vmem:[%s1 + $0x134] sm:$0xf]
  %v173 = vld [vmem:[%s1 + $0x138] sm:$0xf]
  %v174 = vld [vmem:[%s1 + $0x13c] sm:$0xf]
  %v175 = vld [vmem:[%s1 + $0x140] sm:$0xf]
  %v176 = vld [vmem:[%s1 + $0x144] sm:$0xf]
  %v177 = vld [vmem:[%s1 + $0x148] sm:$0xf]
  %v178 = vld [vmem:[%s1 + $0x14c] sm:$0xf]
  %v179 = vld [vmem:[%s1 + $0x150] sm:$0xf]
  %v180 = vld [vmem:[%s1 + $0x154] sm:$0xf]
  %v181 = vld [vmem:[%s1 + $0x158] sm:$0xf]
  %v182 = vld [vmem:[%s1 + $0x15c] sm:$0xf]
  %v183 = vld [vmem:[%s1 + $0x160] sm:$0xf]
  %v184 = vld [vmem:[%s1 + $0x164] sm:$0xf]
  %v185 = vld [vmem:[%s1 + $0x168] sm:$0xf]
  %v186 = vld [vmem:[%s1 + $0x16c] sm:$0xf]
  %v187 = vld [vmem:[%s1 + $0x170] sm:$0xf]
  %v188 = vld [vmem:[%s1 + $0x174] sm:$0xf]
  %v189 = vld [vmem:[%s1 + $0x178] sm:$0xf]
  %v190 = vld [vmem:[%s1 + $0x17c] sm:$0xf]
  %v191 = vld [vmem:[%s1 + $0x180] sm:$0xf]
  %v192 = vld [vmem:[%s1 + $0x184] sm:$0xf]
  %v193 = vld [vmem:[%s1 + $0x188] sm:$0xf]
  %v194 = vld [vmem:[%s1 + $0x18c] sm:$0xf]
  %v195 = vld [vmem:[%s1 + $0x190] sm:$0xf]
  %v196 = vld [vmem:[%s1 + $0x194] sm:$0xf]
  %v197 = vld [vmem:[%s1 + $0x198] sm:$0xf]
  %v198 = vld [vmem:[%s1 + $0x19c] sm:$0xf]
  %v199 = vld [vmem:[%s1 + $0x1a0] sm:$0xf]
  %v200 = vld [vmem:[%s1 + $0x1a4] sm:$0xf]
  %v201 = vld [vmem:[%s1 + $0x1a8] sm:$0xf]
  %v202 = vld [vmem:[%s1 + $0x1ac] sm:$0xf]
  %v203 = vld [vmem:[%s1 + $0x1b0] sm:$0xf]
  %v204 = vld [vmem:[%s1 + $0x1b4] sm:$0xf]
  %v205 = vld [vmem:[%s1 + $0x1b8] sm:$0xf]
  %v206 = vld [vmem:[%s1 + $0x1bc] sm:$0xf]
  %v207 = vld [vmem:[%s1 + $0x1c0] sm:$0xf]
  %v208 = vld [vmem:[%s1 + $0x1c4] sm:$0xf]
  %v209 = vld [vmem:[%s1 + $0x1c8] sm:$0xf]
  %v210 = vld [vmem:[%s1 + $0x1cc] sm:$0xf]
  %v211 = vld [vmem:[%s1 + $0x1d0] sm:$0xf]
  %v212 = vld [vmem:[%s1 + $0x1d4] sm:$0xf]
  %v213 = vld [vmem:[%s1 + $0x1d8] sm:$0xf]
  %v214 = vld [vmem:[%s1 + $0x1dc] sm:$0xf]
  %v215 = vld [vmem:[%s1 + $0x1e0] sm:$0xf]
  %v216 = vld [vmem:[%s1 + $0x1e4] sm:$0xf]
  %v217 = vld [vmem:[%s1 + $0x1e8] sm:$0xf]
  %v218 = vld [vmem:[%s1 + $0x1ec] sm:$0xf]
  %v219 = vld [vmem:[%s1 + $0x1f0] sm:$0xf]
  %v220 = vld [vmem:[%s1 + $0x1f4] sm:$0xf]
  %v221 = vld [vmem:[%s1 + $0x1f8] sm:$0xf]
  %v222 = vld [vmem:[%s1 + $0x1fc] sm:$0xf]
  %v223 = vld [vmem:[%s1 + $0x200] sm:$0xf]
  %v224 = vld [vmem:[%s1 + $0x204] sm:$0xf]
  %v225 = vld [vmem:[%s1 + $0x208] sm:$0xf]
  %v226 = vld [vmem:[%s1 + $0x20c] sm:$0xf]
  %v227 = vld [vmem:[%s1 + $0x210] sm:$0xf]
  %v228 = vld [vmem:[%s1 + $0x214] sm:$0xf]
  %v229 = vld [vmem:[%s1 + $0x218] sm:$0xf]
  %v230 = vld [vmem:[%s1 + $0x21c] sm:$0xf]
  %v231 = vld [vmem:[%s1 + $0x220] sm:$0xf]
  %v232 = vld [vmem:[%s1 + $0x224] sm:$0xf]
  %v233 = vld [vmem:[%s1 + $0x228] sm:$0xf]
  %v234 = vld [vmem:[%s1 + $0x22c] sm:$0xf]
  %v235 = vld [vmem:[%s1 + $0x230] sm:$0xf]
  %v236 = vld [vmem:[%s1 + $0x234] sm:$0xf]
  %v237 = vld [vmem:[%s1 + $0x238] sm:$0xf]
  %v238 = vld [vmem:[%s1 + $0x23c] sm:$0xf]
  %v319 = vunpack.c.l.b16 %v15
  %v320 = vunpack.c.h.b16 %v15
  %v321 = vunpack.c.l.b16 %v16
  %v322 = vunpack.c.h.b16 %v16
  %v323 = vunpack.c.l.b16 %v17
  %v324 = vunpack.c.h.b16 %v17
  %v325 = vunpack.c.l.b16 %v18
  %v326 = vunpack.c.h.b16 %v18
  %v327 = vunpack.c.l.b16 %v19
  %v328 = vunpack.c.l.b16 %v20
  %v329 = vunpack.c.h.b16 %v20
  %v330 = vunpack.c.l.b16 %v21
  %v331 = vunpack.c.h.b16 %v21
  %v332 = vunpack.c.l.b16 %v22
  %v333 = vunpack.c.h.b16 %v22
  %v334 = vunpack.c.l.b16 %v23
  %v335 = vunpack.c.h.b16 %v23
  %v336 = vunpack.c.l.b16 %v24
  %v337 = vunpack.c.l.b16 %v25
  %v338 = vunpack.c.h.b16 %v25
  %v339 = vunpack.c.l.b16 %v26
  %v340 = vunpack.c.h.b16 %v26
  %v341 = vunpack.c.l.b16 %v27
  %v342 = vunpack.c.h.b16 %v27
  %v343 = vunpack.c.l.b16 %v28
  %v344 = vunpack.c.h.b16 %v28
  %v345 = vunpack.c.l.b16 %v29
  %v346 = vunpack.c.l.b16 %v30
  %v347 = vunpack.c.h.b16 %v30
  %v348 = vunpack.c.l.b16 %v31
  %v349 = vunpack.c.h.b16 %v31
  %v350 = vunpack.c.l.b16 %v32
  %v351 = vunpack.c.h.b16 %v32
  %v352 = vunpack.c.l.b16 %v33
  %v353 = vunpack.c.h.b16 %v33
  %v354 = vunpack.c.l.b16 %v34
  %v355 = vunpack.c.l.b16 %v35
  %v356 = vunpack.c.h.b16 %v35
  %v357 = vunpack.c.l.b16 %v36
  %v358 = vunpack.c.h.b16 %v36
  %v359 = vunpack.c.l.b16 %v37
  %v360 = vunpack.c.h.b16 %v37
  %v361 = vunpack.c.l.b16 %v38
  %v362 = vunpack.c.h.b16 %v38
  %v363 = vunpack.c.l.b16 %v39
  %v364 = vunpack.c.l.b16 %v40
  %v365 = vunpack.c.h.b16 %v40
  %v366 = vunpack.c.l.b16 %v41
  %v367 = vunpack.c.h.b16 %v41
  %v368 = vunpack.c.l.b16 %v42
  %v369 = vunpack.c.h.b16 %v42
  %v370 = vunpack.c.l.b16 %v43
  %v371 = vunpack.c.h.b16 %v43
  %v372 = vunpack.c.l.b16 %v44
  %v373 = vunpack.c.l.b16 %v45
  %v374 = vunpack.c.h.b16 %v45
  %v375 = vunpack.c.l.b16 %v46
  %v376 = vunpack.c.h.b16 %v46
  %v377 = vunpack.c.l.b16 %v47
  %v378 = vunpack.c.h.b16 %v47
  %v379 = vunpack.c.l.b16 %v48
  %v380 = vunpack.c.h.b16 %v48
  %v381 = vunpack.c.l.b16 %v49
  %v382 = vunpack.c.l.b16 %v50
  %v383 = vunpack.c.h.b16 %v50
  %v384 = vunpack.c.l.b16 %v51
  %v385 = vunpack.c.h.b16 %v51
  %v386 = vunpack.c.l.b16 %v52
  %v387 = vunpack.c.h.b16 %v52
  %v388 = vunpack.c.l.b16 %v53
  %v389 = vunpack.c.h.b16 %v53
  %v390 = vunpack.c.l.b16 %v54
  %v391 = vunpack.c.l.b16 %v55
  %v392 = vunpack.c.h.b16 %v55
  %v393 = vunpack.c.l.b16 %v56
  %v394 = vunpack.c.h.b16 %v56
  %v395 = vunpack.c.l.b16 %v57
  %v396 = vunpack.c.h.b16 %v57
  %v397 = vunpack.c.l.b16 %v58
  %v398 = vunpack.c.h.b16 %v58
  %v399 = vunpack.c.l.b16 %v59
  %v400 = vunpack.c.l.b16 %v60
  %v401 = vunpack.c.h.b16 %v60
  %v402 = vunpack.c.l.b16 %v61
  %v403 = vunpack.c.h.b16 %v61
  %v404 = vunpack.c.l.b16 %v62
  %v405 = vunpack.c.h.b16 %v62
  %v406 = vunpack.c.l.b16 %v63
  %v407 = vunpack.c.h.b16 %v63
  %v408 = vunpack.c.l.b16 %v64
  %v409 = vunpack.c.l.b16 %v65
  %v410 = vunpack.c.h.b16 %v65
  %v411 = vunpack.c.l.b16 %v66
  %v412 = vunpack.c.h.b16 %v66
  %v413 = vunpack.c.l.b16 %v67
  %v414 = vunpack.c.h.b16 %v67
  %v415 = vunpack.c.l.b16 %v68
  %v416 = vunpack.c.h.b16 %v68
  %v417 = vunpack.c.l.b16 %v69
  %v418 = vunpack.c.l.b16 %v70
  %v419 = vunpack.c.h.b16 %v70
  %v420 = vunpack.c.l.b16 %v71
  %v421 = vunpack.c.h.b16 %v71
  %v422 = vunpack.c.l.b16 %v72
  %v423 = vunpack.c.h.b16 %v72
  %v424 = vunpack.c.l.b16 %v73
  %v425 = vunpack.c.h.b16 %v73
  %v426 = vunpack.c.l.b16 %v74
  %v427 = vunpack.c.l.b16 %v75
  %v428 = vunpack.c.h.b16 %v75
  %v429 = vunpack.c.l.b16 %v76
  %v430 = vunpack.c.h.b16 %v76
  %v431 = vunpack.c.l.b16 %v77
  %v432 = vunpack.c.h.b16 %v77
  %v433 = vunpack.c.l.b16 %v78
  %v434 = vunpack.c.h.b16 %v78
  %v435 = vunpack.c.l.b16 %v79
  %v436 = vunpack.c.l.b16 %v80
  %v437 = vunpack.c.h.b16 %v80
  %v438 = vunpack.c.l.b16 %v81
  %v439 = vunpack.c.h.b16 %v81
  %v440 = vunpack.c.l.b16 %v82
  %v441 = vunpack.c.h.b16 %v82
  %v442 = vunpack.c.l.b16 %v83
  %v443 = vunpack.c.h.b16 %v83
  %v444 = vunpack.c.l.b16 %v84
  %v445 = vunpack.c.l.b16 %v85
  %v446 = vunpack.c.h.b16 %v85
  %v447 = vunpack.c.l.b16 %v86
  %v448 = vunpack.c.h.b16 %v86
  %v449 = vunpack.c.l.b16 %v87
  %v450 = vunpack.c.h.b16 %v87
  %v451 = vunpack.c.l.b16 %v88
  %v452 = vunpack.c.h.b16 %v88
  %v453 = vunpack.c.l.b16 %v89
  %v454 = vunpack.c.l.b16 %v90
  %v455 = vunpack.c.h.b16 %v90
  %v456 = vunpack.c.l.b16 %v91
  %v457 = vunpack.c.h.b16 %v91
  %v458 = vunpack.c.l.b16 %v92
  %v459 = vunpack.c.h.b16 %v92
  %v460 = vunpack.c.l.b16 %v93
  %v461 = vunpack.c.h.b16 %v93
  %v462 = vunpack.c.l.b16 %v94
  %v463 = vpack.c.b16 %v328, %v319
  %v464 = vpack.c.b16 %v329, %v320
  %v465 = vpack.c.b16 %v330, %v321
  %v466 = vpack.c.b16 %v331, %v322
  %v467 = vpack.c.b16 %v332, %v323
  %v468 = vpack.c.b16 %v333, %v324
  %v469 = vpack.c.b16 %v334, %v325
  %v470 = vpack.c.b16 %v335, %v326
  %v471 = vpack.c.b16 %v336, %v327
  %v472 = vpack.c.b16 %v346, %v337
  %v473 = vpack.c.b16 %v347, %v338
  %v474 = vpack.c.b16 %v348, %v339
  %v475 = vpack.c.b16 %v349, %v340
  %v476 = vpack.c.b16 %v350, %v341
  %v477 = vpack.c.b16 %v351, %v342
  %v478 = vpack.c.b16 %v352, %v343
  %v479 = vpack.c.b16 %v353, %v344
  %v480 = vpack.c.b16 %v354, %v345
  %v481 = vpack.c.b16 %v364, %v355
  %v482 = vpack.c.b16 %v365, %v356
  %v483 = vpack.c.b16 %v366, %v357
  %v484 = vpack.c.b16 %v367, %v358
  %v485 = vpack.c.b16 %v368, %v359
  %v486 = vpack.c.b16 %v369, %v360
  %v487 = vpack.c.b16 %v370, %v361
  %v488 = vpack.c.b16 %v371, %v362
  %v489 = vpack.c.b16 %v372, %v363
  %v490 = vpack.c.b16 %v382, %v373
  %v491 = vpack.c.b16 %v383, %v374
  %v492 = vpack.c.b16 %v384, %v375
  %v493 = vpack.c.b16 %v385, %v376
  %v494 = vpack.c.b16 %v386, %v377
  %v495 = vpack.c.b16 %v387, %v378
  %v496 = vpack.c.b16 %v388, %v379
  %v497 = vpack.c.b16 %v389, %v380
  %v498 = vpack.c.b16 %v390, %v381
  %v499 = vpack.c.b16 %v400, %v391
  %v500 = vpack.c.b16 %v401, %v392
  %v501 = vpack.c.b16 %v402, %v393
  %v502 = vpack.c.b16 %v403, %v394
  %v503 = vpack.c.b16 %v404, %v395
  %v504 = vpack.c.b16 %v405, %v396
  %v505 = vpack.c.b16 %v406, %v397
  %v506 = vpack.c.b16 %v407, %v398
  %v507 = vpack.c.b16 %v408, %v399
  %v508 = vpack.c.b16 %v418, %v409
  %v509 = vpack.c.b16 %v419, %v410
  %v510 = vpack.c.b16 %v420, %v411
  %v511 = vpack.c.b16 %v421, %v412
  %v512 = vpack.c.b16 %v422, %v413
  %v513 = vpack.c.b16 %v423, %v414
  %v514 = vpack.c.b16 %v424, %v415
  %v515 = vpack.c.b16 %v425, %v416
  %v516 = vpack.c.b16 %v426, %v417
  %v517 = vpack.c.b16 %v436, %v427
  %v518 = vpack.c.b16 %v437, %v428
  %v519 = vpack.c.b16 %v438, %v429
  %v520 = vpack.c.b16 %v439, %v430
  %v521 = vpack.c.b16 %v440, %v431
  %v522 = vpack.c.b16 %v441, %v432
  %v523 = vpack.c.b16 %v442, %v433
  %v524 = vpack.c.b16 %v443, %v434
  %v525 = vpack.c.b16 %v444, %v435
  %v526 = vpack.c.b16 %v454, %v445
  %v527 = vpack.c.b16 %v455, %v446
  %v528 = vpack.c.b16 %v456, %v447
  %v529 = vpack.c.b16 %v457, %v448
  %v530 = vpack.c.b16 %v458, %v449
  %v531 = vpack.c.b16 %v459, %v450
  %v532 = vpack.c.b16 %v460, %v451
  %v533 = vpack.c.b16 %v461, %v452
  %v534 = vpack.c.b16 %v462, %v453
  %v751 = vunpack.c.l.b16 %v95
  %v752 = vunpack.c.l.b16 %v96
  %v753 = vunpack.c.l.b16 %v97
  %v754 = vunpack.c.l.b16 %v98
  %v755 = vunpack.c.l.b16 %v99
  %v756 = vunpack.c.l.b16 %v100
  %v757 = vunpack.c.l.b16 %v101
  %v758 = vunpack.c.l.b16 %v102
  %v759 = vunpack.c.l.b16 %v103
  %v760 = vunpack.c.l.b16 %v104
  %v761 = vunpack.c.l.b16 %v105
  %v762 = vunpack.c.l.b16 %v106
  %v763 = vunpack.c.l.b16 %v107
  %v764 = vunpack.c.l.b16 %v108
  %v765 = vunpack.c.l.b16 %v109
  %v766 = vunpack.c.l.b16 %v110
  %v767 = vunpack.c.l.b16 %v111
  %v768 = vunpack.c.l.b16 %v112
  %v769 = vunpack.c.l.b16 %v113
  %v770 = vunpack.c.l.b16 %v114
  %v771 = vunpack.c.l.b16 %v115
  %v772 = vunpack.c.l.b16 %v116
  %v773 = vunpack.c.l.b16 %v117
  %v774 = vunpack.c.l.b16 %v118
  %v775 = vunpack.c.l.b16 %v119
  %v776 = vunpack.c.l.b16 %v120
  %v777 = vunpack.c.l.b16 %v121
  %v778 = vunpack.c.l.b16 %v122
  %v779 = vunpack.c.l.b16 %v123
  %v780 = vunpack.c.l.b16 %v124
  %v781 = vunpack.c.l.b16 %v125
  %v782 = vunpack.c.l.b16 %v126
  %v783 = vunpack.c.l.b16 %v127
  %v784 = vunpack.c.l.b16 %v128
  %v785 = vunpack.c.l.b16 %v129
  %v786 = vunpack.c.l.b16 %v130
  %v787 = vunpack.c.l.b16 %v131
  %v788 = vunpack.c.l.b16 %v132
  %v789 = vunpack.c.l.b16 %v133
  %v790 = vunpack.c.l.b16 %v134
  %v791 = vunpack.c.l.b16 %v135
  %v792 = vunpack.c.l.b16 %v136
  %v793 = vunpack.c.l.b16 %v137
  %v794 = vunpack.c.l.b16 %v138
  %v795 = vunpack.c.l.b16 %v139
  %v796 = vunpack.c.l.b16 %v140
  %v797 = vunpack.c.l.b16 %v141
  %v798 = vunpack.c.l.b16 %v142
  %v799 = vunpack.c.l.b16 %v143
  %v800 = vunpack.c.l.b16 %v144
  %v801 = vunpack.c.l.b16 %v145
  %v802 = vunpack.c.l.b16 %v146
  %v803 = vunpack.c.l.b16 %v147
  %v804 = vunpack.c.l.b16 %v148
  %v805 = vunpack.c.l.b16 %v149
  %v806 = vunpack.c.l.b16 %v150
  %v807 = vunpack.c.l.b16 %v151
  %v808 = vunpack.c.l.b16 %v152
  %v809 = vunpack.c.l.b16 %v153
  %v810 = vunpack.c.l.b16 %v154
  %v811 = vunpack.c.l.b16 %v155
  %v812 = vunpack.c.l.b16 %v156
  %v813 = vunpack.c.l.b16 %v157
  %v814 = vunpack.c.l.b16 %v158
  %v815 = vunpack.c.l.b16 %v159
  %v816 = vunpack.c.l.b16 %v160
  %v817 = vunpack.c.l.b16 %v161
  %v818 = vunpack.c.l.b16 %v162
  %v819 = vunpack.c.l.b16 %v163
  %v820 = vunpack.c.l.b16 %v164
  %v821 = vunpack.c.l.b16 %v165
  %v822 = vunpack.c.l.b16 %v166
  %v823 = vunpack.c.l.b16 %v167
  %v824 = vunpack.c.l.b16 %v168
  %v825 = vunpack.c.l.b16 %v169
  %v826 = vunpack.c.l.b16 %v170
  %v827 = vunpack.c.l.b16 %v171
  %v828 = vunpack.c.l.b16 %v172
  %v829 = vunpack.c.l.b16 %v173
  %v830 = vunpack.c.l.b16 %v174
  %v831 = vunpack.c.l.b16 %v175
  %v832 = vunpack.c.l.b16 %v176
  %v833 = vunpack.c.l.b16 %v177
  %v834 = vunpack.c.l.b16 %v178
  %v835 = vunpack.c.l.b16 %v179
  %v836 = vunpack.c.l.b16 %v180
  %v837 = vunpack.c.l.b16 %v181
  %v838 = vunpack.c.l.b16 %v182
  %v839 = vunpack.c.l.b16 %v183
  %v840 = vunpack.c.l.b16 %v184
  %v841 = vunpack.c.l.b16 %v185
  %v842 = vunpack.c.l.b16 %v186
  %v843 = vunpack.c.l.b16 %v187
  %v844 = vunpack.c.l.b16 %v188
  %v845 = vunpack.c.l.b16 %v189
  %v846 = vunpack.c.l.b16 %v190
  %v847 = vunpack.c.l.b16 %v191
  %v848 = vunpack.c.l.b16 %v192
  %v849 = vunpack.c.l.b16 %v193
  %v850 = vunpack.c.l.b16 %v194
  %v851 = vunpack.c.l.b16 %v195
  %v852 = vunpack.c.l.b16 %v196
  %v853 = vunpack.c.l.b16 %v197
  %v854 = vunpack.c.l.b16 %v198
  %v855 = vunpack.c.l.b16 %v199
  %v856 = vunpack.c.l.b16 %v200
  %v857 = vunpack.c.l.b16 %v201
  %v858 = vunpack.c.l.b16 %v202
  %v859 = vunpack.c.l.b16 %v203
  %v860 = vunpack.c.l.b16 %v204
  %v861 = vunpack.c.l.b16 %v205
  %v862 = vunpack.c.l.b16 %v206
  %v863 = vunpack.c.l.b16 %v207
  %v864 = vunpack.c.l.b16 %v208
  %v865 = vunpack.c.l.b16 %v209
  %v866 = vunpack.c.l.b16 %v210
  %v867 = vunpack.c.l.b16 %v211
  %v868 = vunpack.c.l.b16 %v212
  %v869 = vunpack.c.l.b16 %v213
  %v870 = vunpack.c.l.b16 %v214
  %v871 = vunpack.c.l.b16 %v215
  %v872 = vunpack.c.l.b16 %v216
  %v873 = vunpack.c.l.b16 %v217
  %v874 = vunpack.c.l.b16 %v218
  %v875 = vunpack.c.l.b16 %v219
  %v876 = vunpack.c.l.b16 %v220
  %v877 = vunpack.c.l.b16 %v221
  %v878 = vunpack.c.l.b16 %v222
  %v879 = vunpack.c.l.b16 %v223
  %v880 = vunpack.c.l.b16 %v224
  %v881 = vunpack.c.l.b16 %v225
  %v882 = vunpack.c.l.b16 %v226
  %v883 = vunpack.c.l.b16 %v227
  %v884 = vunpack.c.l.b16 %v228
  %v885 = vunpack.c.l.b16 %v229
  %v886 = vunpack.c.l.b16 %v230
  %v887 = vunpack.c.l.b16 %v231
  %v888 = vunpack.c.l.b16 %v232
  %v889 = vunpack.c.l.b16 %v233
  %v890 = vunpack.c.l.b16 %v234
  %v891 = vunpack.c.l.b16 %v235
  %v892 = vunpack.c.l.b16 %v236
  %v893 = vunpack.c.l.b16 %v237
  %v894 = vunpack.c.l.b16 %v238
  %v895 = vpack.c.b16 %v752, %v751
  %v896 = vpack.c.b16 %v754, %v753
  %v897 = vpack.c.b16 %v756, %v755
  %v898 = vpack.c.b16 %v758, %v757
  %v899 = vpack.c.b16 %v760, %v759
  %v900 = vpack.c.b16 %v762, %v761
  %v901 = vpack.c.b16 %v764, %v763
  %v902 = vpack.c.b16 %v766, %v765
  %v903 = vpack.c.b16 %v768, %v767
  %v904 = vpack.c.b16 %v770, %v769
  %v905 = vpack.c.b16 %v772, %v771
  %v906 = vpack.c.b16 %v774, %v773
  %v907 = vpack.c.b16 %v776, %v775
  %v908 = vpack.c.b16 %v778, %v777
  %v909 = vpack.c.b16 %v780, %v779
  %v910 = vpack.c.b16 %v782, %v781
  %v911 = vpack.c.b16 %v784, %v783
  %v912 = vpack.c.b16 %v786, %v785
  %v913 = vpack.c.b16 %v788, %v787
  %v914 = vpack.c.b16 %v790, %v789
  %v915 = vpack.c.b16 %v792, %v791
  %v916 = vpack.c.b16 %v794, %v793
  %v917 = vpack.c.b16 %v796, %v795
  %v918 = vpack.c.b16 %v798, %v797
  %v919 = vpack.c.b16 %v800, %v799
  %v920 = vpack.c.b16 %v802, %v801
  %v921 = vpack.c.b16 %v804, %v803
  %v922 = vpack.c.b16 %v806, %v805
  %v923 = vpack.c.b16 %v808, %v807
  %v924 = vpack.c.b16 %v810, %v809
  %v925 = vpack.c.b16 %v812, %v811
  %v926 = vpack.c.b16 %v814, %v813
  %v927 = vpack.c.b16 %v816, %v815
  %v928 = vpack.c.b16 %v818, %v817
  %v929 = vpack.c.b16 %v820, %v819
  %v930 = vpack.c.b16 %v822, %v821
  %v931 = vpack.c.b16 %v824, %v823
  %v932 = vpack.c.b16 %v826, %v825
  %v933 = vpack.c.b16 %v828, %v827
  %v934 = vpack.c.b16 %v830, %v829
  %v935 = vpack.c.b16 %v832, %v831
  %v936 = vpack.c.b16 %v834, %v833
  %v937 = vpack.c.b16 %v836, %v835
  %v938 = vpack.c.b16 %v838, %v837
  %v939 = vpack.c.b16 %v840, %v839
  %v940 = vpack.c.b16 %v842, %v841
  %v941 = vpack.c.b16 %v844, %v843
  %v942 = vpack.c.b16 %v846, %v845
  %v943 = vpack.c.b16 %v848, %v847
  %v944 = vpack.c.b16 %v850, %v849
  %v945 = vpack.c.b16 %v852, %v851
  %v946 = vpack.c.b16 %v854, %v853
  %v947 = vpack.c.b16 %v856, %v855
  %v948 = vpack.c.b16 %v858, %v857
  %v949 = vpack.c.b16 %v860, %v859
  %v950 = vpack.c.b16 %v862, %v861
  %v951 = vpack.c.b16 %v864, %v863
  %v952 = vpack.c.b16 %v866, %v865
  %v953 = vpack.c.b16 %v868, %v867
  %v954 = vpack.c.b16 %v870, %v869
  %v955 = vpack.c.b16 %v872, %v871
  %v956 = vpack.c.b16 %v874, %v873
  %v957 = vpack.c.b16 %v876, %v875
  %v958 = vpack.c.b16 %v878, %v877
  %v959 = vpack.c.b16 %v880, %v879
  %v960 = vpack.c.b16 %v882, %v881
  %v961 = vpack.c.b16 %v884, %v883
  %v962 = vpack.c.b16 %v886, %v885
  %v963 = vpack.c.b16 %v888, %v887
  %v964 = vpack.c.b16 %v890, %v889
  %v965 = vpack.c.b16 %v892, %v891
  %v966 = vpack.c.b16 %v894, %v893
  %1039 = vmatprep.subr.bf16.mxu0 0
  %1040 = vmatpush1.bf16.msra.mxu0 %v895
  %1041 = vmatprep.subr.bf16.mxu0 0
  %1042 = vmatpush1.bf16.msra.mxu0 %v896
  %1043 = vmatprep.subr.bf16.mxu0 0
  %1044 = vmatpush1.bf16.msra.mxu0 %v897
  %1045 = vmatprep.subr.bf16.mxu0 0
  %1046 = vmatpush1.bf16.msra.mxu0 %v898
  %1047 = vmatprep.subr.bf16.mxu0 0
  %1048 = vmatpush1.bf16.msra.mxu0 %v899
  %1049 = vmatprep.subr.bf16.mxu0 0
  %1050 = vmatpush1.bf16.msra.mxu0 %v900
  %1051 = vmatprep.subr.bf16.mxu0 0
  %1052 = vmatpush1.bf16.msra.mxu0 %v901
  %1053 = vmatprep.subr.bf16.mxu0 0
  %1054 = vmatpush1.bf16.msra.mxu0 %v902
  %1055 = vmatprep.subr.bf16.mxu0 0
  %1056 = vmatpush1.bf16.msra.mxu0 %v903
  %1057 = vmatprep.subr.bf16.mxu0 0
  %1058 = vmatpush1.bf16.msra.mxu0 %v904
  %1059 = vmatprep.subr.bf16.mxu0 0
  %1060 = vmatpush1.bf16.msra.mxu0 %v905
  %1061 = vmatprep.subr.bf16.mxu0 0
  %1062 = vmatpush1.bf16.msra.mxu0 %v906
  %1063 = vmatprep.subr.bf16.mxu0 0
  %1064 = vmatpush1.bf16.msra.mxu0 %v907
  %1065 = vmatprep.subr.bf16.mxu0 0
  %1066 = vmatpush1.bf16.msra.mxu0 %v908
  %1067 = vmatprep.subr.bf16.mxu0 0
  %1068 = vmatpush1.bf16.msra.mxu0 %v909
  %1069 = vmatprep.subr.bf16.mxu0 0
  %1070 = vmatpush1.bf16.msra.mxu0 %v910
  %1071 = vmatprep.mubr.bf16.mxu0 %v464
  %1072 = vmatmul.mubr.bf16.gmra.mrb[0].mxu0 %v463
  %v1073 = vpop.f32.mrb[0].mxu0
  %v1074 = vadd.f32 0.0, %v1073
  %v1075 = vpop.f32.mrb[0].mxu0
  %v1076 = vpop.f32.mrb[0].mxu0
  %v1077 = vadd.f32 0.0, %v1076
  %v1078 = vpop.f32.mrb[0].mxu0
  %1079 = vmatprep.mubr.bf16.mxu0 %v473
  %1080 = vmatmul.mubr.bf16.gmra.mrb[0].mxu0 %v472
  %v1081 = vpop.f32.mrb[0].mxu0
  %v1082 = vadd.f32 0.0, %v1081
  %v1083 = vpop.f32.mrb[0].mxu0
  %v1084 = vpop.f32.mrb[0].mxu0
  %v1085 = vadd.f32 0.0, %v1084
  %v1086 = vpop.f32.mrb[0].mxu0
  %1087 = vmatprep.mubr.bf16.mxu0 %v482
  %1088 = vmatmul.mubr.bf16.gmra.mrb[0].mxu0 %v481
  %v1089 = vpop.f32.mrb[0].mxu0
  %v1090 = vadd.f32 0.0, %v1089
  %v1091 = vpop.f32.mrb[0].mxu0
  %v1092 = vpop.f32.mrb[0].mxu0
  %v1093 = vadd.f32 0.0, %v1092
  %v1094 = vpop.f32.mrb[0].mxu0
  %1095 = vmatprep.mubr.bf16.mxu0 %v491
  %1096 = vmatmul.mubr.bf16.gmra.mrb[0].mxu0 %v490
  %v1097 = vpop.f32.mrb[0].mxu0
  %v1098 = vadd.f32 0.0, %v1097
  %v1099 = vpop.f32.mrb[0].mxu0
  %v1100 = vpop.f32.mrb[0].mxu0
  %v1101 = vadd.f32 0.0, %v1100
  %v1102 = vpop.f32.mrb[0].mxu0
  %1103 = vmatprep.mubr.bf16.mxu0 %v500
  %1104 = vmatmul.mubr.bf16.gmra.mrb[0].mxu0 %v499
  %v1105 = vpop.f32.mrb[0].mxu0
  %v1106 = vadd.f32 0.0, %v1105
  %v1107 = vpop.f32.mrb[0].mxu0
  %v1108 = vpop.f32.mrb[0].mxu0
  %v1109 = vadd.f32 0.0, %v1108
  %v1110 = vpop.f32.mrb[0].mxu0
  %1111 = vmatprep.mubr.bf16.mxu0 %v509
  %1112 = vmatmul.mubr.bf16.gmra.mrb[0].mxu0 %v508
  %v1113 = vpop.f32.mrb[0].mxu0
  %v1114 = vadd.f32 0.0, %v1113
  %v1115 = vpop.f32.mrb[0].mxu0
  %v1116 = vpop.f32.mrb[0].mxu0
  %v1117 = vadd.f32 0.0, %v1116
  %v1118 = vpop.f32.mrb[0].mxu0
  %1119 = vmatprep.mubr.bf16.mxu0 %v518
  %1120 = vmatmul.mubr.bf16.gmra.mrb[0].mxu0 %v517
  %v1121 = vpop.f32.mrb[0].mxu0
  %v1122 = vadd.f32 0.0, %v1121
  %v1123 = vpop.f32.mrb[0].mxu0
  %v1124 = vpop.f32.mrb[0].mxu0
  %v1125 = vadd.f32 0.0, %v1124
  %v1126 = vpop.f32.mrb[0].mxu0
  %1127 = vmatprep.mubr.bf16.mxu0 %v527
  %1128 = vmatmul.mubr.bf16.gmra.mrb[0].mxu0 %v526
  %v1129 = vpop.f32.mrb[0].mxu0
  %v1130 = vadd.f32 0.0, %v1129
  %v1131 = vpop.f32.mrb[0].mxu0
  %v1132 = vpop.f32.mrb[0].mxu0
  %v1133 = vadd.f32 0.0, %v1132
  %v1134 = vpop.f32.mrb[0].mxu0
  %1135 = vdwg.mxu0
  %1136 = vmatprep.subr.bf16.mxu0 0
  %1137 = vmatpush1.bf16.msra.mxu0 %v911
  %1138 = vmatprep.subr.bf16.mxu0 0
  %1139 = vmatpush1.bf16.msra.mxu0 %v912
  %1140 = vmatprep.subr.bf16.mxu0 0
  %1141 = vmatpush1.bf16.msra.mxu0 %v913
  %1142 = vmatprep.subr.bf16.mxu0 0
  %1143 = vmatpush1.bf16.msra.mxu0 %v914
  %1144 = vmatprep.subr.bf16.mxu0 0
  %1145 = vmatpush1.bf16.msra.mxu0 %v915
  %1146 = vmatprep.subr.bf16.mxu0 0
  %1147 = vmatpush1.bf16.msra.mxu0 %v916
  %1148 = vmatprep.subr.bf16.mxu0 0
  %1149 = vmatpush1.bf16.msra.mxu0 %v917
  %1150 = vmatprep.subr.bf16.mxu0 0
  %1151 = vmatpush1.bf16.msra.mxu0 %v918
  %1152 = vmatprep.subr.bf16.mxu0 0
  %1153 = vmatpush1.bf16.msra.mxu0 %v919
  %1154 = vmatprep.subr.bf16.mxu0 0
  %1155 = vmatpush1.bf16.msra.mxu0 %v920
  %1156 = vmatprep.subr.bf16.mxu0 0
  %1157 = vmatpush1.bf16.msra.mxu0 %v921
  %1158 = vmatprep.subr.bf16.mxu0 0
  %1159 = vmatpush1.bf16.msra.mxu0 %v922
  %1160 = vmatprep.subr.bf16.mxu0 0
  %1161 = vmatpush1.bf16.msra.mxu0 %v923
  %1162 = vmatprep.subr.bf16.mxu0 0
  %1163 = vmatpush1.bf16.msra.mxu0 %v924
  %1164 = vmatprep.subr.bf16.mxu0 0
  %1165 = vmatpush1.bf16.msra.mxu0 %v925
  %1166 = vmatprep.subr.bf16.mxu0 0
  %1167 = vmatpush1.bf16.msra.mxu0 %v926
  %1168 = vmatprep.mubr.bf16.mxu0 %v466
  %1169 = vmatmul.mubr.bf16.gmra.mrb[0].mxu0 %v465
  %v1170 = vpop.f32.mrb[0].mxu0
  %v1171 = vadd.f32 %v1074, %v1170
  %v1172 = vpop.f32.mrb[0].mxu0
  %v1173 = vpop.f32.mrb[0].mxu0
  %v1174 = vadd.f32 %v1077, %v1173
  %v1175 = vpop.f32.mrb[0].mxu0
  %1176 = vmatprep.mubr.bf16.mxu0 %v475
  %1177 = vmatmul.mubr.bf16.gmra.mrb[0].mxu0 %v474
  %v1178 = vpop.f32.mrb[0].mxu0
  %v1179 = vadd.f32 %v1082, %v1178
  %v1180 = vpop.f32.mrb[0].mxu0
  %v1181 = vpop.f32.mrb[0].mxu0
  %v1182 = vadd.f32 %v1085, %v1181
  %v1183 = vpop.f32.mrb[0].mxu0
  %1184 = vmatprep.mubr.bf16.mxu0 %v484
  %1185 = vmatmul.mubr.bf16.gmra.mrb[0].mxu0 %v483
  %v1186 = vpop.f32.mrb[0].mxu0
  %v1187 = vadd.f32 %v1090, %v1186
  %v1188 = vpop.f32.mrb[0].mxu0
  %v1189 = vpop.f32.mrb[0].mxu0
  %v1190 = vadd.f32 %v1093, %v1189
  %v1191 = vpop.f32.mrb[0].mxu0
  %1192 = vmatprep.mubr.bf16.mxu0 %v493
  %1193 = vmatmul.mubr.bf16.gmra.mrb[0].mxu0 %v492
  %v1194 = vpop.f32.mrb[0].mxu0
  %v1195 = vadd.f32 %v1098, %v1194
  %v1196 = vpop.f32.mrb[0].mxu0
  %v1197 = vpop.f32.mrb[0].mxu0
  %v1198 = vadd.f32 %v1101, %v1197
  %v1199 = vpop.f32.mrb[0].mxu0
  %1200 = vmatprep.mubr.bf16.mxu0 %v502
  %1201 = vmatmul.mubr.bf16.gmra.mrb[0].mxu0 %v501
  %v1202 = vpop.f32.mrb[0].mxu0
  %v1203 = vadd.f32 %v1106, %v1202
  %v1204 = vpop.f32.mrb[0].mxu0
  %v1205 = vpop.f32.mrb[0].mxu0
  %v1206 = vadd.f32 %v1109, %v1205
  %v1207 = vpop.f32.mrb[0].mxu0
  %1208 = vmatprep.mubr.bf16.mxu0 %v511
  %1209 = vmatmul.mubr.bf16.gmra.mrb[0].mxu0 %v510
  %v1210 = vpop.f32.mrb[0].mxu0
  %v1211 = vadd.f32 %v1114, %v1210
  %v1212 = vpop.f32.mrb[0].mxu0
  %v1213 = vpop.f32.mrb[0].mxu0
  %v1214 = vadd.f32 %v1117, %v1213
  %v1215 = vpop.f32.mrb[0].mxu0
  %1216 = vmatprep.mubr.bf16.mxu0 %v520
  %1217 = vmatmul.mubr.bf16.gmra.mrb[0].mxu0 %v519
  %v1218 = vpop.f32.mrb[0].mxu0
  %v1219 = vadd.f32 %v1122, %v1218
  %v1220 = vpop.f32.mrb[0].mxu0
  %v1221 = vpop.f32.mrb[0].mxu0
  %v1222 = vadd.f32 %v1125, %v1221
  %v1223 = vpop.f32.mrb[0].mxu0
  %1224 = vmatprep.mubr.bf16.mxu0 %v529
  %1225 = vmatmul.mubr.bf16.gmra.mrb[0].mxu0 %v528
  %v1226 = vpop.f32.mrb[0].mxu0
  %v1227 = vadd.f32 %v1130, %v1226
  %v1228 = vpop.f32.mrb[0].mxu0
  %v1229 = vpop.f32.mrb[0].mxu0
  %v1230 = vadd.f32 %v1133, %v1229
  %v1231 = vpop.f32.mrb[0].mxu0
  %1232 = vdwg.mxu0
  %1233 = vmatprep.subr.bf16.mxu0 0
  %1234 = vmatpush1.bf16.msra.mxu0 %v927
  %1235 = vmatprep.subr.bf16.mxu0 0
  %1236 = vmatpush1.bf16.msra.mxu0 %v928
  %1237 = vmatprep.subr.bf16.mxu0 0
  %1238 = vmatpush1.bf16.msra.mxu0 %v929
  %1239 = vmatprep.subr.bf16.mxu0 0
  %1240 = vmatpush1.bf16.msra.mxu0 %v930
  %1241 = vmatprep.subr.bf16.mxu0 0
  %1242 = vmatpush1.bf16.msra.mxu0 %v931
  %1243 = vmatprep.subr.bf16.mxu0 0
  %1244 = vmatpush1.bf16.msra.mxu0 %v932
  %1245 = vmatprep.subr.bf16.mxu0 0
  %1246 = vmatpush1.bf16.msra.mxu0 %v933
  %1247 = vmatprep.subr.bf16.mxu0 0
  %1248 = vmatpush1.bf16.msra.mxu0 %v934
  %1249 = vmatprep.subr.bf16.mxu0 0
  %1250 = vmatpush1.bf16.msra.mxu0 %v935
  %1251 = vmatprep.subr.bf16.mxu0 0
  %1252 = vmatpush1.bf16.msra.mxu0 %v936
  %1253 = vmatprep.subr.bf16.mxu0 0
  %1254 = vmatpush1.bf16.msra.mxu0 %v937
  %1255 = vmatprep.subr.bf16.mxu0 0
  %1256 = vmatpush1.bf16.msra.mxu0 %v938
  %1257 = vmatprep.subr.bf16.mxu0 0
  %1258 = vmatpush1.bf16.msra.mxu0 %v939
  %1259 = vmatprep.subr.bf16.mxu0 0
  %1260 = vmatpush1.bf16.msra.mxu0 %v940
  %1261 = vmatprep.subr.bf16.mxu0 0
  %1262 = vmatpush1.bf16.msra.mxu0 %v941
  %1263 = vmatprep.subr.bf16.mxu0 0
  %1264 = vmatpush1.bf16.msra.mxu0 %v942
  %1265 = vmatprep.mubr.bf16.mxu0 %v468
  %1266 = vmatmul.mubr.bf16.gmra.mrb[0].mxu0 %v467
  %v1267 = vpop.f32.mrb[0].mxu0
  %v1268 = vadd.f32 %v1171, %v1267
  %v1269 = vpop.f32.mrb[0].mxu0
  %v1270 = vpop.f32.mrb[0].mxu0
  %v1271 = vadd.f32 %v1174, %v1270
  %v1272 = vpop.f32.mrb[0].mxu0
  %1273 = vmatprep.mubr.bf16.mxu0 %v477
  %1274 = vmatmul.mubr.bf16.gmra.mrb[0].mxu0 %v476
  %v1275 = vpop.f32.mrb[0].mxu0
  %v1276 = vadd.f32 %v1179, %v1275
  %v1277 = vpop.f32.mrb[0].mxu0
  %v1278 = vpop.f32.mrb[0].mxu0
  %v1279 = vadd.f32 %v1182, %v1278
  %v1280 = vpop.f32.mrb[0].mxu0
  %1281 = vmatprep.mubr.bf16.mxu0 %v486
  %1282 = vmatmul.mubr.bf16.gmra.mrb[0].mxu0 %v485
  %v1283 = vpop.f32.mrb[0].mxu0
  %v1284 = vadd.f32 %v1187, %v1283
  %v1285 = vpop.f32.mrb[0].mxu0
  %v1286 = vpop.f32.mrb[0].mxu0
  %v1287 = vadd.f32 %v1190, %v1286
  %v1288 = vpop.f32.mrb[0].mxu0
  %1289 = vmatprep.mubr.bf16.mxu0 %v495
  %1290 = vmatmul.mubr.bf16.gmra.mrb[0].mxu0 %v494
  %v1291 = vpop.f32.mrb[0].mxu0
  %v1292 = vadd.f32 %v1195, %v1291
  %v1293 = vpop.f32.mrb[0].mxu0
  %v1294 = vpop.f32.mrb[0].mxu0
  %v1295 = vadd.f32 %v1198, %v1294
  %v1296 = vpop.f32.mrb[0].mxu0
  %1297 = vmatprep.mubr.bf16.mxu0 %v504
  %1298 = vmatmul.mubr.bf16.gmra.mrb[0].mxu0 %v503
  %v1299 = vpop.f32.mrb[0].mxu0
  %v1300 = vadd.f32 %v1203, %v1299
  %v1301 = vpop.f32.mrb[0].mxu0
  %v1302 = vpop.f32.mrb[0].mxu0
  %v1303 = vadd.f32 %v1206, %v1302
  %v1304 = vpop.f32.mrb[0].mxu0
  %1305 = vmatprep.mubr.bf16.mxu0 %v513
  %1306 = vmatmul.mubr.bf16.gmra.mrb[0].mxu0 %v512
  %v1307 = vpop.f32.mrb[0].mxu0
  %v1308 = vadd.f32 %v1211, %v1307
  %v1309 = vpop.f32.mrb[0].mxu0
  %v1310 = vpop.f32.mrb[0].mxu0
  %v1311 = vadd.f32 %v1214, %v1310
  %v1312 = vpop.f32.mrb[0].mxu0
  %1313 = vmatprep.mubr.bf16.mxu0 %v522
  %1314 = vmatmul.mubr.bf16.gmra.mrb[0].mxu0 %v521
  %v1315 = vpop.f32.mrb[0].mxu0
  %v1316 = vadd.f32 %v1219, %v1315
  %v1317 = vpop.f32.mrb[0].mxu0
  %v1318 = vpop.f32.mrb[0].mxu0
  %v1319 = vadd.f32 %v1222, %v1318
  %v1320 = vpop.f32.mrb[0].mxu0
  %1321 = vmatprep.mubr.bf16.mxu0 %v531
  %1322 = vmatmul.mubr.bf16.gmra.mrb[0].mxu0 %v530
  %v1323 = vpop.f32.mrb[0].mxu0
  %v1324 = vadd.f32 %v1227, %v1323
  %v1325 = vpop.f32.mrb[0].mxu0
  %v1326 = vpop.f32.mrb[0].mxu0
  %v1327 = vadd.f32 %v1230, %v1326
  %v1328 = vpop.f32.mrb[0].mxu0
  %1329 = vdwg.mxu0
  %1330 = vmatprep.subr.bf16.mxu0 0
  %1331 = vmatpush1.bf16.msra.mxu0 %v943
  %1332 = vmatprep.subr.bf16.mxu0 0
  %1333 = vmatpush1.bf16.msra.mxu0 %v944
  %1334 = vmatprep.subr.bf16.mxu0 0
  %1335 = vmatpush1.bf16.msra.mxu0 %v945
  %1336 = vmatprep.subr.bf16.mxu0 0
  %1337 = vmatpush1.bf16.msra.mxu0 %v946
  %1338 = vmatprep.subr.bf16.mxu0 0
  %1339 = vmatpush1.bf16.msra.mxu0 %v947
  %1340 = vmatprep.subr.bf16.mxu0 0
  %1341 = vmatpush1.bf16.msra.mxu0 %v948
  %1342 = vmatprep.subr.bf16.mxu0 0
  %1343 = vmatpush1.bf16.msra.mxu0 %v949
  %1344 = vmatprep.subr.bf16.mxu0 0
  %1345 = vmatpush1.bf16.msra.mxu0 %v950
  %1346 = vmatprep.subr.bf16.mxu0 0
  %1347 = vmatpush1.bf16.msra.mxu0 %v951
  %1348 = vmatprep.subr.bf16.mxu0 0
  %1349 = vmatpush1.bf16.msra.mxu0 %v952
  %1350 = vmatprep.subr.bf16.mxu0 0
  %1351 = vmatpush1.bf16.msra.mxu0 %v953
  %1352 = vmatprep.subr.bf16.mxu0 0
  %1353 = vmatpush1.bf16.msra.mxu0 %v954
  %1354 = vmatprep.subr.bf16.mxu0 0
  %1355 = vmatpush1.bf16.msra.mxu0 %v955
  %1356 = vmatprep.subr.bf16.mxu0 0
  %1357 = vmatpush1.bf16.msra.mxu0 %v956
  %1358 = vmatprep.subr.bf16.mxu0 0
  %1359 = vmatpush1.bf16.msra.mxu0 %v957
  %1360 = vmatprep.subr.bf16.mxu0 0
  %1361 = vmatpush1.bf16.msra.mxu0 %v958
  %1362 = vmatprep.mubr.bf16.mxu0 %v470
  %1363 = vmatmul.mubr.bf16.gmra.mrb[0].mxu0 %v469
  %v1364 = vpop.f32.mrb[0].mxu0
  %v1365 = vadd.f32 %v1268, %v1364
  %v1366 = vpop.f32.mrb[0].mxu0
  %v1367 = vpop.f32.mrb[0].mxu0
  %v1368 = vadd.f32 %v1271, %v1367
  %v1369 = vpop.f32.mrb[0].mxu0
  %1370 = vmatprep.mubr.bf16.mxu0 %v479
  %1371 = vmatmul.mubr.bf16.gmra.mrb[0].mxu0 %v478
  %v1372 = vpop.f32.mrb[0].mxu0
  %v1373 = vadd.f32 %v1276, %v1372
  %v1374 = vpop.f32.mrb[0].mxu0
  %v1375 = vpop.f32.mrb[0].mxu0
  %v1376 = vadd.f32 %v1279, %v1375
  %v1377 = vpop.f32.mrb[0].mxu0
  %1378 = vmatprep.mubr.bf16.mxu0 %v488
  %1379 = vmatmul.mubr.bf16.gmra.mrb[0].mxu0 %v487
  %v1380 = vpop.f32.mrb[0].mxu0
  %v1381 = vadd.f32 %v1284, %v1380
  %v1382 = vpop.f32.mrb[0].mxu0
  %v1383 = vpop.f32.mrb[0].mxu0
  %v1384 = vadd.f32 %v1287, %v1383
  %v1385 = vpop.f32.mrb[0].mxu0
  %1386 = vmatprep.mubr.bf16.mxu0 %v497
  %1387 = vmatmul.mubr.bf16.gmra.mrb[0].mxu0 %v496
  %v1388 = vpop.f32.mrb[0].mxu0
  %v1389 = vadd.f32 %v1292, %v1388
  %v1390 = vpop.f32.mrb[0].mxu0
  %v1391 = vpop.f32.mrb[0].mxu0
  %v1392 = vadd.f32 %v1295, %v1391
  %v1393 = vpop.f32.mrb[0].mxu0
  %1394 = vmatprep.mubr.bf16.mxu0 %v506
  %1395 = vmatmul.mubr.bf16.gmra.mrb[0].mxu0 %v505
  %v1396 = vpop.f32.mrb[0].mxu0
  %v1397 = vadd.f32 %v1300, %v1396
  %v1398 = vpop.f32.mrb[0].mxu0
  %v1399 = vpop.f32.mrb[0].mxu0
  %v1400 = vadd.f32 %v1303, %v1399
  %v1401 = vpop.f32.mrb[0].mxu0
  %1402 = vmatprep.mubr.bf16.mxu0 %v515
  %1403 = vmatmul.mubr.bf16.gmra.mrb[0].mxu0 %v514
  %v1404 = vpop.f32.mrb[0].mxu0
  %v1405 = vadd.f32 %v1308, %v1404
  %v1406 = vpop.f32.mrb[0].mxu0
  %v1407 = vpop.f32.mrb[0].mxu0
  %v1408 = vadd.f32 %v1311, %v1407
  %v1409 = vpop.f32.mrb[0].mxu0
  %1410 = vmatprep.mubr.bf16.mxu0 %v524
  %1411 = vmatmul.mubr.bf16.gmra.mrb[0].mxu0 %v523
  %v1412 = vpop.f32.mrb[0].mxu0
  %v1413 = vadd.f32 %v1316, %v1412
  %v1414 = vpop.f32.mrb[0].mxu0
  %v1415 = vpop.f32.mrb[0].mxu0
  %v1416 = vadd.f32 %v1319, %v1415
  %v1417 = vpop.f32.mrb[0].mxu0
  %1418 = vmatprep.mubr.bf16.mxu0 %v533
  %1419 = vmatmul.mubr.bf16.gmra.mrb[0].mxu0 %v532
  %v1420 = vpop.f32.mrb[0].mxu0
  %v1421 = vadd.f32 %v1324, %v1420
  %v1422 = vpop.f32.mrb[0].mxu0
  %v1423 = vpop.f32.mrb[0].mxu0
  %v1424 = vadd.f32 %v1327, %v1423
  %v1425 = vpop.f32.mrb[0].mxu0
  %1426 = vdwg.mxu0
  %1427 = vmatprep.subr.bf16.mxu0 0
  %1428 = vmatpush1.bf16.msra.mxu0 %v959
  %1429 = vmatprep.subr.bf16.mxu0 0
  %1430 = vmatpush1.bf16.msra.mxu0 %v960
  %1431 = vmatprep.subr.bf16.mxu0 0
  %1432 = vmatpush1.bf16.msra.mxu0 %v961
  %1433 = vmatprep.subr.bf16.mxu0 0
  %1434 = vmatpush1.bf16.msra.mxu0 %v962
  %1435 = vmatprep.subr.bf16.mxu0 0
  %1436 = vmatpush1.bf16.msra.mxu0 %v963
  %1437 = vmatprep.subr.bf16.mxu0 0
  %1438 = vmatpush1.bf16.msra.mxu0 %v964
  %1439 = vmatprep.subr.bf16.mxu0 0
  %1440 = vmatpush1.bf16.msra.mxu0 %v965
  %1441 = vmatprep.subr.bf16.mxu0 0
  %1442 = vmatpush1.bf16.msra.mxu0 %v966
  %1443 = vmatprep.subr.bf16.mxu0 0
  %1444 = vmatpush1.bf16.msra.mxu0 0
  %1445 = vmatprep.subr.bf16.mxu0 0
  %1446 = vmatpush1.bf16.msra.mxu0 0
  %1447 = vmatprep.subr.bf16.mxu0 0
  %1448 = vmatpush1.bf16.msra.mxu0 0
  %1449 = vmatprep.subr.bf16.mxu0 0
  %1450 = vmatpush1.bf16.msra.mxu0 0
  %1451 = vmatprep.subr.bf16.mxu0 0
  %1452 = vmatpush1.bf16.msra.mxu0 0
  %1453 = vmatprep.subr.bf16.mxu0 0
  %1454 = vmatpush1.bf16.msra.mxu0 0
  %1455 = vmatprep.subr.bf16.mxu0 0
  %1456 = vmatpush1.bf16.msra.mxu0 0
  %1457 = vmatprep.subr.bf16.mxu0 0
  %1458 = vmatpush1.bf16.msra.mxu0 0
  %1459 = vmatprep.mubr.bf16.mxu0 0
  %1460 = vmatmul.mubr.bf16.gmra.mrb[0].mxu0 %v471
  %v1461 = vpop.f32.mrb[0].mxu0
  %v1462 = vadd.f32 %v1365, %v1461
  %v1463 = vpop.f32.mrb[0].mxu0
  %v1464 = vpop.f32.mrb[0].mxu0
  %v1465 = vadd.f32 %v1368, %v1464
  %v1466 = vpop.f32.mrb[0].mxu0
  %1467 = vmatprep.mubr.bf16.mxu0 0
  %1468 = vmatmul.mubr.bf16.gmra.mrb[0].mxu0 %v480
  %v1469 = vpop.f32.mrb[0].mxu0
  %v1470 = vadd.f32 %v1373, %v1469
  %v1471 = vpop.f32.mrb[0].mxu0
  %v1472 = vpop.f32.mrb[0].mxu0
  %v1473 = vadd.f32 %v1376, %v1472
  %v1474 = vpop.f32.mrb[0].mxu0
  %1475 = vmatprep.mubr.bf16.mxu0 0
  %1476 = vmatmul.mubr.bf16.gmra.mrb[0].mxu0 %v489
  %v1477 = vpop.f32.mrb[0].mxu0
  %v1478 = vadd.f32 %v1381, %v1477
  %v1479 = vpop.f32.mrb[0].mxu0
  %v1480 = vpop.f32.mrb[0].mxu0
  %v1481 = vadd.f32 %v1384, %v1480
  %v1482 = vpop.f32.mrb[0].mxu0
  %1483 = vmatprep.mubr.bf16.mxu0 0
  %1484 = vmatmul.mubr.bf16.gmra.mrb[0].mxu0 %v498
  %v1485 = vpop.f32.mrb[0].mxu0
  %v1486 = vadd.f32 %v1389, %v1485
  %v1487 = vpop.f32.mrb[0].mxu0
  %v1488 = vpop.f32.mrb[0].mxu0
  %v1489 = vadd.f32 %v1392, %v1488
  %v1490 = vpop.f32.mrb[0].mxu0
  %1491 = vmatprep.mubr.bf16.mxu0 0
  %1492 = vmatmul.mubr.bf16.gmra.mrb[0].mxu0 %v507
  %v1493 = vpop.f32.mrb[0].mxu0
  %v1494 = vadd.f32 %v1397, %v1493
  %v1495 = vpop.f32.mrb[0].mxu0
  %v1496 = vpop.f32.mrb[0].mxu0
  %v1497 = vadd.f32 %v1400, %v1496
  %v1498 = vpop.f32.mrb[0].mxu0
  %1499 = vmatprep.mubr.bf16.mxu0 0
  %1500 = vmatmul.mubr.bf16.gmra.mrb[0].mxu0 %v516
  %v1501 = vpop.f32.mrb[0].mxu0
  %v1502 = vadd.f32 %v1405, %v1501
  %v1503 = vpop.f32.mrb[0].mxu0
  %v1504 = vpop.f32.mrb[0].mxu0
  %v1505 = vadd.f32 %v1408, %v1504
  %v1506 = vpop.f32.mrb[0].mxu0
  %1507 = vmatprep.mubr.bf16.mxu0 0
  %1508 = vmatmul.mubr.bf16.gmra.mrb[0].mxu0 %v525
  %v1509 = vpop.f32.mrb[0].mxu0
  %v1510 = vadd.f32 %v1413, %v1509
  %v1511 = vpop.f32.mrb[0].mxu0
  %v1512 = vpop.f32.mrb[0].mxu0
  %v1513 = vadd.f32 %v1416, %v1512
  %v1514 = vpop.f32.mrb[0].mxu0
  %1515 = vmatprep.mubr.bf16.mxu0 0
  %1516 = vmatmul.mubr.bf16.gmra.mrb[0].mxu0 %v534
  %v1517 = vpop.f32.mrb[0].mxu0
  %v1518 = vadd.f32 %v1421, %v1517
  %v1519 = vpop.f32.mrb[0].mxu0
  %v1520 = vpop.f32.mrb[0].mxu0
  %v1521 = vadd.f32 %v1424, %v1520
  %v1522 = vpop.f32.mrb[0].mxu0
  %1523 = vdwg.mxu0
  %1524 = vst [vmem:[%s2] sm:$0xff] %v1462
  %1525 = vst [vmem:[%s2 + $0x8] sm:$0xff] %v1465
  %1526 = vst [vmem:[%s2 + $0x10] sm:$0xff] %v1470
  %1527 = vst [vmem:[%s2 + $0x18] sm:$0xff] %v1473
  %1528 = vst [vmem:[%s2 + $0x20] sm:$0xff] %v1478
  %1529 = vst [vmem:[%s2 + $0x28] sm:$0xff] %v1481
  %1530 = vst [vmem:[%s2 + $0x30] sm:$0xff] %v1486
  %1531 = vst [vmem:[%s2 + $0x38] sm:$0xff] %v1489
  %1532 = vst [vmem:[%s2 + $0x40] sm:$0xff] %v1494
  %1533 = vst [vmem:[%s2 + $0x48] sm:$0xff] %v1497
  %1534 = vst [vmem:[%s2 + $0x50] sm:$0xff] %v1502
  %1535 = vst [vmem:[%s2 + $0x58] sm:$0xff] %v1505
  %1536 = vst [vmem:[%s2 + $0x60] sm:$0xff] %v1510
  %1537 = vst [vmem:[%s2 + $0x68] sm:$0xff] %v1513
  %1538 = vst [vmem:[%s2 + $0x70] sm:$0xff] %v1518
  %1539 = vst [vmem:[%s2 + $0x78] sm:$0xff] %v1521
  %p1540 = scmp.eq.s32.totalorder 0, 0
  // Predicated region
  $region10: #{vanilla_encoder_forward.24} parent=0 // pred_check
    %p1541 = pneg %p1540
  $region11: #{vanilla_encoder_forward.24} parent=0 // pred_check_branch
    %1543 = sbr.rel (%p1541) target = $region13
  $region12: #{vanilla_encoder_forward.24} parent=0 // pred_region
    %1544 = vst [vmem:[%s3] sm:$0x1] 0.0
    %1545 = vst [vmem:[%s4] sm:$0x1] 0.0
  $region13: #{vanilla_encoder_forward.24} parent=0 // pred_fallthru
    _
  %v1546 = vld [vmem:[%s3] sm:$0x1]
  %v1547 = vadd.f32 %v1462, %v1465
  %v1548 = vadd.f32 %v1547, %v1470
  %v1549 = vadd.f32 %v1548, %v1473
  %v1550 = vadd.f32 %v1549, %v1478
  %v1551 = vadd.f32 %v1550, %v1481
  %v1552 = vadd.f32 %v1551, %v1486
  %v1553 = vadd.f32 %v1552, %v1489
  %v1554 = vadd.f32 %v1553, %v1494
  %v1555 = vadd.f32 %v1554, %v1497
  %v1556 = vadd.f32 %v1555, %v1502
  %v1557 = vadd.f32 %v1556, %v1505
  %v1558 = vadd.f32 %v1557, %v1510
  %v1559 = vadd.f32 %v1558, %v1513
  %v1560 = vadd.f32 %v1559, %v1518
  %v1561 = vadd.f32 %v1560, %v1521
  %v1562 = vrot.slane %v1561, 4
  %v1563 = vadd.f32 %v1561, %v1562
  %v1564 = vrot.slane %v1563, 2
  %v1565 = vadd.f32 %v1563, %v1564
  %v1566 = vrot.slane %v1565, 1
  %v1567 = vadd.f32 %v1565, %v1566
  %v1568 = vadd.f32 %v1546, %v1567
  %1569 = vst [vmem:[%s3] sm:$0x1] %v1568
  %v1570 = vld [vmem:[%s4] sm:$0x1]
  %v1571 = vmul.f32 %v1462, %v1462
  %v1572 = vmul.f32 %v1465, %v1465
  %v1573 = vmul.f32 %v1470, %v1470
  %v1574 = vmul.f32 %v1473, %v1473
  %v1575 = vmul.f32 %v1478, %v1478
  %v1576 = vmul.f32 %v1481, %v1481
  %v1577 = vmul.f32 %v1486, %v1486
  %v1578 = vmul.f32 %v1489, %v1489
  %v1579 = vmul.f32 %v1494, %v1494
  %v1580 = vmul.f32 %v1497, %v1497
  %v1581 = vmul.f32 %v1502, %v1502
  %v1582 = vmul.f32 %v1505, %v1505
  %v1583 = vmul.f32 %v1510, %v1510
  %v1584 = vmul.f32 %v1513, %v1513
  %v1585 = vmul.f32 %v1518, %v1518
  %v1586 = vmul.f32 %v1521, %v1521
  %v1587 = vadd.f32 %v1571, %v1572
  %v1588 = vadd.f32 %v1587, %v1573
  %v1589 = vadd.f32 %v1588, %v1574
  %v1590 = vadd.f32 %v1589, %v1575
  %v1591 = vadd.f32 %v1590, %v1576
  %v1592 = vadd.f32 %v1591, %v1577
  %v1593 = vadd.f32 %v1592, %v1578
  %v1594 = vadd.f32 %v1593, %v1579
  %v1595 = vadd.f32 %v1594, %v1580
  %v1596 = vadd.f32 %v1595, %v1581
  %v1597 = vadd.f32 %v1596, %v1582
  %v1598 = vadd.f32 %v1597, %v1583
  %v1599 = vadd.f32 %v1598, %v1584
  %v1600 = vadd.f32 %v1599, %v1585
  %v1601 = vadd.f32 %v1600, %v1586
  %v1602 = vrot.slane %v1601, 4
  %v1603 = vadd.f32 %v1601, %v1602
  %v1604 = vrot.slane %v1603, 2
  %v1605 = vadd.f32 %v1603, %v1604
  %v1606 = vrot.slane %v1605, 1
  %v1607 = vadd.f32 %v1605, %v1606
  %v1608 = vadd.f32 %v1570, %v1607
  %1609 = vst [vmem:[%s4] sm:$0x1] %v1608
  // Predicated region
  $region14: #{vanilla_encoder_forward.24} parent=0 // pred_check
    _
  $region15: #{vanilla_encoder_forward.24} parent=0 // pred_check_branch
    %1611 = sbr.rel (0) target = $region17
  $region16: #{vanilla_encoder_forward.24} parent=0 // pred_region
    _
  $region17: #{vanilla_encoder_forward.24} parent=0 // pred_fallthru
    _
  // Predicated region
  $region18: #{vanilla_encoder_forward.24} parent=0 // pred_check
    _
  $region19: #{vanilla_encoder_forward.24} parent=0 // pred_check_branch
    %1613 = sbr.rel (0) target = $region21
  $region20: #{vanilla_encoder_forward.24} parent=0 // pred_region
    _
  $region21: #{vanilla_encoder_forward.24} parent=0 // pred_fallthru
    _
  // Predicated region
  $region22: #{vanilla_encoder_forward.24} parent=0 // pred_check
    _
  $region23: #{vanilla_encoder_forward.24} parent=0 // pred_check_branch
    %1615 = sbr.rel (0) target = $region25
  $region24: #{vanilla_encoder_forward.24} parent=0 // pred_region
    _
  $region25: #{vanilla_encoder_forward.24} parent=0 // pred_fallthru
    _
  // Predicated region
  $region26: #{vanilla_encoder_forward.24} parent=0 // pred_check
    _
  $region27: #{vanilla_encoder_forward.24} parent=0 // pred_check_branch
    %1617 = sbr.rel (0) target = $region29
  $region28: #{vanilla_encoder_forward.24} parent=0 // pred_region
    _
  $region29: #{vanilla_encoder_forward.24} parent=0 // pred_fallthru
    _
  // Predicated region
  $region30: #{vanilla_encoder_forward.24} parent=0 // pred_check
    _
  $region31: #{vanilla_encoder_forward.24} parent=0 // pred_check_branch
    %1619 = sbr.rel (0) target = $region33
  $region32: #{vanilla_encoder_forward.24} parent=0 // pred_region
    _
  $region33: #{vanilla_encoder_forward.24} parent=0 // pred_fallthru
    _
  // Predicated region
  $region34: #{vanilla_encoder_forward.24} parent=0 // pred_check
    _
  $region35: #{vanilla_encoder_forward.24} parent=0 // pred_check_branch
    %1621 = sbr.rel (0) target = $region37
  $region36: #{vanilla_encoder_forward.24} parent=0 // pred_region
    _
  $region37: #{vanilla_encoder_forward.24} parent=0 // pred_fallthru
    _

// kernel: vanilla_encoder_forward.28
$region0: #{vanilla_encoder_forward.28}
  #allocation0 [shape = 'u32[]', space=smem, size = 0x4, offset = 0x4, fixed_abs, tag = 'smem constant byte address 0x4 - core index']
  #allocation1 [shape = 'u32[144,128]{1,0:T(1,128)}', space=vmem, size = 0x12000, scoped, tag = 'internal scratch']
  %s0 = inlined_call_operand.vmem [shape: f32[128,128], index: 0, kind: input, shape index: {}]
  %s1 = inlined_call_operand.vmem [shape: f32[1,128], index: 1, kind: input, shape index: {}]
  %s2 = inlined_call_operand.vmem [shape: f32[1,128], index: 2, kind: input, shape index: {}]
  %s3 = inlined_call_operand.vmem [shape: f32[1,128], index: 3, kind: input, shape index: {}]
  %s4 = inlined_call_operand.vmem [shape: f32[1,128], index: 4, kind: input, shape index: {}]
  %s5 = inlined_call_operand.vmem [shape: f32[128,128], index: 5, kind: input, shape index: {}]
  %s6 = inlined_call_operand.vmem [shape: f32[128,128], index: 6, kind: output, shape index: {}]
  %s7 = sld [smem:[#allocation0]]
  $region34: #{vanilla_encoder_forward.28} parent=0
    _
  %s9 = ssub.s32 1, %s7
  %s10 = scalar_select 0, %s9, %s7
  // Predicated region
  $region2: #{vanilla_encoder_forward.28} parent=0 // pred_check
    _
  $region3: #{vanilla_encoder_forward.28} parent=0 // pred_check_branch
    %12 = sbr.rel (0) target = $region5
  $region4: #{vanilla_encoder_forward.28} parent=0 // pred_region
    _
  $region5: #{vanilla_encoder_forward.28} parent=0 // pred_fallthru
    _
  // Predicated region
  $region6: #{vanilla_encoder_forward.28} parent=0 // pred_check
    _
  $region7: #{vanilla_encoder_forward.28} parent=0 // pred_check_branch
    %14 = sbr.rel (0) target = $region9
  $region8: #{vanilla_encoder_forward.28} parent=0 // pred_region
    _
  $region9: #{vanilla_encoder_forward.28} parent=0 // pred_fallthru
    _
  // Predicated region
  $region10: #{vanilla_encoder_forward.28} parent=0 // pred_check
    _
  $region11: #{vanilla_encoder_forward.28} parent=0 // pred_check_branch
    %16 = sbr.rel (0) target = $region13
  $region12: #{vanilla_encoder_forward.28} parent=0 // pred_region
    _
  $region13: #{vanilla_encoder_forward.28} parent=0 // pred_fallthru
    _
  // Predicated region
  $region14: #{vanilla_encoder_forward.28} parent=0 // pred_check
    _
  $region15: #{vanilla_encoder_forward.28} parent=0 // pred_check_branch
    %18 = sbr.rel (0) target = $region17
  $region16: #{vanilla_encoder_forward.28} parent=0 // pred_region
    _
  $region17: #{vanilla_encoder_forward.28} parent=0 // pred_fallthru
    _
  // Predicated region
  $region18: #{vanilla_encoder_forward.28} parent=0 // pred_check
    _
  $region19: #{vanilla_encoder_forward.28} parent=0 // pred_check_branch
    %20 = sbr.rel (0) target = $region21
  $region20: #{vanilla_encoder_forward.28} parent=0 // pred_region
    _
  $region21: #{vanilla_encoder_forward.28} parent=0 // pred_fallthru
    _
  // Predicated region
  $region22: #{vanilla_encoder_forward.28} parent=0 // pred_check
    _
  $region23: #{vanilla_encoder_forward.28} parent=0 // pred_check_branch
    %22 = sbr.rel (0) target = $region25
  $region24: #{vanilla_encoder_forward.28} parent=0 // pred_region
    _
  $region25: #{vanilla_encoder_forward.28} parent=0 // pred_fallthru
    _
  %v23 = vld [vmem:[%s1] sm:$0x1]
  %v24 = vmul.f32 %v23, 0.0078125
  %v25 = vld [vmem:[%s2] sm:$0x1]
  %v26 = vmul.f32 %v25, 0.0078125
  %v27 = vmul.f32 %v24, %v24
  %v28 = vsub.f32 %v26, %v27
  %v29 = vmax.f32 %v28, 0.0
  %v30 = vld [vmem:[%s3] sm:$0x1]
  %v31 = vadd.f32 %v29, 1e-05
  %v32 = vrsqrt.pop %v31
  %v33 = vmul.f32 %v30, %v32
  %v34 = vld [vmem:[%s4] sm:$0x1]
  %v35 = vmul.f32 %v24, %v33
  %v36 = vsub.f32 %v34, %v35
  %v37 = vld [vmem:[%s0] sm:$0xff]
  %v38 = vld [vmem:[%s0 + $0x8] sm:$0xff]
  %v39 = vld [vmem:[%s0 + $0x10] sm:$0xff]
  %v40 = vld [vmem:[%s0 + $0x18] sm:$0xff]
  %v41 = vld [vmem:[%s0 + $0x20] sm:$0xff]
  %v42 = vld [vmem:[%s0 + $0x28] sm:$0xff]
  %v43 = vld [vmem:[%s0 + $0x30] sm:$0xff]
  %v44 = vld [vmem:[%s0 + $0x38] sm:$0xff]
  %v45 = vld [vmem:[%s0 + $0x40] sm:$0xff]
  %v46 = vld [vmem:[%s0 + $0x48] sm:$0xff]
  %v47 = vld [vmem:[%s0 + $0x50] sm:$0xff]
  %v48 = vld [vmem:[%s0 + $0x58] sm:$0xff]
  %v49 = vld [vmem:[%s0 + $0x60] sm:$0xff]
  %v50 = vld [vmem:[%s0 + $0x68] sm:$0xff]
  %v51 = vld [vmem:[%s0 + $0x70] sm:$0xff]
  %v52 = vld [vmem:[%s0 + $0x78] sm:$0xff]
  %v54 = vlaneseq
  %v55 = vshrl.u32 %v54, 7
  %v56 = vsub.s32 0, %v55
  %v57 = vrot.slane %v33, %v56
  %v59 = vmul.f32 %v37, %v57
  %v60 = vmul.f32 %v38, %v57
  %v61 = vmul.f32 %v39, %v57
  %v62 = vmul.f32 %v40, %v57
  %v63 = vmul.f32 %v41, %v57
  %v64 = vmul.f32 %v42, %v57
  %v65 = vmul.f32 %v43, %v57
  %v66 = vmul.f32 %v44, %v57
  %v67 = vmul.f32 %v45, %v57
  %v68 = vmul.f32 %v46, %v57
  %v69 = vmul.f32 %v47, %v57
  %v70 = vmul.f32 %v48, %v57
  %v71 = vmul.f32 %v49, %v57
  %v72 = vmul.f32 %v50, %v57
  %v73 = vmul.f32 %v51, %v57
  %v74 = vmul.f32 %v52, %v57
  %v76 = vlaneseq
  %v77 = vshrl.u32 %v76, 7
  %v78 = vsub.s32 0, %v77
  %v79 = vrot.slane %v36, %v78
  %v81 = vadd.f32 %v59, %v79
  %v82 = vadd.f32 %v60, %v79
  %v83 = vadd.f32 %v61, %v79
  %v84 = vadd.f32 %v62, %v79
  %v85 = vadd.f32 %v63, %v79
  %v86 = vadd.f32 %v64, %v79
  %v87 = vadd.f32 %v65, %v79
  %v88 = vadd.f32 %v66, %v79
  %v89 = vadd.f32 %v67, %v79
  %v90 = vadd.f32 %v68, %v79
  %v91 = vadd.f32 %v69, %v79
  %v92 = vadd.f32 %v70, %v79
  %v93 = vadd.f32 %v71, %v79
  %v94 = vadd.f32 %v72, %v79
  %v95 = vadd.f32 %v73, %v79
  %v96 = vadd.f32 %v74, %v79
  %v97 = vld [vmem:[%s5] sm:$0xff]
  %v98 = vld [vmem:[%s5 + $0x8] sm:$0xff]
  %v99 = vld [vmem:[%s5 + $0x10] sm:$0xff]
  %v100 = vld [vmem:[%s5 + $0x18] sm:$0xff]
  %v101 = vld [vmem:[%s5 + $0x20] sm:$0xff]
  %v102 = vld [vmem:[%s5 + $0x28] sm:$0xff]
  %v103 = vld [vmem:[%s5 + $0x30] sm:$0xff]
  %v104 = vld [vmem:[%s5 + $0x38] sm:$0xff]
  %v105 = vld [vmem:[%s5 + $0x40] sm:$0xff]
  %v106 = vld [vmem:[%s5 + $0x48] sm:$0xff]
  %v107 = vld [vmem:[%s5 + $0x50] sm:$0xff]
  %v108 = vld [vmem:[%s5 + $0x58] sm:$0xff]
  %v109 = vld [vmem:[%s5 + $0x60] sm:$0xff]
  %v110 = vld [vmem:[%s5 + $0x68] sm:$0xff]
  %v111 = vld [vmem:[%s5 + $0x70] sm:$0xff]
  %v112 = vld [vmem:[%s5 + $0x78] sm:$0xff]
  %v113 = vadd.f32 %v81, %v97
  %v114 = vadd.f32 %v82, %v98
  %v115 = vadd.f32 %v83, %v99
  %v116 = vadd.f32 %v84, %v100
  %v117 = vadd.f32 %v85, %v101
  %v118 = vadd.f32 %v86, %v102
  %v119 = vadd.f32 %v87, %v103
  %v120 = vadd.f32 %v88, %v104
  %v121 = vadd.f32 %v89, %v105
  %v122 = vadd.f32 %v90, %v106
  %v123 = vadd.f32 %v91, %v107
  %v124 = vadd.f32 %v92, %v108
  %v125 = vadd.f32 %v93, %v109
  %v126 = vadd.f32 %v94, %v110
  %v127 = vadd.f32 %v95, %v111
  %v128 = vadd.f32 %v96, %v112
  %v129 = vmul.f32 %v113, 0.5
  %v130 = vmul.f32 %v114, 0.5
  %v131 = vmul.f32 %v115, 0.5
  %v132 = vmul.f32 %v116, 0.5
  %v133 = vmul.f32 %v117, 0.5
  %v134 = vmul.f32 %v118, 0.5
  %v135 = vmul.f32 %v119, 0.5
  %v136 = vmul.f32 %v120, 0.5
  %v137 = vmul.f32 %v121, 0.5
  %v138 = vmul.f32 %v122, 0.5
  %v139 = vmul.f32 %v123, 0.5
  %v140 = vmul.f32 %v124, 0.5
  %v141 = vmul.f32 %v125, 0.5
  %v142 = vmul.f32 %v126, 0.5
  %v143 = vmul.f32 %v127, 0.5
  %v144 = vmul.f32 %v128, 0.5
  %v145 = vmul.f32 %v113, 0.70710677
  %v146 = vmul.f32 %v114, 0.70710677
  %v147 = vmul.f32 %v115, 0.70710677
  %v148 = vmul.f32 %v116, 0.70710677
  %v149 = vmul.f32 %v117, 0.70710677
  %v150 = vmul.f32 %v118, 0.70710677
  %v151 = vmul.f32 %v119, 0.70710677
  %v152 = vmul.f32 %v120, 0.70710677
  %v153 = vmul.f32 %v121, 0.70710677
  %v154 = vmul.f32 %v122, 0.70710677
  %v155 = vmul.f32 %v123, 0.70710677
  %v156 = vmul.f32 %v124, 0.70710677
  %v157 = vmul.f32 %v125, 0.70710677
  %v158 = vmul.f32 %v126, 0.70710677
  %v159 = vmul.f32 %v127, 0.70710677
  %v160 = vmul.f32 %v128, 0.70710677
  %v161 = verf.f32.pop %v145
  %v162 = verf.f32.pop %v146
  %v163 = verf.f32.pop %v147
  %v164 = verf.f32.pop %v148
  %v165 = verf.f32.pop %v149
  %v166 = verf.f32.pop %v150
  %v167 = verf.f32.pop %v151
  %v168 = verf.f32.pop %v152
  %v169 = verf.f32.pop %v153
  %v170 = verf.f32.pop %v154
  %v171 = verf.f32.pop %v155
  %v172 = verf.f32.pop %v156
  %v173 = verf.f32.pop %v157
  %v174 = verf.f32.pop %v158
  %v175 = verf.f32.pop %v159
  %v176 = verf.f32.pop %v160
  %v177 = vadd.f32 %v161, 1.0
  %v178 = vadd.f32 %v162, 1.0
  %v179 = vadd.f32 %v163, 1.0
  %v180 = vadd.f32 %v164, 1.0
  %v181 = vadd.f32 %v165, 1.0
  %v182 = vadd.f32 %v166, 1.0
  %v183 = vadd.f32 %v167, 1.0
  %v184 = vadd.f32 %v168, 1.0
  %v185 = vadd.f32 %v169, 1.0
  %v186 = vadd.f32 %v170, 1.0
  %v187 = vadd.f32 %v171, 1.0
  %v188 = vadd.f32 %v172, 1.0
  %v189 = vadd.f32 %v173, 1.0
  %v190 = vadd.f32 %v174, 1.0
  %v191 = vadd.f32 %v175, 1.0
  %v192 = vadd.f32 %v176, 1.0
  %v193 = vmul.f32 %v129, %v177
  %v194 = vmul.f32 %v130, %v178
  %v195 = vmul.f32 %v131, %v179
  %v196 = vmul.f32 %v132, %v180
  %v197 = vmul.f32 %v133, %v181
  %v198 = vmul.f32 %v134, %v182
  %v199 = vmul.f32 %v135, %v183
  %v200 = vmul.f32 %v136, %v184
  %v201 = vmul.f32 %v137, %v185
  %v202 = vmul.f32 %v138, %v186
  %v203 = vmul.f32 %v139, %v187
  %v204 = vmul.f32 %v140, %v188
  %v205 = vmul.f32 %v141, %v189
  %v206 = vmul.f32 %v142, %v190
  %v207 = vmul.f32 %v143, %v191
  %v208 = vmul.f32 %v144, %v192
  %209 = vst [vmem:[%s6] sm:$0xff] %v193
  %210 = vst [vmem:[%s6 + $0x8] sm:$0xff] %v194
  %211 = vst [vmem:[%s6 + $0x10] sm:$0xff] %v195
  %212 = vst [vmem:[%s6 + $0x18] sm:$0xff] %v196
  %213 = vst [vmem:[%s6 + $0x20] sm:$0xff] %v197
  %214 = vst [vmem:[%s6 + $0x28] sm:$0xff] %v198
  %215 = vst [vmem:[%s6 + $0x30] sm:$0xff] %v199
  %216 = vst [vmem:[%s6 + $0x38] sm:$0xff] %v200
  %217 = vst [vmem:[%s6 + $0x40] sm:$0xff] %v201
  %218 = vst [vmem:[%s6 + $0x48] sm:$0xff] %v202
  %219 = vst [vmem:[%s6 + $0x50] sm:$0xff] %v203
  %220 = vst [vmem:[%s6 + $0x58] sm:$0xff] %v204
  %221 = vst [vmem:[%s6 + $0x60] sm:$0xff] %v205
  %222 = vst [vmem:[%s6 + $0x68] sm:$0xff] %v206
  %223 = vst [vmem:[%s6 + $0x70] sm:$0xff] %v207
  %224 = vst [vmem:[%s6 + $0x78] sm:$0xff] %v208
  // Predicated region
  $region26: #{vanilla_encoder_forward.28} parent=0 // pred_check
    _
  $region27: #{vanilla_encoder_forward.28} parent=0 // pred_check_branch
    %226 = sbr.rel (0) target = $region29
  $region28: #{vanilla_encoder_forward.28} parent=0 // pred_region
    _
  $region29: #{vanilla_encoder_forward.28} parent=0 // pred_fallthru
    _
  // Predicated region
  $region30: #{vanilla_encoder_forward.28} parent=0 // pred_check
    _
  $region31: #{vanilla_encoder_forward.28} parent=0 // pred_check_branch
    %228 = sbr.rel (0) target = $region33
  $region32: #{vanilla_encoder_forward.28} parent=0 // pred_region
    _
  $region33: #{vanilla_encoder_forward.28} parent=0 // pred_fallthru
    _

// kernel: vanilla_encoder_forward.26
$region0: #{vanilla_encoder_forward.26}
  #allocation0 [shape = 'u32[]', space=smem, size = 0x4, offset = 0x4, fixed_abs, tag = 'smem constant byte address 0x4 - core index']
  #allocation1 [shape = 'u32[144,128]{1,0:T(1,128)}', space=vmem, size = 0x12000, scoped, tag = 'internal scratch']
  %s0 = inlined_call_operand.vmem [shape: bf16[128,128], index: 0, kind: input, shape index: {}]
  %s1 = inlined_call_operand.vmem [shape: bf16[128,128], index: 1, kind: input, shape index: {}]
  %s2 = inlined_call_operand.vmem [shape: f32[1,128], index: 2, kind: input, shape index: {}]
  %s3 = inlined_call_operand.vmem [shape: f32[128,128], index: 3, kind: output, shape index: {}]
  %s4 = sld [smem:[#allocation0]]
  $region22: #{vanilla_encoder_forward.26} parent=0
    _
  %s6 = ssub.s32 1, %s4
  %s7 = scalar_select 0, %s6, %s4
  // Predicated region
  $region2: #{vanilla_encoder_forward.26} parent=0 // pred_check
    _
  $region3: #{vanilla_encoder_forward.26} parent=0 // pred_check_branch
    %9 = sbr.rel (0) target = $region5
  $region4: #{vanilla_encoder_forward.26} parent=0 // pred_region
    _
  $region5: #{vanilla_encoder_forward.26} parent=0 // pred_fallthru
    _
  // Predicated region
  $region6: #{vanilla_encoder_forward.26} parent=0 // pred_check
    _
  $region7: #{vanilla_encoder_forward.26} parent=0 // pred_check_branch
    %11 = sbr.rel (0) target = $region9
  $region8: #{vanilla_encoder_forward.26} parent=0 // pred_region
    _
  $region9: #{vanilla_encoder_forward.26} parent=0 // pred_fallthru
    _
  // Predicated region
  $region10: #{vanilla_encoder_forward.26} parent=0 // pred_check
    _
  $region11: #{vanilla_encoder_forward.26} parent=0 // pred_check_branch
    %13 = sbr.rel (0) target = $region13
  $region12: #{vanilla_encoder_forward.26} parent=0 // pred_region
    _
  $region13: #{vanilla_encoder_forward.26} parent=0 // pred_fallthru
    _
  %v15 = vld [vmem:[%s0] sm:$0xf]
  %v16 = vld [vmem:[%s0 + $0x4] sm:$0xf]
  %v17 = vld [vmem:[%s0 + $0x8] sm:$0xf]
  %v18 = vld [vmem:[%s0 + $0xc] sm:$0xf]
  %v19 = vld [vmem:[%s0 + $0x10] sm:$0xf]
  %v20 = vld [vmem:[%s0 + $0x14] sm:$0xf]
  %v21 = vld [vmem:[%s0 + $0x18] sm:$0xf]
  %v22 = vld [vmem:[%s0 + $0x1c] sm:$0xf]
  %v23 = vld [vmem:[%s0 + $0x20] sm:$0xf]
  %v24 = vld [vmem:[%s0 + $0x24] sm:$0xf]
  %v25 = vld [vmem:[%s0 + $0x28] sm:$0xf]
  %v26 = vld [vmem:[%s0 + $0x2c] sm:$0xf]
  %v27 = vld [vmem:[%s0 + $0x30] sm:$0xf]
  %v28 = vld [vmem:[%s0 + $0x34] sm:$0xf]
  %v29 = vld [vmem:[%s0 + $0x38] sm:$0xf]
  %v30 = vld [vmem:[%s0 + $0x3c] sm:$0xf]
  %v31 = vld [vmem:[%s1] sm:$0xf]
  %v32 = vld [vmem:[%s1 + $0x4] sm:$0xf]
  %v33 = vld [vmem:[%s1 + $0x8] sm:$0xf]
  %v34 = vld [vmem:[%s1 + $0xc] sm:$0xf]
  %v35 = vld [vmem:[%s1 + $0x10] sm:$0xf]
  %v36 = vld [vmem:[%s1 + $0x14] sm:$0xf]
  %v37 = vld [vmem:[%s1 + $0x18] sm:$0xf]
  %v38 = vld [vmem:[%s1 + $0x1c] sm:$0xf]
  %v39 = vld [vmem:[%s1 + $0x20] sm:$0xf]
  %v40 = vld [vmem:[%s1 + $0x24] sm:$0xf]
  %v41 = vld [vmem:[%s1 + $0x28] sm:$0xf]
  %v42 = vld [vmem:[%s1 + $0x2c] sm:$0xf]
  %v43 = vld [vmem:[%s1 + $0x30] sm:$0xf]
  %v44 = vld [vmem:[%s1 + $0x34] sm:$0xf]
  %v45 = vld [vmem:[%s1 + $0x38] sm:$0xf]
  %v46 = vld [vmem:[%s1 + $0x3c] sm:$0xf]
  %v47 = vld [vmem:[%s2] sm:$0x1]
  %v49 = vlaneseq
  %v50 = vshrl.u32 %v49, 7
  %v51 = vsub.s32 0, %v50
  %v52 = vrot.slane %v47, %v51
  %v70 = vunpack.c.l.b16 %v15
  %v71 = vunpack.c.l.b16 %v16
  %v72 = vunpack.c.l.b16 %v17
  %v73 = vunpack.c.l.b16 %v18
  %v74 = vunpack.c.l.b16 %v19
  %v75 = vunpack.c.l.b16 %v20
  %v76 = vunpack.c.l.b16 %v21
  %v77 = vunpack.c.l.b16 %v22
  %v78 = vunpack.c.l.b16 %v23
  %v79 = vunpack.c.l.b16 %v24
  %v80 = vunpack.c.l.b16 %v25
  %v81 = vunpack.c.l.b16 %v26
  %v82 = vunpack.c.l.b16 %v27
  %v83 = vunpack.c.l.b16 %v28
  %v84 = vunpack.c.l.b16 %v29
  %v85 = vunpack.c.l.b16 %v30
  %v86 = vpack.c.b16 %v71, %v70
  %v87 = vpack.c.b16 %v73, %v72
  %v88 = vpack.c.b16 %v75, %v74
  %v89 = vpack.c.b16 %v77, %v76
  %v90 = vpack.c.b16 %v79, %v78
  %v91 = vpack.c.b16 %v81, %v80
  %v92 = vpack.c.b16 %v83, %v82
  %v93 = vpack.c.b16 %v85, %v84
  %v118 = vunpack.c.l.b16 %v31
  %v119 = vunpack.c.l.b16 %v32
  %v120 = vunpack.c.l.b16 %v33
  %v121 = vunpack.c.l.b16 %v34
  %v122 = vunpack.c.l.b16 %v35
  %v123 = vunpack.c.l.b16 %v36
  %v124 = vunpack.c.l.b16 %v37
  %v125 = vunpack.c.l.b16 %v38
  %v126 = vunpack.c.l.b16 %v39
  %v127 = vunpack.c.l.b16 %v40
  %v128 = vunpack.c.l.b16 %v41
  %v129 = vunpack.c.l.b16 %v42
  %v130 = vunpack.c.l.b16 %v43
  %v131 = vunpack.c.l.b16 %v44
  %v132 = vunpack.c.l.b16 %v45
  %v133 = vunpack.c.l.b16 %v46
  %v134 = vpack.c.b16 %v119, %v118
  %v135 = vpack.c.b16 %v121, %v120
  %v136 = vpack.c.b16 %v123, %v122
  %v137 = vpack.c.b16 %v125, %v124
  %v138 = vpack.c.b16 %v127, %v126
  %v139 = vpack.c.b16 %v129, %v128
  %v140 = vpack.c.b16 %v131, %v130
  %v141 = vpack.c.b16 %v133, %v132
  %150 = vmatprep.subr.bf16.mxu0 0
  %151 = vmatpush1.bf16.msra.mxu0 %v134
  %152 = vmatprep.subr.bf16.mxu0 0
  %153 = vmatpush1.bf16.msra.mxu0 %v135
  %154 = vmatprep.subr.bf16.mxu0 0
  %155 = vmatpush1.bf16.msra.mxu0 %v136
  %156 = vmatprep.subr.bf16.mxu0 0
  %157 = vmatpush1.bf16.msra.mxu0 %v137
  %158 = vmatprep.subr.bf16.mxu0 0
  %159 = vmatpush1.bf16.msra.mxu0 %v138
  %160 = vmatprep.subr.bf16.mxu0 0
  %161 = vmatpush1.bf16.msra.mxu0 %v139
  %162 = vmatprep.subr.bf16.mxu0 0
  %163 = vmatpush1.bf16.msra.mxu0 %v140
  %164 = vmatprep.subr.bf16.mxu0 0
  %165 = vmatpush1.bf16.msra.mxu0 %v141
  %166 = vmatprep.subr.bf16.mxu0 0
  %167 = vmatpush1.bf16.msra.mxu0 0
  %168 = vmatprep.subr.bf16.mxu0 0
  %169 = vmatpush1.bf16.msra.mxu0 0
  %170 = vmatprep.subr.bf16.mxu0 0
  %171 = vmatpush1.bf16.msra.mxu0 0
  %172 = vmatprep.subr.bf16.mxu0 0
  %173 = vmatpush1.bf16.msra.mxu0 0
  %174 = vmatprep.subr.bf16.mxu0 0
  %175 = vmatpush1.bf16.msra.mxu0 0
  %176 = vmatprep.subr.bf16.mxu0 0
  %177 = vmatpush1.bf16.msra.mxu0 0
  %178 = vmatprep.subr.bf16.mxu0 0
  %179 = vmatpush1.bf16.msra.mxu0 0
  %180 = vmatprep.subr.bf16.mxu0 0
  %181 = vmatpush1.bf16.msra.mxu0 0
  %182 = vmatprep.mubr.bf16.mxu0 0
  %183 = vmatmul.mubr.bf16.gmra.mrb[0].mxu0 %v86
  %v184 = vpop.f32.mrb[0].mxu0
  %v185 = vadd.f32 %v52, %v184
  %v186 = vpop.f32.mrb[0].mxu0
  %v187 = vpop.f32.mrb[0].mxu0
  %v188 = vadd.f32 %v52, %v187
  %v189 = vpop.f32.mrb[0].mxu0
  %190 = vmatprep.mubr.bf16.mxu0 0
  %191 = vmatmul.mubr.bf16.gmra.mrb[0].mxu0 %v87
  %v192 = vpop.f32.mrb[0].mxu0
  %v193 = vadd.f32 %v52, %v192
  %v194 = vpop.f32.mrb[0].mxu0
  %v195 = vpop.f32.mrb[0].mxu0
  %v196 = vadd.f32 %v52, %v195
  %v197 = vpop.f32.mrb[0].mxu0
  %198 = vmatprep.mubr.bf16.mxu0 0
  %199 = vmatmul.mubr.bf16.gmra.mrb[0].mxu0 %v88
  %v200 = vpop.f32.mrb[0].mxu0
  %v201 = vadd.f32 %v52, %v200
  %v202 = vpop.f32.mrb[0].mxu0
  %v203 = vpop.f32.mrb[0].mxu0
  %v204 = vadd.f32 %v52, %v203
  %v205 = vpop.f32.mrb[0].mxu0
  %206 = vmatprep.mubr.bf16.mxu0 0
  %207 = vmatmul.mubr.bf16.gmra.mrb[0].mxu0 %v89
  %v208 = vpop.f32.mrb[0].mxu0
  %v209 = vadd.f32 %v52, %v208
  %v210 = vpop.f32.mrb[0].mxu0
  %v211 = vpop.f32.mrb[0].mxu0
  %v212 = vadd.f32 %v52, %v211
  %v213 = vpop.f32.mrb[0].mxu0
  %214 = vmatprep.mubr.bf16.mxu0 0
  %215 = vmatmul.mubr.bf16.gmra.mrb[0].mxu0 %v90
  %v216 = vpop.f32.mrb[0].mxu0
  %v217 = vadd.f32 %v52, %v216
  %v218 = vpop.f32.mrb[0].mxu0
  %v219 = vpop.f32.mrb[0].mxu0
  %v220 = vadd.f32 %v52, %v219
  %v221 = vpop.f32.mrb[0].mxu0
  %222 = vmatprep.mubr.bf16.mxu0 0
  %223 = vmatmul.mubr.bf16.gmra.mrb[0].mxu0 %v91
  %v224 = vpop.f32.mrb[0].mxu0
  %v225 = vadd.f32 %v52, %v224
  %v226 = vpop.f32.mrb[0].mxu0
  %v227 = vpop.f32.mrb[0].mxu0
  %v228 = vadd.f32 %v52, %v227
  %v229 = vpop.f32.mrb[0].mxu0
  %230 = vmatprep.mubr.bf16.mxu0 0
  %231 = vmatmul.mubr.bf16.gmra.mrb[0].mxu0 %v92
  %v232 = vpop.f32.mrb[0].mxu0
  %v233 = vadd.f32 %v52, %v232
  %v234 = vpop.f32.mrb[0].mxu0
  %v235 = vpop.f32.mrb[0].mxu0
  %v236 = vadd.f32 %v52, %v235
  %v237 = vpop.f32.mrb[0].mxu0
  %238 = vmatprep.mubr.bf16.mxu0 0
  %239 = vmatmul.mubr.bf16.gmra.mrb[0].mxu0 %v93
  %v240 = vpop.f32.mrb[0].mxu0
  %v241 = vadd.f32 %v52, %v240
  %v242 = vpop.f32.mrb[0].mxu0
  %v243 = vpop.f32.mrb[0].mxu0
  %v244 = vadd.f32 %v52, %v243
  %v245 = vpop.f32.mrb[0].mxu0
  %246 = vdwg.mxu0
  %247 = vst [vmem:[%s3] sm:$0xff] %v185
  %248 = vst [vmem:[%s3 + $0x8] sm:$0xff] %v188
  %249 = vst [vmem:[%s3 + $0x10] sm:$0xff] %v193
  %250 = vst [vmem:[%s3 + $0x18] sm:$0xff] %v196
  %251 = vst [vmem:[%s3 + $0x20] sm:$0xff] %v201
  %252 = vst [vmem:[%s3 + $0x28] sm:$0xff] %v204
  %253 = vst [vmem:[%s3 + $0x30] sm:$0xff] %v209
  %254 = vst [vmem:[%s3 + $0x38] sm:$0xff] %v212
  %255 = vst [vmem:[%s3 + $0x40] sm:$0xff] %v217
  %256 = vst [vmem:[%s3 + $0x48] sm:$0xff] %v220
  %257 = vst [vmem:[%s3 + $0x50] sm:$0xff] %v225
  %258 = vst [vmem:[%s3 + $0x58] sm:$0xff] %v228
  %259 = vst [vmem:[%s3 + $0x60] sm:$0xff] %v233
  %260 = vst [vmem:[%s3 + $0x68] sm:$0xff] %v236
  %261 = vst [vmem:[%s3 + $0x70] sm:$0xff] %v241
  %262 = vst [vmem:[%s3 + $0x78] sm:$0xff] %v244
  // Predicated region
  $region14: #{vanilla_encoder_forward.26} parent=0 // pred_check
    _
  $region15: #{vanilla_encoder_forward.26} parent=0 // pred_check_branch
    %264 = sbr.rel (0) target = $region17
  $region16: #{vanilla_encoder_forward.26} parent=0 // pred_region
    _
  $region17: #{vanilla_encoder_forward.26} parent=0 // pred_fallthru
    _
  // Predicated region
  $region18: #{vanilla_encoder_forward.26} parent=0 // pred_check
    _
  $region19: #{vanilla_encoder_forward.26} parent=0 // pred_check_branch
    %266 = sbr.rel (0) target = $region21
  $region20: #{vanilla_encoder_forward.26} parent=0 // pred_region
    _
  $region21: #{vanilla_encoder_forward.26} parent=0 // pred_fallthru
    _

// kernel: vanilla_encoder_forward.30
$region0: #{vanilla_encoder_forward.30}
  #allocation0 [shape = 'u32[]', space=smem, size = 0x4, offset = 0x4, fixed_abs, tag = 'smem constant byte address 0x4 - core index']
  #allocation1 [shape = 'u32[144,128]{1,0:T(1,128)}', space=vmem, size = 0x12000, scoped, tag = 'internal scratch']
  %s0 = inlined_call_operand.vmem [shape: f32[32,128], index: 0, kind: input, shape index: {}]
  %s1 = inlined_call_operand.vmem [shape: f32[1,128], index: 1, kind: input, shape index: {}]
  %s2 = inlined_call_operand.vmem [shape: f32[1,128], index: 2, kind: input, shape index: {}]
  %s3 = inlined_call_operand.vmem [shape: f32[1,128], index: 3, kind: input, shape index: {}]
  %s4 = inlined_call_operand.vmem [shape: f32[1,128], index: 4, kind: input, shape index: {}]
  %s5 = inlined_call_operand.vmem [shape: f32[32,128], index: 5, kind: output, shape index: {}]
  %s6 = sld [smem:[#allocation0]]
  $region30: #{vanilla_encoder_forward.30} parent=0
    _
  %s8 = ssub.s32 1, %s6
  %s9 = scalar_select 0, %s8, %s6
  // Predicated region
  $region2: #{vanilla_encoder_forward.30} parent=0 // pred_check
    _
  $region3: #{vanilla_encoder_forward.30} parent=0 // pred_check_branch
    %11 = sbr.rel (0) target = $region5
  $region4: #{vanilla_encoder_forward.30} parent=0 // pred_region
    _
  $region5: #{vanilla_encoder_forward.30} parent=0 // pred_fallthru
    _
  // Predicated region
  $region6: #{vanilla_encoder_forward.30} parent=0 // pred_check
    _
  $region7: #{vanilla_encoder_forward.30} parent=0 // pred_check_branch
    %13 = sbr.rel (0) target = $region9
  $region8: #{vanilla_encoder_forward.30} parent=0 // pred_region
    _
  $region9: #{vanilla_encoder_forward.30} parent=0 // pred_fallthru
    _
  // Predicated region
  $region10: #{vanilla_encoder_forward.30} parent=0 // pred_check
    _
  $region11: #{vanilla_encoder_forward.30} parent=0 // pred_check_branch
    %15 = sbr.rel (0) target = $region13
  $region12: #{vanilla_encoder_forward.30} parent=0 // pred_region
    _
  $region13: #{vanilla_encoder_forward.30} parent=0 // pred_fallthru
    _
  // Predicated region
  $region14: #{vanilla_encoder_forward.30} parent=0 // pred_check
    _
  $region15: #{vanilla_encoder_forward.30} parent=0 // pred_check_branch
    %17 = sbr.rel (0) target = $region17
  $region16: #{vanilla_encoder_forward.30} parent=0 // pred_region
    _
  $region17: #{vanilla_encoder_forward.30} parent=0 // pred_fallthru
    _
  // Predicated region
  $region18: #{vanilla_encoder_forward.30} parent=0 // pred_check
    _
  $region19: #{vanilla_encoder_forward.30} parent=0 // pred_check_branch
    %19 = sbr.rel (0) target = $region21
  $region20: #{vanilla_encoder_forward.30} parent=0 // pred_region
    _
  $region21: #{vanilla_encoder_forward.30} parent=0 // pred_fallthru
    _
  %v20 = vld [vmem:[%s1] sm:$0x1]
  %v21 = vmul.f32 %v20, 0.03125
  %v22 = vld [vmem:[%s2] sm:$0x1]
  %v23 = vmul.f32 %v22, 0.03125
  %v24 = vmul.f32 %v21, %v21
  %v25 = vsub.f32 %v23, %v24
  %v26 = vmax.f32 %v25, 0.0
  %v27 = vld [vmem:[%s3] sm:$0x1]
  %v28 = vadd.f32 %v26, 1e-05
  %v29 = vrsqrt.pop %v28
  %v30 = vmul.f32 %v27, %v29
  %v31 = vld [vmem:[%s4] sm:$0x1]
  %v32 = vmul.f32 %v21, %v30
  %v33 = vsub.f32 %v31, %v32
  %v34 = vld [vmem:[%s0] sm:$0xff]
  %v35 = vld [vmem:[%s0 + $0x8] sm:$0xff]
  %v36 = vld [vmem:[%s0 + $0x10] sm:$0xff]
  %v37 = vld [vmem:[%s0 + $0x18] sm:$0xff]
  %v39 = vlaneseq
  %v40 = vshrl.u32 %v39, 7
  %v41 = vsub.s32 0, %v40
  %v42 = vrot.slane %v30, %v41
  %v44 = vmul.f32 %v34, %v42
  %v45 = vmul.f32 %v35, %v42
  %v46 = vmul.f32 %v36, %v42
  %v47 = vmul.f32 %v37, %v42
  %v49 = vlaneseq
  %v50 = vshrl.u32 %v49, 7
  %v51 = vsub.s32 0, %v50
  %v52 = vrot.slane %v33, %v51
  %v54 = vadd.f32 %v44, %v52
  %v55 = vadd.f32 %v45, %v52
  %v56 = vadd.f32 %v46, %v52
  %v57 = vadd.f32 %v47, %v52
  %v58 = vmul.f32 %v54, 0.5
  %v59 = vmul.f32 %v55, 0.5
  %v60 = vmul.f32 %v56, 0.5
  %v61 = vmul.f32 %v57, 0.5
  %v62 = vmul.f32 %v54, 0.70710677
  %v63 = vmul.f32 %v55, 0.70710677
  %v64 = vmul.f32 %v56, 0.70710677
  %v65 = vmul.f32 %v57, 0.70710677
  %v66 = verf.f32.pop %v62
  %v67 = verf.f32.pop %v63
  %v68 = verf.f32.pop %v64
  %v69 = verf.f32.pop %v65
  %v70 = vadd.f32 %v66, 1.0
  %v71 = vadd.f32 %v67, 1.0
  %v72 = vadd.f32 %v68, 1.0
  %v73 = vadd.f32 %v69, 1.0
  %v74 = vmul.f32 %v58, %v70
  %v75 = vmul.f32 %v59, %v71
  %v76 = vmul.f32 %v60, %v72
  %v77 = vmul.f32 %v61, %v73
  %78 = vst [vmem:[%s5] sm:$0xff] %v74
  %79 = vst [vmem:[%s5 + $0x8] sm:$0xff] %v75
  %80 = vst [vmem:[%s5 + $0x10] sm:$0xff] %v76
  %81 = vst [vmem:[%s5 + $0x18] sm:$0xff] %v77
  // Predicated region
  $region22: #{vanilla_encoder_forward.30} parent=0 // pred_check
    _
  $region23: #{vanilla_encoder_forward.30} parent=0 // pred_check_branch
    %83 = sbr.rel (0) target = $region25
  $region24: #{vanilla_encoder_forward.30} parent=0 // pred_region
    _
  $region25: #{vanilla_encoder_forward.30} parent=0 // pred_fallthru
    _
  // Predicated region
  $region26: #{vanilla_encoder_forward.30} parent=0 // pred_check
    _
  $region27: #{vanilla_encoder_forward.30} parent=0 // pred_check_branch
    %85 = sbr.rel (0) target = $region29
  $region28: #{vanilla_encoder_forward.30} parent=0 // pred_region
    _
  $region29: #{vanilla_encoder_forward.30} parent=0 // pred_fallthru
    _

// kernel: vanilla_encoder_forward.29
$region0: #{vanilla_encoder_forward.29}
  #allocation0 [shape = 'u32[]', space=smem, size = 0x4, offset = 0x4, fixed_abs, tag = 'smem constant byte address 0x4 - core index']
  #allocation1 [shape = 'u32[144,128]{1,0:T(1,128)}', space=vmem, size = 0x12000, scoped, tag = 'internal scratch']
  %s0 = inlined_call_operand.vmem [shape: bf16[32,1152], index: 0, kind: input, shape index: {}]
  %s1 = inlined_call_operand.vmem [shape: bf16[1152,128], index: 1, kind: input, shape index: {}]
  %s2 = inlined_call_operand.vmem [shape: f32[32,128], index: 2, kind: output, shape index: {0}]
  %s3 = inlined_call_operand.vmem [shape: f32[1,128], index: 3, kind: output, shape index: {1}]
  %s4 = inlined_call_operand.vmem [shape: f32[1,128], index: 4, kind: output, shape index: {2}]
  %5 = xla_tuple %s2, %s3, %s4
  %s6 = sld [smem:[#allocation0]]
  $region38: #{vanilla_encoder_forward.29} parent=0
    _
  %s8 = ssub.s32 1, %s6
  %s9 = scalar_select 0, %s8, %s6
  // Predicated region
  $region2: #{vanilla_encoder_forward.29} parent=0 // pred_check
    _
  $region3: #{vanilla_encoder_forward.29} parent=0 // pred_check_branch
    %11 = sbr.rel (0) target = $region5
  $region4: #{vanilla_encoder_forward.29} parent=0 // pred_region
    _
  $region5: #{vanilla_encoder_forward.29} parent=0 // pred_fallthru
    _
  // Predicated region
  $region6: #{vanilla_encoder_forward.29} parent=0 // pred_check
    _
  $region7: #{vanilla_encoder_forward.29} parent=0 // pred_check_branch
    %13 = sbr.rel (0) target = $region9
  $region8: #{vanilla_encoder_forward.29} parent=0 // pred_region
    _
  $region9: #{vanilla_encoder_forward.29} parent=0 // pred_fallthru
    _
  %v15 = vld [vmem:[%s0] sm:$0xff]
  %v16 = vld [vmem:[%s0 + $0x8] sm:$0xff]
  %v17 = vld [vmem:[%s0 + $0x10] sm:$0xff]
  %v18 = vld [vmem:[%s0 + $0x18] sm:$0xff]
  %v19 = vld [vmem:[%s0 + $0x20] sm:$0xf]
  %v20 = vld [vmem:[%s0 + $0x24] sm:$0xff]
  %v21 = vld [vmem:[%s0 + $0x2c] sm:$0xff]
  %v22 = vld [vmem:[%s0 + $0x34] sm:$0xff]
  %v23 = vld [vmem:[%s0 + $0x3c] sm:$0xff]
  %v24 = vld [vmem:[%s0 + $0x44] sm:$0xf]
  %v25 = vld [vmem:[%s0 + $0x48] sm:$0xff]
  %v26 = vld [vmem:[%s0 + $0x50] sm:$0xff]
  %v27 = vld [vmem:[%s0 + $0x58] sm:$0xff]
  %v28 = vld [vmem:[%s0 + $0x60] sm:$0xff]
  %v29 = vld [vmem:[%s0 + $0x68] sm:$0xf]
  %v30 = vld [vmem:[%s0 + $0x6c] sm:$0xff]
  %v31 = vld [vmem:[%s0 + $0x74] sm:$0xff]
  %v32 = vld [vmem:[%s0 + $0x7c] sm:$0xff]
  %v33 = vld [vmem:[%s0 + $0x84] sm:$0xff]
  %v34 = vld [vmem:[%s0 + $0x8c] sm:$0xf]
  %v35 = vld [vmem:[%s1] sm:$0xf]
  %v36 = vld [vmem:[%s1 + $0x4] sm:$0xf]
  %v37 = vld [vmem:[%s1 + $0x8] sm:$0xf]
  %v38 = vld [vmem:[%s1 + $0xc] sm:$0xf]
  %v39 = vld [vmem:[%s1 + $0x10] sm:$0xf]
  %v40 = vld [vmem:[%s1 + $0x14] sm:$0xf]
  %v41 = vld [vmem:[%s1 + $0x18] sm:$0xf]
  %v42 = vld [vmem:[%s1 + $0x1c] sm:$0xf]
  %v43 = vld [vmem:[%s1 + $0x20] sm:$0xf]
  %v44 = vld [vmem:[%s1 + $0x24] sm:$0xf]
  %v45 = vld [vmem:[%s1 + $0x28] sm:$0xf]
  %v46 = vld [vmem:[%s1 + $0x2c] sm:$0xf]
  %v47 = vld [vmem:[%s1 + $0x30] sm:$0xf]
  %v48 = vld [vmem:[%s1 + $0x34] sm:$0xf]
  %v49 = vld [vmem:[%s1 + $0x38] sm:$0xf]
  %v50 = vld [vmem:[%s1 + $0x3c] sm:$0xf]
  %v51 = vld [vmem:[%s1 + $0x40] sm:$0xf]
  %v52 = vld [vmem:[%s1 + $0x44] sm:$0xf]
  %v53 = vld [vmem:[%s1 + $0x48] sm:$0xf]
  %v54 = vld [vmem:[%s1 + $0x4c] sm:$0xf]
  %v55 = vld [vmem:[%s1 + $0x50] sm:$0xf]
  %v56 = vld [vmem:[%s1 + $0x54] sm:$0xf]
  %v57 = vld [vmem:[%s1 + $0x58] sm:$0xf]
  %v58 = vld [vmem:[%s1 + $0x5c] sm:$0xf]
  %v59 = vld [vmem:[%s1 + $0x60] sm:$0xf]
  %v60 = vld [vmem:[%s1 + $0x64] sm:$0xf]
  %v61 = vld [vmem:[%s1 + $0x68] sm:$0xf]
  %v62 = vld [vmem:[%s1 + $0x6c] sm:$0xf]
  %v63 = vld [vmem:[%s1 + $0x70] sm:$0xf]
  %v64 = vld [vmem:[%s1 + $0x74] sm:$0xf]
  %v65 = vld [vmem:[%s1 + $0x78] sm:$0xf]
  %v66 = vld [vmem:[%s1 + $0x7c] sm:$0xf]
  %v67 = vld [vmem:[%s1 + $0x80] sm:$0xf]
  %v68 = vld [vmem:[%s1 + $0x84] sm:$0xf]
  %v69 = vld [vmem:[%s1 + $0x88] sm:$0xf]
  %v70 = vld [vmem:[%s1 + $0x8c] sm:$0xf]
  %v71 = vld [vmem:[%s1 + $0x90] sm:$0xf]
  %v72 = vld [vmem:[%s1 + $0x94] sm:$0xf]
  %v73 = vld [vmem:[%s1 + $0x98] sm:$0xf]
  %v74 = vld [vmem:[%s1 + $0x9c] sm:$0xf]
  %v75 = vld [vmem:[%s1 + $0xa0] sm:$0xf]
  %v76 = vld [vmem:[%s1 + $0xa4] sm:$0xf]
  %v77 = vld [vmem:[%s1 + $0xa8] sm:$0xf]
  %v78 = vld [vmem:[%s1 + $0xac] sm:$0xf]
  %v79 = vld [vmem:[%s1 + $0xb0] sm:$0xf]
  %v80 = vld [vmem:[%s1 + $0xb4] sm:$0xf]
  %v81 = vld [vmem:[%s1 + $0xb8] sm:$0xf]
  %v82 = vld [vmem:[%s1 + $0xbc] sm:$0xf]
  %v83 = vld [vmem:[%s1 + $0xc0] sm:$0xf]
  %v84 = vld [vmem:[%s1 + $0xc4] sm:$0xf]
  %v85 = vld [vmem:[%s1 + $0xc8] sm:$0xf]
  %v86 = vld [vmem:[%s1 + $0xcc] sm:$0xf]
  %v87 = vld [vmem:[%s1 + $0xd0] sm:$0xf]
  %v88 = vld [vmem:[%s1 + $0xd4] sm:$0xf]
  %v89 = vld [vmem:[%s1 + $0xd8] sm:$0xf]
  %v90 = vld [vmem:[%s1 + $0xdc] sm:$0xf]
  %v91 = vld [vmem:[%s1 + $0xe0] sm:$0xf]
  %v92 = vld [vmem:[%s1 + $0xe4] sm:$0xf]
  %v93 = vld [vmem:[%s1 + $0xe8] sm:$0xf]
  %v94 = vld [vmem:[%s1 + $0xec] sm:$0xf]
  %v95 = vld [vmem:[%s1 + $0xf0] sm:$0xf]
  %v96 = vld [vmem:[%s1 + $0xf4] sm:$0xf]
  %v97 = vld [vmem:[%s1 + $0xf8] sm:$0xf]
  %v98 = vld [vmem:[%s1 + $0xfc] sm:$0xf]
  %v99 = vld [vmem:[%s1 + $0x100] sm:$0xf]
  %v100 = vld [vmem:[%s1 + $0x104] sm:$0xf]
  %v101 = vld [vmem:[%s1 + $0x108] sm:$0xf]
  %v102 = vld [vmem:[%s1 + $0x10c] sm:$0xf]
  %v103 = vld [vmem:[%s1 + $0x110] sm:$0xf]
  %v104 = vld [vmem:[%s1 + $0x114] sm:$0xf]
  %v105 = vld [vmem:[%s1 + $0x118] sm:$0xf]
  %v106 = vld [vmem:[%s1 + $0x11c] sm:$0xf]
  %v107 = vld [vmem:[%s1 + $0x120] sm:$0xf]
  %v108 = vld [vmem:[%s1 + $0x124] sm:$0xf]
  %v109 = vld [vmem:[%s1 + $0x128] sm:$0xf]
  %v110 = vld [vmem:[%s1 + $0x12c] sm:$0xf]
  %v111 = vld [vmem:[%s1 + $0x130] sm:$0xf]
  %v112 = vld [vmem:[%s1 + $0x134] sm:$0xf]
  %v113 = vld [vmem:[%s1 + $0x138] sm:$0xf]
  %v114 = vld [vmem:[%s1 + $0x13c] sm:$0xf]
  %v115 = vld [vmem:[%s1 + $0x140] sm:$0xf]
  %v116 = vld [vmem:[%s1 + $0x144] sm:$0xf]
  %v117 = vld [vmem:[%s1 + $0x148] sm:$0xf]
  %v118 = vld [vmem:[%s1 + $0x14c] sm:$0xf]
  %v119 = vld [vmem:[%s1 + $0x150] sm:$0xf]
  %v120 = vld [vmem:[%s1 + $0x154] sm:$0xf]
  %v121 = vld [vmem:[%s1 + $0x158] sm:$0xf]
  %v122 = vld [vmem:[%s1 + $0x15c] sm:$0xf]
  %v123 = vld [vmem:[%s1 + $0x160] sm:$0xf]
  %v124 = vld [vmem:[%s1 + $0x164] sm:$0xf]
  %v125 = vld [vmem:[%s1 + $0x168] sm:$0xf]
  %v126 = vld [vmem:[%s1 + $0x16c] sm:$0xf]
  %v127 = vld [vmem:[%s1 + $0x170] sm:$0xf]
  %v128 = vld [vmem:[%s1 + $0x174] sm:$0xf]
  %v129 = vld [vmem:[%s1 + $0x178] sm:$0xf]
  %v130 = vld [vmem:[%s1 + $0x17c] sm:$0xf]
  %v131 = vld [vmem:[%s1 + $0x180] sm:$0xf]
  %v132 = vld [vmem:[%s1 + $0x184] sm:$0xf]
  %v133 = vld [vmem:[%s1 + $0x188] sm:$0xf]
  %v134 = vld [vmem:[%s1 + $0x18c] sm:$0xf]
  %v135 = vld [vmem:[%s1 + $0x190] sm:$0xf]
  %v136 = vld [vmem:[%s1 + $0x194] sm:$0xf]
  %v137 = vld [vmem:[%s1 + $0x198] sm:$0xf]
  %v138 = vld [vmem:[%s1 + $0x19c] sm:$0xf]
  %v139 = vld [vmem:[%s1 + $0x1a0] sm:$0xf]
  %v140 = vld [vmem:[%s1 + $0x1a4] sm:$0xf]
  %v141 = vld [vmem:[%s1 + $0x1a8] sm:$0xf]
  %v142 = vld [vmem:[%s1 + $0x1ac] sm:$0xf]
  %v143 = vld [vmem:[%s1 + $0x1b0] sm:$0xf]
  %v144 = vld [vmem:[%s1 + $0x1b4] sm:$0xf]
  %v145 = vld [vmem:[%s1 + $0x1b8] sm:$0xf]
  %v146 = vld [vmem:[%s1 + $0x1bc] sm:$0xf]
  %v147 = vld [vmem:[%s1 + $0x1c0] sm:$0xf]
  %v148 = vld [vmem:[%s1 + $0x1c4] sm:$0xf]
  %v149 = vld [vmem:[%s1 + $0x1c8] sm:$0xf]
  %v150 = vld [vmem:[%s1 + $0x1cc] sm:$0xf]
  %v151 = vld [vmem:[%s1 + $0x1d0] sm:$0xf]
  %v152 = vld [vmem:[%s1 + $0x1d4] sm:$0xf]
  %v153 = vld [vmem:[%s1 + $0x1d8] sm:$0xf]
  %v154 = vld [vmem:[%s1 + $0x1dc] sm:$0xf]
  %v155 = vld [vmem:[%s1 + $0x1e0] sm:$0xf]
  %v156 = vld [vmem:[%s1 + $0x1e4] sm:$0xf]
  %v157 = vld [vmem:[%s1 + $0x1e8] sm:$0xf]
  %v158 = vld [vmem:[%s1 + $0x1ec] sm:$0xf]
  %v159 = vld [vmem:[%s1 + $0x1f0] sm:$0xf]
  %v160 = vld [vmem:[%s1 + $0x1f4] sm:$0xf]
  %v161 = vld [vmem:[%s1 + $0x1f8] sm:$0xf]
  %v162 = vld [vmem:[%s1 + $0x1fc] sm:$0xf]
  %v163 = vld [vmem:[%s1 + $0x200] sm:$0xf]
  %v164 = vld [vmem:[%s1 + $0x204] sm:$0xf]
  %v165 = vld [vmem:[%s1 + $0x208] sm:$0xf]
  %v166 = vld [vmem:[%s1 + $0x20c] sm:$0xf]
  %v167 = vld [vmem:[%s1 + $0x210] sm:$0xf]
  %v168 = vld [vmem:[%s1 + $0x214] sm:$0xf]
  %v169 = vld [vmem:[%s1 + $0x218] sm:$0xf]
  %v170 = vld [vmem:[%s1 + $0x21c] sm:$0xf]
  %v171 = vld [vmem:[%s1 + $0x220] sm:$0xf]
  %v172 = vld [vmem:[%s1 + $0x224] sm:$0xf]
  %v173 = vld [vmem:[%s1 + $0x228] sm:$0xf]
  %v174 = vld [vmem:[%s1 + $0x22c] sm:$0xf]
  %v175 = vld [vmem:[%s1 + $0x230] sm:$0xf]
  %v176 = vld [vmem:[%s1 + $0x234] sm:$0xf]
  %v177 = vld [vmem:[%s1 + $0x238] sm:$0xf]
  %v178 = vld [vmem:[%s1 + $0x23c] sm:$0xf]
  %v199 = vunpack.c.l.b16 %v15
  %v200 = vunpack.c.h.b16 %v15
  %v201 = vunpack.c.l.b16 %v16
  %v202 = vunpack.c.h.b16 %v16
  %v203 = vunpack.c.l.b16 %v17
  %v204 = vunpack.c.h.b16 %v17
  %v205 = vunpack.c.l.b16 %v18
  %v206 = vunpack.c.h.b16 %v18
  %v207 = vunpack.c.l.b16 %v19
  %v208 = vunpack.c.l.b16 %v20
  %v209 = vunpack.c.h.b16 %v20
  %v210 = vunpack.c.l.b16 %v21
  %v211 = vunpack.c.h.b16 %v21
  %v212 = vunpack.c.l.b16 %v22
  %v213 = vunpack.c.h.b16 %v22
  %v214 = vunpack.c.l.b16 %v23
  %v215 = vunpack.c.h.b16 %v23
  %v216 = vunpack.c.l.b16 %v24
  %v217 = vunpack.c.l.b16 %v25
  %v218 = vunpack.c.h.b16 %v25
  %v219 = vunpack.c.l.b16 %v26
  %v220 = vunpack.c.h.b16 %v26
  %v221 = vunpack.c.l.b16 %v27
  %v222 = vunpack.c.h.b16 %v27
  %v223 = vunpack.c.l.b16 %v28
  %v224 = vunpack.c.h.b16 %v28
  %v225 = vunpack.c.l.b16 %v29
  %v226 = vunpack.c.l.b16 %v30
  %v227 = vunpack.c.h.b16 %v30
  %v228 = vunpack.c.l.b16 %v31
  %v229 = vunpack.c.h.b16 %v31
  %v230 = vunpack.c.l.b16 %v32
  %v231 = vunpack.c.h.b16 %v32
  %v232 = vunpack.c.l.b16 %v33
  %v233 = vunpack.c.h.b16 %v33
  %v234 = vunpack.c.l.b16 %v34
  %v235 = vpack.c.b16 %v208, %v199
  %v236 = vpack.c.b16 %v209, %v200
  %v237 = vpack.c.b16 %v210, %v201
  %v238 = vpack.c.b16 %v211, %v202
  %v239 = vpack.c.b16 %v212, %v203
  %v240 = vpack.c.b16 %v213, %v204
  %v241 = vpack.c.b16 %v214, %v205
  %v242 = vpack.c.b16 %v215, %v206
  %v243 = vpack.c.b16 %v216, %v207
  %v244 = vpack.c.b16 %v226, %v217
  %v245 = vpack.c.b16 %v227, %v218
  %v246 = vpack.c.b16 %v228, %v219
  %v247 = vpack.c.b16 %v229, %v220
  %v248 = vpack.c.b16 %v230, %v221
  %v249 = vpack.c.b16 %v231, %v222
  %v250 = vpack.c.b16 %v232, %v223
  %v251 = vpack.c.b16 %v233, %v224
  %v252 = vpack.c.b16 %v234, %v225
  %v415 = vunpack.c.l.b16 %v35
  %v416 = vunpack.c.l.b16 %v36
  %v417 = vunpack.c.l.b16 %v37
  %v418 = vunpack.c.l.b16 %v38
  %v419 = vunpack.c.l.b16 %v39
  %v420 = vunpack.c.l.b16 %v40
  %v421 = vunpack.c.l.b16 %v41
  %v422 = vunpack.c.l.b16 %v42
  %v423 = vunpack.c.l.b16 %v43
  %v424 = vunpack.c.l.b16 %v44
  %v425 = vunpack.c.l.b16 %v45
  %v426 = vunpack.c.l.b16 %v46
  %v427 = vunpack.c.l.b16 %v47
  %v428 = vunpack.c.l.b16 %v48
  %v429 = vunpack.c.l.b16 %v49
  %v430 = vunpack.c.l.b16 %v50
  %v431 = vunpack.c.l.b16 %v51
  %v432 = vunpack.c.l.b16 %v52
  %v433 = vunpack.c.l.b16 %v53
  %v434 = vunpack.c.l.b16 %v54
  %v435 = vunpack.c.l.b16 %v55
  %v436 = vunpack.c.l.b16 %v56
  %v437 = vunpack.c.l.b16 %v57
  %v438 = vunpack.c.l.b16 %v58
  %v439 = vunpack.c.l.b16 %v59
  %v440 = vunpack.c.l.b16 %v60
  %v441 = vunpack.c.l.b16 %v61
  %v442 = vunpack.c.l.b16 %v62
  %v443 = vunpack.c.l.b16 %v63
  %v444 = vunpack.c.l.b16 %v64
  %v445 = vunpack.c.l.b16 %v65
  %v446 = vunpack.c.l.b16 %v66
  %v447 = vunpack.c.l.b16 %v67
  %v448 = vunpack.c.l.b16 %v68
  %v449 = vunpack.c.l.b16 %v69
  %v450 = vunpack.c.l.b16 %v70
  %v451 = vunpack.c.l.b16 %v71
  %v452 = vunpack.c.l.b16 %v72
  %v453 = vunpack.c.l.b16 %v73
  %v454 = vunpack.c.l.b16 %v74
  %v455 = vunpack.c.l.b16 %v75
  %v456 = vunpack.c.l.b16 %v76
  %v457 = vunpack.c.l.b16 %v77
  %v458 = vunpack.c.l.b16 %v78
  %v459 = vunpack.c.l.b16 %v79
  %v460 = vunpack.c.l.b16 %v80
  %v461 = vunpack.c.l.b16 %v81
  %v462 = vunpack.c.l.b16 %v82
  %v463 = vunpack.c.l.b16 %v83
  %v464 = vunpack.c.l.b16 %v84
  %v465 = vunpack.c.l.b16 %v85
  %v466 = vunpack.c.l.b16 %v86
  %v467 = vunpack.c.l.b16 %v87
  %v468 = vunpack.c.l.b16 %v88
  %v469 = vunpack.c.l.b16 %v89
  %v470 = vunpack.c.l.b16 %v90
  %v471 = vunpack.c.l.b16 %v91
  %v472 = vunpack.c.l.b16 %v92
  %v473 = vunpack.c.l.b16 %v93
  %v474 = vunpack.c.l.b16 %v94
  %v475 = vunpack.c.l.b16 %v95
  %v476 = vunpack.c.l.b16 %v96
  %v477 = vunpack.c.l.b16 %v97
  %v478 = vunpack.c.l.b16 %v98
  %v479 = vunpack.c.l.b16 %v99
  %v480 = vunpack.c.l.b16 %v100
  %v481 = vunpack.c.l.b16 %v101
  %v482 = vunpack.c.l.b16 %v102
  %v483 = vunpack.c.l.b16 %v103
  %v484 = vunpack.c.l.b16 %v104
  %v485 = vunpack.c.l.b16 %v105
  %v486 = vunpack.c.l.b16 %v106
  %v487 = vunpack.c.l.b16 %v107
  %v488 = vunpack.c.l.b16 %v108
  %v489 = vunpack.c.l.b16 %v109
  %v490 = vunpack.c.l.b16 %v110
  %v491 = vunpack.c.l.b16 %v111
  %v492 = vunpack.c.l.b16 %v112
  %v493 = vunpack.c.l.b16 %v113
  %v494 = vunpack.c.l.b16 %v114
  %v495 = vunpack.c.l.b16 %v115
  %v496 = vunpack.c.l.b16 %v116
  %v497 = vunpack.c.l.b16 %v117
  %v498 = vunpack.c.l.b16 %v118
  %v499 = vunpack.c.l.b16 %v119
  %v500 = vunpack.c.l.b16 %v120
  %v501 = vunpack.c.l.b16 %v121
  %v502 = vunpack.c.l.b16 %v122
  %v503 = vunpack.c.l.b16 %v123
  %v504 = vunpack.c.l.b16 %v124
  %v505 = vunpack.c.l.b16 %v125
  %v506 = vunpack.c.l.b16 %v126
  %v507 = vunpack.c.l.b16 %v127
  %v508 = vunpack.c.l.b16 %v128
  %v509 = vunpack.c.l.b16 %v129
  %v510 = vunpack.c.l.b16 %v130
  %v511 = vunpack.c.l.b16 %v131
  %v512 = vunpack.c.l.b16 %v132
  %v513 = vunpack.c.l.b16 %v133
  %v514 = vunpack.c.l.b16 %v134
  %v515 = vunpack.c.l.b16 %v135
  %v516 = vunpack.c.l.b16 %v136
  %v517 = vunpack.c.l.b16 %v137
  %v518 = vunpack.c.l.b16 %v138
  %v519 = vunpack.c.l.b16 %v139
  %v520 = vunpack.c.l.b16 %v140
  %v521 = vunpack.c.l.b16 %v141
  %v522 = vunpack.c.l.b16 %v142
  %v523 = vunpack.c.l.b16 %v143
  %v524 = vunpack.c.l.b16 %v144
  %v525 = vunpack.c.l.b16 %v145
  %v526 = vunpack.c.l.b16 %v146
  %v527 = vunpack.c.l.b16 %v147
  %v528 = vunpack.c.l.b16 %v148
  %v529 = vunpack.c.l.b16 %v149
  %v530 = vunpack.c.l.b16 %v150
  %v531 = vunpack.c.l.b16 %v151
  %v532 = vunpack.c.l.b16 %v152
  %v533 = vunpack.c.l.b16 %v153
  %v534 = vunpack.c.l.b16 %v154
  %v535 = vunpack.c.l.b16 %v155
  %v536 = vunpack.c.l.b16 %v156
  %v537 = vunpack.c.l.b16 %v157
  %v538 = vunpack.c.l.b16 %v158
  %v539 = vunpack.c.l.b16 %v159
  %v540 = vunpack.c.l.b16 %v160
  %v541 = vunpack.c.l.b16 %v161
  %v542 = vunpack.c.l.b16 %v162
  %v543 = vunpack.c.l.b16 %v163
  %v544 = vunpack.c.l.b16 %v164
  %v545 = vunpack.c.l.b16 %v165
  %v546 = vunpack.c.l.b16 %v166
  %v547 = vunpack.c.l.b16 %v167
  %v548 = vunpack.c.l.b16 %v168
  %v549 = vunpack.c.l.b16 %v169
  %v550 = vunpack.c.l.b16 %v170
  %v551 = vunpack.c.l.b16 %v171
  %v552 = vunpack.c.l.b16 %v172
  %v553 = vunpack.c.l.b16 %v173
  %v554 = vunpack.c.l.b16 %v174
  %v555 = vunpack.c.l.b16 %v175
  %v556 = vunpack.c.l.b16 %v176
  %v557 = vunpack.c.l.b16 %v177
  %v558 = vunpack.c.l.b16 %v178
  %v559 = vpack.c.b16 %v416, %v415
  %v560 = vpack.c.b16 %v418, %v417
  %v561 = vpack.c.b16 %v420, %v419
  %v562 = vpack.c.b16 %v422, %v421
  %v563 = vpack.c.b16 %v424, %v423
  %v564 = vpack.c.b16 %v426, %v425
  %v565 = vpack.c.b16 %v428, %v427
  %v566 = vpack.c.b16 %v430, %v429
  %v567 = vpack.c.b16 %v432, %v431
  %v568 = vpack.c.b16 %v434, %v433
  %v569 = vpack.c.b16 %v436, %v435
  %v570 = vpack.c.b16 %v438, %v437
  %v571 = vpack.c.b16 %v440, %v439
  %v572 = vpack.c.b16 %v442, %v441
  %v573 = vpack.c.b16 %v444, %v443
  %v574 = vpack.c.b16 %v446, %v445
  %v575 = vpack.c.b16 %v448, %v447
  %v576 = vpack.c.b16 %v450, %v449
  %v577 = vpack.c.b16 %v452, %v451
  %v578 = vpack.c.b16 %v454, %v453
  %v579 = vpack.c.b16 %v456, %v455
  %v580 = vpack.c.b16 %v458, %v457
  %v581 = vpack.c.b16 %v460, %v459
  %v582 = vpack.c.b16 %v462, %v461
  %v583 = vpack.c.b16 %v464, %v463
  %v584 = vpack.c.b16 %v466, %v465
  %v585 = vpack.c.b16 %v468, %v467
  %v586 = vpack.c.b16 %v470, %v469
  %v587 = vpack.c.b16 %v472, %v471
  %v588 = vpack.c.b16 %v474, %v473
  %v589 = vpack.c.b16 %v476, %v475
  %v590 = vpack.c.b16 %v478, %v477
  %v591 = vpack.c.b16 %v480, %v479
  %v592 = vpack.c.b16 %v482, %v481
  %v593 = vpack.c.b16 %v484, %v483
  %v594 = vpack.c.b16 %v486, %v485
  %v595 = vpack.c.b16 %v488, %v487
  %v596 = vpack.c.b16 %v490, %v489
  %v597 = vpack.c.b16 %v492, %v491
  %v598 = vpack.c.b16 %v494, %v493
  %v599 = vpack.c.b16 %v496, %v495
  %v600 = vpack.c.b16 %v498, %v497
  %v601 = vpack.c.b16 %v500, %v499
  %v602 = vpack.c.b16 %v502, %v501
  %v603 = vpack.c.b16 %v504, %v503
  %v604 = vpack.c.b16 %v506, %v505
  %v605 = vpack.c.b16 %v508, %v507
  %v606 = vpack.c.b16 %v510, %v509
  %v607 = vpack.c.b16 %v512, %v511
  %v608 = vpack.c.b16 %v514, %v513
  %v609 = vpack.c.b16 %v516, %v515
  %v610 = vpack.c.b16 %v518, %v517
  %v611 = vpack.c.b16 %v520, %v519
  %v612 = vpack.c.b16 %v522, %v521
  %v613 = vpack.c.b16 %v524, %v523
  %v614 = vpack.c.b16 %v526, %v525
  %v615 = vpack.c.b16 %v528, %v527
  %v616 = vpack.c.b16 %v530, %v529
  %v617 = vpack.c.b16 %v532, %v531
  %v618 = vpack.c.b16 %v534, %v533
  %v619 = vpack.c.b16 %v536, %v535
  %v620 = vpack.c.b16 %v538, %v537
  %v621 = vpack.c.b16 %v540, %v539
  %v622 = vpack.c.b16 %v542, %v541
  %v623 = vpack.c.b16 %v544, %v543
  %v624 = vpack.c.b16 %v546, %v545
  %v625 = vpack.c.b16 %v548, %v547
  %v626 = vpack.c.b16 %v550, %v549
  %v627 = vpack.c.b16 %v552, %v551
  %v628 = vpack.c.b16 %v554, %v553
  %v629 = vpack.c.b16 %v556, %v555
  %v630 = vpack.c.b16 %v558, %v557
  %703 = vmatprep.subr.bf16.mxu0 0
  %704 = vmatpush1.bf16.msra.mxu0 %v559
  %705 = vmatprep.subr.bf16.mxu0 0
  %706 = vmatpush1.bf16.msra.mxu0 %v560
  %707 = vmatprep.subr.bf16.mxu0 0
  %708 = vmatpush1.bf16.msra.mxu0 %v561
  %709 = vmatprep.subr.bf16.mxu0 0
  %710 = vmatpush1.bf16.msra.mxu0 %v562
  %711 = vmatprep.subr.bf16.mxu0 0
  %712 = vmatpush1.bf16.msra.mxu0 %v563
  %713 = vmatprep.subr.bf16.mxu0 0
  %714 = vmatpush1.bf16.msra.mxu0 %v564
  %715 = vmatprep.subr.bf16.mxu0 0
  %716 = vmatpush1.bf16.msra.mxu0 %v565
  %717 = vmatprep.subr.bf16.mxu0 0
  %718 = vmatpush1.bf16.msra.mxu0 %v566
  %719 = vmatprep.subr.bf16.mxu0 0
  %720 = vmatpush1.bf16.msra.mxu0 %v567
  %721 = vmatprep.subr.bf16.mxu0 0
  %722 = vmatpush1.bf16.msra.mxu0 %v568
  %723 = vmatprep.subr.bf16.mxu0 0
  %724 = vmatpush1.bf16.msra.mxu0 %v569
  %725 = vmatprep.subr.bf16.mxu0 0
  %726 = vmatpush1.bf16.msra.mxu0 %v570
  %727 = vmatprep.subr.bf16.mxu0 0
  %728 = vmatpush1.bf16.msra.mxu0 %v571
  %729 = vmatprep.subr.bf16.mxu0 0
  %730 = vmatpush1.bf16.msra.mxu0 %v572
  %731 = vmatprep.subr.bf16.mxu0 0
  %732 = vmatpush1.bf16.msra.mxu0 %v573
  %733 = vmatprep.subr.bf16.mxu0 0
  %734 = vmatpush1.bf16.msra.mxu0 %v574
  %735 = vmatprep.mubr.bf16.mxu0 %v236
  %736 = vmatmul.mubr.bf16.gmra.mrb[0].mxu0 %v235
  %v737 = vpop.f32.mrb[0].mxu0
  %v738 = vadd.f32 0.0, %v737
  %v739 = vpop.f32.mrb[0].mxu0
  %v740 = vpop.f32.mrb[0].mxu0
  %v741 = vadd.f32 0.0, %v740
  %v742 = vpop.f32.mrb[0].mxu0
  %743 = vmatprep.mubr.bf16.mxu0 %v245
  %744 = vmatmul.mubr.bf16.gmra.mrb[0].mxu0 %v244
  %v745 = vpop.f32.mrb[0].mxu0
  %v746 = vadd.f32 0.0, %v745
  %v747 = vpop.f32.mrb[0].mxu0
  %v748 = vpop.f32.mrb[0].mxu0
  %v749 = vadd.f32 0.0, %v748
  %v750 = vpop.f32.mrb[0].mxu0
  %751 = vdwg.mxu0
  %752 = vmatprep.subr.bf16.mxu0 0
  %753 = vmatpush1.bf16.msra.mxu0 %v575
  %754 = vmatprep.subr.bf16.mxu0 0
  %755 = vmatpush1.bf16.msra.mxu0 %v576
  %756 = vmatprep.subr.bf16.mxu0 0
  %757 = vmatpush1.bf16.msra.mxu0 %v577
  %758 = vmatprep.subr.bf16.mxu0 0
  %759 = vmatpush1.bf16.msra.mxu0 %v578
  %760 = vmatprep.subr.bf16.mxu0 0
  %761 = vmatpush1.bf16.msra.mxu0 %v579
  %762 = vmatprep.subr.bf16.mxu0 0
  %763 = vmatpush1.bf16.msra.mxu0 %v580
  %764 = vmatprep.subr.bf16.mxu0 0
  %765 = vmatpush1.bf16.msra.mxu0 %v581
  %766 = vmatprep.subr.bf16.mxu0 0
  %767 = vmatpush1.bf16.msra.mxu0 %v582
  %768 = vmatprep.subr.bf16.mxu0 0
  %769 = vmatpush1.bf16.msra.mxu0 %v583
  %770 = vmatprep.subr.bf16.mxu0 0
  %771 = vmatpush1.bf16.msra.mxu0 %v584
  %772 = vmatprep.subr.bf16.mxu0 0
  %773 = vmatpush1.bf16.msra.mxu0 %v585
  %774 = vmatprep.subr.bf16.mxu0 0
  %775 = vmatpush1.bf16.msra.mxu0 %v586
  %776 = vmatprep.subr.bf16.mxu0 0
  %777 = vmatpush1.bf16.msra.mxu0 %v587
  %778 = vmatprep.subr.bf16.mxu0 0
  %779 = vmatpush1.bf16.msra.mxu0 %v588
  %780 = vmatprep.subr.bf16.mxu0 0
  %781 = vmatpush1.bf16.msra.mxu0 %v589
  %782 = vmatprep.subr.bf16.mxu0 0
  %783 = vmatpush1.bf16.msra.mxu0 %v590
  %784 = vmatprep.mubr.bf16.mxu0 %v238
  %785 = vmatmul.mubr.bf16.gmra.mrb[0].mxu0 %v237
  %v786 = vpop.f32.mrb[0].mxu0
  %v787 = vadd.f32 %v738, %v786
  %v788 = vpop.f32.mrb[0].mxu0
  %v789 = vpop.f32.mrb[0].mxu0
  %v790 = vadd.f32 %v741, %v789
  %v791 = vpop.f32.mrb[0].mxu0
  %792 = vmatprep.mubr.bf16.mxu0 %v247
  %793 = vmatmul.mubr.bf16.gmra.mrb[0].mxu0 %v246
  %v794 = vpop.f32.mrb[0].mxu0
  %v795 = vadd.f32 %v746, %v794
  %v796 = vpop.f32.mrb[0].mxu0
  %v797 = vpop.f32.mrb[0].mxu0
  %v798 = vadd.f32 %v749, %v797
  %v799 = vpop.f32.mrb[0].mxu0
  %800 = vdwg.mxu0
  %801 = vmatprep.subr.bf16.mxu0 0
  %802 = vmatpush1.bf16.msra.mxu0 %v591
  %803 = vmatprep.subr.bf16.mxu0 0
  %804 = vmatpush1.bf16.msra.mxu0 %v592
  %805 = vmatprep.subr.bf16.mxu0 0
  %806 = vmatpush1.bf16.msra.mxu0 %v593
  %807 = vmatprep.subr.bf16.mxu0 0
  %808 = vmatpush1.bf16.msra.mxu0 %v594
  %809 = vmatprep.subr.bf16.mxu0 0
  %810 = vmatpush1.bf16.msra.mxu0 %v595
  %811 = vmatprep.subr.bf16.mxu0 0
  %812 = vmatpush1.bf16.msra.mxu0 %v596
  %813 = vmatprep.subr.bf16.mxu0 0
  %814 = vmatpush1.bf16.msra.mxu0 %v597
  %815 = vmatprep.subr.bf16.mxu0 0
  %816 = vmatpush1.bf16.msra.mxu0 %v598
  %817 = vmatprep.subr.bf16.mxu0 0
  %818 = vmatpush1.bf16.msra.mxu0 %v599
  %819 = vmatprep.subr.bf16.mxu0 0
  %820 = vmatpush1.bf16.msra.mxu0 %v600
  %821 = vmatprep.subr.bf16.mxu0 0
  %822 = vmatpush1.bf16.msra.mxu0 %v601
  %823 = vmatprep.subr.bf16.mxu0 0
  %824 = vmatpush1.bf16.msra.mxu0 %v602
  %825 = vmatprep.subr.bf16.mxu0 0
  %826 = vmatpush1.bf16.msra.mxu0 %v603
  %827 = vmatprep.subr.bf16.mxu0 0
  %828 = vmatpush1.bf16.msra.mxu0 %v604
  %829 = vmatprep.subr.bf16.mxu0 0
  %830 = vmatpush1.bf16.msra.mxu0 %v605
  %831 = vmatprep.subr.bf16.mxu0 0
  %832 = vmatpush1.bf16.msra.mxu0 %v606
  %833 = vmatprep.mubr.bf16.mxu0 %v240
  %834 = vmatmul.mubr.bf16.gmra.mrb[0].mxu0 %v239
  %v835 = vpop.f32.mrb[0].mxu0
  %v836 = vadd.f32 %v787, %v835
  %v837 = vpop.f32.mrb[0].mxu0
  %v838 = vpop.f32.mrb[0].mxu0
  %v839 = vadd.f32 %v790, %v838
  %v840 = vpop.f32.mrb[0].mxu0
  %841 = vmatprep.mubr.bf16.mxu0 %v249
  %842 = vmatmul.mubr.bf16.gmra.mrb[0].mxu0 %v248
  %v843 = vpop.f32.mrb[0].mxu0
  %v844 = vadd.f32 %v795, %v843
  %v845 = vpop.f32.mrb[0].mxu0
  %v846 = vpop.f32.mrb[0].mxu0
  %v847 = vadd.f32 %v798, %v846
  %v848 = vpop.f32.mrb[0].mxu0
  %849 = vdwg.mxu0
  %850 = vmatprep.subr.bf16.mxu0 0
  %851 = vmatpush1.bf16.msra.mxu0 %v607
  %852 = vmatprep.subr.bf16.mxu0 0
  %853 = vmatpush1.bf16.msra.mxu0 %v608
  %854 = vmatprep.subr.bf16.mxu0 0
  %855 = vmatpush1.bf16.msra.mxu0 %v609
  %856 = vmatprep.subr.bf16.mxu0 0
  %857 = vmatpush1.bf16.msra.mxu0 %v610
  %858 = vmatprep.subr.bf16.mxu0 0
  %859 = vmatpush1.bf16.msra.mxu0 %v611
  %860 = vmatprep.subr.bf16.mxu0 0
  %861 = vmatpush1.bf16.msra.mxu0 %v612
  %862 = vmatprep.subr.bf16.mxu0 0
  %863 = vmatpush1.bf16.msra.mxu0 %v613
  %864 = vmatprep.subr.bf16.mxu0 0
  %865 = vmatpush1.bf16.msra.mxu0 %v614
  %866 = vmatprep.subr.bf16.mxu0 0
  %867 = vmatpush1.bf16.msra.mxu0 %v615
  %868 = vmatprep.subr.bf16.mxu0 0
  %869 = vmatpush1.bf16.msra.mxu0 %v616
  %870 = vmatprep.subr.bf16.mxu0 0
  %871 = vmatpush1.bf16.msra.mxu0 %v617
  %872 = vmatprep.subr.bf16.mxu0 0
  %873 = vmatpush1.bf16.msra.mxu0 %v618
  %874 = vmatprep.subr.bf16.mxu0 0
  %875 = vmatpush1.bf16.msra.mxu0 %v619
  %876 = vmatprep.subr.bf16.mxu0 0
  %877 = vmatpush1.bf16.msra.mxu0 %v620
  %878 = vmatprep.subr.bf16.mxu0 0
  %879 = vmatpush1.bf16.msra.mxu0 %v621
  %880 = vmatprep.subr.bf16.mxu0 0
  %881 = vmatpush1.bf16.msra.mxu0 %v622
  %882 = vmatprep.mubr.bf16.mxu0 %v242
  %883 = vmatmul.mubr.bf16.gmra.mrb[0].mxu0 %v241
  %v884 = vpop.f32.mrb[0].mxu0
  %v885 = vadd.f32 %v836, %v884
  %v886 = vpop.f32.mrb[0].mxu0
  %v887 = vpop.f32.mrb[0].mxu0
  %v888 = vadd.f32 %v839, %v887
  %v889 = vpop.f32.mrb[0].mxu0
  %890 = vmatprep.mubr.bf16.mxu0 %v251
  %891 = vmatmul.mubr.bf16.gmra.mrb[0].mxu0 %v250
  %v892 = vpop.f32.mrb[0].mxu0
  %v893 = vadd.f32 %v844, %v892
  %v894 = vpop.f32.mrb[0].mxu0
  %v895 = vpop.f32.mrb[0].mxu0
  %v896 = vadd.f32 %v847, %v895
  %v897 = vpop.f32.mrb[0].mxu0
  %898 = vdwg.mxu0
  %899 = vmatprep.subr.bf16.mxu0 0
  %900 = vmatpush1.bf16.msra.mxu0 %v623
  %901 = vmatprep.subr.bf16.mxu0 0
  %902 = vmatpush1.bf16.msra.mxu0 %v624
  %903 = vmatprep.subr.bf16.mxu0 0
  %904 = vmatpush1.bf16.msra.mxu0 %v625
  %905 = vmatprep.subr.bf16.mxu0 0
  %906 = vmatpush1.bf16.msra.mxu0 %v626
  %907 = vmatprep.subr.bf16.mxu0 0
  %908 = vmatpush1.bf16.msra.mxu0 %v627
  %909 = vmatprep.subr.bf16.mxu0 0
  %910 = vmatpush1.bf16.msra.mxu0 %v628
  %911 = vmatprep.subr.bf16.mxu0 0
  %912 = vmatpush1.bf16.msra.mxu0 %v629
  %913 = vmatprep.subr.bf16.mxu0 0
  %914 = vmatpush1.bf16.msra.mxu0 %v630
  %915 = vmatprep.subr.bf16.mxu0 0
  %916 = vmatpush1.bf16.msra.mxu0 0
  %917 = vmatprep.subr.bf16.mxu0 0
  %918 = vmatpush1.bf16.msra.mxu0 0
  %919 = vmatprep.subr.bf16.mxu0 0
  %920 = vmatpush1.bf16.msra.mxu0 0
  %921 = vmatprep.subr.bf16.mxu0 0
  %922 = vmatpush1.bf16.msra.mxu0 0
  %923 = vmatprep.subr.bf16.mxu0 0
  %924 = vmatpush1.bf16.msra.mxu0 0
  %925 = vmatprep.subr.bf16.mxu0 0
  %926 = vmatpush1.bf16.msra.mxu0 0
  %927 = vmatprep.subr.bf16.mxu0 0
  %928 = vmatpush1.bf16.msra.mxu0 0
  %929 = vmatprep.subr.bf16.mxu0 0
  %930 = vmatpush1.bf16.msra.mxu0 0
  %931 = vmatprep.mubr.bf16.mxu0 0
  %932 = vmatmul.mubr.bf16.gmra.mrb[0].mxu0 %v243
  %v933 = vpop.f32.mrb[0].mxu0
  %v934 = vadd.f32 %v885, %v933
  %v935 = vpop.f32.mrb[0].mxu0
  %v936 = vpop.f32.mrb[0].mxu0
  %v937 = vadd.f32 %v888, %v936
  %v938 = vpop.f32.mrb[0].mxu0
  %939 = vmatprep.mubr.bf16.mxu0 0
  %940 = vmatmul.mubr.bf16.gmra.mrb[0].mxu0 %v252
  %v941 = vpop.f32.mrb[0].mxu0
  %v942 = vadd.f32 %v893, %v941
  %v943 = vpop.f32.mrb[0].mxu0
  %v944 = vpop.f32.mrb[0].mxu0
  %v945 = vadd.f32 %v896, %v944
  %v946 = vpop.f32.mrb[0].mxu0
  %947 = vdwg.mxu0
  %948 = vst [vmem:[%s2] sm:$0xff] %v934
  %949 = vst [vmem:[%s2 + $0x8] sm:$0xff] %v937
  %950 = vst [vmem:[%s2 + $0x10] sm:$0xff] %v942
  %951 = vst [vmem:[%s2 + $0x18] sm:$0xff] %v945
  %p952 = scmp.eq.s32.totalorder 0, 0
  // Predicated region
  $region10: #{vanilla_encoder_forward.29} parent=0 // pred_check
    %p953 = pneg %p952
  $region11: #{vanilla_encoder_forward.29} parent=0 // pred_check_branch
    %955 = sbr.rel (%p953) target = $region13
  $region12: #{vanilla_encoder_forward.29} parent=0 // pred_region
    %956 = vst [vmem:[%s3] sm:$0x1] 0.0
    %957 = vst [vmem:[%s4] sm:$0x1] 0.0
  $region13: #{vanilla_encoder_forward.29} parent=0 // pred_fallthru
    _
  %v958 = vld [vmem:[%s3] sm:$0x1]
  %v959 = vadd.f32 %v934, %v937
  %v960 = vadd.f32 %v959, %v942
  %v961 = vadd.f32 %v960, %v945
  %v962 = vrot.slane %v961, 4
  %v963 = vadd.f32 %v961, %v962
  %v964 = vrot.slane %v963, 2
  %v965 = vadd.f32 %v963, %v964
  %v966 = vrot.slane %v965, 1
  %v967 = vadd.f32 %v965, %v966
  %v968 = vadd.f32 %v958, %v967
  %969 = vst [vmem:[%s3] sm:$0x1] %v968
  %v970 = vld [vmem:[%s4] sm:$0x1]
  %v971 = vmul.f32 %v934, %v934
  %v972 = vmul.f32 %v937, %v937
  %v973 = vmul.f32 %v942, %v942
  %v974 = vmul.f32 %v945, %v945
  %v975 = vadd.f32 %v971, %v972
  %v976 = vadd.f32 %v975, %v973
  %v977 = vadd.f32 %v976, %v974
  %v978 = vrot.slane %v977, 4
  %v979 = vadd.f32 %v977, %v978
  %v980 = vrot.slane %v979, 2
  %v981 = vadd.f32 %v979, %v980
  %v982 = vrot.slane %v981, 1
  %v983 = vadd.f32 %v981, %v982
  %v984 = vadd.f32 %v970, %v983
  %985 = vst [vmem:[%s4] sm:$0x1] %v984
  // Predicated region
  $region14: #{vanilla_encoder_forward.29} parent=0 // pred_check
    _
  $region15: #{vanilla_encoder_forward.29} parent=0 // pred_check_branch
    %987 = sbr.rel (0) target = $region17
  $region16: #{vanilla_encoder_forward.29} parent=0 // pred_region
    _
  $region17: #{vanilla_encoder_forward.29} parent=0 // pred_fallthru
    _
  // Predicated region
  $region18: #{vanilla_encoder_forward.29} parent=0 // pred_check
    _
  $region19: #{vanilla_encoder_forward.29} parent=0 // pred_check_branch
    %989 = sbr.rel (0) target = $region21
  $region20: #{vanilla_encoder_forward.29} parent=0 // pred_region
    _
  $region21: #{vanilla_encoder_forward.29} parent=0 // pred_fallthru
    _
  // Predicated region
  $region22: #{vanilla_encoder_forward.29} parent=0 // pred_check
    _
  $region23: #{vanilla_encoder_forward.29} parent=0 // pred_check_branch
    %991 = sbr.rel (0) target = $region25
  $region24: #{vanilla_encoder_forward.29} parent=0 // pred_region
    _
  $region25: #{vanilla_encoder_forward.29} parent=0 // pred_fallthru
    _
  // Predicated region
  $region26: #{vanilla_encoder_forward.29} parent=0 // pred_check
    _
  $region27: #{vanilla_encoder_forward.29} parent=0 // pred_check_branch
    %993 = sbr.rel (0) target = $region29
  $region28: #{vanilla_encoder_forward.29} parent=0 // pred_region
    _
  $region29: #{vanilla_encoder_forward.29} parent=0 // pred_fallthru
    _
  // Predicated region
  $region30: #{vanilla_encoder_forward.29} parent=0 // pred_check
    _
  $region31: #{vanilla_encoder_forward.29} parent=0 // pred_check_branch
    %995 = sbr.rel (0) target = $region33
  $region32: #{vanilla_encoder_forward.29} parent=0 // pred_region
    _
  $region33: #{vanilla_encoder_forward.29} parent=0 // pred_fallthru
    _
  // Predicated region
  $region34: #{vanilla_encoder_forward.29} parent=0 // pred_check
    _
  $region35: #{vanilla_encoder_forward.29} parent=0 // pred_check_branch
    %997 = sbr.rel (0) target = $region37
  $region36: #{vanilla_encoder_forward.29} parent=0 // pred_region
    _
  $region37: #{vanilla_encoder_forward.29} parent=0 // pred_fallthru
    _

// kernel: vanilla_encoder_forward.33
$region0: #{vanilla_encoder_forward.33}
  #allocation0 [shape = 'u32[]', space=smem, size = 0x4, offset = 0x4, fixed_abs, tag = 'smem constant byte address 0x4 - core index']
  #allocation1 [shape = 'u32[144,128]{1,0:T(1,128)}', space=vmem, size = 0x12000, scoped, tag = 'internal scratch']
  %s0 = inlined_call_operand.vmem [shape: f32[32,128], index: 0, kind: input, shape index: {}]
  %s1 = inlined_call_operand.vmem [shape: f32[1,128], index: 1, kind: input, shape index: {}]
  %s2 = inlined_call_operand.vmem [shape: f32[1,128], index: 2, kind: input, shape index: {}]
  %s3 = inlined_call_operand.vmem [shape: f32[1,128], index: 3, kind: input, shape index: {}]
  %s4 = inlined_call_operand.vmem [shape: f32[1,128], index: 4, kind: input, shape index: {}]
  %s5 = inlined_call_operand.vmem [shape: f32[32,128], index: 5, kind: input, shape index: {}]
  %s6 = inlined_call_operand.vmem [shape: f32[32,128], index: 6, kind: output, shape index: {}]
  %s7 = sld [smem:[#allocation0]]
  $region34: #{vanilla_encoder_forward.33} parent=0
    _
  %s9 = ssub.s32 1, %s7
  %s10 = scalar_select 0, %s9, %s7
  // Predicated region
  $region2: #{vanilla_encoder_forward.33} parent=0 // pred_check
    _
  $region3: #{vanilla_encoder_forward.33} parent=0 // pred_check_branch
    %12 = sbr.rel (0) target = $region5
  $region4: #{vanilla_encoder_forward.33} parent=0 // pred_region
    _
  $region5: #{vanilla_encoder_forward.33} parent=0 // pred_fallthru
    _
  // Predicated region
  $region6: #{vanilla_encoder_forward.33} parent=0 // pred_check
    _
  $region7: #{vanilla_encoder_forward.33} parent=0 // pred_check_branch
    %14 = sbr.rel (0) target = $region9
  $region8: #{vanilla_encoder_forward.33} parent=0 // pred_region
    _
  $region9: #{vanilla_encoder_forward.33} parent=0 // pred_fallthru
    _
  // Predicated region
  $region10: #{vanilla_encoder_forward.33} parent=0 // pred_check
    _
  $region11: #{vanilla_encoder_forward.33} parent=0 // pred_check_branch
    %16 = sbr.rel (0) target = $region13
  $region12: #{vanilla_encoder_forward.33} parent=0 // pred_region
    _
  $region13: #{vanilla_encoder_forward.33} parent=0 // pred_fallthru
    _
  // Predicated region
  $region14: #{vanilla_encoder_forward.33} parent=0 // pred_check
    _
  $region15: #{vanilla_encoder_forward.33} parent=0 // pred_check_branch
    %18 = sbr.rel (0) target = $region17
  $region16: #{vanilla_encoder_forward.33} parent=0 // pred_region
    _
  $region17: #{vanilla_encoder_forward.33} parent=0 // pred_fallthru
    _
  // Predicated region
  $region18: #{vanilla_encoder_forward.33} parent=0 // pred_check
    _
  $region19: #{vanilla_encoder_forward.33} parent=0 // pred_check_branch
    %20 = sbr.rel (0) target = $region21
  $region20: #{vanilla_encoder_forward.33} parent=0 // pred_region
    _
  $region21: #{vanilla_encoder_forward.33} parent=0 // pred_fallthru
    _
  // Predicated region
  $region22: #{vanilla_encoder_forward.33} parent=0 // pred_check
    _
  $region23: #{vanilla_encoder_forward.33} parent=0 // pred_check_branch
    %22 = sbr.rel (0) target = $region25
  $region24: #{vanilla_encoder_forward.33} parent=0 // pred_region
    _
  $region25: #{vanilla_encoder_forward.33} parent=0 // pred_fallthru
    _
  %v23 = vld [vmem:[%s1] sm:$0x1]
  %v24 = vmul.f32 %v23, 0.03125
  %v25 = vld [vmem:[%s2] sm:$0x1]
  %v26 = vmul.f32 %v25, 0.03125
  %v27 = vmul.f32 %v24, %v24
  %v28 = vsub.f32 %v26, %v27
  %v29 = vmax.f32 %v28, 0.0
  %v30 = vld [vmem:[%s3] sm:$0x1]
  %v31 = vadd.f32 %v29, 1e-05
  %v32 = vrsqrt.pop %v31
  %v33 = vmul.f32 %v30, %v32
  %v34 = vld [vmem:[%s4] sm:$0x1]
  %v35 = vmul.f32 %v24, %v33
  %v36 = vsub.f32 %v34, %v35
  %v37 = vld [vmem:[%s0] sm:$0xff]
  %v38 = vld [vmem:[%s0 + $0x8] sm:$0xff]
  %v39 = vld [vmem:[%s0 + $0x10] sm:$0xff]
  %v40 = vld [vmem:[%s0 + $0x18] sm:$0xff]
  %v42 = vlaneseq
  %v43 = vshrl.u32 %v42, 7
  %v44 = vsub.s32 0, %v43
  %v45 = vrot.slane %v33, %v44
  %v47 = vmul.f32 %v37, %v45
  %v48 = vmul.f32 %v38, %v45
  %v49 = vmul.f32 %v39, %v45
  %v50 = vmul.f32 %v40, %v45
  %v52 = vlaneseq
  %v53 = vshrl.u32 %v52, 7
  %v54 = vsub.s32 0, %v53
  %v55 = vrot.slane %v36, %v54
  %v57 = vadd.f32 %v47, %v55
  %v58 = vadd.f32 %v48, %v55
  %v59 = vadd.f32 %v49, %v55
  %v60 = vadd.f32 %v50, %v55
  %v61 = vld [vmem:[%s5] sm:$0xff]
  %v62 = vld [vmem:[%s5 + $0x8] sm:$0xff]
  %v63 = vld [vmem:[%s5 + $0x10] sm:$0xff]
  %v64 = vld [vmem:[%s5 + $0x18] sm:$0xff]
  %v65 = vadd.f32 %v57, %v61
  %v66 = vadd.f32 %v58, %v62
  %v67 = vadd.f32 %v59, %v63
  %v68 = vadd.f32 %v60, %v64
  %v69 = vmul.f32 %v65, 0.5
  %v70 = vmul.f32 %v66, 0.5
  %v71 = vmul.f32 %v67, 0.5
  %v72 = vmul.f32 %v68, 0.5
  %v73 = vmul.f32 %v65, 0.70710677
  %v74 = vmul.f32 %v66, 0.70710677
  %v75 = vmul.f32 %v67, 0.70710677
  %v76 = vmul.f32 %v68, 0.70710677
  %v77 = verf.f32.pop %v73
  %v78 = verf.f32.pop %v74
  %v79 = verf.f32.pop %v75
  %v80 = verf.f32.pop %v76
  %v81 = vadd.f32 %v77, 1.0
  %v82 = vadd.f32 %v78, 1.0
  %v83 = vadd.f32 %v79, 1.0
  %v84 = vadd.f32 %v80, 1.0
  %v85 = vmul.f32 %v69, %v81
  %v86 = vmul.f32 %v70, %v82
  %v87 = vmul.f32 %v71, %v83
  %v88 = vmul.f32 %v72, %v84
  %89 = vst [vmem:[%s6] sm:$0xff] %v85
  %90 = vst [vmem:[%s6 + $0x8] sm:$0xff] %v86
  %91 = vst [vmem:[%s6 + $0x10] sm:$0xff] %v87
  %92 = vst [vmem:[%s6 + $0x18] sm:$0xff] %v88
  // Predicated region
  $region26: #{vanilla_encoder_forward.33} parent=0 // pred_check
    _
  $region27: #{vanilla_encoder_forward.33} parent=0 // pred_check_branch
    %94 = sbr.rel (0) target = $region29
  $region28: #{vanilla_encoder_forward.33} parent=0 // pred_region
    _
  $region29: #{vanilla_encoder_forward.33} parent=0 // pred_fallthru
    _
  // Predicated region
  $region30: #{vanilla_encoder_forward.33} parent=0 // pred_check
    _
  $region31: #{vanilla_encoder_forward.33} parent=0 // pred_check_branch
    %96 = sbr.rel (0) target = $region33
  $region32: #{vanilla_encoder_forward.33} parent=0 // pred_region
    _
  $region33: #{vanilla_encoder_forward.33} parent=0 // pred_fallthru
    _

// kernel: vanilla_encoder_forward.31
$region0: #{vanilla_encoder_forward.31}
  #allocation0 [shape = 'u32[]', space=smem, size = 0x4, offset = 0x4, fixed_abs, tag = 'smem constant byte address 0x4 - core index']
  #allocation1 [shape = 'u32[144,128]{1,0:T(1,128)}', space=vmem, size = 0x12000, scoped, tag = 'internal scratch']
  %s0 = inlined_call_operand.vmem [shape: bf16[32,128], index: 0, kind: input, shape index: {}]
  %s1 = inlined_call_operand.vmem [shape: bf16[128,128], index: 1, kind: input, shape index: {}]
  %s2 = inlined_call_operand.vmem [shape: f32[1,128], index: 2, kind: input, shape index: {}]
  %s3 = inlined_call_operand.vmem [shape: f32[32,128], index: 3, kind: output, shape index: {}]
  %s4 = sld [smem:[#allocation0]]
  $region22: #{vanilla_encoder_forward.31} parent=0
    _
  %s6 = ssub.s32 1, %s4
  %s7 = scalar_select 0, %s6, %s4
  // Predicated region
  $region2: #{vanilla_encoder_forward.31} parent=0 // pred_check
    _
  $region3: #{vanilla_encoder_forward.31} parent=0 // pred_check_branch
    %9 = sbr.rel (0) target = $region5
  $region4: #{vanilla_encoder_forward.31} parent=0 // pred_region
    _
  $region5: #{vanilla_encoder_forward.31} parent=0 // pred_fallthru
    _
  // Predicated region
  $region6: #{vanilla_encoder_forward.31} parent=0 // pred_check
    _
  $region7: #{vanilla_encoder_forward.31} parent=0 // pred_check_branch
    %11 = sbr.rel (0) target = $region9
  $region8: #{vanilla_encoder_forward.31} parent=0 // pred_region
    _
  $region9: #{vanilla_encoder_forward.31} parent=0 // pred_fallthru
    _
  // Predicated region
  $region10: #{vanilla_encoder_forward.31} parent=0 // pred_check
    _
  $region11: #{vanilla_encoder_forward.31} parent=0 // pred_check_branch
    %13 = sbr.rel (0) target = $region13
  $region12: #{vanilla_encoder_forward.31} parent=0 // pred_region
    _
  $region13: #{vanilla_encoder_forward.31} parent=0 // pred_fallthru
    _
  %v15 = vld [vmem:[%s0] sm:$0xf]
  %v16 = vld [vmem:[%s0 + $0x4] sm:$0xf]
  %v17 = vld [vmem:[%s0 + $0x8] sm:$0xf]
  %v18 = vld [vmem:[%s0 + $0xc] sm:$0xf]
  %v19 = vld [vmem:[%s1] sm:$0xf]
  %v20 = vld [vmem:[%s1 + $0x4] sm:$0xf]
  %v21 = vld [vmem:[%s1 + $0x8] sm:$0xf]
  %v22 = vld [vmem:[%s1 + $0xc] sm:$0xf]
  %v23 = vld [vmem:[%s1 + $0x10] sm:$0xf]
  %v24 = vld [vmem:[%s1 + $0x14] sm:$0xf]
  %v25 = vld [vmem:[%s1 + $0x18] sm:$0xf]
  %v26 = vld [vmem:[%s1 + $0x1c] sm:$0xf]
  %v27 = vld [vmem:[%s1 + $0x20] sm:$0xf]
  %v28 = vld [vmem:[%s1 + $0x24] sm:$0xf]
  %v29 = vld [vmem:[%s1 + $0x28] sm:$0xf]
  %v30 = vld [vmem:[%s1 + $0x2c] sm:$0xf]
  %v31 = vld [vmem:[%s1 + $0x30] sm:$0xf]
  %v32 = vld [vmem:[%s1 + $0x34] sm:$0xf]
  %v33 = vld [vmem:[%s1 + $0x38] sm:$0xf]
  %v34 = vld [vmem:[%s1 + $0x3c] sm:$0xf]
  %v35 = vld [vmem:[%s2] sm:$0x1]
  %v37 = vlaneseq
  %v38 = vshrl.u32 %v37, 7
  %v39 = vsub.s32 0, %v38
  %v40 = vrot.slane %v35, %v39
  %v46 = vunpack.c.l.b16 %v15
  %v47 = vunpack.c.l.b16 %v16
  %v48 = vunpack.c.l.b16 %v17
  %v49 = vunpack.c.l.b16 %v18
  %v50 = vpack.c.b16 %v47, %v46
  %v51 = vpack.c.b16 %v49, %v48
  %v70 = vunpack.c.l.b16 %v19
  %v71 = vunpack.c.l.b16 %v20
  %v72 = vunpack.c.l.b16 %v21
  %v73 = vunpack.c.l.b16 %v22
  %v74 = vunpack.c.l.b16 %v23
  %v75 = vunpack.c.l.b16 %v24
  %v76 = vunpack.c.l.b16 %v25
  %v77 = vunpack.c.l.b16 %v26
  %v78 = vunpack.c.l.b16 %v27
  %v79 = vunpack.c.l.b16 %v28
  %v80 = vunpack.c.l.b16 %v29
  %v81 = vunpack.c.l.b16 %v30
  %v82 = vunpack.c.l.b16 %v31
  %v83 = vunpack.c.l.b16 %v32
  %v84 = vunpack.c.l.b16 %v33
  %v85 = vunpack.c.l.b16 %v34
  %v86 = vpack.c.b16 %v71, %v70
  %v87 = vpack.c.b16 %v73, %v72
  %v88 = vpack.c.b16 %v75, %v74
  %v89 = vpack.c.b16 %v77, %v76
  %v90 = vpack.c.b16 %v79, %v78
  %v91 = vpack.c.b16 %v81, %v80
  %v92 = vpack.c.b16 %v83, %v82
  %v93 = vpack.c.b16 %v85, %v84
  %102 = vmatprep.subr.bf16.mxu0 0
  %103 = vmatpush1.bf16.msra.mxu0 %v86
  %104 = vmatprep.subr.bf16.mxu0 0
  %105 = vmatpush1.bf16.msra.mxu0 %v87
  %106 = vmatprep.subr.bf16.mxu0 0
  %107 = vmatpush1.bf16.msra.mxu0 %v88
  %108 = vmatprep.subr.bf16.mxu0 0
  %109 = vmatpush1.bf16.msra.mxu0 %v89
  %110 = vmatprep.subr.bf16.mxu0 0
  %111 = vmatpush1.bf16.msra.mxu0 %v90
  %112 = vmatprep.subr.bf16.mxu0 0
  %113 = vmatpush1.bf16.msra.mxu0 %v91
  %114 = vmatprep.subr.bf16.mxu0 0
  %115 = vmatpush1.bf16.msra.mxu0 %v92
  %116 = vmatprep.subr.bf16.mxu0 0
  %117 = vmatpush1.bf16.msra.mxu0 %v93
  %118 = vmatprep.subr.bf16.mxu0 0
  %119 = vmatpush1.bf16.msra.mxu0 0
  %120 = vmatprep.subr.bf16.mxu0 0
  %121 = vmatpush1.bf16.msra.mxu0 0
  %122 = vmatprep.subr.bf16.mxu0 0
  %123 = vmatpush1.bf16.msra.mxu0 0
  %124 = vmatprep.subr.bf16.mxu0 0
  %125 = vmatpush1.bf16.msra.mxu0 0
  %126 = vmatprep.subr.bf16.mxu0 0
  %127 = vmatpush1.bf16.msra.mxu0 0
  %128 = vmatprep.subr.bf16.mxu0 0
  %129 = vmatpush1.bf16.msra.mxu0 0
  %130 = vmatprep.subr.bf16.mxu0 0
  %131 = vmatpush1.bf16.msra.mxu0 0
  %132 = vmatprep.subr.bf16.mxu0 0
  %133 = vmatpush1.bf16.msra.mxu0 0
  %134 = vmatprep.mubr.bf16.mxu0 0
  %135 = vmatmul.mubr.bf16.gmra.mrb[0].mxu0 %v50
  %v136 = vpop.f32.mrb[0].mxu0
  %v137 = vadd.f32 %v40, %v136
  %v138 = vpop.f32.mrb[0].mxu0
  %v139 = vpop.f32.mrb[0].mxu0
  %v140 = vadd.f32 %v40, %v139
  %v141 = vpop.f32.mrb[0].mxu0
  %142 = vmatprep.mubr.bf16.mxu0 0
  %143 = vmatmul.mubr.bf16.gmra.mrb[0].mxu0 %v51
  %v144 = vpop.f32.mrb[0].mxu0
  %v145 = vadd.f32 %v40, %v144
  %v146 = vpop.f32.mrb[0].mxu0
  %v147 = vpop.f32.mrb[0].mxu0
  %v148 = vadd.f32 %v40, %v147
  %v149 = vpop.f32.mrb[0].mxu0
  %150 = vdwg.mxu0
  %151 = vst [vmem:[%s3] sm:$0xff] %v137
  %152 = vst [vmem:[%s3 + $0x8] sm:$0xff] %v140
  %153 = vst [vmem:[%s3 + $0x10] sm:$0xff] %v145
  %154 = vst [vmem:[%s3 + $0x18] sm:$0xff] %v148
  // Predicated region
  $region14: #{vanilla_encoder_forward.31} parent=0 // pred_check
    _
  $region15: #{vanilla_encoder_forward.31} parent=0 // pred_check_branch
    %156 = sbr.rel (0) target = $region17
  $region16: #{vanilla_encoder_forward.31} parent=0 // pred_region
    _
  $region17: #{vanilla_encoder_forward.31} parent=0 // pred_fallthru
    _
  // Predicated region
  $region18: #{vanilla_encoder_forward.31} parent=0 // pred_check
    _
  $region19: #{vanilla_encoder_forward.31} parent=0 // pred_check_branch
    %158 = sbr.rel (0) target = $region21
  $region20: #{vanilla_encoder_forward.31} parent=0 // pred_region
    _
  $region21: #{vanilla_encoder_forward.31} parent=0 // pred_fallthru
    _

// kernel: vanilla_encoder_forward.35
$region0: #{vanilla_encoder_forward.35}
  #allocation0 [shape = 'u32[]', space=smem, size = 0x4, offset = 0x4, fixed_abs, tag = 'smem constant byte address 0x4 - core index']
  #allocation1 [shape = 'u32[144,128]{1,0:T(1,128)}', space=vmem, size = 0x12000, scoped, tag = 'internal scratch']
  %s0 = inlined_call_operand.vmem [shape: f32[8,128], index: 0, kind: input, shape index: {}]
  %s1 = inlined_call_operand.vmem [shape: f32[1,128], index: 1, kind: input, shape index: {}]
  %s2 = inlined_call_operand.vmem [shape: f32[1,128], index: 2, kind: input, shape index: {}]
  %s3 = inlined_call_operand.vmem [shape: f32[1,128], index: 3, kind: input, shape index: {}]
  %s4 = inlined_call_operand.vmem [shape: f32[1,128], index: 4, kind: input, shape index: {}]
  %s5 = inlined_call_operand.vmem [shape: f32[8,128], index: 5, kind: output, shape index: {}]
  %s6 = sld [smem:[#allocation0]]
  $region30: #{vanilla_encoder_forward.35} parent=0
    _
  %s8 = ssub.s32 1, %s6
  %s9 = scalar_select 0, %s8, %s6
  // Predicated region
  $region2: #{vanilla_encoder_forward.35} parent=0 // pred_check
    _
  $region3: #{vanilla_encoder_forward.35} parent=0 // pred_check_branch
    %11 = sbr.rel (0) target = $region5
  $region4: #{vanilla_encoder_forward.35} parent=0 // pred_region
    _
  $region5: #{vanilla_encoder_forward.35} parent=0 // pred_fallthru
    _
  // Predicated region
  $region6: #{vanilla_encoder_forward.35} parent=0 // pred_check
    _
  $region7: #{vanilla_encoder_forward.35} parent=0 // pred_check_branch
    %13 = sbr.rel (0) target = $region9
  $region8: #{vanilla_encoder_forward.35} parent=0 // pred_region
    _
  $region9: #{vanilla_encoder_forward.35} parent=0 // pred_fallthru
    _
  // Predicated region
  $region10: #{vanilla_encoder_forward.35} parent=0 // pred_check
    _
  $region11: #{vanilla_encoder_forward.35} parent=0 // pred_check_branch
    %15 = sbr.rel (0) target = $region13
  $region12: #{vanilla_encoder_forward.35} parent=0 // pred_region
    _
  $region13: #{vanilla_encoder_forward.35} parent=0 // pred_fallthru
    _
  // Predicated region
  $region14: #{vanilla_encoder_forward.35} parent=0 // pred_check
    _
  $region15: #{vanilla_encoder_forward.35} parent=0 // pred_check_branch
    %17 = sbr.rel (0) target = $region17
  $region16: #{vanilla_encoder_forward.35} parent=0 // pred_region
    _
  $region17: #{vanilla_encoder_forward.35} parent=0 // pred_fallthru
    _
  // Predicated region
  $region18: #{vanilla_encoder_forward.35} parent=0 // pred_check
    _
  $region19: #{vanilla_encoder_forward.35} parent=0 // pred_check_branch
    %19 = sbr.rel (0) target = $region21
  $region20: #{vanilla_encoder_forward.35} parent=0 // pred_region
    _
  $region21: #{vanilla_encoder_forward.35} parent=0 // pred_fallthru
    _
  %v20 = vld [vmem:[%s1] sm:$0x1]
  %v21 = vmul.f32 %v20, 0.125
  %v22 = vld [vmem:[%s2] sm:$0x1]
  %v23 = vmul.f32 %v22, 0.125
  %v24 = vmul.f32 %v21, %v21
  %v25 = vsub.f32 %v23, %v24
  %v26 = vmax.f32 %v25, 0.0
  %v27 = vld [vmem:[%s3] sm:$0x1]
  %v28 = vadd.f32 %v26, 1e-05
  %v29 = vrsqrt.pop %v28
  %v30 = vmul.f32 %v27, %v29
  %v31 = vld [vmem:[%s4] sm:$0x1]
  %v32 = vmul.f32 %v21, %v30
  %v33 = vsub.f32 %v31, %v32
  %v34 = vld [vmem:[%s0] sm:$0xff]
  %v36 = vlaneseq
  %v37 = vshrl.u32 %v36, 7
  %v38 = vsub.s32 0, %v37
  %v39 = vrot.slane %v30, %v38
  %v41 = vmul.f32 %v34, %v39
  %v43 = vlaneseq
  %v44 = vshrl.u32 %v43, 7
  %v45 = vsub.s32 0, %v44
  %v46 = vrot.slane %v33, %v45
  %v48 = vadd.f32 %v41, %v46
  %v49 = vmul.f32 %v48, 0.5
  %v50 = vmul.f32 %v48, 0.70710677
  %v51 = verf.f32.pop %v50
  %v52 = vadd.f32 %v51, 1.0
  %v53 = vmul.f32 %v49, %v52
  %54 = vst [vmem:[%s5] sm:$0xff] %v53
  // Predicated region
  $region22: #{vanilla_encoder_forward.35} parent=0 // pred_check
    _
  $region23: #{vanilla_encoder_forward.35} parent=0 // pred_check_branch
    %56 = sbr.rel (0) target = $region25
  $region24: #{vanilla_encoder_forward.35} parent=0 // pred_region
    _
  $region25: #{vanilla_encoder_forward.35} parent=0 // pred_fallthru
    _
  // Predicated region
  $region26: #{vanilla_encoder_forward.35} parent=0 // pred_check
    _
  $region27: #{vanilla_encoder_forward.35} parent=0 // pred_check_branch
    %58 = sbr.rel (0) target = $region29
  $region28: #{vanilla_encoder_forward.35} parent=0 // pred_region
    _
  $region29: #{vanilla_encoder_forward.35} parent=0 // pred_fallthru
    _

// kernel: vanilla_encoder_forward.34
$region0: #{vanilla_encoder_forward.34}
  #allocation0 [shape = 'u32[]', space=smem, size = 0x4, offset = 0x4, fixed_abs, tag = 'smem constant byte address 0x4 - core index']
  #allocation1 [shape = 'u32[144,128]{1,0:T(1,128)}', space=vmem, size = 0x12000, scoped, tag = 'internal scratch']
  %s0 = inlined_call_operand.vmem [shape: bf16[8,1152], index: 0, kind: input, shape index: {}]
  %s1 = inlined_call_operand.vmem [shape: bf16[1152,128], index: 1, kind: input, shape index: {}]
  %s2 = inlined_call_operand.vmem [shape: f32[8,128], index: 2, kind: output, shape index: {0}]
  %s3 = inlined_call_operand.vmem [shape: f32[1,128], index: 3, kind: output, shape index: {1}]
  %s4 = inlined_call_operand.vmem [shape: f32[1,128], index: 4, kind: output, shape index: {2}]
  %5 = xla_tuple %s2, %s3, %s4
  %s6 = sld [smem:[#allocation0]]
  $region38: #{vanilla_encoder_forward.34} parent=0
    _
  %s8 = ssub.s32 1, %s6
  %s9 = scalar_select 0, %s8, %s6
  // Predicated region
  $region2: #{vanilla_encoder_forward.34} parent=0 // pred_check
    _
  $region3: #{vanilla_encoder_forward.34} parent=0 // pred_check_branch
    %11 = sbr.rel (0) target = $region5
  $region4: #{vanilla_encoder_forward.34} parent=0 // pred_region
    _
  $region5: #{vanilla_encoder_forward.34} parent=0 // pred_fallthru
    _
  // Predicated region
  $region6: #{vanilla_encoder_forward.34} parent=0 // pred_check
    _
  $region7: #{vanilla_encoder_forward.34} parent=0 // pred_check_branch
    %13 = sbr.rel (0) target = $region9
  $region8: #{vanilla_encoder_forward.34} parent=0 // pred_region
    _
  $region9: #{vanilla_encoder_forward.34} parent=0 // pred_fallthru
    _
  %v15 = vld [vmem:[%s0] sm:$0xff]
  %v16 = vld [vmem:[%s0 + $0x8] sm:$0xff]
  %v17 = vld [vmem:[%s0 + $0x10] sm:$0xff]
  %v18 = vld [vmem:[%s0 + $0x18] sm:$0xff]
  %v19 = vld [vmem:[%s0 + $0x20] sm:$0xf]
  %v20 = vld [vmem:[%s1] sm:$0xf]
  %v21 = vld [vmem:[%s1 + $0x4] sm:$0xf]
  %v22 = vld [vmem:[%s1 + $0x8] sm:$0xf]
  %v23 = vld [vmem:[%s1 + $0xc] sm:$0xf]
  %v24 = vld [vmem:[%s1 + $0x10] sm:$0xf]
  %v25 = vld [vmem:[%s1 + $0x14] sm:$0xf]
  %v26 = vld [vmem:[%s1 + $0x18] sm:$0xf]
  %v27 = vld [vmem:[%s1 + $0x1c] sm:$0xf]
  %v28 = vld [vmem:[%s1 + $0x20] sm:$0xf]
  %v29 = vld [vmem:[%s1 + $0x24] sm:$0xf]
  %v30 = vld [vmem:[%s1 + $0x28] sm:$0xf]
  %v31 = vld [vmem:[%s1 + $0x2c] sm:$0xf]
  %v32 = vld [vmem:[%s1 + $0x30] sm:$0xf]
  %v33 = vld [vmem:[%s1 + $0x34] sm:$0xf]
  %v34 = vld [vmem:[%s1 + $0x38] sm:$0xf]
  %v35 = vld [vmem:[%s1 + $0x3c] sm:$0xf]
  %v36 = vld [vmem:[%s1 + $0x40] sm:$0xf]
  %v37 = vld [vmem:[%s1 + $0x44] sm:$0xf]
  %v38 = vld [vmem:[%s1 + $0x48] sm:$0xf]
  %v39 = vld [vmem:[%s1 + $0x4c] sm:$0xf]
  %v40 = vld [vmem:[%s1 + $0x50] sm:$0xf]
  %v41 = vld [vmem:[%s1 + $0x54] sm:$0xf]
  %v42 = vld [vmem:[%s1 + $0x58] sm:$0xf]
  %v43 = vld [vmem:[%s1 + $0x5c] sm:$0xf]
  %v44 = vld [vmem:[%s1 + $0x60] sm:$0xf]
  %v45 = vld [vmem:[%s1 + $0x64] sm:$0xf]
  %v46 = vld [vmem:[%s1 + $0x68] sm:$0xf]
  %v47 = vld [vmem:[%s1 + $0x6c] sm:$0xf]
  %v48 = vld [vmem:[%s1 + $0x70] sm:$0xf]
  %v49 = vld [vmem:[%s1 + $0x74] sm:$0xf]
  %v50 = vld [vmem:[%s1 + $0x78] sm:$0xf]
  %v51 = vld [vmem:[%s1 + $0x7c] sm:$0xf]
  %v52 = vld [vmem:[%s1 + $0x80] sm:$0xf]
  %v53 = vld [vmem:[%s1 + $0x84] sm:$0xf]
  %v54 = vld [vmem:[%s1 + $0x88] sm:$0xf]
  %v55 = vld [vmem:[%s1 + $0x8c] sm:$0xf]
  %v56 = vld [vmem:[%s1 + $0x90] sm:$0xf]
  %v57 = vld [vmem:[%s1 + $0x94] sm:$0xf]
  %v58 = vld [vmem:[%s1 + $0x98] sm:$0xf]
  %v59 = vld [vmem:[%s1 + $0x9c] sm:$0xf]
  %v60 = vld [vmem:[%s1 + $0xa0] sm:$0xf]
  %v61 = vld [vmem:[%s1 + $0xa4] sm:$0xf]
  %v62 = vld [vmem:[%s1 + $0xa8] sm:$0xf]
  %v63 = vld [vmem:[%s1 + $0xac] sm:$0xf]
  %v64 = vld [vmem:[%s1 + $0xb0] sm:$0xf]
  %v65 = vld [vmem:[%s1 + $0xb4] sm:$0xf]
  %v66 = vld [vmem:[%s1 + $0xb8] sm:$0xf]
  %v67 = vld [vmem:[%s1 + $0xbc] sm:$0xf]
  %v68 = vld [vmem:[%s1 + $0xc0] sm:$0xf]
  %v69 = vld [vmem:[%s1 + $0xc4] sm:$0xf]
  %v70 = vld [vmem:[%s1 + $0xc8] sm:$0xf]
  %v71 = vld [vmem:[%s1 + $0xcc] sm:$0xf]
  %v72 = vld [vmem:[%s1 + $0xd0] sm:$0xf]
  %v73 = vld [vmem:[%s1 + $0xd4] sm:$0xf]
  %v74 = vld [vmem:[%s1 + $0xd8] sm:$0xf]
  %v75 = vld [vmem:[%s1 + $0xdc] sm:$0xf]
  %v76 = vld [vmem:[%s1 + $0xe0] sm:$0xf]
  %v77 = vld [vmem:[%s1 + $0xe4] sm:$0xf]
  %v78 = vld [vmem:[%s1 + $0xe8] sm:$0xf]
  %v79 = vld [vmem:[%s1 + $0xec] sm:$0xf]
  %v80 = vld [vmem:[%s1 + $0xf0] sm:$0xf]
  %v81 = vld [vmem:[%s1 + $0xf4] sm:$0xf]
  %v82 = vld [vmem:[%s1 + $0xf8] sm:$0xf]
  %v83 = vld [vmem:[%s1 + $0xfc] sm:$0xf]
  %v84 = vld [vmem:[%s1 + $0x100] sm:$0xf]
  %v85 = vld [vmem:[%s1 + $0x104] sm:$0xf]
  %v86 = vld [vmem:[%s1 + $0x108] sm:$0xf]
  %v87 = vld [vmem:[%s1 + $0x10c] sm:$0xf]
  %v88 = vld [vmem:[%s1 + $0x110] sm:$0xf]
  %v89 = vld [vmem:[%s1 + $0x114] sm:$0xf]
  %v90 = vld [vmem:[%s1 + $0x118] sm:$0xf]
  %v91 = vld [vmem:[%s1 + $0x11c] sm:$0xf]
  %v92 = vld [vmem:[%s1 + $0x120] sm:$0xf]
  %v93 = vld [vmem:[%s1 + $0x124] sm:$0xf]
  %v94 = vld [vmem:[%s1 + $0x128] sm:$0xf]
  %v95 = vld [vmem:[%s1 + $0x12c] sm:$0xf]
  %v96 = vld [vmem:[%s1 + $0x130] sm:$0xf]
  %v97 = vld [vmem:[%s1 + $0x134] sm:$0xf]
  %v98 = vld [vmem:[%s1 + $0x138] sm:$0xf]
  %v99 = vld [vmem:[%s1 + $0x13c] sm:$0xf]
  %v100 = vld [vmem:[%s1 + $0x140] sm:$0xf]
  %v101 = vld [vmem:[%s1 + $0x144] sm:$0xf]
  %v102 = vld [vmem:[%s1 + $0x148] sm:$0xf]
  %v103 = vld [vmem:[%s1 + $0x14c] sm:$0xf]
  %v104 = vld [vmem:[%s1 + $0x150] sm:$0xf]
  %v105 = vld [vmem:[%s1 + $0x154] sm:$0xf]
  %v106 = vld [vmem:[%s1 + $0x158] sm:$0xf]
  %v107 = vld [vmem:[%s1 + $0x15c] sm:$0xf]
  %v108 = vld [vmem:[%s1 + $0x160] sm:$0xf]
  %v109 = vld [vmem:[%s1 + $0x164] sm:$0xf]
  %v110 = vld [vmem:[%s1 + $0x168] sm:$0xf]
  %v111 = vld [vmem:[%s1 + $0x16c] sm:$0xf]
  %v112 = vld [vmem:[%s1 + $0x170] sm:$0xf]
  %v113 = vld [vmem:[%s1 + $0x174] sm:$0xf]
  %v114 = vld [vmem:[%s1 + $0x178] sm:$0xf]
  %v115 = vld [vmem:[%s1 + $0x17c] sm:$0xf]
  %v116 = vld [vmem:[%s1 + $0x180] sm:$0xf]
  %v117 = vld [vmem:[%s1 + $0x184] sm:$0xf]
  %v118 = vld [vmem:[%s1 + $0x188] sm:$0xf]
  %v119 = vld [vmem:[%s1 + $0x18c] sm:$0xf]
  %v120 = vld [vmem:[%s1 + $0x190] sm:$0xf]
  %v121 = vld [vmem:[%s1 + $0x194] sm:$0xf]
  %v122 = vld [vmem:[%s1 + $0x198] sm:$0xf]
  %v123 = vld [vmem:[%s1 + $0x19c] sm:$0xf]
  %v124 = vld [vmem:[%s1 + $0x1a0] sm:$0xf]
  %v125 = vld [vmem:[%s1 + $0x1a4] sm:$0xf]
  %v126 = vld [vmem:[%s1 + $0x1a8] sm:$0xf]
  %v127 = vld [vmem:[%s1 + $0x1ac] sm:$0xf]
  %v128 = vld [vmem:[%s1 + $0x1b0] sm:$0xf]
  %v129 = vld [vmem:[%s1 + $0x1b4] sm:$0xf]
  %v130 = vld [vmem:[%s1 + $0x1b8] sm:$0xf]
  %v131 = vld [vmem:[%s1 + $0x1bc] sm:$0xf]
  %v132 = vld [vmem:[%s1 + $0x1c0] sm:$0xf]
  %v133 = vld [vmem:[%s1 + $0x1c4] sm:$0xf]
  %v134 = vld [vmem:[%s1 + $0x1c8] sm:$0xf]
  %v135 = vld [vmem:[%s1 + $0x1cc] sm:$0xf]
  %v136 = vld [vmem:[%s1 + $0x1d0] sm:$0xf]
  %v137 = vld [vmem:[%s1 + $0x1d4] sm:$0xf]
  %v138 = vld [vmem:[%s1 + $0x1d8] sm:$0xf]
  %v139 = vld [vmem:[%s1 + $0x1dc] sm:$0xf]
  %v140 = vld [vmem:[%s1 + $0x1e0] sm:$0xf]
  %v141 = vld [vmem:[%s1 + $0x1e4] sm:$0xf]
  %v142 = vld [vmem:[%s1 + $0x1e8] sm:$0xf]
  %v143 = vld [vmem:[%s1 + $0x1ec] sm:$0xf]
  %v144 = vld [vmem:[%s1 + $0x1f0] sm:$0xf]
  %v145 = vld [vmem:[%s1 + $0x1f4] sm:$0xf]
  %v146 = vld [vmem:[%s1 + $0x1f8] sm:$0xf]
  %v147 = vld [vmem:[%s1 + $0x1fc] sm:$0xf]
  %v148 = vld [vmem:[%s1 + $0x200] sm:$0xf]
  %v149 = vld [vmem:[%s1 + $0x204] sm:$0xf]
  %v150 = vld [vmem:[%s1 + $0x208] sm:$0xf]
  %v151 = vld [vmem:[%s1 + $0x20c] sm:$0xf]
  %v152 = vld [vmem:[%s1 + $0x210] sm:$0xf]
  %v153 = vld [vmem:[%s1 + $0x214] sm:$0xf]
  %v154 = vld [vmem:[%s1 + $0x218] sm:$0xf]
  %v155 = vld [vmem:[%s1 + $0x21c] sm:$0xf]
  %v156 = vld [vmem:[%s1 + $0x220] sm:$0xf]
  %v157 = vld [vmem:[%s1 + $0x224] sm:$0xf]
  %v158 = vld [vmem:[%s1 + $0x228] sm:$0xf]
  %v159 = vld [vmem:[%s1 + $0x22c] sm:$0xf]
  %v160 = vld [vmem:[%s1 + $0x230] sm:$0xf]
  %v161 = vld [vmem:[%s1 + $0x234] sm:$0xf]
  %v162 = vld [vmem:[%s1 + $0x238] sm:$0xf]
  %v163 = vld [vmem:[%s1 + $0x23c] sm:$0xf]
  %v169 = vunpack.c.l.b16 %v15
  %v170 = vunpack.c.h.b16 %v15
  %v171 = vunpack.c.l.b16 %v16
  %v172 = vunpack.c.h.b16 %v16
  %v173 = vunpack.c.l.b16 %v17
  %v174 = vunpack.c.h.b16 %v17
  %v175 = vunpack.c.l.b16 %v18
  %v176 = vunpack.c.h.b16 %v18
  %v177 = vunpack.c.l.b16 %v19
  %v178 = vpack.c.b16 %v169, %v169
  %v179 = vpack.c.b16 %v170, %v170
  %v180 = vpack.c.b16 %v171, %v171
  %v181 = vpack.c.b16 %v172, %v172
  %v182 = vpack.c.b16 %v173, %v173
  %v183 = vpack.c.b16 %v174, %v174
  %v184 = vpack.c.b16 %v175, %v175
  %v185 = vpack.c.b16 %v176, %v176
  %v186 = vpack.c.b16 %v177, %v177
  %v340 = vunpack.c.l.b16 %v20
  %v341 = vunpack.c.l.b16 %v21
  %v342 = vunpack.c.l.b16 %v22
  %v343 = vunpack.c.l.b16 %v23
  %v344 = vunpack.c.l.b16 %v24
  %v345 = vunpack.c.l.b16 %v25
  %v346 = vunpack.c.l.b16 %v26
  %v347 = vunpack.c.l.b16 %v27
  %v348 = vunpack.c.l.b16 %v28
  %v349 = vunpack.c.l.b16 %v29
  %v350 = vunpack.c.l.b16 %v30
  %v351 = vunpack.c.l.b16 %v31
  %v352 = vunpack.c.l.b16 %v32
  %v353 = vunpack.c.l.b16 %v33
  %v354 = vunpack.c.l.b16 %v34
  %v355 = vunpack.c.l.b16 %v35
  %v356 = vunpack.c.l.b16 %v36
  %v357 = vunpack.c.l.b16 %v37
  %v358 = vunpack.c.l.b16 %v38
  %v359 = vunpack.c.l.b16 %v39
  %v360 = vunpack.c.l.b16 %v40
  %v361 = vunpack.c.l.b16 %v41
  %v362 = vunpack.c.l.b16 %v42
  %v363 = vunpack.c.l.b16 %v43
  %v364 = vunpack.c.l.b16 %v44
  %v365 = vunpack.c.l.b16 %v45
  %v366 = vunpack.c.l.b16 %v46
  %v367 = vunpack.c.l.b16 %v47
  %v368 = vunpack.c.l.b16 %v48
  %v369 = vunpack.c.l.b16 %v49
  %v370 = vunpack.c.l.b16 %v50
  %v371 = vunpack.c.l.b16 %v51
  %v372 = vunpack.c.l.b16 %v52
  %v373 = vunpack.c.l.b16 %v53
  %v374 = vunpack.c.l.b16 %v54
  %v375 = vunpack.c.l.b16 %v55
  %v376 = vunpack.c.l.b16 %v56
  %v377 = vunpack.c.l.b16 %v57
  %v378 = vunpack.c.l.b16 %v58
  %v379 = vunpack.c.l.b16 %v59
  %v380 = vunpack.c.l.b16 %v60
  %v381 = vunpack.c.l.b16 %v61
  %v382 = vunpack.c.l.b16 %v62
  %v383 = vunpack.c.l.b16 %v63
  %v384 = vunpack.c.l.b16 %v64
  %v385 = vunpack.c.l.b16 %v65
  %v386 = vunpack.c.l.b16 %v66
  %v387 = vunpack.c.l.b16 %v67
  %v388 = vunpack.c.l.b16 %v68
  %v389 = vunpack.c.l.b16 %v69
  %v390 = vunpack.c.l.b16 %v70
  %v391 = vunpack.c.l.b16 %v71
  %v392 = vunpack.c.l.b16 %v72
  %v393 = vunpack.c.l.b16 %v73
  %v394 = vunpack.c.l.b16 %v74
  %v395 = vunpack.c.l.b16 %v75
  %v396 = vunpack.c.l.b16 %v76
  %v397 = vunpack.c.l.b16 %v77
  %v398 = vunpack.c.l.b16 %v78
  %v399 = vunpack.c.l.b16 %v79
  %v400 = vunpack.c.l.b16 %v80
  %v401 = vunpack.c.l.b16 %v81
  %v402 = vunpack.c.l.b16 %v82
  %v403 = vunpack.c.l.b16 %v83
  %v404 = vunpack.c.l.b16 %v84
  %v405 = vunpack.c.l.b16 %v85
  %v406 = vunpack.c.l.b16 %v86
  %v407 = vunpack.c.l.b16 %v87
  %v408 = vunpack.c.l.b16 %v88
  %v409 = vunpack.c.l.b16 %v89
  %v410 = vunpack.c.l.b16 %v90
  %v411 = vunpack.c.l.b16 %v91
  %v412 = vunpack.c.l.b16 %v92
  %v413 = vunpack.c.l.b16 %v93
  %v414 = vunpack.c.l.b16 %v94
  %v415 = vunpack.c.l.b16 %v95
  %v416 = vunpack.c.l.b16 %v96
  %v417 = vunpack.c.l.b16 %v97
  %v418 = vunpack.c.l.b16 %v98
  %v419 = vunpack.c.l.b16 %v99
  %v420 = vunpack.c.l.b16 %v100
  %v421 = vunpack.c.l.b16 %v101
  %v422 = vunpack.c.l.b16 %v102
  %v423 = vunpack.c.l.b16 %v103
  %v424 = vunpack.c.l.b16 %v104
  %v425 = vunpack.c.l.b16 %v105
  %v426 = vunpack.c.l.b16 %v106
  %v427 = vunpack.c.l.b16 %v107
  %v428 = vunpack.c.l.b16 %v108
  %v429 = vunpack.c.l.b16 %v109
  %v430 = vunpack.c.l.b16 %v110
  %v431 = vunpack.c.l.b16 %v111
  %v432 = vunpack.c.l.b16 %v112
  %v433 = vunpack.c.l.b16 %v113
  %v434 = vunpack.c.l.b16 %v114
  %v435 = vunpack.c.l.b16 %v115
  %v436 = vunpack.c.l.b16 %v116
  %v437 = vunpack.c.l.b16 %v117
  %v438 = vunpack.c.l.b16 %v118
  %v439 = vunpack.c.l.b16 %v119
  %v440 = vunpack.c.l.b16 %v120
  %v441 = vunpack.c.l.b16 %v121
  %v442 = vunpack.c.l.b16 %v122
  %v443 = vunpack.c.l.b16 %v123
  %v444 = vunpack.c.l.b16 %v124
  %v445 = vunpack.c.l.b16 %v125
  %v446 = vunpack.c.l.b16 %v126
  %v447 = vunpack.c.l.b16 %v127
  %v448 = vunpack.c.l.b16 %v128
  %v449 = vunpack.c.l.b16 %v129
  %v450 = vunpack.c.l.b16 %v130
  %v451 = vunpack.c.l.b16 %v131
  %v452 = vunpack.c.l.b16 %v132
  %v453 = vunpack.c.l.b16 %v133
  %v454 = vunpack.c.l.b16 %v134
  %v455 = vunpack.c.l.b16 %v135
  %v456 = vunpack.c.l.b16 %v136
  %v457 = vunpack.c.l.b16 %v137
  %v458 = vunpack.c.l.b16 %v138
  %v459 = vunpack.c.l.b16 %v139
  %v460 = vunpack.c.l.b16 %v140
  %v461 = vunpack.c.l.b16 %v141
  %v462 = vunpack.c.l.b16 %v142
  %v463 = vunpack.c.l.b16 %v143
  %v464 = vunpack.c.l.b16 %v144
  %v465 = vunpack.c.l.b16 %v145
  %v466 = vunpack.c.l.b16 %v146
  %v467 = vunpack.c.l.b16 %v147
  %v468 = vunpack.c.l.b16 %v148
  %v469 = vunpack.c.l.b16 %v149
  %v470 = vunpack.c.l.b16 %v150
  %v471 = vunpack.c.l.b16 %v151
  %v472 = vunpack.c.l.b16 %v152
  %v473 = vunpack.c.l.b16 %v153
  %v474 = vunpack.c.l.b16 %v154
  %v475 = vunpack.c.l.b16 %v155
  %v476 = vunpack.c.l.b16 %v156
  %v477 = vunpack.c.l.b16 %v157
  %v478 = vunpack.c.l.b16 %v158
  %v479 = vunpack.c.l.b16 %v159
  %v480 = vunpack.c.l.b16 %v160
  %v481 = vunpack.c.l.b16 %v161
  %v482 = vunpack.c.l.b16 %v162
  %v483 = vunpack.c.l.b16 %v163
  %v484 = vpack.c.b16 %v341, %v340
  %v485 = vpack.c.b16 %v343, %v342
  %v486 = vpack.c.b16 %v345, %v344
  %v487 = vpack.c.b16 %v347, %v346
  %v488 = vpack.c.b16 %v349, %v348
  %v489 = vpack.c.b16 %v351, %v350
  %v490 = vpack.c.b16 %v353, %v352
  %v491 = vpack.c.b16 %v355, %v354
  %v492 = vpack.c.b16 %v357, %v356
  %v493 = vpack.c.b16 %v359, %v358
  %v494 = vpack.c.b16 %v361, %v360
  %v495 = vpack.c.b16 %v363, %v362
  %v496 = vpack.c.b16 %v365, %v364
  %v497 = vpack.c.b16 %v367, %v366
  %v498 = vpack.c.b16 %v369, %v368
  %v499 = vpack.c.b16 %v371, %v370
  %v500 = vpack.c.b16 %v373, %v372
  %v501 = vpack.c.b16 %v375, %v374
  %v502 = vpack.c.b16 %v377, %v376
  %v503 = vpack.c.b16 %v379, %v378
  %v504 = vpack.c.b16 %v381, %v380
  %v505 = vpack.c.b16 %v383, %v382
  %v506 = vpack.c.b16 %v385, %v384
  %v507 = vpack.c.b16 %v387, %v386
  %v508 = vpack.c.b16 %v389, %v388
  %v509 = vpack.c.b16 %v391, %v390
  %v510 = vpack.c.b16 %v393, %v392
  %v511 = vpack.c.b16 %v395, %v394
  %v512 = vpack.c.b16 %v397, %v396
  %v513 = vpack.c.b16 %v399, %v398
  %v514 = vpack.c.b16 %v401, %v400
  %v515 = vpack.c.b16 %v403, %v402
  %v516 = vpack.c.b16 %v405, %v404
  %v517 = vpack.c.b16 %v407, %v406
  %v518 = vpack.c.b16 %v409, %v408
  %v519 = vpack.c.b16 %v411, %v410
  %v520 = vpack.c.b16 %v413, %v412
  %v521 = vpack.c.b16 %v415, %v414
  %v522 = vpack.c.b16 %v417, %v416
  %v523 = vpack.c.b16 %v419, %v418
  %v524 = vpack.c.b16 %v421, %v420
  %v525 = vpack.c.b16 %v423, %v422
  %v526 = vpack.c.b16 %v425, %v424
  %v527 = vpack.c.b16 %v427, %v426
  %v528 = vpack.c.b16 %v429, %v428
  %v529 = vpack.c.b16 %v431, %v430
  %v530 = vpack.c.b16 %v433, %v432
  %v531 = vpack.c.b16 %v435, %v434
  %v532 = vpack.c.b16 %v437, %v436
  %v533 = vpack.c.b16 %v439, %v438
  %v534 = vpack.c.b16 %v441, %v440
  %v535 = vpack.c.b16 %v443, %v442
  %v536 = vpack.c.b16 %v445, %v444
  %v537 = vpack.c.b16 %v447, %v446
  %v538 = vpack.c.b16 %v449, %v448
  %v539 = vpack.c.b16 %v451, %v450
  %v540 = vpack.c.b16 %v453, %v452
  %v541 = vpack.c.b16 %v455, %v454
  %v542 = vpack.c.b16 %v457, %v456
  %v543 = vpack.c.b16 %v459, %v458
  %v544 = vpack.c.b16 %v461, %v460
  %v545 = vpack.c.b16 %v463, %v462
  %v546 = vpack.c.b16 %v465, %v464
  %v547 = vpack.c.b16 %v467, %v466
  %v548 = vpack.c.b16 %v469, %v468
  %v549 = vpack.c.b16 %v471, %v470
  %v550 = vpack.c.b16 %v473, %v472
  %v551 = vpack.c.b16 %v475, %v474
  %v552 = vpack.c.b16 %v477, %v476
  %v553 = vpack.c.b16 %v479, %v478
  %v554 = vpack.c.b16 %v481, %v480
  %v555 = vpack.c.b16 %v483, %v482
  %628 = vmatprep.subr.bf16.mxu0 0
  %629 = vmatpush1.bf16.msra.mxu0 %v484
  %630 = vmatprep.subr.bf16.mxu0 0
  %631 = vmatpush1.bf16.msra.mxu0 %v485
  %632 = vmatprep.subr.bf16.mxu0 0
  %633 = vmatpush1.bf16.msra.mxu0 %v486
  %634 = vmatprep.subr.bf16.mxu0 0
  %635 = vmatpush1.bf16.msra.mxu0 %v487
  %636 = vmatprep.subr.bf16.mxu0 0
  %637 = vmatpush1.bf16.msra.mxu0 %v488
  %638 = vmatprep.subr.bf16.mxu0 0
  %639 = vmatpush1.bf16.msra.mxu0 %v489
  %640 = vmatprep.subr.bf16.mxu0 0
  %641 = vmatpush1.bf16.msra.mxu0 %v490
  %642 = vmatprep.subr.bf16.mxu0 0
  %643 = vmatpush1.bf16.msra.mxu0 %v491
  %644 = vmatprep.subr.bf16.mxu0 0
  %645 = vmatpush1.bf16.msra.mxu0 %v492
  %646 = vmatprep.subr.bf16.mxu0 0
  %647 = vmatpush1.bf16.msra.mxu0 %v493
  %648 = vmatprep.subr.bf16.mxu0 0
  %649 = vmatpush1.bf16.msra.mxu0 %v494
  %650 = vmatprep.subr.bf16.mxu0 0
  %651 = vmatpush1.bf16.msra.mxu0 %v495
  %652 = vmatprep.subr.bf16.mxu0 0
  %653 = vmatpush1.bf16.msra.mxu0 %v496
  %654 = vmatprep.subr.bf16.mxu0 0
  %655 = vmatpush1.bf16.msra.mxu0 %v497
  %656 = vmatprep.subr.bf16.mxu0 0
  %657 = vmatpush1.bf16.msra.mxu0 %v498
  %658 = vmatprep.subr.bf16.mxu0 0
  %659 = vmatpush1.bf16.msra.mxu0 %v499
  %660 = vmatprep.mubr.bf16.mxu0 %v179
  %661 = vmatmul.mubr.bf16.gmra.mrb[0].mxu0 %v178
  %v662 = vpop.f32.mrb[0].mxu0
  %v663 = vadd.f32 0.0, %v662
  %v664 = vpop.f32.mrb[0].mxu0
  %v665 = vpop.f32.mrb[0].mxu0
  %v666 = vpop.f32.mrb[0].mxu0
  %667 = vdwg.mxu0
  %668 = vmatprep.subr.bf16.mxu0 0
  %669 = vmatpush1.bf16.msra.mxu0 %v500
  %670 = vmatprep.subr.bf16.mxu0 0
  %671 = vmatpush1.bf16.msra.mxu0 %v501
  %672 = vmatprep.subr.bf16.mxu0 0
  %673 = vmatpush1.bf16.msra.mxu0 %v502
  %674 = vmatprep.subr.bf16.mxu0 0
  %675 = vmatpush1.bf16.msra.mxu0 %v503
  %676 = vmatprep.subr.bf16.mxu0 0
  %677 = vmatpush1.bf16.msra.mxu0 %v504
  %678 = vmatprep.subr.bf16.mxu0 0
  %679 = vmatpush1.bf16.msra.mxu0 %v505
  %680 = vmatprep.subr.bf16.mxu0 0
  %681 = vmatpush1.bf16.msra.mxu0 %v506
  %682 = vmatprep.subr.bf16.mxu0 0
  %683 = vmatpush1.bf16.msra.mxu0 %v507
  %684 = vmatprep.subr.bf16.mxu0 0
  %685 = vmatpush1.bf16.msra.mxu0 %v508
  %686 = vmatprep.subr.bf16.mxu0 0
  %687 = vmatpush1.bf16.msra.mxu0 %v509
  %688 = vmatprep.subr.bf16.mxu0 0
  %689 = vmatpush1.bf16.msra.mxu0 %v510
  %690 = vmatprep.subr.bf16.mxu0 0
  %691 = vmatpush1.bf16.msra.mxu0 %v511
  %692 = vmatprep.subr.bf16.mxu0 0
  %693 = vmatpush1.bf16.msra.mxu0 %v512
  %694 = vmatprep.subr.bf16.mxu0 0
  %695 = vmatpush1.bf16.msra.mxu0 %v513
  %696 = vmatprep.subr.bf16.mxu0 0
  %697 = vmatpush1.bf16.msra.mxu0 %v514
  %698 = vmatprep.subr.bf16.mxu0 0
  %699 = vmatpush1.bf16.msra.mxu0 %v515
  %700 = vmatprep.mubr.bf16.mxu0 %v181
  %701 = vmatmul.mubr.bf16.gmra.mrb[0].mxu0 %v180
  %v702 = vpop.f32.mrb[0].mxu0
  %v703 = vadd.f32 %v663, %v702
  %v704 = vpop.f32.mrb[0].mxu0
  %v705 = vpop.f32.mrb[0].mxu0
  %v706 = vpop.f32.mrb[0].mxu0
  %707 = vdwg.mxu0
  %708 = vmatprep.subr.bf16.mxu0 0
  %709 = vmatpush1.bf16.msra.mxu0 %v516
  %710 = vmatprep.subr.bf16.mxu0 0
  %711 = vmatpush1.bf16.msra.mxu0 %v517
  %712 = vmatprep.subr.bf16.mxu0 0
  %713 = vmatpush1.bf16.msra.mxu0 %v518
  %714 = vmatprep.subr.bf16.mxu0 0
  %715 = vmatpush1.bf16.msra.mxu0 %v519
  %716 = vmatprep.subr.bf16.mxu0 0
  %717 = vmatpush1.bf16.msra.mxu0 %v520
  %718 = vmatprep.subr.bf16.mxu0 0
  %719 = vmatpush1.bf16.msra.mxu0 %v521
  %720 = vmatprep.subr.bf16.mxu0 0
  %721 = vmatpush1.bf16.msra.mxu0 %v522
  %722 = vmatprep.subr.bf16.mxu0 0
  %723 = vmatpush1.bf16.msra.mxu0 %v523
  %724 = vmatprep.subr.bf16.mxu0 0
  %725 = vmatpush1.bf16.msra.mxu0 %v524
  %726 = vmatprep.subr.bf16.mxu0 0
  %727 = vmatpush1.bf16.msra.mxu0 %v525
  %728 = vmatprep.subr.bf16.mxu0 0
  %729 = vmatpush1.bf16.msra.mxu0 %v526
  %730 = vmatprep.subr.bf16.mxu0 0
  %731 = vmatpush1.bf16.msra.mxu0 %v527
  %732 = vmatprep.subr.bf16.mxu0 0
  %733 = vmatpush1.bf16.msra.mxu0 %v528
  %734 = vmatprep.subr.bf16.mxu0 0
  %735 = vmatpush1.bf16.msra.mxu0 %v529
  %736 = vmatprep.subr.bf16.mxu0 0
  %737 = vmatpush1.bf16.msra.mxu0 %v530
  %738 = vmatprep.subr.bf16.mxu0 0
  %739 = vmatpush1.bf16.msra.mxu0 %v531
  %740 = vmatprep.mubr.bf16.mxu0 %v183
  %741 = vmatmul.mubr.bf16.gmra.mrb[0].mxu0 %v182
  %v742 = vpop.f32.mrb[0].mxu0
  %v743 = vadd.f32 %v703, %v742
  %v744 = vpop.f32.mrb[0].mxu0
  %v745 = vpop.f32.mrb[0].mxu0
  %v746 = vpop.f32.mrb[0].mxu0
  %747 = vdwg.mxu0
  %748 = vmatprep.subr.bf16.mxu0 0
  %749 = vmatpush1.bf16.msra.mxu0 %v532
  %750 = vmatprep.subr.bf16.mxu0 0
  %751 = vmatpush1.bf16.msra.mxu0 %v533
  %752 = vmatprep.subr.bf16.mxu0 0
  %753 = vmatpush1.bf16.msra.mxu0 %v534
  %754 = vmatprep.subr.bf16.mxu0 0
  %755 = vmatpush1.bf16.msra.mxu0 %v535
  %756 = vmatprep.subr.bf16.mxu0 0
  %757 = vmatpush1.bf16.msra.mxu0 %v536
  %758 = vmatprep.subr.bf16.mxu0 0
  %759 = vmatpush1.bf16.msra.mxu0 %v537
  %760 = vmatprep.subr.bf16.mxu0 0
  %761 = vmatpush1.bf16.msra.mxu0 %v538
  %762 = vmatprep.subr.bf16.mxu0 0
  %763 = vmatpush1.bf16.msra.mxu0 %v539
  %764 = vmatprep.subr.bf16.mxu0 0
  %765 = vmatpush1.bf16.msra.mxu0 %v540
  %766 = vmatprep.subr.bf16.mxu0 0
  %767 = vmatpush1.bf16.msra.mxu0 %v541
  %768 = vmatprep.subr.bf16.mxu0 0
  %769 = vmatpush1.bf16.msra.mxu0 %v542
  %770 = vmatprep.subr.bf16.mxu0 0
  %771 = vmatpush1.bf16.msra.mxu0 %v543
  %772 = vmatprep.subr.bf16.mxu0 0
  %773 = vmatpush1.bf16.msra.mxu0 %v544
  %774 = vmatprep.subr.bf16.mxu0 0
  %775 = vmatpush1.bf16.msra.mxu0 %v545
  %776 = vmatprep.subr.bf16.mxu0 0
  %777 = vmatpush1.bf16.msra.mxu0 %v546
  %778 = vmatprep.subr.bf16.mxu0 0
  %779 = vmatpush1.bf16.msra.mxu0 %v547
  %780 = vmatprep.mubr.bf16.mxu0 %v185
  %781 = vmatmul.mubr.bf16.gmra.mrb[0].mxu0 %v184
  %v782 = vpop.f32.mrb[0].mxu0
  %v783 = vadd.f32 %v743, %v782
  %v784 = vpop.f32.mrb[0].mxu0
  %v785 = vpop.f32.mrb[0].mxu0
  %v786 = vpop.f32.mrb[0].mxu0
  %787 = vdwg.mxu0
  %788 = vmatprep.subr.bf16.mxu0 0
  %789 = vmatpush1.bf16.msra.mxu0 %v548
  %790 = vmatprep.subr.bf16.mxu0 0
  %791 = vmatpush1.bf16.msra.mxu0 %v549
  %792 = vmatprep.subr.bf16.mxu0 0
  %793 = vmatpush1.bf16.msra.mxu0 %v550
  %794 = vmatprep.subr.bf16.mxu0 0
  %795 = vmatpush1.bf16.msra.mxu0 %v551
  %796 = vmatprep.subr.bf16.mxu0 0
  %797 = vmatpush1.bf16.msra.mxu0 %v552
  %798 = vmatprep.subr.bf16.mxu0 0
  %799 = vmatpush1.bf16.msra.mxu0 %v553
  %800 = vmatprep.subr.bf16.mxu0 0
  %801 = vmatpush1.bf16.msra.mxu0 %v554
  %802 = vmatprep.subr.bf16.mxu0 0
  %803 = vmatpush1.bf16.msra.mxu0 %v555
  %804 = vmatprep.subr.bf16.mxu0 0
  %805 = vmatpush1.bf16.msra.mxu0 0
  %806 = vmatprep.subr.bf16.mxu0 0
  %807 = vmatpush1.bf16.msra.mxu0 0
  %808 = vmatprep.subr.bf16.mxu0 0
  %809 = vmatpush1.bf16.msra.mxu0 0
  %810 = vmatprep.subr.bf16.mxu0 0
  %811 = vmatpush1.bf16.msra.mxu0 0
  %812 = vmatprep.subr.bf16.mxu0 0
  %813 = vmatpush1.bf16.msra.mxu0 0
  %814 = vmatprep.subr.bf16.mxu0 0
  %815 = vmatpush1.bf16.msra.mxu0 0
  %816 = vmatprep.subr.bf16.mxu0 0
  %817 = vmatpush1.bf16.msra.mxu0 0
  %818 = vmatprep.subr.bf16.mxu0 0
  %819 = vmatpush1.bf16.msra.mxu0 0
  %820 = vmatprep.mubr.bf16.mxu0 0
  %821 = vmatmul.mubr.bf16.gmra.mrb[0].mxu0 %v186
  %v822 = vpop.f32.mrb[0].mxu0
  %v823 = vadd.f32 %v783, %v822
  %v824 = vpop.f32.mrb[0].mxu0
  %v825 = vpop.f32.mrb[0].mxu0
  %v826 = vpop.f32.mrb[0].mxu0
  %827 = vdwg.mxu0
  %828 = vst [vmem:[%s2] sm:$0xff] %v823
  %p829 = scmp.eq.s32.totalorder 0, 0
  // Predicated region
  $region10: #{vanilla_encoder_forward.34} parent=0 // pred_check
    %p830 = pneg %p829
  $region11: #{vanilla_encoder_forward.34} parent=0 // pred_check_branch
    %832 = sbr.rel (%p830) target = $region13
  $region12: #{vanilla_encoder_forward.34} parent=0 // pred_region
    %833 = vst [vmem:[%s3] sm:$0x1] 0.0
    %834 = vst [vmem:[%s4] sm:$0x1] 0.0
  $region13: #{vanilla_encoder_forward.34} parent=0 // pred_fallthru
    _
  %v835 = vld [vmem:[%s3] sm:$0x1]
  %v836 = vrot.slane %v823, 4
  %v837 = vadd.f32 %v823, %v836
  %v838 = vrot.slane %v837, 2
  %v839 = vadd.f32 %v837, %v838
  %v840 = vrot.slane %v839, 1
  %v841 = vadd.f32 %v839, %v840
  %v842 = vadd.f32 %v835, %v841
  %843 = vst [vmem:[%s3] sm:$0x1] %v842
  %v844 = vld [vmem:[%s4] sm:$0x1]
  %v845 = vmul.f32 %v823, %v823
  %v846 = vrot.slane %v845, 4
  %v847 = vadd.f32 %v845, %v846
  %v848 = vrot.slane %v847, 2
  %v849 = vadd.f32 %v847, %v848
  %v850 = vrot.slane %v849, 1
  %v851 = vadd.f32 %v849, %v850
  %v852 = vadd.f32 %v844, %v851
  %853 = vst [vmem:[%s4] sm:$0x1] %v852
  // Predicated region
  $region14: #{vanilla_encoder_forward.34} parent=0 // pred_check
    _
  $region15: #{vanilla_encoder_forward.34} parent=0 // pred_check_branch
    %855 = sbr.rel (0) target = $region17
  $region16: #{vanilla_encoder_forward.34} parent=0 // pred_region
    _
  $region17: #{vanilla_encoder_forward.34} parent=0 // pred_fallthru
    _
  // Predicated region
  $region18: #{vanilla_encoder_forward.34} parent=0 // pred_check
    _
  $region19: #{vanilla_encoder_forward.34} parent=0 // pred_check_branch
    %857 = sbr.rel (0) target = $region21
  $region20: #{vanilla_encoder_forward.34} parent=0 // pred_region
    _
  $region21: #{vanilla_encoder_forward.34} parent=0 // pred_fallthru
    _
  // Predicated region
  $region22: #{vanilla_encoder_forward.34} parent=0 // pred_check
    _
  $region23: #{vanilla_encoder_forward.34} parent=0 // pred_check_branch
    %859 = sbr.rel (0) target = $region25
  $region24: #{vanilla_encoder_forward.34} parent=0 // pred_region
    _
  $region25: #{vanilla_encoder_forward.34} parent=0 // pred_fallthru
    _
  // Predicated region
  $region26: #{vanilla_encoder_forward.34} parent=0 // pred_check
    _
  $region27: #{vanilla_encoder_forward.34} parent=0 // pred_check_branch
    %861 = sbr.rel (0) target = $region29
  $region28: #{vanilla_encoder_forward.34} parent=0 // pred_region
    _
  $region29: #{vanilla_encoder_forward.34} parent=0 // pred_fallthru
    _
  // Predicated region
  $region30: #{vanilla_encoder_forward.34} parent=0 // pred_check
    _
  $region31: #{vanilla_encoder_forward.34} parent=0 // pred_check_branch
    %863 = sbr.rel (0) target = $region33
  $region32: #{vanilla_encoder_forward.34} parent=0 // pred_region
    _
  $region33: #{vanilla_encoder_forward.34} parent=0 // pred_fallthru
    _
  // Predicated region
  $region34: #{vanilla_encoder_forward.34} parent=0 // pred_check
    _
  $region35: #{vanilla_encoder_forward.34} parent=0 // pred_check_branch
    %865 = sbr.rel (0) target = $region37
  $region36: #{vanilla_encoder_forward.34} parent=0 // pred_region
    _
  $region37: #{vanilla_encoder_forward.34} parent=0 // pred_fallthru
    _

// kernel: vanilla_encoder_forward.36
$region0: #{vanilla_encoder_forward.36}
  #allocation0 [shape = 'u32[]', space=smem, size = 0x4, offset = 0x4, fixed_abs, tag = 'smem constant byte address 0x4 - core index']
  #allocation1 [shape = 'u32[144,128]{1,0:T(1,128)}', space=vmem, size = 0x12000, scoped, tag = 'internal scratch']
  %s0 = inlined_call_operand.vmem [shape: bf16[8,128], index: 0, kind: input, shape index: {}]
  %s1 = inlined_call_operand.vmem [shape: bf16[128,128], index: 1, kind: input, shape index: {}]
  %s2 = inlined_call_operand.vmem [shape: f32[1,128], index: 2, kind: input, shape index: {}]
  %s3 = inlined_call_operand.vmem [shape: f32[8,128], index: 3, kind: output, shape index: {}]
  %s4 = sld [smem:[#allocation0]]
  $region22: #{vanilla_encoder_forward.36} parent=0
    _
  %s6 = ssub.s32 1, %s4
  %s7 = scalar_select 0, %s6, %s4
  // Predicated region
  $region2: #{vanilla_encoder_forward.36} parent=0 // pred_check
    _
  $region3: #{vanilla_encoder_forward.36} parent=0 // pred_check_branch
    %9 = sbr.rel (0) target = $region5
  $region4: #{vanilla_encoder_forward.36} parent=0 // pred_region
    _
  $region5: #{vanilla_encoder_forward.36} parent=0 // pred_fallthru
    _
  // Predicated region
  $region6: #{vanilla_encoder_forward.36} parent=0 // pred_check
    _
  $region7: #{vanilla_encoder_forward.36} parent=0 // pred_check_branch
    %11 = sbr.rel (0) target = $region9
  $region8: #{vanilla_encoder_forward.36} parent=0 // pred_region
    _
  $region9: #{vanilla_encoder_forward.36} parent=0 // pred_fallthru
    _
  // Predicated region
  $region10: #{vanilla_encoder_forward.36} parent=0 // pred_check
    _
  $region11: #{vanilla_encoder_forward.36} parent=0 // pred_check_branch
    %13 = sbr.rel (0) target = $region13
  $region12: #{vanilla_encoder_forward.36} parent=0 // pred_region
    _
  $region13: #{vanilla_encoder_forward.36} parent=0 // pred_fallthru
    _
  %v15 = vld [vmem:[%s0] sm:$0xf]
  %v16 = vld [vmem:[%s1] sm:$0xf]
  %v17 = vld [vmem:[%s1 + $0x4] sm:$0xf]
  %v18 = vld [vmem:[%s1 + $0x8] sm:$0xf]
  %v19 = vld [vmem:[%s1 + $0xc] sm:$0xf]
  %v20 = vld [vmem:[%s1 + $0x10] sm:$0xf]
  %v21 = vld [vmem:[%s1 + $0x14] sm:$0xf]
  %v22 = vld [vmem:[%s1 + $0x18] sm:$0xf]
  %v23 = vld [vmem:[%s1 + $0x1c] sm:$0xf]
  %v24 = vld [vmem:[%s1 + $0x20] sm:$0xf]
  %v25 = vld [vmem:[%s1 + $0x24] sm:$0xf]
  %v26 = vld [vmem:[%s1 + $0x28] sm:$0xf]
  %v27 = vld [vmem:[%s1 + $0x2c] sm:$0xf]
  %v28 = vld [vmem:[%s1 + $0x30] sm:$0xf]
  %v29 = vld [vmem:[%s1 + $0x34] sm:$0xf]
  %v30 = vld [vmem:[%s1 + $0x38] sm:$0xf]
  %v31 = vld [vmem:[%s1 + $0x3c] sm:$0xf]
  %v32 = vld [vmem:[%s2] sm:$0x1]
  %v34 = vlaneseq
  %v35 = vshrl.u32 %v34, 7
  %v36 = vsub.s32 0, %v35
  %v37 = vrot.slane %v32, %v36
  %v55 = vunpack.c.l.b16 %v16
  %v56 = vunpack.c.l.b16 %v17
  %v57 = vunpack.c.l.b16 %v18
  %v58 = vunpack.c.l.b16 %v19
  %v59 = vunpack.c.l.b16 %v20
  %v60 = vunpack.c.l.b16 %v21
  %v61 = vunpack.c.l.b16 %v22
  %v62 = vunpack.c.l.b16 %v23
  %v63 = vunpack.c.l.b16 %v24
  %v64 = vunpack.c.l.b16 %v25
  %v65 = vunpack.c.l.b16 %v26
  %v66 = vunpack.c.l.b16 %v27
  %v67 = vunpack.c.l.b16 %v28
  %v68 = vunpack.c.l.b16 %v29
  %v69 = vunpack.c.l.b16 %v30
  %v70 = vunpack.c.l.b16 %v31
  %v71 = vpack.c.b16 %v56, %v55
  %v72 = vpack.c.b16 %v58, %v57
  %v73 = vpack.c.b16 %v60, %v59
  %v74 = vpack.c.b16 %v62, %v61
  %v75 = vpack.c.b16 %v64, %v63
  %v76 = vpack.c.b16 %v66, %v65
  %v77 = vpack.c.b16 %v68, %v67
  %v78 = vpack.c.b16 %v70, %v69
  %87 = vmatprep.subr.bf16.mxu0 0
  %88 = vmatpush1.bf16.msra.mxu0 %v71
  %89 = vmatprep.subr.bf16.mxu0 0
  %90 = vmatpush1.bf16.msra.mxu0 %v72
  %91 = vmatprep.subr.bf16.mxu0 0
  %92 = vmatpush1.bf16.msra.mxu0 %v73
  %93 = vmatprep.subr.bf16.mxu0 0
  %94 = vmatpush1.bf16.msra.mxu0 %v74
  %95 = vmatprep.subr.bf16.mxu0 0
  %96 = vmatpush1.bf16.msra.mxu0 %v75
  %97 = vmatprep.subr.bf16.mxu0 0
  %98 = vmatpush1.bf16.msra.mxu0 %v76
  %99 = vmatprep.subr.bf16.mxu0 0
  %100 = vmatpush1.bf16.msra.mxu0 %v77
  %101 = vmatprep.subr.bf16.mxu0 0
  %102 = vmatpush1.bf16.msra.mxu0 %v78
  %103 = vmatprep.subr.bf16.mxu0 0
  %104 = vmatpush1.bf16.msra.mxu0 0
  %105 = vmatprep.subr.bf16.mxu0 0
  %106 = vmatpush1.bf16.msra.mxu0 0
  %107 = vmatprep.subr.bf16.mxu0 0
  %108 = vmatpush1.bf16.msra.mxu0 0
  %109 = vmatprep.subr.bf16.mxu0 0
  %110 = vmatpush1.bf16.msra.mxu0 0
  %111 = vmatprep.subr.bf16.mxu0 0
  %112 = vmatpush1.bf16.msra.mxu0 0
  %113 = vmatprep.subr.bf16.mxu0 0
  %114 = vmatpush1.bf16.msra.mxu0 0
  %115 = vmatprep.subr.bf16.mxu0 0
  %116 = vmatpush1.bf16.msra.mxu0 0
  %117 = vmatprep.subr.bf16.mxu0 0
  %118 = vmatpush1.bf16.msra.mxu0 0
  %119 = vmatprep.mubr.bf16.mxu0 0
  %120 = vmatmul.mubr.bf16.gmra.mrb[0].mxu0 %v15
  %v121 = vpop.f32.mrb[0].mxu0
  %v122 = vadd.f32 %v37, %v121
  %v123 = vpop.f32.mrb[0].mxu0
  %v124 = vpop.f32.mrb[0].mxu0
  %v125 = vpop.f32.mrb[0].mxu0
  %126 = vdwg.mxu0
  %127 = vst [vmem:[%s3] sm:$0xff] %v122
  // Predicated region
  $region14: #{vanilla_encoder_forward.36} parent=0 // pred_check
    _
  $region15: #{vanilla_encoder_forward.36} parent=0 // pred_check_branch
    %129 = sbr.rel (0) target = $region17
  $region16: #{vanilla_encoder_forward.36} parent=0 // pred_region
    _
  $region17: #{vanilla_encoder_forward.36} parent=0 // pred_fallthru
    _
  // Predicated region
  $region18: #{vanilla_encoder_forward.36} parent=0 // pred_check
    _
  $region19: #{vanilla_encoder_forward.36} parent=0 // pred_check_branch
    %131 = sbr.rel (0) target = $region21
  $region20: #{vanilla_encoder_forward.36} parent=0 // pred_region
    _
  $region21: #{vanilla_encoder_forward.36} parent=0 // pred_fallthru
    _

// kernel: vanilla_encoder_forward.38
$region0: #{vanilla_encoder_forward.38}
  #allocation0 [shape = 'u32[]', space=smem, size = 0x4, offset = 0x4, fixed_abs, tag = 'smem constant byte address 0x4 - core index']
  #allocation1 [shape = 'u32[144,128]{1,0:T(1,128)}', space=vmem, size = 0x12000, scoped, tag = 'internal scratch']
  %s0 = inlined_call_operand.vmem [shape: f32[8,128], index: 0, kind: input, shape index: {}]
  %s1 = inlined_call_operand.vmem [shape: f32[1,128], index: 1, kind: input, shape index: {}]
  %s2 = inlined_call_operand.vmem [shape: f32[1,128], index: 2, kind: input, shape index: {}]
  %s3 = inlined_call_operand.vmem [shape: f32[1,128], index: 3, kind: input, shape index: {}]
  %s4 = inlined_call_operand.vmem [shape: f32[1,128], index: 4, kind: input, shape index: {}]
  %s5 = inlined_call_operand.vmem [shape: f32[8,128], index: 5, kind: input, shape index: {}]
  %s6 = inlined_call_operand.vmem [shape: f32[8,128], index: 6, kind: output, shape index: {}]
  %s7 = sld [smem:[#allocation0]]
  $region34: #{vanilla_encoder_forward.38} parent=0
    _
  %s9 = ssub.s32 1, %s7
  %s10 = scalar_select 0, %s9, %s7
  // Predicated region
  $region2: #{vanilla_encoder_forward.38} parent=0 // pred_check
    _
  $region3: #{vanilla_encoder_forward.38} parent=0 // pred_check_branch
    %12 = sbr.rel (0) target = $region5
  $region4: #{vanilla_encoder_forward.38} parent=0 // pred_region
    _
  $region5: #{vanilla_encoder_forward.38} parent=0 // pred_fallthru
    _
  // Predicated region
  $region6: #{vanilla_encoder_forward.38} parent=0 // pred_check
    _
  $region7: #{vanilla_encoder_forward.38} parent=0 // pred_check_branch
    %14 = sbr.rel (0) target = $region9
  $region8: #{vanilla_encoder_forward.38} parent=0 // pred_region
    _
  $region9: #{vanilla_encoder_forward.38} parent=0 // pred_fallthru
    _
  // Predicated region
  $region10: #{vanilla_encoder_forward.38} parent=0 // pred_check
    _
  $region11: #{vanilla_encoder_forward.38} parent=0 // pred_check_branch
    %16 = sbr.rel (0) target = $region13
  $region12: #{vanilla_encoder_forward.38} parent=0 // pred_region
    _
  $region13: #{vanilla_encoder_forward.38} parent=0 // pred_fallthru
    _
  // Predicated region
  $region14: #{vanilla_encoder_forward.38} parent=0 // pred_check
    _
  $region15: #{vanilla_encoder_forward.38} parent=0 // pred_check_branch
    %18 = sbr.rel (0) target = $region17
  $region16: #{vanilla_encoder_forward.38} parent=0 // pred_region
    _
  $region17: #{vanilla_encoder_forward.38} parent=0 // pred_fallthru
    _
  // Predicated region
  $region18: #{vanilla_encoder_forward.38} parent=0 // pred_check
    _
  $region19: #{vanilla_encoder_forward.38} parent=0 // pred_check_branch
    %20 = sbr.rel (0) target = $region21
  $region20: #{vanilla_encoder_forward.38} parent=0 // pred_region
    _
  $region21: #{vanilla_encoder_forward.38} parent=0 // pred_fallthru
    _
  // Predicated region
  $region22: #{vanilla_encoder_forward.38} parent=0 // pred_check
    _
  $region23: #{vanilla_encoder_forward.38} parent=0 // pred_check_branch
    %22 = sbr.rel (0) target = $region25
  $region24: #{vanilla_encoder_forward.38} parent=0 // pred_region
    _
  $region25: #{vanilla_encoder_forward.38} parent=0 // pred_fallthru
    _
  %v23 = vld [vmem:[%s1] sm:$0x1]
  %v24 = vmul.f32 %v23, 0.125
  %v25 = vld [vmem:[%s2] sm:$0x1]
  %v26 = vmul.f32 %v25, 0.125
  %v27 = vmul.f32 %v24, %v24
  %v28 = vsub.f32 %v26, %v27
  %v29 = vmax.f32 %v28, 0.0
  %v30 = vld [vmem:[%s3] sm:$0x1]
  %v31 = vadd.f32 %v29, 1e-05
  %v32 = vrsqrt.pop %v31
  %v33 = vmul.f32 %v30, %v32
  %v34 = vld [vmem:[%s4] sm:$0x1]
  %v35 = vmul.f32 %v24, %v33
  %v36 = vsub.f32 %v34, %v35
  %v37 = vld [vmem:[%s0] sm:$0xff]
  %v39 = vlaneseq
  %v40 = vshrl.u32 %v39, 7
  %v41 = vsub.s32 0, %v40
  %v42 = vrot.slane %v33, %v41
  %v44 = vmul.f32 %v37, %v42
  %v46 = vlaneseq
  %v47 = vshrl.u32 %v46, 7
  %v48 = vsub.s32 0, %v47
  %v49 = vrot.slane %v36, %v48
  %v51 = vadd.f32 %v44, %v49
  %v52 = vld [vmem:[%s5] sm:$0xff]
  %v53 = vadd.f32 %v51, %v52
  %v54 = vmul.f32 %v53, 0.5
  %v55 = vmul.f32 %v53, 0.70710677
  %v56 = verf.f32.pop %v55
  %v57 = vadd.f32 %v56, 1.0
  %v58 = vmul.f32 %v54, %v57
  %59 = vst [vmem:[%s6] sm:$0xff] %v58
  // Predicated region
  $region26: #{vanilla_encoder_forward.38} parent=0 // pred_check
    _
  $region27: #{vanilla_encoder_forward.38} parent=0 // pred_check_branch
    %61 = sbr.rel (0) target = $region29
  $region28: #{vanilla_encoder_forward.38} parent=0 // pred_region
    _
  $region29: #{vanilla_encoder_forward.38} parent=0 // pred_fallthru
    _
  // Predicated region
  $region30: #{vanilla_encoder_forward.38} parent=0 // pred_check
    _
  $region31: #{vanilla_encoder_forward.38} parent=0 // pred_check_branch
    %63 = sbr.rel (0) target = $region33
  $region32: #{vanilla_encoder_forward.38} parent=0 // pred_region
    _
  $region33: #{vanilla_encoder_forward.38} parent=0 // pred_fallthru
    _

// kernel: vanilla_encoder_forward.40
$region0: #{vanilla_encoder_forward.40}
  #allocation0 [shape = 'u32[]', space=smem, size = 0x4, offset = 0x4, fixed_abs, tag = 'smem constant byte address 0x4 - core index']
  #allocation1 [shape = 'u32[144,128]{1,0:T(1,128)}', space=vmem, size = 0x12000, scoped, tag = 'internal scratch']
  %s0 = inlined_call_operand.vmem [shape: f32[2,128], index: 0, kind: input, shape index: {}]
  %s1 = inlined_call_operand.vmem [shape: f32[1,128], index: 1, kind: input, shape index: {}]
  %s2 = inlined_call_operand.vmem [shape: f32[1,128], index: 2, kind: input, shape index: {}]
  %s3 = inlined_call_operand.vmem [shape: f32[1,128], index: 3, kind: input, shape index: {}]
  %s4 = inlined_call_operand.vmem [shape: f32[1,128], index: 4, kind: input, shape index: {}]
  %s5 = inlined_call_operand.vmem [shape: f32[2,128], index: 5, kind: output, shape index: {}]
  %s6 = sld [smem:[#allocation0]]
  $region30: #{vanilla_encoder_forward.40} parent=0
    _
  %s8 = ssub.s32 1, %s6
  %s9 = scalar_select 0, %s8, %s6
  // Predicated region
  $region2: #{vanilla_encoder_forward.40} parent=0 // pred_check
    _
  $region3: #{vanilla_encoder_forward.40} parent=0 // pred_check_branch
    %11 = sbr.rel (0) target = $region5
  $region4: #{vanilla_encoder_forward.40} parent=0 // pred_region
    _
  $region5: #{vanilla_encoder_forward.40} parent=0 // pred_fallthru
    _
  // Predicated region
  $region6: #{vanilla_encoder_forward.40} parent=0 // pred_check
    _
  $region7: #{vanilla_encoder_forward.40} parent=0 // pred_check_branch
    %13 = sbr.rel (0) target = $region9
  $region8: #{vanilla_encoder_forward.40} parent=0 // pred_region
    _
  $region9: #{vanilla_encoder_forward.40} parent=0 // pred_fallthru
    _
  // Predicated region
  $region10: #{vanilla_encoder_forward.40} parent=0 // pred_check
    _
  $region11: #{vanilla_encoder_forward.40} parent=0 // pred_check_branch
    %15 = sbr.rel (0) target = $region13
  $region12: #{vanilla_encoder_forward.40} parent=0 // pred_region
    _
  $region13: #{vanilla_encoder_forward.40} parent=0 // pred_fallthru
    _
  // Predicated region
  $region14: #{vanilla_encoder_forward.40} parent=0 // pred_check
    _
  $region15: #{vanilla_encoder_forward.40} parent=0 // pred_check_branch
    %17 = sbr.rel (0) target = $region17
  $region16: #{vanilla_encoder_forward.40} parent=0 // pred_region
    _
  $region17: #{vanilla_encoder_forward.40} parent=0 // pred_fallthru
    _
  // Predicated region
  $region18: #{vanilla_encoder_forward.40} parent=0 // pred_check
    _
  $region19: #{vanilla_encoder_forward.40} parent=0 // pred_check_branch
    %19 = sbr.rel (0) target = $region21
  $region20: #{vanilla_encoder_forward.40} parent=0 // pred_region
    _
  $region21: #{vanilla_encoder_forward.40} parent=0 // pred_fallthru
    _
  %v20 = vld [vmem:[%s1] sm:$0x1]
  %v21 = vmul.f32 %v20, 0.5
  %v22 = vld [vmem:[%s2] sm:$0x1]
  %v23 = vmul.f32 %v22, 0.5
  %v24 = vmul.f32 %v21, %v21
  %v25 = vsub.f32 %v23, %v24
  %v26 = vmax.f32 %v25, 0.0
  %v27 = vld [vmem:[%s3] sm:$0x1]
  %v28 = vadd.f32 %v26, 1e-05
  %v29 = vrsqrt.pop %v28
  %v30 = vmul.f32 %v27, %v29
  %v31 = vld [vmem:[%s4] sm:$0x1]
  %v32 = vmul.f32 %v21, %v30
  %v33 = vsub.f32 %v31, %v32
  %v34 = vld [vmem:[%s0] sm:$0x3]
  %v36 = vlaneseq
  %v37 = vshrl.u32 %v36, 7
  %v38 = vsub.s32 0, %v37
  %v39 = vrot.slane %v30, %v38
  %v41 = vmul.f32 %v34, %v39
  %v43 = vlaneseq
  %v44 = vshrl.u32 %v43, 7
  %v45 = vsub.s32 0, %v44
  %v46 = vrot.slane %v33, %v45
  %v48 = vadd.f32 %v41, %v46
  %v49 = vmul.f32 %v48, 0.5
  %v50 = vmul.f32 %v48, 0.70710677
  %v51 = verf.f32.pop %v50
  %v52 = vadd.f32 %v51, 1.0
  %v53 = vmul.f32 %v49, %v52
  %54 = vst [vmem:[%s5] sm:$0x3] %v53
  // Predicated region
  $region22: #{vanilla_encoder_forward.40} parent=0 // pred_check
    _
  $region23: #{vanilla_encoder_forward.40} parent=0 // pred_check_branch
    %56 = sbr.rel (0) target = $region25
  $region24: #{vanilla_encoder_forward.40} parent=0 // pred_region
    _
  $region25: #{vanilla_encoder_forward.40} parent=0 // pred_fallthru
    _
  // Predicated region
  $region26: #{vanilla_encoder_forward.40} parent=0 // pred_check
    _
  $region27: #{vanilla_encoder_forward.40} parent=0 // pred_check_branch
    %58 = sbr.rel (0) target = $region29
  $region28: #{vanilla_encoder_forward.40} parent=0 // pred_region
    _
  $region29: #{vanilla_encoder_forward.40} parent=0 // pred_fallthru
    _

// kernel: vanilla_encoder_forward.41
$region0: #{vanilla_encoder_forward.41}
  #allocation0 [shape = 'u32[]', space=smem, size = 0x4, offset = 0x4, fixed_abs, tag = 'smem constant byte address 0x4 - core index']
  #allocation1 [shape = 'u32[144,128]{1,0:T(1,128)}', space=vmem, size = 0x12000, scoped, tag = 'internal scratch']
  %s0 = inlined_call_operand.vmem [shape: bf16[2,128], index: 0, kind: input, shape index: {}]
  %s1 = inlined_call_operand.vmem [shape: bf16[128,128], index: 1, kind: input, shape index: {}]
  %s2 = inlined_call_operand.vmem [shape: f32[1,128], index: 2, kind: input, shape index: {}]
  %s3 = inlined_call_operand.vmem [shape: f32[2,128], index: 3, kind: output, shape index: {}]
  %s4 = sld [smem:[#allocation0]]
  $region22: #{vanilla_encoder_forward.41} parent=0
    _
  %s6 = ssub.s32 1, %s4
  %s7 = scalar_select 0, %s6, %s4
  // Predicated region
  $region2: #{vanilla_encoder_forward.41} parent=0 // pred_check
    _
  $region3: #{vanilla_encoder_forward.41} parent=0 // pred_check_branch
    %9 = sbr.rel (0) target = $region5
  $region4: #{vanilla_encoder_forward.41} parent=0 // pred_region
    _
  $region5: #{vanilla_encoder_forward.41} parent=0 // pred_fallthru
    _
  // Predicated region
  $region6: #{vanilla_encoder_forward.41} parent=0 // pred_check
    _
  $region7: #{vanilla_encoder_forward.41} parent=0 // pred_check_branch
    %11 = sbr.rel (0) target = $region9
  $region8: #{vanilla_encoder_forward.41} parent=0 // pred_region
    _
  $region9: #{vanilla_encoder_forward.41} parent=0 // pred_fallthru
    _
  // Predicated region
  $region10: #{vanilla_encoder_forward.41} parent=0 // pred_check
    _
  $region11: #{vanilla_encoder_forward.41} parent=0 // pred_check_branch
    %13 = sbr.rel (0) target = $region13
  $region12: #{vanilla_encoder_forward.41} parent=0 // pred_region
    _
  $region13: #{vanilla_encoder_forward.41} parent=0 // pred_fallthru
    _
  %v15 = vld [vmem:[%s0] sm:$0x1]
  %v16 = vld [vmem:[%s1] sm:$0xf]
  %v17 = vld [vmem:[%s1 + $0x4] sm:$0xf]
  %v18 = vld [vmem:[%s1 + $0x8] sm:$0xf]
  %v19 = vld [vmem:[%s1 + $0xc] sm:$0xf]
  %v20 = vld [vmem:[%s1 + $0x10] sm:$0xf]
  %v21 = vld [vmem:[%s1 + $0x14] sm:$0xf]
  %v22 = vld [vmem:[%s1 + $0x18] sm:$0xf]
  %v23 = vld [vmem:[%s1 + $0x1c] sm:$0xf]
  %v24 = vld [vmem:[%s1 + $0x20] sm:$0xf]
  %v25 = vld [vmem:[%s1 + $0x24] sm:$0xf]
  %v26 = vld [vmem:[%s1 + $0x28] sm:$0xf]
  %v27 = vld [vmem:[%s1 + $0x2c] sm:$0xf]
  %v28 = vld [vmem:[%s1 + $0x30] sm:$0xf]
  %v29 = vld [vmem:[%s1 + $0x34] sm:$0xf]
  %v30 = vld [vmem:[%s1 + $0x38] sm:$0xf]
  %v31 = vld [vmem:[%s1 + $0x3c] sm:$0xf]
  %v32 = vld [vmem:[%s2] sm:$0x1]
  %v34 = vlaneseq
  %v35 = vshrl.u32 %v34, 7
  %v36 = vsub.s32 0, %v35
  %v37 = vrot.slane %v32, %v36
  %v55 = vunpack.c.l.b16 %v16
  %v56 = vunpack.c.l.b16 %v17
  %v57 = vunpack.c.l.b16 %v18
  %v58 = vunpack.c.l.b16 %v19
  %v59 = vunpack.c.l.b16 %v20
  %v60 = vunpack.c.l.b16 %v21
  %v61 = vunpack.c.l.b16 %v22
  %v62 = vunpack.c.l.b16 %v23
  %v63 = vunpack.c.l.b16 %v24
  %v64 = vunpack.c.l.b16 %v25
  %v65 = vunpack.c.l.b16 %v26
  %v66 = vunpack.c.l.b16 %v27
  %v67 = vunpack.c.l.b16 %v28
  %v68 = vunpack.c.l.b16 %v29
  %v69 = vunpack.c.l.b16 %v30
  %v70 = vunpack.c.l.b16 %v31
  %v71 = vpack.c.b16 %v56, %v55
  %v72 = vpack.c.b16 %v58, %v57
  %v73 = vpack.c.b16 %v60, %v59
  %v74 = vpack.c.b16 %v62, %v61
  %v75 = vpack.c.b16 %v64, %v63
  %v76 = vpack.c.b16 %v66, %v65
  %v77 = vpack.c.b16 %v68, %v67
  %v78 = vpack.c.b16 %v70, %v69
  %87 = vmatprep.subr.bf16.mxu0 0
  %88 = vmatpush1.bf16.msra.mxu0 %v71
  %89 = vmatprep.subr.bf16.mxu0 0
  %90 = vmatpush1.bf16.msra.mxu0 %v72
  %91 = vmatprep.subr.bf16.mxu0 0
  %92 = vmatpush1.bf16.msra.mxu0 %v73
  %93 = vmatprep.subr.bf16.mxu0 0
  %94 = vmatpush1.bf16.msra.mxu0 %v74
  %95 = vmatprep.subr.bf16.mxu0 0
  %96 = vmatpush1.bf16.msra.mxu0 %v75
  %97 = vmatprep.subr.bf16.mxu0 0
  %98 = vmatpush1.bf16.msra.mxu0 %v76
  %99 = vmatprep.subr.bf16.mxu0 0
  %100 = vmatpush1.bf16.msra.mxu0 %v77
  %101 = vmatprep.subr.bf16.mxu0 0
  %102 = vmatpush1.bf16.msra.mxu0 %v78
  %103 = vmatprep.subr.bf16.mxu0 0
  %104 = vmatpush1.bf16.msra.mxu0 0
  %105 = vmatprep.subr.bf16.mxu0 0
  %106 = vmatpush1.bf16.msra.mxu0 0
  %107 = vmatprep.subr.bf16.mxu0 0
  %108 = vmatpush1.bf16.msra.mxu0 0
  %109 = vmatprep.subr.bf16.mxu0 0
  %110 = vmatpush1.bf16.msra.mxu0 0
  %111 = vmatprep.subr.bf16.mxu0 0
  %112 = vmatpush1.bf16.msra.mxu0 0
  %113 = vmatprep.subr.bf16.mxu0 0
  %114 = vmatpush1.bf16.msra.mxu0 0
  %115 = vmatprep.subr.bf16.mxu0 0
  %116 = vmatpush1.bf16.msra.mxu0 0
  %117 = vmatprep.subr.bf16.mxu0 0
  %118 = vmatpush1.bf16.msra.mxu0 0
  %119 = vmatprep.mubr.bf16.mxu0 0
  %120 = vmatmul.mubr.bf16.gmra.mrb[0].mxu0 %v15
  %v121 = vpop.f32.mrb[0].mxu0
  %v122 = vadd.f32 %v37, %v121
  %v123 = vpop.f32.mrb[0].mxu0
  %v124 = vpop.f32.mrb[0].mxu0
  %v125 = vpop.f32.mrb[0].mxu0
  %126 = vdwg.mxu0
  %127 = vst [vmem:[%s3] sm:$0x3] %v122
  // Predicated region
  $region14: #{vanilla_encoder_forward.41} parent=0 // pred_check
    _
  $region15: #{vanilla_encoder_forward.41} parent=0 // pred_check_branch
    %129 = sbr.rel (0) target = $region17
  $region16: #{vanilla_encoder_forward.41} parent=0 // pred_region
    _
  $region17: #{vanilla_encoder_forward.41} parent=0 // pred_fallthru
    _
  // Predicated region
  $region18: #{vanilla_encoder_forward.41} parent=0 // pred_check
    _
  $region19: #{vanilla_encoder_forward.41} parent=0 // pred_check_branch
    %131 = sbr.rel (0) target = $region21
  $region20: #{vanilla_encoder_forward.41} parent=0 // pred_region
    _
  $region21: #{vanilla_encoder_forward.41} parent=0 // pred_fallthru
    _

// kernel: vanilla_encoder_forward.43
$region0: #{vanilla_encoder_forward.43}
  #allocation0 [shape = 'u32[]', space=smem, size = 0x4, offset = 0x4, fixed_abs, tag = 'smem constant byte address 0x4 - core index']
  #allocation1 [shape = 'u32[144,128]{1,0:T(1,128)}', space=vmem, size = 0x12000, scoped, tag = 'internal scratch']
  %s0 = inlined_call_operand.vmem [shape: f32[2,128], index: 0, kind: input, shape index: {}]
  %s1 = inlined_call_operand.vmem [shape: f32[1,128], index: 1, kind: input, shape index: {}]
  %s2 = inlined_call_operand.vmem [shape: f32[1,128], index: 2, kind: input, shape index: {}]
  %s3 = inlined_call_operand.vmem [shape: f32[1,128], index: 3, kind: input, shape index: {}]
  %s4 = inlined_call_operand.vmem [shape: f32[1,128], index: 4, kind: input, shape index: {}]
  %s5 = inlined_call_operand.vmem [shape: f32[2,128], index: 5, kind: input, shape index: {}]
  %s6 = inlined_call_operand.hbm [shape: f32[2,128], index: 6, kind: output, shape index: {}]
  %s7 = sld [smem:[#allocation0]]
  $region34: #{vanilla_encoder_forward.43} parent=0
    _
  %s9 = ssub.s32 1, %s7
  %s10 = scalar_select 0, %s9, %s7
  $region1: #{vanilla_encoder_forward.43} parent=0
    #allocation2 [shape = 'u8[1024]{0}', space=vmem, size = 0x400, scoped, tag = 'output window, operand 0, single buffered']
    #allocation3 [shape = 's32[1]{0}', space=sflag, size = 0x4, scoped, tag = 'scoped memory for vanilla_encoder_forward.43']
    %11 = vsyncpa [#allocation3], 0
    // Predicated region
    $region2: #{vanilla_encoder_forward.43} parent=1 // pred_check
      _
    $region3: #{vanilla_encoder_forward.43} parent=1 // pred_check_branch
      %13 = sbr.rel (0) target = $region5
    $region4: #{vanilla_encoder_forward.43} parent=1 // pred_region
      _
    $region5: #{vanilla_encoder_forward.43} parent=1 // pred_fallthru
      _
    // Predicated region
    $region6: #{vanilla_encoder_forward.43} parent=1 // pred_check
      _
    $region7: #{vanilla_encoder_forward.43} parent=1 // pred_check_branch
      %15 = sbr.rel (0) target = $region9
    $region8: #{vanilla_encoder_forward.43} parent=1 // pred_region
      _
    $region9: #{vanilla_encoder_forward.43} parent=1 // pred_fallthru
      _
    // Predicated region
    $region10: #{vanilla_encoder_forward.43} parent=1 // pred_check
      _
    $region11: #{vanilla_encoder_forward.43} parent=1 // pred_check_branch
      %17 = sbr.rel (0) target = $region13
    $region12: #{vanilla_encoder_forward.43} parent=1 // pred_region
      _
    $region13: #{vanilla_encoder_forward.43} parent=1 // pred_fallthru
      _
    // Predicated region
    $region14: #{vanilla_encoder_forward.43} parent=1 // pred_check
      _
    $region15: #{vanilla_encoder_forward.43} parent=1 // pred_check_branch
      %19 = sbr.rel (0) target = $region17
    $region16: #{vanilla_encoder_forward.43} parent=1 // pred_region
      _
    $region17: #{vanilla_encoder_forward.43} parent=1 // pred_fallthru
      _
    // Predicated region
    $region18: #{vanilla_encoder_forward.43} parent=1 // pred_check
      _
    $region19: #{vanilla_encoder_forward.43} parent=1 // pred_check_branch
      %21 = sbr.rel (0) target = $region21
    $region20: #{vanilla_encoder_forward.43} parent=1 // pred_region
      _
    $region21: #{vanilla_encoder_forward.43} parent=1 // pred_fallthru
      _
    // Predicated region
    $region22: #{vanilla_encoder_forward.43} parent=1 // pred_check
      _
    $region23: #{vanilla_encoder_forward.43} parent=1 // pred_check_branch
      %23 = sbr.rel (0) target = $region25
    $region24: #{vanilla_encoder_forward.43} parent=1 // pred_region
      _
    $region25: #{vanilla_encoder_forward.43} parent=1 // pred_fallthru
      _
    %v24 = vld [vmem:[%s1] sm:$0x1]
    %v25 = vmul.f32 %v24, 0.5
    %v26 = vld [vmem:[%s2] sm:$0x1]
    %v27 = vmul.f32 %v26, 0.5
    %v28 = vmul.f32 %v25, %v25
    %v29 = vsub.f32 %v27, %v28
    %v30 = vmax.f32 %v29, 0.0
    %v31 = vld [vmem:[%s3] sm:$0x1]
    %v32 = vadd.f32 %v30, 1e-05
    %v33 = vrsqrt.pop %v32
    %v34 = vmul.f32 %v31, %v33
    %v35 = vld [vmem:[%s4] sm:$0x1]
    %v36 = vmul.f32 %v25, %v34
    %v37 = vsub.f32 %v35, %v36
    %v38 = vld [vmem:[%s0] sm:$0x3]
    %v40 = vlaneseq
    %v41 = vshrl.u32 %v40, 7
    %v42 = vsub.s32 0, %v41
    %v43 = vrot.slane %v34, %v42
    %v45 = vmul.f32 %v38, %v43
    %v47 = vlaneseq
    %v48 = vshrl.u32 %v47, 7
    %v49 = vsub.s32 0, %v48
    %v50 = vrot.slane %v37, %v49
    %v52 = vadd.f32 %v45, %v50
    %v53 = vld [vmem:[%s5] sm:$0x3]
    %v54 = vadd.f32 %v52, %v53
    %v55 = vmul.f32 %v54, 0.5
    %v56 = vmul.f32 %v54, 0.70710677
    %v57 = verf.f32.pop %v56
    %v58 = vadd.f32 %v57, 1.0
    %v59 = vmul.f32 %v55, %v58
    %60 = vst [vmem:[#allocation2] sm:$0x3] %v59
    // Predicated region
    $region26: #{vanilla_encoder_forward.43} parent=1 // pred_check
      _
    $region27: #{vanilla_encoder_forward.43} parent=1 // pred_check_branch
      %62 = sbr.rel (0) target = $region29
    $region28: #{vanilla_encoder_forward.43} parent=1 // pred_region
      %s64 = ssub.s32 32, 32
      %65 = vsyncadd [#allocation3], %s64
      %s67 = sshll.u32 [#allocation2], 4
      %s68 = int_to_ptr.vmem [resolvable:$true] %s67
      %70 = dma.vmem_to_hbm [thread:$0]  %s68, 32, %s6, [#allocation3]
    $region29: #{vanilla_encoder_forward.43} parent=1 // pred_fallthru
      _
    // Predicated region
    $region30: #{vanilla_encoder_forward.43} parent=1 // pred_check
      _
    $region31: #{vanilla_encoder_forward.43} parent=1 // pred_check_branch
      %72 = sbr.rel (0) target = $region33
    $region32: #{vanilla_encoder_forward.43} parent=1 // pred_region
      %73 = dma.done [#allocation3], 32
    $region33: #{vanilla_encoder_forward.43} parent=1 // pred_fallthru
      _
    %74 = vsyncpa [#allocation3], 1

// kernel: vanilla_encoder_forward.39
$region0: #{vanilla_encoder_forward.39}
  #allocation0 [shape = 'u32[]', space=smem, size = 0x4, offset = 0x4, fixed_abs, tag = 'smem constant byte address 0x4 - core index']
  #allocation1 [shape = 'u32[144,128]{1,0:T(1,128)}', space=vmem, size = 0x12000, scoped, tag = 'internal scratch']
  %s0 = inlined_call_operand.vmem [shape: bf16[2,1152], index: 0, kind: input, shape index: {}]
  %s1 = inlined_call_operand.vmem [shape: bf16[1152,128], index: 1, kind: input, shape index: {}]
  %s2 = inlined_call_operand.vmem [shape: f32[2,128], index: 2, kind: output, shape index: {0}]
  %s3 = inlined_call_operand.vmem [shape: f32[1,128], index: 3, kind: output, shape index: {1}]
  %s4 = inlined_call_operand.vmem [shape: f32[1,128], index: 4, kind: output, shape index: {2}]
  %5 = xla_tuple %s2, %s3, %s4
  %s6 = sld [smem:[#allocation0]]
  $region38: #{vanilla_encoder_forward.39} parent=0
    _
  %s8 = ssub.s32 1, %s6
  %s9 = scalar_select 0, %s8, %s6
  // Predicated region
  $region2: #{vanilla_encoder_forward.39} parent=0 // pred_check
    _
  $region3: #{vanilla_encoder_forward.39} parent=0 // pred_check_branch
    %11 = sbr.rel (0) target = $region5
  $region4: #{vanilla_encoder_forward.39} parent=0 // pred_region
    _
  $region5: #{vanilla_encoder_forward.39} parent=0 // pred_fallthru
    _
  // Predicated region
  $region6: #{vanilla_encoder_forward.39} parent=0 // pred_check
    _
  $region7: #{vanilla_encoder_forward.39} parent=0 // pred_check_branch
    %13 = sbr.rel (0) target = $region9
  $region8: #{vanilla_encoder_forward.39} parent=0 // pred_region
    _
  $region9: #{vanilla_encoder_forward.39} parent=0 // pred_fallthru
    _
  %v15 = vld [vmem:[%s0] sm:$0xff]
  %v16 = vld [vmem:[%s0 + $0x8] sm:$0x1]
  %v17 = vld [vmem:[%s1] sm:$0xf]
  %v18 = vld [vmem:[%s1 + $0x4] sm:$0xf]
  %v19 = vld [vmem:[%s1 + $0x8] sm:$0xf]
  %v20 = vld [vmem:[%s1 + $0xc] sm:$0xf]
  %v21 = vld [vmem:[%s1 + $0x10] sm:$0xf]
  %v22 = vld [vmem:[%s1 + $0x14] sm:$0xf]
  %v23 = vld [vmem:[%s1 + $0x18] sm:$0xf]
  %v24 = vld [vmem:[%s1 + $0x1c] sm:$0xf]
  %v25 = vld [vmem:[%s1 + $0x20] sm:$0xf]
  %v26 = vld [vmem:[%s1 + $0x24] sm:$0xf]
  %v27 = vld [vmem:[%s1 + $0x28] sm:$0xf]
  %v28 = vld [vmem:[%s1 + $0x2c] sm:$0xf]
  %v29 = vld [vmem:[%s1 + $0x30] sm:$0xf]
  %v30 = vld [vmem:[%s1 + $0x34] sm:$0xf]
  %v31 = vld [vmem:[%s1 + $0x38] sm:$0xf]
  %v32 = vld [vmem:[%s1 + $0x3c] sm:$0xf]
  %v33 = vld [vmem:[%s1 + $0x40] sm:$0xf]
  %v34 = vld [vmem:[%s1 + $0x44] sm:$0xf]
  %v35 = vld [vmem:[%s1 + $0x48] sm:$0xf]
  %v36 = vld [vmem:[%s1 + $0x4c] sm:$0xf]
  %v37 = vld [vmem:[%s1 + $0x50] sm:$0xf]
  %v38 = vld [vmem:[%s1 + $0x54] sm:$0xf]
  %v39 = vld [vmem:[%s1 + $0x58] sm:$0xf]
  %v40 = vld [vmem:[%s1 + $0x5c] sm:$0xf]
  %v41 = vld [vmem:[%s1 + $0x60] sm:$0xf]
  %v42 = vld [vmem:[%s1 + $0x64] sm:$0xf]
  %v43 = vld [vmem:[%s1 + $0x68] sm:$0xf]
  %v44 = vld [vmem:[%s1 + $0x6c] sm:$0xf]
  %v45 = vld [vmem:[%s1 + $0x70] sm:$0xf]
  %v46 = vld [vmem:[%s1 + $0x74] sm:$0xf]
  %v47 = vld [vmem:[%s1 + $0x78] sm:$0xf]
  %v48 = vld [vmem:[%s1 + $0x7c] sm:$0xf]
  %v49 = vld [vmem:[%s1 + $0x80] sm:$0xf]
  %v50 = vld [vmem:[%s1 + $0x84] sm:$0xf]
  %v51 = vld [vmem:[%s1 + $0x88] sm:$0xf]
  %v52 = vld [vmem:[%s1 + $0x8c] sm:$0xf]
  %v53 = vld [vmem:[%s1 + $0x90] sm:$0xf]
  %v54 = vld [vmem:[%s1 + $0x94] sm:$0xf]
  %v55 = vld [vmem:[%s1 + $0x98] sm:$0xf]
  %v56 = vld [vmem:[%s1 + $0x9c] sm:$0xf]
  %v57 = vld [vmem:[%s1 + $0xa0] sm:$0xf]
  %v58 = vld [vmem:[%s1 + $0xa4] sm:$0xf]
  %v59 = vld [vmem:[%s1 + $0xa8] sm:$0xf]
  %v60 = vld [vmem:[%s1 + $0xac] sm:$0xf]
  %v61 = vld [vmem:[%s1 + $0xb0] sm:$0xf]
  %v62 = vld [vmem:[%s1 + $0xb4] sm:$0xf]
  %v63 = vld [vmem:[%s1 + $0xb8] sm:$0xf]
  %v64 = vld [vmem:[%s1 + $0xbc] sm:$0xf]
  %v65 = vld [vmem:[%s1 + $0xc0] sm:$0xf]
  %v66 = vld [vmem:[%s1 + $0xc4] sm:$0xf]
  %v67 = vld [vmem:[%s1 + $0xc8] sm:$0xf]
  %v68 = vld [vmem:[%s1 + $0xcc] sm:$0xf]
  %v69 = vld [vmem:[%s1 + $0xd0] sm:$0xf]
  %v70 = vld [vmem:[%s1 + $0xd4] sm:$0xf]
  %v71 = vld [vmem:[%s1 + $0xd8] sm:$0xf]
  %v72 = vld [vmem:[%s1 + $0xdc] sm:$0xf]
  %v73 = vld [vmem:[%s1 + $0xe0] sm:$0xf]
  %v74 = vld [vmem:[%s1 + $0xe4] sm:$0xf]
  %v75 = vld [vmem:[%s1 + $0xe8] sm:$0xf]
  %v76 = vld [vmem:[%s1 + $0xec] sm:$0xf]
  %v77 = vld [vmem:[%s1 + $0xf0] sm:$0xf]
  %v78 = vld [vmem:[%s1 + $0xf4] sm:$0xf]
  %v79 = vld [vmem:[%s1 + $0xf8] sm:$0xf]
  %v80 = vld [vmem:[%s1 + $0xfc] sm:$0xf]
  %v81 = vld [vmem:[%s1 + $0x100] sm:$0xf]
  %v82 = vld [vmem:[%s1 + $0x104] sm:$0xf]
  %v83 = vld [vmem:[%s1 + $0x108] sm:$0xf]
  %v84 = vld [vmem:[%s1 + $0x10c] sm:$0xf]
  %v85 = vld [vmem:[%s1 + $0x110] sm:$0xf]
  %v86 = vld [vmem:[%s1 + $0x114] sm:$0xf]
  %v87 = vld [vmem:[%s1 + $0x118] sm:$0xf]
  %v88 = vld [vmem:[%s1 + $0x11c] sm:$0xf]
  %v89 = vld [vmem:[%s1 + $0x120] sm:$0xf]
  %v90 = vld [vmem:[%s1 + $0x124] sm:$0xf]
  %v91 = vld [vmem:[%s1 + $0x128] sm:$0xf]
  %v92 = vld [vmem:[%s1 + $0x12c] sm:$0xf]
  %v93 = vld [vmem:[%s1 + $0x130] sm:$0xf]
  %v94 = vld [vmem:[%s1 + $0x134] sm:$0xf]
  %v95 = vld [vmem:[%s1 + $0x138] sm:$0xf]
  %v96 = vld [vmem:[%s1 + $0x13c] sm:$0xf]
  %v97 = vld [vmem:[%s1 + $0x140] sm:$0xf]
  %v98 = vld [vmem:[%s1 + $0x144] sm:$0xf]
  %v99 = vld [vmem:[%s1 + $0x148] sm:$0xf]
  %v100 = vld [vmem:[%s1 + $0x14c] sm:$0xf]
  %v101 = vld [vmem:[%s1 + $0x150] sm:$0xf]
  %v102 = vld [vmem:[%s1 + $0x154] sm:$0xf]
  %v103 = vld [vmem:[%s1 + $0x158] sm:$0xf]
  %v104 = vld [vmem:[%s1 + $0x15c] sm:$0xf]
  %v105 = vld [vmem:[%s1 + $0x160] sm:$0xf]
  %v106 = vld [vmem:[%s1 + $0x164] sm:$0xf]
  %v107 = vld [vmem:[%s1 + $0x168] sm:$0xf]
  %v108 = vld [vmem:[%s1 + $0x16c] sm:$0xf]
  %v109 = vld [vmem:[%s1 + $0x170] sm:$0xf]
  %v110 = vld [vmem:[%s1 + $0x174] sm:$0xf]
  %v111 = vld [vmem:[%s1 + $0x178] sm:$0xf]
  %v112 = vld [vmem:[%s1 + $0x17c] sm:$0xf]
  %v113 = vld [vmem:[%s1 + $0x180] sm:$0xf]
  %v114 = vld [vmem:[%s1 + $0x184] sm:$0xf]
  %v115 = vld [vmem:[%s1 + $0x188] sm:$0xf]
  %v116 = vld [vmem:[%s1 + $0x18c] sm:$0xf]
  %v117 = vld [vmem:[%s1 + $0x190] sm:$0xf]
  %v118 = vld [vmem:[%s1 + $0x194] sm:$0xf]
  %v119 = vld [vmem:[%s1 + $0x198] sm:$0xf]
  %v120 = vld [vmem:[%s1 + $0x19c] sm:$0xf]
  %v121 = vld [vmem:[%s1 + $0x1a0] sm:$0xf]
  %v122 = vld [vmem:[%s1 + $0x1a4] sm:$0xf]
  %v123 = vld [vmem:[%s1 + $0x1a8] sm:$0xf]
  %v124 = vld [vmem:[%s1 + $0x1ac] sm:$0xf]
  %v125 = vld [vmem:[%s1 + $0x1b0] sm:$0xf]
  %v126 = vld [vmem:[%s1 + $0x1b4] sm:$0xf]
  %v127 = vld [vmem:[%s1 + $0x1b8] sm:$0xf]
  %v128 = vld [vmem:[%s1 + $0x1bc] sm:$0xf]
  %v129 = vld [vmem:[%s1 + $0x1c0] sm:$0xf]
  %v130 = vld [vmem:[%s1 + $0x1c4] sm:$0xf]
  %v131 = vld [vmem:[%s1 + $0x1c8] sm:$0xf]
  %v132 = vld [vmem:[%s1 + $0x1cc] sm:$0xf]
  %v133 = vld [vmem:[%s1 + $0x1d0] sm:$0xf]
  %v134 = vld [vmem:[%s1 + $0x1d4] sm:$0xf]
  %v135 = vld [vmem:[%s1 + $0x1d8] sm:$0xf]
  %v136 = vld [vmem:[%s1 + $0x1dc] sm:$0xf]
  %v137 = vld [vmem:[%s1 + $0x1e0] sm:$0xf]
  %v138 = vld [vmem:[%s1 + $0x1e4] sm:$0xf]
  %v139 = vld [vmem:[%s1 + $0x1e8] sm:$0xf]
  %v140 = vld [vmem:[%s1 + $0x1ec] sm:$0xf]
  %v141 = vld [vmem:[%s1 + $0x1f0] sm:$0xf]
  %v142 = vld [vmem:[%s1 + $0x1f4] sm:$0xf]
  %v143 = vld [vmem:[%s1 + $0x1f8] sm:$0xf]
  %v144 = vld [vmem:[%s1 + $0x1fc] sm:$0xf]
  %v145 = vld [vmem:[%s1 + $0x200] sm:$0xf]
  %v146 = vld [vmem:[%s1 + $0x204] sm:$0xf]
  %v147 = vld [vmem:[%s1 + $0x208] sm:$0xf]
  %v148 = vld [vmem:[%s1 + $0x20c] sm:$0xf]
  %v149 = vld [vmem:[%s1 + $0x210] sm:$0xf]
  %v150 = vld [vmem:[%s1 + $0x214] sm:$0xf]
  %v151 = vld [vmem:[%s1 + $0x218] sm:$0xf]
  %v152 = vld [vmem:[%s1 + $0x21c] sm:$0xf]
  %v153 = vld [vmem:[%s1 + $0x220] sm:$0xf]
  %v154 = vld [vmem:[%s1 + $0x224] sm:$0xf]
  %v155 = vld [vmem:[%s1 + $0x228] sm:$0xf]
  %v156 = vld [vmem:[%s1 + $0x22c] sm:$0xf]
  %v157 = vld [vmem:[%s1 + $0x230] sm:$0xf]
  %v158 = vld [vmem:[%s1 + $0x234] sm:$0xf]
  %v159 = vld [vmem:[%s1 + $0x238] sm:$0xf]
  %v160 = vld [vmem:[%s1 + $0x23c] sm:$0xf]
  %v163 = vcombine.high %v15, %v15
  %v165 = vunpack.c.l.s4 1966171168
  %v166 = vunpack.c.0.s8 %v165
  %v167 = vlaneseq
  %v168 = vshrl.u32 %v167, 7
  %v169 = vsub.s32 %v166, %v168
  %v170 = vrot.slane %v15, %v169
  %v172 = vunpack.c.l.s4 1966171168
  %v173 = vunpack.c.0.s8 %v172
  %v174 = vlaneseq
  %v175 = vshrl.u32 %v174, 7
  %v176 = vsub.s32 %v173, %v175
  %v177 = vrot.slane %v163, %v176
  %v178 = vcombine.high %v170, %v170
  %v179 = vcombine.high %v177, %v177
  %v181 = vunpack.c.l.s4 1966171168
  %v182 = vunpack.c.0.s8 %v181
  %v183 = vlaneseq
  %v184 = vshrl.u32 %v183, 7
  %v185 = vsub.s32 %v182, %v184
  %v186 = vrot.slane %v170, %v185
  %v188 = vunpack.c.l.s4 1966171168
  %v189 = vunpack.c.0.s8 %v188
  %v190 = vlaneseq
  %v191 = vshrl.u32 %v190, 7
  %v192 = vsub.s32 %v189, %v191
  %v193 = vrot.slane %v177, %v192
  %v195 = vunpack.c.l.s4 1966171168
  %v196 = vunpack.c.0.s8 %v195
  %v197 = vlaneseq
  %v198 = vshrl.u32 %v197, 7
  %v199 = vsub.s32 %v196, %v198
  %v200 = vrot.slane %v178, %v199
  %v202 = vunpack.c.l.s4 1966171168
  %v203 = vunpack.c.0.s8 %v202
  %v204 = vlaneseq
  %v205 = vshrl.u32 %v204, 7
  %v206 = vsub.s32 %v203, %v205
  %v207 = vrot.slane %v179, %v206
  %v208 = vcombine.high %v186, %v186
  %v209 = vcombine.high %v193, %v193
  %v210 = vcombine.high %v200, %v200
  %v211 = vcombine.high %v207, %v207
  %v213 = vunpack.c.l.s4 1966171168
  %v214 = vunpack.c.0.s8 %v213
  %v215 = vlaneseq
  %v216 = vshrl.u32 %v215, 7
  %v217 = vsub.s32 %v214, %v216
  %v218 = vrot.slane %v16, %v217
  %v220 = vunpack.c.l.s4 1966171168
  %v221 = vunpack.c.0.s8 %v220
  %v222 = vlaneseq
  %v223 = vshrl.u32 %v222, 7
  %v224 = vsub.s32 %v221, %v223
  %v225 = vrot.slane %v218, %v224
  %v379 = vunpack.c.l.b16 %v17
  %v380 = vunpack.c.l.b16 %v18
  %v381 = vunpack.c.l.b16 %v19
  %v382 = vunpack.c.l.b16 %v20
  %v383 = vunpack.c.l.b16 %v21
  %v384 = vunpack.c.l.b16 %v22
  %v385 = vunpack.c.l.b16 %v23
  %v386 = vunpack.c.l.b16 %v24
  %v387 = vunpack.c.l.b16 %v25
  %v388 = vunpack.c.l.b16 %v26
  %v389 = vunpack.c.l.b16 %v27
  %v390 = vunpack.c.l.b16 %v28
  %v391 = vunpack.c.l.b16 %v29
  %v392 = vunpack.c.l.b16 %v30
  %v393 = vunpack.c.l.b16 %v31
  %v394 = vunpack.c.l.b16 %v32
  %v395 = vunpack.c.l.b16 %v33
  %v396 = vunpack.c.l.b16 %v34
  %v397 = vunpack.c.l.b16 %v35
  %v398 = vunpack.c.l.b16 %v36
  %v399 = vunpack.c.l.b16 %v37
  %v400 = vunpack.c.l.b16 %v38
  %v401 = vunpack.c.l.b16 %v39
  %v402 = vunpack.c.l.b16 %v40
  %v403 = vunpack.c.l.b16 %v41
  %v404 = vunpack.c.l.b16 %v42
  %v405 = vunpack.c.l.b16 %v43
  %v406 = vunpack.c.l.b16 %v44
  %v407 = vunpack.c.l.b16 %v45
  %v408 = vunpack.c.l.b16 %v46
  %v409 = vunpack.c.l.b16 %v47
  %v410 = vunpack.c.l.b16 %v48
  %v411 = vunpack.c.l.b16 %v49
  %v412 = vunpack.c.l.b16 %v50
  %v413 = vunpack.c.l.b16 %v51
  %v414 = vunpack.c.l.b16 %v52
  %v415 = vunpack.c.l.b16 %v53
  %v416 = vunpack.c.l.b16 %v54
  %v417 = vunpack.c.l.b16 %v55
  %v418 = vunpack.c.l.b16 %v56
  %v419 = vunpack.c.l.b16 %v57
  %v420 = vunpack.c.l.b16 %v58
  %v421 = vunpack.c.l.b16 %v59
  %v422 = vunpack.c.l.b16 %v60
  %v423 = vunpack.c.l.b16 %v61
  %v424 = vunpack.c.l.b16 %v62
  %v425 = vunpack.c.l.b16 %v63
  %v426 = vunpack.c.l.b16 %v64
  %v427 = vunpack.c.l.b16 %v65
  %v428 = vunpack.c.l.b16 %v66
  %v429 = vunpack.c.l.b16 %v67
  %v430 = vunpack.c.l.b16 %v68
  %v431 = vunpack.c.l.b16 %v69
  %v432 = vunpack.c.l.b16 %v70
  %v433 = vunpack.c.l.b16 %v71
  %v434 = vunpack.c.l.b16 %v72
  %v435 = vunpack.c.l.b16 %v73
  %v436 = vunpack.c.l.b16 %v74
  %v437 = vunpack.c.l.b16 %v75
  %v438 = vunpack.c.l.b16 %v76
  %v439 = vunpack.c.l.b16 %v77
  %v440 = vunpack.c.l.b16 %v78
  %v441 = vunpack.c.l.b16 %v79
  %v442 = vunpack.c.l.b16 %v80
  %v443 = vunpack.c.l.b16 %v81
  %v444 = vunpack.c.l.b16 %v82
  %v445 = vunpack.c.l.b16 %v83
  %v446 = vunpack.c.l.b16 %v84
  %v447 = vunpack.c.l.b16 %v85
  %v448 = vunpack.c.l.b16 %v86
  %v449 = vunpack.c.l.b16 %v87
  %v450 = vunpack.c.l.b16 %v88
  %v451 = vunpack.c.l.b16 %v89
  %v452 = vunpack.c.l.b16 %v90
  %v453 = vunpack.c.l.b16 %v91
  %v454 = vunpack.c.l.b16 %v92
  %v455 = vunpack.c.l.b16 %v93
  %v456 = vunpack.c.l.b16 %v94
  %v457 = vunpack.c.l.b16 %v95
  %v458 = vunpack.c.l.b16 %v96
  %v459 = vunpack.c.l.b16 %v97
  %v460 = vunpack.c.l.b16 %v98
  %v461 = vunpack.c.l.b16 %v99
  %v462 = vunpack.c.l.b16 %v100
  %v463 = vunpack.c.l.b16 %v101
  %v464 = vunpack.c.l.b16 %v102
  %v465 = vunpack.c.l.b16 %v103
  %v466 = vunpack.c.l.b16 %v104
  %v467 = vunpack.c.l.b16 %v105
  %v468 = vunpack.c.l.b16 %v106
  %v469 = vunpack.c.l.b16 %v107
  %v470 = vunpack.c.l.b16 %v108
  %v471 = vunpack.c.l.b16 %v109
  %v472 = vunpack.c.l.b16 %v110
  %v473 = vunpack.c.l.b16 %v111
  %v474 = vunpack.c.l.b16 %v112
  %v475 = vunpack.c.l.b16 %v113
  %v476 = vunpack.c.l.b16 %v114
  %v477 = vunpack.c.l.b16 %v115
  %v478 = vunpack.c.l.b16 %v116
  %v479 = vunpack.c.l.b16 %v117
  %v480 = vunpack.c.l.b16 %v118
  %v481 = vunpack.c.l.b16 %v119
  %v482 = vunpack.c.l.b16 %v120
  %v483 = vunpack.c.l.b16 %v121
  %v484 = vunpack.c.l.b16 %v122
  %v485 = vunpack.c.l.b16 %v123
  %v486 = vunpack.c.l.b16 %v124
  %v487 = vunpack.c.l.b16 %v125
  %v488 = vunpack.c.l.b16 %v126
  %v489 = vunpack.c.l.b16 %v127
  %v490 = vunpack.c.l.b16 %v128
  %v491 = vunpack.c.l.b16 %v129
  %v492 = vunpack.c.l.b16 %v130
  %v493 = vunpack.c.l.b16 %v131
  %v494 = vunpack.c.l.b16 %v132
  %v495 = vunpack.c.l.b16 %v133
  %v496 = vunpack.c.l.b16 %v134
  %v497 = vunpack.c.l.b16 %v135
  %v498 = vunpack.c.l.b16 %v136
  %v499 = vunpack.c.l.b16 %v137
  %v500 = vunpack.c.l.b16 %v138
  %v501 = vunpack.c.l.b16 %v139
  %v502 = vunpack.c.l.b16 %v140
  %v503 = vunpack.c.l.b16 %v141
  %v504 = vunpack.c.l.b16 %v142
  %v505 = vunpack.c.l.b16 %v143
  %v506 = vunpack.c.l.b16 %v144
  %v507 = vunpack.c.l.b16 %v145
  %v508 = vunpack.c.l.b16 %v146
  %v509 = vunpack.c.l.b16 %v147
  %v510 = vunpack.c.l.b16 %v148
  %v511 = vunpack.c.l.b16 %v149
  %v512 = vunpack.c.l.b16 %v150
  %v513 = vunpack.c.l.b16 %v151
  %v514 = vunpack.c.l.b16 %v152
  %v515 = vunpack.c.l.b16 %v153
  %v516 = vunpack.c.l.b16 %v154
  %v517 = vunpack.c.l.b16 %v155
  %v518 = vunpack.c.l.b16 %v156
  %v519 = vunpack.c.l.b16 %v157
  %v520 = vunpack.c.l.b16 %v158
  %v521 = vunpack.c.l.b16 %v159
  %v522 = vunpack.c.l.b16 %v160
  %v523 = vpack.c.b16 %v380, %v379
  %v524 = vpack.c.b16 %v382, %v381
  %v525 = vpack.c.b16 %v384, %v383
  %v526 = vpack.c.b16 %v386, %v385
  %v527 = vpack.c.b16 %v388, %v387
  %v528 = vpack.c.b16 %v390, %v389
  %v529 = vpack.c.b16 %v392, %v391
  %v530 = vpack.c.b16 %v394, %v393
  %v531 = vpack.c.b16 %v396, %v395
  %v532 = vpack.c.b16 %v398, %v397
  %v533 = vpack.c.b16 %v400, %v399
  %v534 = vpack.c.b16 %v402, %v401
  %v535 = vpack.c.b16 %v404, %v403
  %v536 = vpack.c.b16 %v406, %v405
  %v537 = vpack.c.b16 %v408, %v407
  %v538 = vpack.c.b16 %v410, %v409
  %v539 = vpack.c.b16 %v412, %v411
  %v540 = vpack.c.b16 %v414, %v413
  %v541 = vpack.c.b16 %v416, %v415
  %v542 = vpack.c.b16 %v418, %v417
  %v543 = vpack.c.b16 %v420, %v419
  %v544 = vpack.c.b16 %v422, %v421
  %v545 = vpack.c.b16 %v424, %v423
  %v546 = vpack.c.b16 %v426, %v425
  %v547 = vpack.c.b16 %v428, %v427
  %v548 = vpack.c.b16 %v430, %v429
  %v549 = vpack.c.b16 %v432, %v431
  %v550 = vpack.c.b16 %v434, %v433
  %v551 = vpack.c.b16 %v436, %v435
  %v552 = vpack.c.b16 %v438, %v437
  %v553 = vpack.c.b16 %v440, %v439
  %v554 = vpack.c.b16 %v442, %v441
  %v555 = vpack.c.b16 %v444, %v443
  %v556 = vpack.c.b16 %v446, %v445
  %v557 = vpack.c.b16 %v448, %v447
  %v558 = vpack.c.b16 %v450, %v449
  %v559 = vpack.c.b16 %v452, %v451
  %v560 = vpack.c.b16 %v454, %v453
  %v561 = vpack.c.b16 %v456, %v455
  %v562 = vpack.c.b16 %v458, %v457
  %v563 = vpack.c.b16 %v460, %v459
  %v564 = vpack.c.b16 %v462, %v461
  %v565 = vpack.c.b16 %v464, %v463
  %v566 = vpack.c.b16 %v466, %v465
  %v567 = vpack.c.b16 %v468, %v467
  %v568 = vpack.c.b16 %v470, %v469
  %v569 = vpack.c.b16 %v472, %v471
  %v570 = vpack.c.b16 %v474, %v473
  %v571 = vpack.c.b16 %v476, %v475
  %v572 = vpack.c.b16 %v478, %v477
  %v573 = vpack.c.b16 %v480, %v479
  %v574 = vpack.c.b16 %v482, %v481
  %v575 = vpack.c.b16 %v484, %v483
  %v576 = vpack.c.b16 %v486, %v485
  %v577 = vpack.c.b16 %v488, %v487
  %v578 = vpack.c.b16 %v490, %v489
  %v579 = vpack.c.b16 %v492, %v491
  %v580 = vpack.c.b16 %v494, %v493
  %v581 = vpack.c.b16 %v496, %v495
  %v582 = vpack.c.b16 %v498, %v497
  %v583 = vpack.c.b16 %v500, %v499
  %v584 = vpack.c.b16 %v502, %v501
  %v585 = vpack.c.b16 %v504, %v503
  %v586 = vpack.c.b16 %v506, %v505
  %v587 = vpack.c.b16 %v508, %v507
  %v588 = vpack.c.b16 %v510, %v509
  %v589 = vpack.c.b16 %v512, %v511
  %v590 = vpack.c.b16 %v514, %v513
  %v591 = vpack.c.b16 %v516, %v515
  %v592 = vpack.c.b16 %v518, %v517
  %v593 = vpack.c.b16 %v520, %v519
  %v594 = vpack.c.b16 %v522, %v521
  %667 = vmatprep.subr.bf16.mxu0 0
  %668 = vmatpush1.bf16.msra.mxu0 %v523
  %669 = vmatprep.subr.bf16.mxu0 0
  %670 = vmatpush1.bf16.msra.mxu0 %v524
  %671 = vmatprep.subr.bf16.mxu0 0
  %672 = vmatpush1.bf16.msra.mxu0 %v525
  %673 = vmatprep.subr.bf16.mxu0 0
  %674 = vmatpush1.bf16.msra.mxu0 %v526
  %675 = vmatprep.subr.bf16.mxu0 0
  %676 = vmatpush1.bf16.msra.mxu0 %v527
  %677 = vmatprep.subr.bf16.mxu0 0
  %678 = vmatpush1.bf16.msra.mxu0 %v528
  %679 = vmatprep.subr.bf16.mxu0 0
  %680 = vmatpush1.bf16.msra.mxu0 %v529
  %681 = vmatprep.subr.bf16.mxu0 0
  %682 = vmatpush1.bf16.msra.mxu0 %v530
  %683 = vmatprep.subr.bf16.mxu0 0
  %684 = vmatpush1.bf16.msra.mxu0 %v531
  %685 = vmatprep.subr.bf16.mxu0 0
  %686 = vmatpush1.bf16.msra.mxu0 %v532
  %687 = vmatprep.subr.bf16.mxu0 0
  %688 = vmatpush1.bf16.msra.mxu0 %v533
  %689 = vmatprep.subr.bf16.mxu0 0
  %690 = vmatpush1.bf16.msra.mxu0 %v534
  %691 = vmatprep.subr.bf16.mxu0 0
  %692 = vmatpush1.bf16.msra.mxu0 %v535
  %693 = vmatprep.subr.bf16.mxu0 0
  %694 = vmatpush1.bf16.msra.mxu0 %v536
  %695 = vmatprep.subr.bf16.mxu0 0
  %696 = vmatpush1.bf16.msra.mxu0 %v537
  %697 = vmatprep.subr.bf16.mxu0 0
  %698 = vmatpush1.bf16.msra.mxu0 %v538
  %699 = vmatprep.mubr.bf16.mxu0 %v200
  %700 = vmatmul.mubr.bf16.gmra.mrb[0].mxu0 %v186
  %v701 = vpop.f32.mrb[0].mxu0
  %v702 = vadd.f32 0.0, %v701
  %v703 = vpop.f32.mrb[0].mxu0
  %v704 = vpop.f32.mrb[0].mxu0
  %v705 = vpop.f32.mrb[0].mxu0
  %706 = vdwg.mxu0
  %707 = vmatprep.subr.bf16.mxu0 0
  %708 = vmatpush1.bf16.msra.mxu0 %v539
  %709 = vmatprep.subr.bf16.mxu0 0
  %710 = vmatpush1.bf16.msra.mxu0 %v540
  %711 = vmatprep.subr.bf16.mxu0 0
  %712 = vmatpush1.bf16.msra.mxu0 %v541
  %713 = vmatprep.subr.bf16.mxu0 0
  %714 = vmatpush1.bf16.msra.mxu0 %v542
  %715 = vmatprep.subr.bf16.mxu0 0
  %716 = vmatpush1.bf16.msra.mxu0 %v543
  %717 = vmatprep.subr.bf16.mxu0 0
  %718 = vmatpush1.bf16.msra.mxu0 %v544
  %719 = vmatprep.subr.bf16.mxu0 0
  %720 = vmatpush1.bf16.msra.mxu0 %v545
  %721 = vmatprep.subr.bf16.mxu0 0
  %722 = vmatpush1.bf16.msra.mxu0 %v546
  %723 = vmatprep.subr.bf16.mxu0 0
  %724 = vmatpush1.bf16.msra.mxu0 %v547
  %725 = vmatprep.subr.bf16.mxu0 0
  %726 = vmatpush1.bf16.msra.mxu0 %v548
  %727 = vmatprep.subr.bf16.mxu0 0
  %728 = vmatpush1.bf16.msra.mxu0 %v549
  %729 = vmatprep.subr.bf16.mxu0 0
  %730 = vmatpush1.bf16.msra.mxu0 %v550
  %731 = vmatprep.subr.bf16.mxu0 0
  %732 = vmatpush1.bf16.msra.mxu0 %v551
  %733 = vmatprep.subr.bf16.mxu0 0
  %734 = vmatpush1.bf16.msra.mxu0 %v552
  %735 = vmatprep.subr.bf16.mxu0 0
  %736 = vmatpush1.bf16.msra.mxu0 %v553
  %737 = vmatprep.subr.bf16.mxu0 0
  %738 = vmatpush1.bf16.msra.mxu0 %v554
  %739 = vmatprep.mubr.bf16.mxu0 %v210
  %740 = vmatmul.mubr.bf16.gmra.mrb[0].mxu0 %v208
  %v741 = vpop.f32.mrb[0].mxu0
  %v742 = vadd.f32 %v702, %v741
  %v743 = vpop.f32.mrb[0].mxu0
  %v744 = vpop.f32.mrb[0].mxu0
  %v745 = vpop.f32.mrb[0].mxu0
  %746 = vdwg.mxu0
  %747 = vmatprep.subr.bf16.mxu0 0
  %748 = vmatpush1.bf16.msra.mxu0 %v555
  %749 = vmatprep.subr.bf16.mxu0 0
  %750 = vmatpush1.bf16.msra.mxu0 %v556
  %751 = vmatprep.subr.bf16.mxu0 0
  %752 = vmatpush1.bf16.msra.mxu0 %v557
  %753 = vmatprep.subr.bf16.mxu0 0
  %754 = vmatpush1.bf16.msra.mxu0 %v558
  %755 = vmatprep.subr.bf16.mxu0 0
  %756 = vmatpush1.bf16.msra.mxu0 %v559
  %757 = vmatprep.subr.bf16.mxu0 0
  %758 = vmatpush1.bf16.msra.mxu0 %v560
  %759 = vmatprep.subr.bf16.mxu0 0
  %760 = vmatpush1.bf16.msra.mxu0 %v561
  %761 = vmatprep.subr.bf16.mxu0 0
  %762 = vmatpush1.bf16.msra.mxu0 %v562
  %763 = vmatprep.subr.bf16.mxu0 0
  %764 = vmatpush1.bf16.msra.mxu0 %v563
  %765 = vmatprep.subr.bf16.mxu0 0
  %766 = vmatpush1.bf16.msra.mxu0 %v564
  %767 = vmatprep.subr.bf16.mxu0 0
  %768 = vmatpush1.bf16.msra.mxu0 %v565
  %769 = vmatprep.subr.bf16.mxu0 0
  %770 = vmatpush1.bf16.msra.mxu0 %v566
  %771 = vmatprep.subr.bf16.mxu0 0
  %772 = vmatpush1.bf16.msra.mxu0 %v567
  %773 = vmatprep.subr.bf16.mxu0 0
  %774 = vmatpush1.bf16.msra.mxu0 %v568
  %775 = vmatprep.subr.bf16.mxu0 0
  %776 = vmatpush1.bf16.msra.mxu0 %v569
  %777 = vmatprep.subr.bf16.mxu0 0
  %778 = vmatpush1.bf16.msra.mxu0 %v570
  %779 = vmatprep.mubr.bf16.mxu0 %v207
  %780 = vmatmul.mubr.bf16.gmra.mrb[0].mxu0 %v193
  %v781 = vpop.f32.mrb[0].mxu0
  %v782 = vadd.f32 %v742, %v781
  %v783 = vpop.f32.mrb[0].mxu0
  %v784 = vpop.f32.mrb[0].mxu0
  %v785 = vpop.f32.mrb[0].mxu0
  %786 = vdwg.mxu0
  %787 = vmatprep.subr.bf16.mxu0 0
  %788 = vmatpush1.bf16.msra.mxu0 %v571
  %789 = vmatprep.subr.bf16.mxu0 0
  %790 = vmatpush1.bf16.msra.mxu0 %v572
  %791 = vmatprep.subr.bf16.mxu0 0
  %792 = vmatpush1.bf16.msra.mxu0 %v573
  %793 = vmatprep.subr.bf16.mxu0 0
  %794 = vmatpush1.bf16.msra.mxu0 %v574
  %795 = vmatprep.subr.bf16.mxu0 0
  %796 = vmatpush1.bf16.msra.mxu0 %v575
  %797 = vmatprep.subr.bf16.mxu0 0
  %798 = vmatpush1.bf16.msra.mxu0 %v576
  %799 = vmatprep.subr.bf16.mxu0 0
  %800 = vmatpush1.bf16.msra.mxu0 %v577
  %801 = vmatprep.subr.bf16.mxu0 0
  %802 = vmatpush1.bf16.msra.mxu0 %v578
  %803 = vmatprep.subr.bf16.mxu0 0
  %804 = vmatpush1.bf16.msra.mxu0 %v579
  %805 = vmatprep.subr.bf16.mxu0 0
  %806 = vmatpush1.bf16.msra.mxu0 %v580
  %807 = vmatprep.subr.bf16.mxu0 0
  %808 = vmatpush1.bf16.msra.mxu0 %v581
  %809 = vmatprep.subr.bf16.mxu0 0
  %810 = vmatpush1.bf16.msra.mxu0 %v582
  %811 = vmatprep.subr.bf16.mxu0 0
  %812 = vmatpush1.bf16.msra.mxu0 %v583
  %813 = vmatprep.subr.bf16.mxu0 0
  %814 = vmatpush1.bf16.msra.mxu0 %v584
  %815 = vmatprep.subr.bf16.mxu0 0
  %816 = vmatpush1.bf16.msra.mxu0 %v585
  %817 = vmatprep.subr.bf16.mxu0 0
  %818 = vmatpush1.bf16.msra.mxu0 %v586
  %819 = vmatprep.mubr.bf16.mxu0 %v211
  %820 = vmatmul.mubr.bf16.gmra.mrb[0].mxu0 %v209
  %v821 = vpop.f32.mrb[0].mxu0
  %v822 = vadd.f32 %v782, %v821
  %v823 = vpop.f32.mrb[0].mxu0
  %v824 = vpop.f32.mrb[0].mxu0
  %v825 = vpop.f32.mrb[0].mxu0
  %826 = vdwg.mxu0
  %827 = vmatprep.subr.bf16.mxu0 0
  %828 = vmatpush1.bf16.msra.mxu0 %v587
  %829 = vmatprep.subr.bf16.mxu0 0
  %830 = vmatpush1.bf16.msra.mxu0 %v588
  %831 = vmatprep.subr.bf16.mxu0 0
  %832 = vmatpush1.bf16.msra.mxu0 %v589
  %833 = vmatprep.subr.bf16.mxu0 0
  %834 = vmatpush1.bf16.msra.mxu0 %v590
  %835 = vmatprep.subr.bf16.mxu0 0
  %836 = vmatpush1.bf16.msra.mxu0 %v591
  %837 = vmatprep.subr.bf16.mxu0 0
  %838 = vmatpush1.bf16.msra.mxu0 %v592
  %839 = vmatprep.subr.bf16.mxu0 0
  %840 = vmatpush1.bf16.msra.mxu0 %v593
  %841 = vmatprep.subr.bf16.mxu0 0
  %842 = vmatpush1.bf16.msra.mxu0 %v594
  %843 = vmatprep.subr.bf16.mxu0 0
  %844 = vmatpush1.bf16.msra.mxu0 0
  %845 = vmatprep.subr.bf16.mxu0 0
  %846 = vmatpush1.bf16.msra.mxu0 0
  %847 = vmatprep.subr.bf16.mxu0 0
  %848 = vmatpush1.bf16.msra.mxu0 0
  %849 = vmatprep.subr.bf16.mxu0 0
  %850 = vmatpush1.bf16.msra.mxu0 0
  %851 = vmatprep.subr.bf16.mxu0 0
  %852 = vmatpush1.bf16.msra.mxu0 0
  %853 = vmatprep.subr.bf16.mxu0 0
  %854 = vmatpush1.bf16.msra.mxu0 0
  %855 = vmatprep.subr.bf16.mxu0 0
  %856 = vmatpush1.bf16.msra.mxu0 0
  %857 = vmatprep.subr.bf16.mxu0 0
  %858 = vmatpush1.bf16.msra.mxu0 0
  %859 = vmatprep.mubr.bf16.mxu0 0
  %860 = vmatmul.mubr.bf16.gmra.mrb[0].mxu0 %v225
  %v861 = vpop.f32.mrb[0].mxu0
  %v862 = vadd.f32 %v822, %v861
  %v863 = vpop.f32.mrb[0].mxu0
  %v864 = vpop.f32.mrb[0].mxu0
  %v865 = vpop.f32.mrb[0].mxu0
  %866 = vdwg.mxu0
  %867 = vst [vmem:[%s2] sm:$0x3] %v862
  %p868 = scmp.eq.s32.totalorder 0, 0
  // Predicated region
  $region10: #{vanilla_encoder_forward.39} parent=0 // pred_check
    %p869 = pneg %p868
  $region11: #{vanilla_encoder_forward.39} parent=0 // pred_check_branch
    %871 = sbr.rel (%p869) target = $region13
  $region12: #{vanilla_encoder_forward.39} parent=0 // pred_region
    %872 = vst [vmem:[%s3] sm:$0x1] 0.0
    %873 = vst [vmem:[%s4] sm:$0x1] 0.0
  $region13: #{vanilla_encoder_forward.39} parent=0 // pred_fallthru
    _
  %v874 = vld [vmem:[%s3] sm:$0x1]
  %vm875 = vcmask 1041408
  %v876 = vsel %vm875, %v862, 0.0
  %v877 = vrot.slane %v876, 4
  %v878 = vadd.f32 %v876, %v877
  %v879 = vrot.slane %v878, 2
  %v880 = vadd.f32 %v878, %v879
  %v881 = vrot.slane %v880, 1
  %v882 = vadd.f32 %v880, %v881
  %v883 = vadd.f32 %v874, %v882
  %884 = vst [vmem:[%s3] sm:$0x1] %v883
  %v885 = vld [vmem:[%s4] sm:$0x1]
  %v886 = vmul.f32 %v862, %v862
  %v887 = vsel %vm875, %v886, 0.0
  %v888 = vrot.slane %v887, 4
  %v889 = vadd.f32 %v887, %v888
  %v890 = vrot.slane %v889, 2
  %v891 = vadd.f32 %v889, %v890
  %v892 = vrot.slane %v891, 1
  %v893 = vadd.f32 %v891, %v892
  %v894 = vadd.f32 %v885, %v893
  %895 = vst [vmem:[%s4] sm:$0x1] %v894
  // Predicated region
  $region14: #{vanilla_encoder_forward.39} parent=0 // pred_check
    _
  $region15: #{vanilla_encoder_forward.39} parent=0 // pred_check_branch
    %897 = sbr.rel (0) target = $region17
  $region16: #{vanilla_encoder_forward.39} parent=0 // pred_region
    _
  $region17: #{vanilla_encoder_forward.39} parent=0 // pred_fallthru
    _
  // Predicated region
  $region18: #{vanilla_encoder_forward.39} parent=0 // pred_check
    _
  $region19: #{vanilla_encoder_forward.39} parent=0 // pred_check_branch
    %899 = sbr.rel (0) target = $region21
  $region20: #{vanilla_encoder_forward.39} parent=0 // pred_region
    _
  $region21: #{vanilla_encoder_forward.39} parent=0 // pred_fallthru
    _
  // Predicated region
  $region22: #{vanilla_encoder_forward.39} parent=0 // pred_check
    _
  $region23: #{vanilla_encoder_forward.39} parent=0 // pred_check_branch
    %901 = sbr.rel (0) target = $region25
  $region24: #{vanilla_encoder_forward.39} parent=0 // pred_region
    _
  $region25: #{vanilla_encoder_forward.39} parent=0 // pred_fallthru
    _
  // Predicated region
  $region26: #{vanilla_encoder_forward.39} parent=0 // pred_check
    _
  $region27: #{vanilla_encoder_forward.39} parent=0 // pred_check_branch
    %903 = sbr.rel (0) target = $region29
  $region28: #{vanilla_encoder_forward.39} parent=0 // pred_region
    _
  $region29: #{vanilla_encoder_forward.39} parent=0 // pred_fallthru
    _
  // Predicated region
  $region30: #{vanilla_encoder_forward.39} parent=0 // pred_check
    _
  $region31: #{vanilla_encoder_forward.39} parent=0 // pred_check_branch
    %905 = sbr.rel (0) target = $region33
  $region32: #{vanilla_encoder_forward.39} parent=0 // pred_region
    _
  $region33: #{vanilla_encoder_forward.39} parent=0 // pred_fallthru
    _
  // Predicated region
  $region34: #{vanilla_encoder_forward.39} parent=0 // pred_check
    _
  $region35: #{vanilla_encoder_forward.39} parent=0 // pred_check_branch
    %907 = sbr.rel (0) target = $region37
  $region36: #{vanilla_encoder_forward.39} parent=0 // pred_region
    _
  $region37: #{vanilla_encoder_forward.39} parent=0 // pred_fallthru
    _

</llo_original>
